<compile_context>
chip_gen: v7x
topology: tpu7x:2x2x1
jax: 0.10.0
libtpu: 0.0.40
codegen_flags: <defaults>
</compile_context>

<pallas_src>
import math
import functools

import jax
import jax.numpy as jnp
from jax.experimental import pallas as pl
from jax.experimental.pallas import tpu as pltpu


# ----------------------------- in-kernel helpers -----------------------------

def _layernorm(x, g, b, eps=1e-6):
    mu = jnp.mean(x, axis=-1, keepdims=True)
    var = jnp.mean((x - mu) ** 2, axis=-1, keepdims=True)
    return (x - mu) * jax.lax.rsqrt(var + eps) * g + b


def _gelu(x):
    return 0.5 * x * (1.0 + jnp.tanh(math.sqrt(2.0 / math.pi) * (x + 0.044715 * x * x * x)))


def _softmax_last(s):
    m = jnp.max(s, axis=-1, keepdims=True)
    e = jnp.exp(s - m)
    return e * pl.reciprocal(jnp.sum(e, axis=-1, keepdims=True), approx=True)


# ------------------------------ fused encoder kernel -------------------------

def _encoder_kernel(num_layers, heads,
                    # data
                    x_ref, abias_ref, keep_ref,
                    # stacked per-layer params
                    lg_ref, lb_ref, wqkv_ref, bqkv_ref, wo_ref, bo_ref,
                    ffg_ref, ffb_ref, w1_ref, b1_ref, w2_ref, b2_ref,
                    # final-stage params
                    ln1g_ref, ln1b_ref, pkw_ref, pkb_ref, pvw_ref, pvb_ref,
                    ln2g_ref, ln2b_ref, efg_ref, efb_ref, ew1_ref, eb1_ref,
                    ew2_ref, eb2_ref,
                    # outputs
                    bv_ref, feat_ref):
    R, T, D = x_ref.shape
    H = heads
    dph = D // H
    M = R * T
    scale = 1.0 / math.sqrt(dph)
    f32, bf16 = jnp.float32, jnp.bfloat16

    x = x_ref[...].reshape(M, D)            # fp32 residual stream for R rows
    abias = abias_ref[...]                  # [R, 1, T] additive key mask (0 real / -1e9 pad)
    keep = keep_ref[...]                    # [R, T, 1] 1.0 real token / 0.0 padding

    # ---------------- transformer_local layers (resident in VMEM) ----------------
    for l in range(num_layers):
        xn = _layernorm(x, lg_ref[l], lb_ref[l])
        qkv = jnp.dot(xn.astype(bf16), wqkv_ref[l],
                      preferred_element_type=f32) + bqkv_ref[l]          # [M, 3D]
        qkv = qkv.reshape(R, T, 3 * D)
        q = qkv[:, :, :D].astype(bf16)
        k = qkv[:, :, D:2 * D].astype(bf16)
        v = qkv[:, :, 2 * D:].astype(bf16)

        ctx_parts = []
        for h in range(H):                   # static head loop, each step batched over R rows
            sl = slice(h * dph, (h + 1) * dph)
            s = jnp.einsum('rqd,rkd->rqk', q[:, :, sl], k[:, :, sl],
                           preferred_element_type=f32)                   # [R, T, T]
            s = s * scale + abias                                        # mask padded keys
            p = _softmax_last(s)
            ctx_parts.append(
                jnp.einsum('rqk,rkd->rqd', p.astype(bf16), v[:, :, sl],
                           preferred_element_type=f32))                  # [R, T, dph]
        ctx = jnp.concatenate(ctx_parts, axis=-1).reshape(M, D)

        attn = jnp.dot(ctx.astype(bf16), wo_ref[l],
                       preferred_element_type=f32) + bo_ref[l]
        h1 = attn + x                                                    # dropout == identity

        # PositionwiseFeedForward (pre-LN, GELU, residual)
        y = _layernorm(h1, ffg_ref[l], ffb_ref[l])
        inter = _gelu(jnp.dot(y.astype(bf16), w1_ref[l],
                              preferred_element_type=f32) + b1_ref[l])
        o = jnp.dot(inter.astype(bf16), w2_ref[l],
                    preferred_element_type=f32) + b2_ref[l]
        x = o + h1

    # ------------- layer_norm1 -> MultiHeadedPooling -> layer_norm2 --------------
    wvec = _layernorm(x, ln1g_ref[...], ln1b_ref[...])                   # [M, D]
    wvec_b = wvec.astype(bf16)
    scores = jnp.dot(wvec_b, pkw_ref[...], preferred_element_type=f32) + pkb_ref[...]   # [M, H]
    values = jnp.dot(wvec_b, pvw_ref[...], preferred_element_type=f32) + pvb_ref[...]   # [M, D]

    scores = scores.reshape(R, T, H) + (keep - 1.0) * 1e9                # mask padded tokens
    m = jnp.max(scores, axis=1, keepdims=True)
    e = jnp.exp(scores - m)
    p = e * pl.reciprocal(jnp.sum(e, axis=1, keepdims=True), approx=True)  # [R, T, H]
    values = values.reshape(R, T, D)

    bv_parts = []
    for h in range(H):
        ph = p[:, :, h:h + 1]                                            # [R, T, 1]
        vh = values[:, :, h * dph:(h + 1) * dph]                         # [R, T, dph]
        ctx = jnp.sum(ph * vh, axis=1, keepdims=True)                    # [R, 1, dph]
        bv_parts.append(_layernorm(ctx, ln2g_ref[...], ln2b_ref[...]))   # layer_norm2
    block_vec = jnp.concatenate(bv_parts, axis=-1)                       # [R, 1, D]
    bv_ref[...] = block_vec

    # --------------- feed_forward(word_vec + block_vec), mask_hier ---------------
    z = (wvec.reshape(R, T, D) + block_vec).reshape(M, D)
    y = _layernorm(z, efg_ref[...], efb_ref[...])
    inter = _gelu(jnp.dot(y.astype(bf16), ew1_ref[...],
                          preferred_element_type=f32) + eb1_ref[...])
    o = jnp.dot(inter.astype(bf16), ew2_ref[...],
                preferred_element_type=f32) + eb2_ref[...]
    feat_ref[...] = (o + z).reshape(R, T, D) * keep                      # mask_hier multiply


# ------------------------------ pallas wrapper --------------------------------

_LAYER_KEYS = ("ln_g", "ln_b", "wqkv", "bqkv", "wo", "bo",
               "ff_g", "ff_b", "w1", "b1", "w2", "b2")

_FINAL_KEYS = ("ln1_g", "ln1_b", "pk_w", "pk_b", "pv_w", "pv_b",
               "ln2_g", "ln2_b", "ff_g", "ff_b", "w1", "b1", "w2", "b2")


def _full_spec(a):
    zeros = (0,) * a.ndim
    return pl.BlockSpec(a.shape, lambda i, _z=zeros: _z)


def _row_block(bn):
    for r in (32, 16, 8):
        if bn >= r:
            return r
    return 8


def _cost_estimate(bn, t, d, f, h, n_layers, bytes_accessed):
    m = bn * t
    dph = d // h
    per_layer = (2 * m * d * 3 * d              # fused QKV projection
                 + 4 * bn * h * t * t * dph      # scores + context
                 + 2 * m * d * d                 # output projection
                 + 4 * m * d * f)                # FFN
    final = 2 * m * d * (h + d) + 2 * bn * h * t * dph + 4 * m * d * f
    flops = n_layers * per_layer + final
    trans = n_layers * (bn * h * t * t + m * f) + (m * h + m * f)
    return pl.CostEstimate(flops=int(flops), transcendentals=int(trans),
                           bytes_accessed=int(bytes_accessed))


def _run_encoder(word_vec, attn_bias, keep_col, layer_params, final_params,
                 *, heads, num_layers, row_block):
    BN_pad, T, D = word_vec.shape
    F = layer_params["w1"].shape[-1]
    R = row_block
    weights = [layer_params[k] for k in _LAYER_KEYS] + [final_params[k] for k in _FINAL_KEYS]

    in_specs = ([pl.BlockSpec((R, T, D), lambda i: (i, 0, 0)),
                 pl.BlockSpec((R, 1, T), lambda i: (i, 0, 0)),
                 pl.BlockSpec((R, T, 1), lambda i: (i, 0, 0))]
                + [_full_spec(w) for w in weights])
    out_shape = (jax.ShapeDtypeStruct((BN_pad, 1, D), jnp.float32),
                 jax.ShapeDtypeStruct((BN_pad, T, D), jnp.float32))
    out_specs = (pl.BlockSpec((R, 1, D), lambda i: (i, 0, 0)),
                 pl.BlockSpec((R, T, D), lambda i: (i, 0, 0)))

    out_bytes = BN_pad * D * 4 + BN_pad * T * D * 4
    in_bytes = sum(int(a.size) * a.dtype.itemsize
                   for a in [word_vec, attn_bias, keep_col] + weights)
    cost = _cost_estimate(BN_pad, T, D, F, heads, num_layers, in_bytes + out_bytes)

    return pl.pallas_call(
        functools.partial(_encoder_kernel, num_layers, heads),
        out_shape=out_shape,
        grid=(BN_pad // R,),
        in_specs=in_specs,
        out_specs=out_specs,
        compiler_params=pltpu.CompilerParams(
            dimension_semantics=("parallel",),          # rows independent -> megacore on v7x
            vmem_limit_bytes=32 * 1024 * 1024),
        cost_estimate=cost,
    )(word_vec, attn_bias, keep_col, *weights)


# ------------------------------- model (glue) ---------------------------------

def sinusoid_pe(max_len, dim):
    position = jnp.arange(max_len, dtype=jnp.float32)[:, None]
    div_term = jnp.exp(jnp.arange(0, dim, 2, dtype=jnp.float32) * -(math.log(10000.0) / dim))
    pe = jnp.zeros((max_len, dim), jnp.float32)
    pe = pe.at[:, 0::2].set(jnp.sin(position * div_term))
    pe = pe.at[:, 1::2].set(jnp.cos(position * div_term))
    return pe


def init_params(key, *, num_layers, d_model, heads, d_ff, vocab_size, max_len=512):
    D, F, H, L = d_model, d_ff, heads, num_layers
    dph = D // H
    keys = jax.random.split(key, 64)
    kit = iter(keys)

    def rnd(shape, scale=0.02):
        return scale * jax.random.normal(next(kit), shape, jnp.float32)

    emb = 0.1 * jax.random.normal(next(kit), (vocab_size, D), jnp.float32)
    emb = emb.at[0].set(0.0)   # padding_idx = 0 row zeroed (nn.Embedding semantics)

    # per-layer weights stacked along a leading L axis; matmul weights cast to bf16
    layers = dict(
        ln_g=jnp.ones((L, 1, D), jnp.float32), ln_b=jnp.zeros((L, 1, D), jnp.float32),
        wqkv=rnd((L, D, 3 * D)).astype(jnp.bfloat16), bqkv=rnd((L, 1, 3 * D), 0.01),
        wo=rnd((L, D, D)).astype(jnp.bfloat16), bo=rnd((L, 1, D), 0.01),
        ff_g=jnp.ones((L, 1, D), jnp.float32), ff_b=jnp.zeros((L, 1, D), jnp.float32),
        w1=rnd((L, D, F)).astype(jnp.bfloat16), b1=rnd((L, 1, F), 0.01),
        w2=rnd((L, F, D)).astype(jnp.bfloat16), b2=rnd((L, 1, D), 0.01),
    )
    final = dict(
        ln1_g=jnp.ones((1, D), jnp.float32), ln1_b=jnp.zeros((1, D), jnp.float32),
        pk_w=rnd((D, H)).astype(jnp.bfloat16), pk_b=rnd((1, H), 0.01),
        pv_w=rnd((D, D)).astype(jnp.bfloat16), pv_b=rnd((1, D), 0.01),
        ln2_g=jnp.ones((1, dph), jnp.float32), ln2_b=jnp.zeros((1, dph), jnp.float32),
        ff_g=jnp.ones((1, D), jnp.float32), ff_b=jnp.zeros((1, D), jnp.float32),
        w1=rnd((D, F)).astype(jnp.bfloat16), b1=rnd((1, F), 0.01),
        w2=rnd((F, D)).astype(jnp.bfloat16), b2=rnd((1, D), 0.01),
    )
    return dict(embedding=emb, pe=sinusoid_pe(max_len, D // 2), layers=layers, final=final)


def new_transformer_encoder_forward(src, params, *, d_model, heads, num_layers, padding_idx=0):
    """src: int32 [B, n_blocks, n_tokens].  Returns (block_vec, src_features, mask_hier)."""
    B, NB, T = src.shape
    D = d_model
    BN = B * NB

    emb = params["embedding"][src]                                   # [B, NB, T, D]
    mask_local = (src != padding_idx)                                # True = real token

    pe = params["pe"]                                                # [max_len, D//2]
    local_pos = jnp.broadcast_to(pe[:T][None, None, :, :], (B, NB, T, D // 2))
    inter_pos = jnp.broadcast_to(pe[:NB][None, :, None, :], (B, NB, T, D // 2))
    combined_pos = jnp.concatenate([local_pos, inter_pos], axis=-1)  # [B, NB, T, D]

    word_vec = (emb * math.sqrt(D) + combined_pos).reshape(BN, T, D).astype(jnp.float32)
    keep = mask_local.reshape(BN, T).astype(jnp.float32)             # 1.0 = real token

    # pad the row axis to a multiple of the per-step row block
    R = _row_block(BN)
    BN_pad = -(-BN // R) * R
    if BN_pad != BN:
        word_vec = jnp.pad(word_vec, ((0, BN_pad - BN), (0, 0), (0, 0)))
        keep = jnp.pad(keep, ((0, BN_pad - BN), (0, 0)))

    attn_bias = ((keep - 1.0) * 1e9).reshape(BN_pad, 1, T)           # 0 real / -1e9 pad
    keep_col = keep.reshape(BN_pad, T, 1)

    block_vec, feats = _run_encoder(word_vec, attn_bias, keep_col,
                                    params["layers"], params["final"],
                                    heads=heads, num_layers=num_layers, row_block=R)

    block_vec = block_vec[:BN, 0, :].reshape(B, NB, D)
    src_features = feats[:BN].reshape(B, NB, T, D)
    mask_hier = mask_local.reshape(BN, T, 1).astype(jnp.float32)
    return block_vec, src_features, mask_hier


# ----------------------------------- main --------------------------------------

if __name__ == "__main__":
    B, NB, T = 2, 3, 8
    d_model, heads, d_ff, num_layers = 32, 4, 64, 2
    vocab_size = 50

    key = jax.random.PRNGKey(0)
    k_tok, k_par = jax.random.split(key)

    src = jax.random.randint(k_tok, (B, NB, T), 1, vocab_size, dtype=jnp.int32)
    # deterministic padding (token id 0 == padding_idx)
    src = src.at[0, 1, 5:].set(0)
    src = src.at[1, 2, 3:].set(0)

    params = init_params(k_par, num_layers=num_layers, d_model=d_model,
                         heads=heads, d_ff=d_ff, vocab_size=vocab_size)

    fwd = jax.jit(functools.partial(new_transformer_encoder_forward,
                                    d_model=d_model, heads=heads, num_layers=num_layers))
    block_vec, src_features, mask_hier = fwd(src, params)
    jax.block_until_ready((block_vec, src_features, mask_hier))

    assert block_vec.shape == (B, NB, d_model)
    assert src_features.shape == (B, NB, T, d_model)
    assert mask_hier.shape == (B * NB, T, 1)
    assert bool(jnp.all(jnp.isfinite(block_vec)))
    assert bool(jnp.all(jnp.isfinite(src_features)))
    # padded token positions of src_features must be exactly zero (mask_hier multiply)
    resid = jnp.sum(jnp.abs(src_features.reshape(B * NB, T, d_model)) * (1.0 - mask_hier))
    assert float(resid) == 0.0
    print("KERNEL_OK")
</pallas_src>

<mosaic_0001>
module attributes {stable_mosaic.version = 11 : i64} {
  func.func @_encoder_kernel(%arg0: i32, %arg1: memref<8x8x32xf32, #tpu.memory_space<vmem>>, %arg2: memref<8x1x8xf32, #tpu.memory_space<vmem>>, %arg3: memref<8x8x1xf32, #tpu.memory_space<vmem>>, %arg4: memref<2x1x32xf32, #tpu.memory_space<vmem>>, %arg5: memref<2x1x32xf32, #tpu.memory_space<vmem>>, %arg6: memref<2x32x96xbf16, #tpu.memory_space<vmem>>, %arg7: memref<2x1x96xf32, #tpu.memory_space<vmem>>, %arg8: memref<2x32x32xbf16, #tpu.memory_space<vmem>>, %arg9: memref<2x1x32xf32, #tpu.memory_space<vmem>>, %arg10: memref<2x1x32xf32, #tpu.memory_space<vmem>>, %arg11: memref<2x1x32xf32, #tpu.memory_space<vmem>>, %arg12: memref<2x32x64xbf16, #tpu.memory_space<vmem>>, %arg13: memref<2x1x64xf32, #tpu.memory_space<vmem>>, %arg14: memref<2x64x32xbf16, #tpu.memory_space<vmem>>, %arg15: memref<2x1x32xf32, #tpu.memory_space<vmem>>, %arg16: memref<1x32xf32, #tpu.memory_space<vmem>>, %arg17: memref<1x32xf32, #tpu.memory_space<vmem>>, %arg18: memref<32x4xbf16, #tpu.memory_space<vmem>>, %arg19: memref<1x4xf32, #tpu.memory_space<vmem>>, %arg20: memref<32x32xbf16, #tpu.memory_space<vmem>>, %arg21: memref<1x32xf32, #tpu.memory_space<vmem>>, %arg22: memref<1x8xf32, #tpu.memory_space<vmem>>, %arg23: memref<1x8xf32, #tpu.memory_space<vmem>>, %arg24: memref<1x32xf32, #tpu.memory_space<vmem>>, %arg25: memref<1x32xf32, #tpu.memory_space<vmem>>, %arg26: memref<32x64xbf16, #tpu.memory_space<vmem>>, %arg27: memref<1x64xf32, #tpu.memory_space<vmem>>, %arg28: memref<64x32xbf16, #tpu.memory_space<vmem>>, %arg29: memref<1x32xf32, #tpu.memory_space<vmem>>, %arg30: memref<8x1x32xf32, #tpu.memory_space<vmem>>, %arg31: memref<8x8x32xf32, #tpu.memory_space<vmem>>) attributes {dimension_semantics = [#tpu.dimension_semantics<parallel>], iteration_bounds = array<i64: 1>, scalar_prefetch = 0 : i64, scratch_operands = 0 : i64, tpu.core_type = #tpu.core_type<tc>, window_params = [{transform_indices = @transform_0, window_bounds = array<i64: 8, 8, 32>}, {transform_indices = @transform_1, window_bounds = array<i64: 8, 1, 8>}, {transform_indices = @transform_2, window_bounds = array<i64: 8, 8, 1>}, {pipeline_mode = #tpu.pipeline_mode<synchronous>, transform_indices = @transform_3, window_bounds = array<i64: 2, 1, 32>}, {pipeline_mode = #tpu.pipeline_mode<synchronous>, transform_indices = @transform_4, window_bounds = array<i64: 2, 1, 32>}, {pipeline_mode = #tpu.pipeline_mode<synchronous>, transform_indices = @transform_5, window_bounds = array<i64: 2, 32, 96>}, {pipeline_mode = #tpu.pipeline_mode<synchronous>, transform_indices = @transform_6, window_bounds = array<i64: 2, 1, 96>}, {pipeline_mode = #tpu.pipeline_mode<synchronous>, transform_indices = @transform_7, window_bounds = array<i64: 2, 32, 32>}, {pipeline_mode = #tpu.pipeline_mode<synchronous>, transform_indices = @transform_8, window_bounds = array<i64: 2, 1, 32>}, {pipeline_mode = #tpu.pipeline_mode<synchronous>, transform_indices = @transform_9, window_bounds = array<i64: 2, 1, 32>}, {pipeline_mode = #tpu.pipeline_mode<synchronous>, transform_indices = @transform_10, window_bounds = array<i64: 2, 1, 32>}, {pipeline_mode = #tpu.pipeline_mode<synchronous>, transform_indices = @transform_11, window_bounds = array<i64: 2, 32, 64>}, {pipeline_mode = #tpu.pipeline_mode<synchronous>, transform_indices = @transform_12, window_bounds = array<i64: 2, 1, 64>}, {pipeline_mode = #tpu.pipeline_mode<synchronous>, transform_indices = @transform_13, window_bounds = array<i64: 2, 64, 32>}, {pipeline_mode = #tpu.pipeline_mode<synchronous>, transform_indices = @transform_14, window_bounds = array<i64: 2, 1, 32>}, {pipeline_mode = #tpu.pipeline_mode<synchronous>, transform_indices = @transform_15, window_bounds = array<i64: 1, 32>}, {pipeline_mode = #tpu.pipeline_mode<synchronous>, transform_indices = @transform_16, window_bounds = array<i64: 1, 32>}, {pipeline_mode = #tpu.pipeline_mode<synchronous>, transform_indices = @transform_17, window_bounds = array<i64: 32, 4>}, {pipeline_mode = #tpu.pipeline_mode<synchronous>, transform_indices = @transform_18, window_bounds = array<i64: 1, 4>}, {pipeline_mode = #tpu.pipeline_mode<synchronous>, transform_indices = @transform_19, window_bounds = array<i64: 32, 32>}, {pipeline_mode = #tpu.pipeline_mode<synchronous>, transform_indices = @transform_20, window_bounds = array<i64: 1, 32>}, {pipeline_mode = #tpu.pipeline_mode<synchronous>, transform_indices = @transform_21, window_bounds = array<i64: 1, 8>}, {pipeline_mode = #tpu.pipeline_mode<synchronous>, transform_indices = @transform_22, window_bounds = array<i64: 1, 8>}, {pipeline_mode = #tpu.pipeline_mode<synchronous>, transform_indices = @transform_23, window_bounds = array<i64: 1, 32>}, {pipeline_mode = #tpu.pipeline_mode<synchronous>, transform_indices = @transform_24, window_bounds = array<i64: 1, 32>}, {pipeline_mode = #tpu.pipeline_mode<synchronous>, transform_indices = @transform_25, window_bounds = array<i64: 32, 64>}, {pipeline_mode = #tpu.pipeline_mode<synchronous>, transform_indices = @transform_26, window_bounds = array<i64: 1, 64>}, {pipeline_mode = #tpu.pipeline_mode<synchronous>, transform_indices = @transform_27, window_bounds = array<i64: 64, 32>}, {pipeline_mode = #tpu.pipeline_mode<synchronous>, transform_indices = @transform_28, window_bounds = array<i64: 1, 32>}, {transform_indices = @transform_29, window_bounds = array<i64: 8, 1, 32>}, {transform_indices = @transform_30, window_bounds = array<i64: 8, 8, 32>}]} {
    %c0 = arith.constant 0 : index
    %c0_0 = arith.constant 0 : index
    %c0_1 = arith.constant 0 : index
    %0 = vector.load %arg1[%c0, %c0_0, %c0_1] : memref<8x8x32xf32, #tpu.memory_space<vmem>>, vector<8x8x32xf32>
    %1 = vector.shape_cast %0 : vector<8x8x32xf32> to vector<64x32xf32>
    %c0_2 = arith.constant 0 : index
    %c0_3 = arith.constant 0 : index
    %c0_4 = arith.constant 0 : index
    %2 = vector.load %arg2[%c0_2, %c0_3, %c0_4] : memref<8x1x8xf32, #tpu.memory_space<vmem>>, vector<8x1x8xf32>
    %c0_5 = arith.constant 0 : index
    %c0_6 = arith.constant 0 : index
    %c0_7 = arith.constant 0 : index
    %3 = vector.load %arg3[%c0_5, %c0_6, %c0_7] : memref<8x8x1xf32, #tpu.memory_space<vmem>>, vector<8x8x1xf32>
    %c0_8 = arith.constant 0 : index
    %c0_9 = arith.constant 0 : index
    %c0_10 = arith.constant 0 : index
    %4 = vector.load %arg4[%c0_8, %c0_9, %c0_10] : memref<2x1x32xf32, #tpu.memory_space<vmem>>, vector<1x1x32xf32>
    %5 = vector.shape_cast %4 : vector<1x1x32xf32> to vector<1x32xf32>
    %c0_11 = arith.constant 0 : index
    %c0_12 = arith.constant 0 : index
    %c0_13 = arith.constant 0 : index
    %6 = vector.load %arg5[%c0_11, %c0_12, %c0_13] : memref<2x1x32xf32, #tpu.memory_space<vmem>>, vector<1x1x32xf32>
    %7 = vector.shape_cast %6 : vector<1x1x32xf32> to vector<1x32xf32>
    %cst = arith.constant dense<0.000000e+00> : vector<64xf32>
    %8 = vector.multi_reduction <add>, %1, %cst [1] : vector<64x32xf32> to vector<64xf32>
    %9 = vector.shape_cast %8 : vector<64xf32> to vector<64x1xf32>
    %cst_14 = arith.constant 3.200000e+01 : f32
    %10 = vector.broadcast %cst_14 : f32 to vector<64x1xf32>
    %11 = arith.divf %9, %10 : vector<64x1xf32>
    %12 = vector.broadcast %11 : vector<64x1xf32> to vector<64x32xf32>
    %13 = arith.subf %1, %12 : vector<64x32xf32>
    %14 = arith.mulf %13, %13 : vector<64x32xf32>
    %cst_15 = arith.constant dense<0.000000e+00> : vector<64xf32>
    %15 = vector.multi_reduction <add>, %14, %cst_15 [1] : vector<64x32xf32> to vector<64xf32>
    %16 = vector.shape_cast %15 : vector<64xf32> to vector<64x1xf32>
    %cst_16 = arith.constant 3.200000e+01 : f32
    %17 = vector.broadcast %cst_16 : f32 to vector<64x1xf32>
    %18 = arith.divf %16, %17 : vector<64x1xf32>
    %19 = vector.broadcast %11 : vector<64x1xf32> to vector<64x32xf32>
    %20 = arith.subf %1, %19 : vector<64x32xf32>
    %cst_17 = arith.constant 9.99999997E-7 : f32
    %21 = vector.broadcast %cst_17 : f32 to vector<64x1xf32>
    %22 = arith.addf %18, %21 : vector<64x1xf32>
    %23 = math.rsqrt %22 : vector<64x1xf32>
    %24 = vector.broadcast %23 : vector<64x1xf32> to vector<64x32xf32>
    %25 = arith.mulf %20, %24 : vector<64x32xf32>
    %26 = vector.broadcast %5 : vector<1x32xf32> to vector<64x32xf32>
    %27 = arith.mulf %25, %26 : vector<64x32xf32>
    %28 = vector.broadcast %7 : vector<1x32xf32> to vector<64x32xf32>
    %29 = arith.addf %27, %28 : vector<64x32xf32>
    %30 = arith.truncf %29 : vector<64x32xf32> to vector<64x32xbf16>
    %c0_18 = arith.constant 0 : index
    %c0_19 = arith.constant 0 : index
    %c0_20 = arith.constant 0 : index
    %31 = vector.load %arg6[%c0_18, %c0_19, %c0_20] : memref<2x32x96xbf16, #tpu.memory_space<vmem>>, vector<1x32x96xbf16>
    %32 = vector.shape_cast %31 : vector<1x32x96xbf16> to vector<32x96xbf16>
    %cst_21 = arith.constant dense<0.000000e+00> : vector<64x96xf32>
    %33 = tpu.matmul %30, %32, %cst_21 {dimension_numbers = #tpu.dot_dimension_numbers<[1], [0], [0], [1], [0, 0, 1, 1], [], []>} : vector<64x32xbf16>, vector<32x96xbf16>, vector<64x96xf32> -> vector<64x96xf32>
    %c0_22 = arith.constant 0 : index
    %c0_23 = arith.constant 0 : index
    %c0_24 = arith.constant 0 : index
    %34 = vector.load %arg7[%c0_22, %c0_23, %c0_24] : memref<2x1x96xf32, #tpu.memory_space<vmem>>, vector<1x1x96xf32>
    %35 = vector.shape_cast %34 : vector<1x1x96xf32> to vector<1x96xf32>
    %36 = vector.broadcast %35 : vector<1x96xf32> to vector<64x96xf32>
    %37 = arith.addf %33, %36 : vector<64x96xf32>
    %38 = vector.shape_cast %37 : vector<64x96xf32> to vector<8x8x96xf32>
    %39 = vector.extract_strided_slice %38 {offsets = [0, 0, 0], sizes = [8, 8, 32], strides = [1, 1, 1]} : vector<8x8x96xf32> to vector<8x8x32xf32>
    %40 = arith.truncf %39 : vector<8x8x32xf32> to vector<8x8x32xbf16>
    %41 = vector.extract_strided_slice %38 {offsets = [0, 0, 32], sizes = [8, 8, 32], strides = [1, 1, 1]} : vector<8x8x96xf32> to vector<8x8x32xf32>
    %42 = arith.truncf %41 : vector<8x8x32xf32> to vector<8x8x32xbf16>
    %43 = vector.extract_strided_slice %38 {offsets = [0, 0, 64], sizes = [8, 8, 32], strides = [1, 1, 1]} : vector<8x8x96xf32> to vector<8x8x32xf32>
    %44 = arith.truncf %43 : vector<8x8x32xf32> to vector<8x8x32xbf16>
    %45 = vector.extract_strided_slice %40 {offsets = [0, 0, 0], sizes = [8, 8, 8], strides = [1, 1, 1]} : vector<8x8x32xbf16> to vector<8x8x8xbf16>
    %46 = vector.extract_strided_slice %42 {offsets = [0, 0, 0], sizes = [8, 8, 8], strides = [1, 1, 1]} : vector<8x8x32xbf16> to vector<8x8x8xbf16>
    "tpu.trace_start"() <{level = 10 : i32, message = "rqd,rkd->rqk"}> : () -> ()
    %cst_25 = arith.constant dense<0.000000e+00> : vector<8x8x8xf32>
    %47 = tpu.matmul %45, %46, %cst_25 {dimension_numbers = #tpu.dot_dimension_numbers<[2], [2], [1], [1], [0, 0, 0, 1, 1, 1], [0], [0]>} : vector<8x8x8xbf16>, vector<8x8x8xbf16>, vector<8x8x8xf32> -> vector<8x8x8xf32>
    "tpu.trace_stop"() : () -> ()
    %cst_26 = arith.constant 0.353553385 : f32
    %48 = vector.broadcast %cst_26 : f32 to vector<8x8x8xf32>
    %49 = arith.mulf %47, %48 : vector<8x8x8xf32>
    %50 = vector.broadcast %2 : vector<8x1x8xf32> to vector<8x8x8xf32>
    %51 = arith.addf %49, %50 : vector<8x8x8xf32>
    %cst_27 = arith.constant dense<0xFF800000> : vector<8x8xf32>
    %52 = vector.multi_reduction <maximumf>, %51, %cst_27 [2] : vector<8x8x8xf32> to vector<8x8xf32>
    %53 = vector.shape_cast %52 : vector<8x8xf32> to vector<8x8x1xf32>
    %54 = vector.broadcast %53 : vector<8x8x1xf32> to vector<8x8x8xf32>
    %55 = arith.subf %51, %54 : vector<8x8x8xf32>
    %56 = math.exp %55 : vector<8x8x8xf32>
    %cst_28 = arith.constant dense<0.000000e+00> : vector<8x8xf32>
    %57 = vector.multi_reduction <add>, %56, %cst_28 [2] : vector<8x8x8xf32> to vector<8x8xf32>
    %58 = vector.shape_cast %57 : vector<8x8xf32> to vector<8x8x1xf32>
    %59 = tpu.reciprocal %58 {approx = true} : vector<8x8x1xf32> -> vector<8x8x1xf32>
    %60 = vector.broadcast %59 : vector<8x8x1xf32> to vector<8x8x8xf32>
    %61 = arith.mulf %56, %60 : vector<8x8x8xf32>
    %62 = arith.truncf %61 : vector<8x8x8xf32> to vector<8x8x8xbf16>
    %63 = vector.extract_strided_slice %44 {offsets = [0, 0, 0], sizes = [8, 8, 8], strides = [1, 1, 1]} : vector<8x8x32xbf16> to vector<8x8x8xbf16>
    "tpu.trace_start"() <{level = 10 : i32, message = "rqk,rkd->rqd"}> : () -> ()
    %cst_29 = arith.constant dense<0.000000e+00> : vector<8x8x8xf32>
    %64 = tpu.matmul %62, %63, %cst_29 {dimension_numbers = #tpu.dot_dimension_numbers<[2], [1], [1], [2], [0, 0, 0, 1, 1, 2], [0], [0]>} : vector<8x8x8xbf16>, vector<8x8x8xbf16>, vector<8x8x8xf32> -> vector<8x8x8xf32>
    "tpu.trace_stop"() : () -> ()
    %65 = vector.extract_strided_slice %40 {offsets = [0, 0, 8], sizes = [8, 8, 8], strides = [1, 1, 1]} : vector<8x8x32xbf16> to vector<8x8x8xbf16>
    %66 = vector.extract_strided_slice %42 {offsets = [0, 0, 8], sizes = [8, 8, 8], strides = [1, 1, 1]} : vector<8x8x32xbf16> to vector<8x8x8xbf16>
    "tpu.trace_start"() <{level = 10 : i32, message = "rqd,rkd->rqk"}> : () -> ()
    %cst_30 = arith.constant dense<0.000000e+00> : vector<8x8x8xf32>
    %67 = tpu.matmul %65, %66, %cst_30 {dimension_numbers = #tpu.dot_dimension_numbers<[2], [2], [1], [1], [0, 0, 0, 1, 1, 1], [0], [0]>} : vector<8x8x8xbf16>, vector<8x8x8xbf16>, vector<8x8x8xf32> -> vector<8x8x8xf32>
    "tpu.trace_stop"() : () -> ()
    %cst_31 = arith.constant 0.353553385 : f32
    %68 = vector.broadcast %cst_31 : f32 to vector<8x8x8xf32>
    %69 = arith.mulf %67, %68 : vector<8x8x8xf32>
    %70 = vector.broadcast %2 : vector<8x1x8xf32> to vector<8x8x8xf32>
    %71 = arith.addf %69, %70 : vector<8x8x8xf32>
    %cst_32 = arith.constant dense<0xFF800000> : vector<8x8xf32>
    %72 = vector.multi_reduction <maximumf>, %71, %cst_32 [2] : vector<8x8x8xf32> to vector<8x8xf32>
    %73 = vector.shape_cast %72 : vector<8x8xf32> to vector<8x8x1xf32>
    %74 = vector.broadcast %73 : vector<8x8x1xf32> to vector<8x8x8xf32>
    %75 = arith.subf %71, %74 : vector<8x8x8xf32>
    %76 = math.exp %75 : vector<8x8x8xf32>
    %cst_33 = arith.constant dense<0.000000e+00> : vector<8x8xf32>
    %77 = vector.multi_reduction <add>, %76, %cst_33 [2] : vector<8x8x8xf32> to vector<8x8xf32>
    %78 = vector.shape_cast %77 : vector<8x8xf32> to vector<8x8x1xf32>
    %79 = tpu.reciprocal %78 {approx = true} : vector<8x8x1xf32> -> vector<8x8x1xf32>
    %80 = vector.broadcast %79 : vector<8x8x1xf32> to vector<8x8x8xf32>
    %81 = arith.mulf %76, %80 : vector<8x8x8xf32>
    %82 = arith.truncf %81 : vector<8x8x8xf32> to vector<8x8x8xbf16>
    %83 = vector.extract_strided_slice %44 {offsets = [0, 0, 8], sizes = [8, 8, 8], strides = [1, 1, 1]} : vector<8x8x32xbf16> to vector<8x8x8xbf16>
    "tpu.trace_start"() <{level = 10 : i32, message = "rqk,rkd->rqd"}> : () -> ()
    %cst_34 = arith.constant dense<0.000000e+00> : vector<8x8x8xf32>
    %84 = tpu.matmul %82, %83, %cst_34 {dimension_numbers = #tpu.dot_dimension_numbers<[2], [1], [1], [2], [0, 0, 0, 1, 1, 2], [0], [0]>} : vector<8x8x8xbf16>, vector<8x8x8xbf16>, vector<8x8x8xf32> -> vector<8x8x8xf32>
    "tpu.trace_stop"() : () -> ()
    %85 = vector.extract_strided_slice %40 {offsets = [0, 0, 16], sizes = [8, 8, 8], strides = [1, 1, 1]} : vector<8x8x32xbf16> to vector<8x8x8xbf16>
    %86 = vector.extract_strided_slice %42 {offsets = [0, 0, 16], sizes = [8, 8, 8], strides = [1, 1, 1]} : vector<8x8x32xbf16> to vector<8x8x8xbf16>
    "tpu.trace_start"() <{level = 10 : i32, message = "rqd,rkd->rqk"}> : () -> ()
    %cst_35 = arith.constant dense<0.000000e+00> : vector<8x8x8xf32>
    %87 = tpu.matmul %85, %86, %cst_35 {dimension_numbers = #tpu.dot_dimension_numbers<[2], [2], [1], [1], [0, 0, 0, 1, 1, 1], [0], [0]>} : vector<8x8x8xbf16>, vector<8x8x8xbf16>, vector<8x8x8xf32> -> vector<8x8x8xf32>
    "tpu.trace_stop"() : () -> ()
    %cst_36 = arith.constant 0.353553385 : f32
    %88 = vector.broadcast %cst_36 : f32 to vector<8x8x8xf32>
    %89 = arith.mulf %87, %88 : vector<8x8x8xf32>
    %90 = vector.broadcast %2 : vector<8x1x8xf32> to vector<8x8x8xf32>
    %91 = arith.addf %89, %90 : vector<8x8x8xf32>
    %cst_37 = arith.constant dense<0xFF800000> : vector<8x8xf32>
    %92 = vector.multi_reduction <maximumf>, %91, %cst_37 [2] : vector<8x8x8xf32> to vector<8x8xf32>
    %93 = vector.shape_cast %92 : vector<8x8xf32> to vector<8x8x1xf32>
    %94 = vector.broadcast %93 : vector<8x8x1xf32> to vector<8x8x8xf32>
    %95 = arith.subf %91, %94 : vector<8x8x8xf32>
    %96 = math.exp %95 : vector<8x8x8xf32>
    %cst_38 = arith.constant dense<0.000000e+00> : vector<8x8xf32>
    %97 = vector.multi_reduction <add>, %96, %cst_38 [2] : vector<8x8x8xf32> to vector<8x8xf32>
    %98 = vector.shape_cast %97 : vector<8x8xf32> to vector<8x8x1xf32>
    %99 = tpu.reciprocal %98 {approx = true} : vector<8x8x1xf32> -> vector<8x8x1xf32>
    %100 = vector.broadcast %99 : vector<8x8x1xf32> to vector<8x8x8xf32>
    %101 = arith.mulf %96, %100 : vector<8x8x8xf32>
    %102 = arith.truncf %101 : vector<8x8x8xf32> to vector<8x8x8xbf16>
    %103 = vector.extract_strided_slice %44 {offsets = [0, 0, 16], sizes = [8, 8, 8], strides = [1, 1, 1]} : vector<8x8x32xbf16> to vector<8x8x8xbf16>
    "tpu.trace_start"() <{level = 10 : i32, message = "rqk,rkd->rqd"}> : () -> ()
    %cst_39 = arith.constant dense<0.000000e+00> : vector<8x8x8xf32>
    %104 = tpu.matmul %102, %103, %cst_39 {dimension_numbers = #tpu.dot_dimension_numbers<[2], [1], [1], [2], [0, 0, 0, 1, 1, 2], [0], [0]>} : vector<8x8x8xbf16>, vector<8x8x8xbf16>, vector<8x8x8xf32> -> vector<8x8x8xf32>
    "tpu.trace_stop"() : () -> ()
    %105 = vector.extract_strided_slice %40 {offsets = [0, 0, 24], sizes = [8, 8, 8], strides = [1, 1, 1]} : vector<8x8x32xbf16> to vector<8x8x8xbf16>
    %106 = vector.extract_strided_slice %42 {offsets = [0, 0, 24], sizes = [8, 8, 8], strides = [1, 1, 1]} : vector<8x8x32xbf16> to vector<8x8x8xbf16>
    "tpu.trace_start"() <{level = 10 : i32, message = "rqd,rkd->rqk"}> : () -> ()
    %cst_40 = arith.constant dense<0.000000e+00> : vector<8x8x8xf32>
    %107 = tpu.matmul %105, %106, %cst_40 {dimension_numbers = #tpu.dot_dimension_numbers<[2], [2], [1], [1], [0, 0, 0, 1, 1, 1], [0], [0]>} : vector<8x8x8xbf16>, vector<8x8x8xbf16>, vector<8x8x8xf32> -> vector<8x8x8xf32>
    "tpu.trace_stop"() : () -> ()
    %cst_41 = arith.constant 0.353553385 : f32
    %108 = vector.broadcast %cst_41 : f32 to vector<8x8x8xf32>
    %109 = arith.mulf %107, %108 : vector<8x8x8xf32>
    %110 = vector.broadcast %2 : vector<8x1x8xf32> to vector<8x8x8xf32>
    %111 = arith.addf %109, %110 : vector<8x8x8xf32>
    %cst_42 = arith.constant dense<0xFF800000> : vector<8x8xf32>
    %112 = vector.multi_reduction <maximumf>, %111, %cst_42 [2] : vector<8x8x8xf32> to vector<8x8xf32>
    %113 = vector.shape_cast %112 : vector<8x8xf32> to vector<8x8x1xf32>
    %114 = vector.broadcast %113 : vector<8x8x1xf32> to vector<8x8x8xf32>
    %115 = arith.subf %111, %114 : vector<8x8x8xf32>
    %116 = math.exp %115 : vector<8x8x8xf32>
    %cst_43 = arith.constant dense<0.000000e+00> : vector<8x8xf32>
    %117 = vector.multi_reduction <add>, %116, %cst_43 [2] : vector<8x8x8xf32> to vector<8x8xf32>
    %118 = vector.shape_cast %117 : vector<8x8xf32> to vector<8x8x1xf32>
    %119 = tpu.reciprocal %118 {approx = true} : vector<8x8x1xf32> -> vector<8x8x1xf32>
    %120 = vector.broadcast %119 : vector<8x8x1xf32> to vector<8x8x8xf32>
    %121 = arith.mulf %116, %120 : vector<8x8x8xf32>
    %122 = arith.truncf %121 : vector<8x8x8xf32> to vector<8x8x8xbf16>
    %123 = vector.extract_strided_slice %44 {offsets = [0, 0, 24], sizes = [8, 8, 8], strides = [1, 1, 1]} : vector<8x8x32xbf16> to vector<8x8x8xbf16>
    "tpu.trace_start"() <{level = 10 : i32, message = "rqk,rkd->rqd"}> : () -> ()
    %cst_44 = arith.constant dense<0.000000e+00> : vector<8x8x8xf32>
    %124 = tpu.matmul %122, %123, %cst_44 {dimension_numbers = #tpu.dot_dimension_numbers<[2], [1], [1], [2], [0, 0, 0, 1, 1, 2], [0], [0]>} : vector<8x8x8xbf16>, vector<8x8x8xbf16>, vector<8x8x8xf32> -> vector<8x8x8xf32>
    "tpu.trace_stop"() : () -> ()
    %125 = tpu.concatenate %64, %84, %104, %124 in 2 : vector<8x8x8xf32>, vector<8x8x8xf32>, vector<8x8x8xf32>, vector<8x8x8xf32> -> vector<8x8x32xf32>
    %126 = vector.shape_cast %125 : vector<8x8x32xf32> to vector<64x32xf32>
    %127 = arith.truncf %126 : vector<64x32xf32> to vector<64x32xbf16>
    %c0_45 = arith.constant 0 : index
    %c0_46 = arith.constant 0 : index
    %c0_47 = arith.constant 0 : index
    %128 = vector.load %arg8[%c0_45, %c0_46, %c0_47] : memref<2x32x32xbf16, #tpu.memory_space<vmem>>, vector<1x32x32xbf16>
    %129 = vector.shape_cast %128 : vector<1x32x32xbf16> to vector<32x32xbf16>
    %cst_48 = arith.constant dense<0.000000e+00> : vector<64x32xf32>
    %130 = tpu.matmul %127, %129, %cst_48 {dimension_numbers = #tpu.dot_dimension_numbers<[1], [0], [0], [1], [0, 0, 1, 1], [], []>} : vector<64x32xbf16>, vector<32x32xbf16>, vector<64x32xf32> -> vector<64x32xf32>
    %c0_49 = arith.constant 0 : index
    %c0_50 = arith.constant 0 : index
    %c0_51 = arith.constant 0 : index
    %131 = vector.load %arg9[%c0_49, %c0_50, %c0_51] : memref<2x1x32xf32, #tpu.memory_space<vmem>>, vector<1x1x32xf32>
    %132 = vector.shape_cast %131 : vector<1x1x32xf32> to vector<1x32xf32>
    %133 = vector.broadcast %132 : vector<1x32xf32> to vector<64x32xf32>
    %134 = arith.addf %130, %133 : vector<64x32xf32>
    %135 = arith.addf %134, %1 : vector<64x32xf32>
    %c0_52 = arith.constant 0 : index
    %c0_53 = arith.constant 0 : index
    %c0_54 = arith.constant 0 : index
    %136 = vector.load %arg10[%c0_52, %c0_53, %c0_54] : memref<2x1x32xf32, #tpu.memory_space<vmem>>, vector<1x1x32xf32>
    %137 = vector.shape_cast %136 : vector<1x1x32xf32> to vector<1x32xf32>
    %c0_55 = arith.constant 0 : index
    %c0_56 = arith.constant 0 : index
    %c0_57 = arith.constant 0 : index
    %138 = vector.load %arg11[%c0_55, %c0_56, %c0_57] : memref<2x1x32xf32, #tpu.memory_space<vmem>>, vector<1x1x32xf32>
    %139 = vector.shape_cast %138 : vector<1x1x32xf32> to vector<1x32xf32>
    %cst_58 = arith.constant dense<0.000000e+00> : vector<64xf32>
    %140 = vector.multi_reduction <add>, %135, %cst_58 [1] : vector<64x32xf32> to vector<64xf32>
    %141 = vector.shape_cast %140 : vector<64xf32> to vector<64x1xf32>
    %cst_59 = arith.constant 3.200000e+01 : f32
    %142 = vector.broadcast %cst_59 : f32 to vector<64x1xf32>
    %143 = arith.divf %141, %142 : vector<64x1xf32>
    %144 = vector.broadcast %143 : vector<64x1xf32> to vector<64x32xf32>
    %145 = arith.subf %135, %144 : vector<64x32xf32>
    %146 = arith.mulf %145, %145 : vector<64x32xf32>
    %cst_60 = arith.constant dense<0.000000e+00> : vector<64xf32>
    %147 = vector.multi_reduction <add>, %146, %cst_60 [1] : vector<64x32xf32> to vector<64xf32>
    %148 = vector.shape_cast %147 : vector<64xf32> to vector<64x1xf32>
    %cst_61 = arith.constant 3.200000e+01 : f32
    %149 = vector.broadcast %cst_61 : f32 to vector<64x1xf32>
    %150 = arith.divf %148, %149 : vector<64x1xf32>
    %151 = vector.broadcast %143 : vector<64x1xf32> to vector<64x32xf32>
    %152 = arith.subf %135, %151 : vector<64x32xf32>
    %cst_62 = arith.constant 9.99999997E-7 : f32
    %153 = vector.broadcast %cst_62 : f32 to vector<64x1xf32>
    %154 = arith.addf %150, %153 : vector<64x1xf32>
    %155 = math.rsqrt %154 : vector<64x1xf32>
    %156 = vector.broadcast %155 : vector<64x1xf32> to vector<64x32xf32>
    %157 = arith.mulf %152, %156 : vector<64x32xf32>
    %158 = vector.broadcast %137 : vector<1x32xf32> to vector<64x32xf32>
    %159 = arith.mulf %157, %158 : vector<64x32xf32>
    %160 = vector.broadcast %139 : vector<1x32xf32> to vector<64x32xf32>
    %161 = arith.addf %159, %160 : vector<64x32xf32>
    %162 = arith.truncf %161 : vector<64x32xf32> to vector<64x32xbf16>
    %c0_63 = arith.constant 0 : index
    %c0_64 = arith.constant 0 : index
    %c0_65 = arith.constant 0 : index
    %163 = vector.load %arg12[%c0_63, %c0_64, %c0_65] : memref<2x32x64xbf16, #tpu.memory_space<vmem>>, vector<1x32x64xbf16>
    %164 = vector.shape_cast %163 : vector<1x32x64xbf16> to vector<32x64xbf16>
    %cst_66 = arith.constant dense<0.000000e+00> : vector<64x64xf32>
    %165 = tpu.matmul %162, %164, %cst_66 {dimension_numbers = #tpu.dot_dimension_numbers<[1], [0], [0], [1], [0, 0, 1, 1], [], []>} : vector<64x32xbf16>, vector<32x64xbf16>, vector<64x64xf32> -> vector<64x64xf32>
    %c0_67 = arith.constant 0 : index
    %c0_68 = arith.constant 0 : index
    %c0_69 = arith.constant 0 : index
    %166 = vector.load %arg13[%c0_67, %c0_68, %c0_69] : memref<2x1x64xf32, #tpu.memory_space<vmem>>, vector<1x1x64xf32>
    %167 = vector.shape_cast %166 : vector<1x1x64xf32> to vector<1x64xf32>
    %168 = vector.broadcast %167 : vector<1x64xf32> to vector<64x64xf32>
    %169 = arith.addf %165, %168 : vector<64x64xf32>
    %cst_70 = arith.constant 5.000000e-01 : f32
    %170 = vector.broadcast %cst_70 : f32 to vector<64x64xf32>
    %171 = arith.mulf %170, %169 : vector<64x64xf32>
    %cst_71 = arith.constant 4.471500e-02 : f32
    %172 = vector.broadcast %cst_71 : f32 to vector<64x64xf32>
    %173 = arith.mulf %172, %169 : vector<64x64xf32>
    %174 = arith.mulf %173, %169 : vector<64x64xf32>
    %175 = arith.mulf %174, %169 : vector<64x64xf32>
    %176 = arith.addf %169, %175 : vector<64x64xf32>
    %cst_72 = arith.constant 0.797884583 : f32
    %177 = vector.broadcast %cst_72 : f32 to vector<64x64xf32>
    %178 = arith.mulf %177, %176 : vector<64x64xf32>
    %179 = math.tanh %178 : vector<64x64xf32>
    %cst_73 = arith.constant 1.000000e+00 : f32
    %180 = vector.broadcast %cst_73 : f32 to vector<64x64xf32>
    %181 = arith.addf %180, %179 : vector<64x64xf32>
    %182 = arith.mulf %171, %181 : vector<64x64xf32>
    %183 = arith.truncf %182 : vector<64x64xf32> to vector<64x64xbf16>
    %c0_74 = arith.constant 0 : index
    %c0_75 = arith.constant 0 : index
    %c0_76 = arith.constant 0 : index
    %184 = vector.load %arg14[%c0_74, %c0_75, %c0_76] : memref<2x64x32xbf16, #tpu.memory_space<vmem>>, vector<1x64x32xbf16>
    %185 = vector.shape_cast %184 : vector<1x64x32xbf16> to vector<64x32xbf16>
    %cst_77 = arith.constant dense<0.000000e+00> : vector<64x32xf32>
    %186 = tpu.matmul %183, %185, %cst_77 {dimension_numbers = #tpu.dot_dimension_numbers<[1], [0], [0], [1], [0, 0, 1, 1], [], []>} : vector<64x64xbf16>, vector<64x32xbf16>, vector<64x32xf32> -> vector<64x32xf32>
    %c0_78 = arith.constant 0 : index
    %c0_79 = arith.constant 0 : index
    %c0_80 = arith.constant 0 : index
    %187 = vector.load %arg15[%c0_78, %c0_79, %c0_80] : memref<2x1x32xf32, #tpu.memory_space<vmem>>, vector<1x1x32xf32>
    %188 = vector.shape_cast %187 : vector<1x1x32xf32> to vector<1x32xf32>
    %189 = vector.broadcast %188 : vector<1x32xf32> to vector<64x32xf32>
    %190 = arith.addf %186, %189 : vector<64x32xf32>
    %191 = arith.addf %190, %135 : vector<64x32xf32>
    %c1 = arith.constant 1 : index
    %c0_81 = arith.constant 0 : index
    %c0_82 = arith.constant 0 : index
    %192 = vector.load %arg4[%c1, %c0_81, %c0_82] : memref<2x1x32xf32, #tpu.memory_space<vmem>>, vector<1x1x32xf32>
    %193 = vector.shape_cast %192 : vector<1x1x32xf32> to vector<1x32xf32>
    %c1_83 = arith.constant 1 : index
    %c0_84 = arith.constant 0 : index
    %c0_85 = arith.constant 0 : index
    %194 = vector.load %arg5[%c1_83, %c0_84, %c0_85] : memref<2x1x32xf32, #tpu.memory_space<vmem>>, vector<1x1x32xf32>
    %195 = vector.shape_cast %194 : vector<1x1x32xf32> to vector<1x32xf32>
    %cst_86 = arith.constant dense<0.000000e+00> : vector<64xf32>
    %196 = vector.multi_reduction <add>, %191, %cst_86 [1] : vector<64x32xf32> to vector<64xf32>
    %197 = vector.shape_cast %196 : vector<64xf32> to vector<64x1xf32>
    %cst_87 = arith.constant 3.200000e+01 : f32
    %198 = vector.broadcast %cst_87 : f32 to vector<64x1xf32>
    %199 = arith.divf %197, %198 : vector<64x1xf32>
    %200 = vector.broadcast %199 : vector<64x1xf32> to vector<64x32xf32>
    %201 = arith.subf %191, %200 : vector<64x32xf32>
    %202 = arith.mulf %201, %201 : vector<64x32xf32>
    %cst_88 = arith.constant dense<0.000000e+00> : vector<64xf32>
    %203 = vector.multi_reduction <add>, %202, %cst_88 [1] : vector<64x32xf32> to vector<64xf32>
    %204 = vector.shape_cast %203 : vector<64xf32> to vector<64x1xf32>
    %cst_89 = arith.constant 3.200000e+01 : f32
    %205 = vector.broadcast %cst_89 : f32 to vector<64x1xf32>
    %206 = arith.divf %204, %205 : vector<64x1xf32>
    %207 = vector.broadcast %199 : vector<64x1xf32> to vector<64x32xf32>
    %208 = arith.subf %191, %207 : vector<64x32xf32>
    %cst_90 = arith.constant 9.99999997E-7 : f32
    %209 = vector.broadcast %cst_90 : f32 to vector<64x1xf32>
    %210 = arith.addf %206, %209 : vector<64x1xf32>
    %211 = math.rsqrt %210 : vector<64x1xf32>
    %212 = vector.broadcast %211 : vector<64x1xf32> to vector<64x32xf32>
    %213 = arith.mulf %208, %212 : vector<64x32xf32>
    %214 = vector.broadcast %193 : vector<1x32xf32> to vector<64x32xf32>
    %215 = arith.mulf %213, %214 : vector<64x32xf32>
    %216 = vector.broadcast %195 : vector<1x32xf32> to vector<64x32xf32>
    %217 = arith.addf %215, %216 : vector<64x32xf32>
    %218 = arith.truncf %217 : vector<64x32xf32> to vector<64x32xbf16>
    %c1_91 = arith.constant 1 : index
    %c0_92 = arith.constant 0 : index
    %c0_93 = arith.constant 0 : index
    %219 = vector.load %arg6[%c1_91, %c0_92, %c0_93] : memref<2x32x96xbf16, #tpu.memory_space<vmem>>, vector<1x32x96xbf16>
    %220 = vector.shape_cast %219 : vector<1x32x96xbf16> to vector<32x96xbf16>
    %cst_94 = arith.constant dense<0.000000e+00> : vector<64x96xf32>
    %221 = tpu.matmul %218, %220, %cst_94 {dimension_numbers = #tpu.dot_dimension_numbers<[1], [0], [0], [1], [0, 0, 1, 1], [], []>} : vector<64x32xbf16>, vector<32x96xbf16>, vector<64x96xf32> -> vector<64x96xf32>
    %c1_95 = arith.constant 1 : index
    %c0_96 = arith.constant 0 : index
    %c0_97 = arith.constant 0 : index
    %222 = vector.load %arg7[%c1_95, %c0_96, %c0_97] : memref<2x1x96xf32, #tpu.memory_space<vmem>>, vector<1x1x96xf32>
    %223 = vector.shape_cast %222 : vector<1x1x96xf32> to vector<1x96xf32>
    %224 = vector.broadcast %223 : vector<1x96xf32> to vector<64x96xf32>
    %225 = arith.addf %221, %224 : vector<64x96xf32>
    %226 = vector.shape_cast %225 : vector<64x96xf32> to vector<8x8x96xf32>
    %227 = vector.extract_strided_slice %226 {offsets = [0, 0, 0], sizes = [8, 8, 32], strides = [1, 1, 1]} : vector<8x8x96xf32> to vector<8x8x32xf32>
    %228 = arith.truncf %227 : vector<8x8x32xf32> to vector<8x8x32xbf16>
    %229 = vector.extract_strided_slice %226 {offsets = [0, 0, 32], sizes = [8, 8, 32], strides = [1, 1, 1]} : vector<8x8x96xf32> to vector<8x8x32xf32>
    %230 = arith.truncf %229 : vector<8x8x32xf32> to vector<8x8x32xbf16>
    %231 = vector.extract_strided_slice %226 {offsets = [0, 0, 64], sizes = [8, 8, 32], strides = [1, 1, 1]} : vector<8x8x96xf32> to vector<8x8x32xf32>
    %232 = arith.truncf %231 : vector<8x8x32xf32> to vector<8x8x32xbf16>
    %233 = vector.extract_strided_slice %228 {offsets = [0, 0, 0], sizes = [8, 8, 8], strides = [1, 1, 1]} : vector<8x8x32xbf16> to vector<8x8x8xbf16>
    %234 = vector.extract_strided_slice %230 {offsets = [0, 0, 0], sizes = [8, 8, 8], strides = [1, 1, 1]} : vector<8x8x32xbf16> to vector<8x8x8xbf16>
    "tpu.trace_start"() <{level = 10 : i32, message = "rqd,rkd->rqk"}> : () -> ()
    %cst_98 = arith.constant dense<0.000000e+00> : vector<8x8x8xf32>
    %235 = tpu.matmul %233, %234, %cst_98 {dimension_numbers = #tpu.dot_dimension_numbers<[2], [2], [1], [1], [0, 0, 0, 1, 1, 1], [0], [0]>} : vector<8x8x8xbf16>, vector<8x8x8xbf16>, vector<8x8x8xf32> -> vector<8x8x8xf32>
    "tpu.trace_stop"() : () -> ()
    %cst_99 = arith.constant 0.353553385 : f32
    %236 = vector.broadcast %cst_99 : f32 to vector<8x8x8xf32>
    %237 = arith.mulf %235, %236 : vector<8x8x8xf32>
    %238 = vector.broadcast %2 : vector<8x1x8xf32> to vector<8x8x8xf32>
    %239 = arith.addf %237, %238 : vector<8x8x8xf32>
    %cst_100 = arith.constant dense<0xFF800000> : vector<8x8xf32>
    %240 = vector.multi_reduction <maximumf>, %239, %cst_100 [2] : vector<8x8x8xf32> to vector<8x8xf32>
    %241 = vector.shape_cast %240 : vector<8x8xf32> to vector<8x8x1xf32>
    %242 = vector.broadcast %241 : vector<8x8x1xf32> to vector<8x8x8xf32>
    %243 = arith.subf %239, %242 : vector<8x8x8xf32>
    %244 = math.exp %243 : vector<8x8x8xf32>
    %cst_101 = arith.constant dense<0.000000e+00> : vector<8x8xf32>
    %245 = vector.multi_reduction <add>, %244, %cst_101 [2] : vector<8x8x8xf32> to vector<8x8xf32>
    %246 = vector.shape_cast %245 : vector<8x8xf32> to vector<8x8x1xf32>
    %247 = tpu.reciprocal %246 {approx = true} : vector<8x8x1xf32> -> vector<8x8x1xf32>
    %248 = vector.broadcast %247 : vector<8x8x1xf32> to vector<8x8x8xf32>
    %249 = arith.mulf %244, %248 : vector<8x8x8xf32>
    %250 = arith.truncf %249 : vector<8x8x8xf32> to vector<8x8x8xbf16>
    %251 = vector.extract_strided_slice %232 {offsets = [0, 0, 0], sizes = [8, 8, 8], strides = [1, 1, 1]} : vector<8x8x32xbf16> to vector<8x8x8xbf16>
    "tpu.trace_start"() <{level = 10 : i32, message = "rqk,rkd->rqd"}> : () -> ()
    %cst_102 = arith.constant dense<0.000000e+00> : vector<8x8x8xf32>
    %252 = tpu.matmul %250, %251, %cst_102 {dimension_numbers = #tpu.dot_dimension_numbers<[2], [1], [1], [2], [0, 0, 0, 1, 1, 2], [0], [0]>} : vector<8x8x8xbf16>, vector<8x8x8xbf16>, vector<8x8x8xf32> -> vector<8x8x8xf32>
    "tpu.trace_stop"() : () -> ()
    %253 = vector.extract_strided_slice %228 {offsets = [0, 0, 8], sizes = [8, 8, 8], strides = [1, 1, 1]} : vector<8x8x32xbf16> to vector<8x8x8xbf16>
    %254 = vector.extract_strided_slice %230 {offsets = [0, 0, 8], sizes = [8, 8, 8], strides = [1, 1, 1]} : vector<8x8x32xbf16> to vector<8x8x8xbf16>
    "tpu.trace_start"() <{level = 10 : i32, message = "rqd,rkd->rqk"}> : () -> ()
    %cst_103 = arith.constant dense<0.000000e+00> : vector<8x8x8xf32>
    %255 = tpu.matmul %253, %254, %cst_103 {dimension_numbers = #tpu.dot_dimension_numbers<[2], [2], [1], [1], [0, 0, 0, 1, 1, 1], [0], [0]>} : vector<8x8x8xbf16>, vector<8x8x8xbf16>, vector<8x8x8xf32> -> vector<8x8x8xf32>
    "tpu.trace_stop"() : () -> ()
    %cst_104 = arith.constant 0.353553385 : f32
    %256 = vector.broadcast %cst_104 : f32 to vector<8x8x8xf32>
    %257 = arith.mulf %255, %256 : vector<8x8x8xf32>
    %258 = vector.broadcast %2 : vector<8x1x8xf32> to vector<8x8x8xf32>
    %259 = arith.addf %257, %258 : vector<8x8x8xf32>
    %cst_105 = arith.constant dense<0xFF800000> : vector<8x8xf32>
    %260 = vector.multi_reduction <maximumf>, %259, %cst_105 [2] : vector<8x8x8xf32> to vector<8x8xf32>
    %261 = vector.shape_cast %260 : vector<8x8xf32> to vector<8x8x1xf32>
    %262 = vector.broadcast %261 : vector<8x8x1xf32> to vector<8x8x8xf32>
    %263 = arith.subf %259, %262 : vector<8x8x8xf32>
    %264 = math.exp %263 : vector<8x8x8xf32>
    %cst_106 = arith.constant dense<0.000000e+00> : vector<8x8xf32>
    %265 = vector.multi_reduction <add>, %264, %cst_106 [2] : vector<8x8x8xf32> to vector<8x8xf32>
    %266 = vector.shape_cast %265 : vector<8x8xf32> to vector<8x8x1xf32>
    %267 = tpu.reciprocal %266 {approx = true} : vector<8x8x1xf32> -> vector<8x8x1xf32>
    %268 = vector.broadcast %267 : vector<8x8x1xf32> to vector<8x8x8xf32>
    %269 = arith.mulf %264, %268 : vector<8x8x8xf32>
    %270 = arith.truncf %269 : vector<8x8x8xf32> to vector<8x8x8xbf16>
    %271 = vector.extract_strided_slice %232 {offsets = [0, 0, 8], sizes = [8, 8, 8], strides = [1, 1, 1]} : vector<8x8x32xbf16> to vector<8x8x8xbf16>
    "tpu.trace_start"() <{level = 10 : i32, message = "rqk,rkd->rqd"}> : () -> ()
    %cst_107 = arith.constant dense<0.000000e+00> : vector<8x8x8xf32>
    %272 = tpu.matmul %270, %271, %cst_107 {dimension_numbers = #tpu.dot_dimension_numbers<[2], [1], [1], [2], [0, 0, 0, 1, 1, 2], [0], [0]>} : vector<8x8x8xbf16>, vector<8x8x8xbf16>, vector<8x8x8xf32> -> vector<8x8x8xf32>
    "tpu.trace_stop"() : () -> ()
    %273 = vector.extract_strided_slice %228 {offsets = [0, 0, 16], sizes = [8, 8, 8], strides = [1, 1, 1]} : vector<8x8x32xbf16> to vector<8x8x8xbf16>
    %274 = vector.extract_strided_slice %230 {offsets = [0, 0, 16], sizes = [8, 8, 8], strides = [1, 1, 1]} : vector<8x8x32xbf16> to vector<8x8x8xbf16>
    "tpu.trace_start"() <{level = 10 : i32, message = "rqd,rkd->rqk"}> : () -> ()
    %cst_108 = arith.constant dense<0.000000e+00> : vector<8x8x8xf32>
    %275 = tpu.matmul %273, %274, %cst_108 {dimension_numbers = #tpu.dot_dimension_numbers<[2], [2], [1], [1], [0, 0, 0, 1, 1, 1], [0], [0]>} : vector<8x8x8xbf16>, vector<8x8x8xbf16>, vector<8x8x8xf32> -> vector<8x8x8xf32>
    "tpu.trace_stop"() : () -> ()
    %cst_109 = arith.constant 0.353553385 : f32
    %276 = vector.broadcast %cst_109 : f32 to vector<8x8x8xf32>
    %277 = arith.mulf %275, %276 : vector<8x8x8xf32>
    %278 = vector.broadcast %2 : vector<8x1x8xf32> to vector<8x8x8xf32>
    %279 = arith.addf %277, %278 : vector<8x8x8xf32>
    %cst_110 = arith.constant dense<0xFF800000> : vector<8x8xf32>
    %280 = vector.multi_reduction <maximumf>, %279, %cst_110 [2] : vector<8x8x8xf32> to vector<8x8xf32>
    %281 = vector.shape_cast %280 : vector<8x8xf32> to vector<8x8x1xf32>
    %282 = vector.broadcast %281 : vector<8x8x1xf32> to vector<8x8x8xf32>
    %283 = arith.subf %279, %282 : vector<8x8x8xf32>
    %284 = math.exp %283 : vector<8x8x8xf32>
    %cst_111 = arith.constant dense<0.000000e+00> : vector<8x8xf32>
    %285 = vector.multi_reduction <add>, %284, %cst_111 [2] : vector<8x8x8xf32> to vector<8x8xf32>
    %286 = vector.shape_cast %285 : vector<8x8xf32> to vector<8x8x1xf32>
    %287 = tpu.reciprocal %286 {approx = true} : vector<8x8x1xf32> -> vector<8x8x1xf32>
    %288 = vector.broadcast %287 : vector<8x8x1xf32> to vector<8x8x8xf32>
    %289 = arith.mulf %284, %288 : vector<8x8x8xf32>
    %290 = arith.truncf %289 : vector<8x8x8xf32> to vector<8x8x8xbf16>
    %291 = vector.extract_strided_slice %232 {offsets = [0, 0, 16], sizes = [8, 8, 8], strides = [1, 1, 1]} : vector<8x8x32xbf16> to vector<8x8x8xbf16>
    "tpu.trace_start"() <{level = 10 : i32, message = "rqk,rkd->rqd"}> : () -> ()
    %cst_112 = arith.constant dense<0.000000e+00> : vector<8x8x8xf32>
    %292 = tpu.matmul %290, %291, %cst_112 {dimension_numbers = #tpu.dot_dimension_numbers<[2], [1], [1], [2], [0, 0, 0, 1, 1, 2], [0], [0]>} : vector<8x8x8xbf16>, vector<8x8x8xbf16>, vector<8x8x8xf32> -> vector<8x8x8xf32>
    "tpu.trace_stop"() : () -> ()
    %293 = vector.extract_strided_slice %228 {offsets = [0, 0, 24], sizes = [8, 8, 8], strides = [1, 1, 1]} : vector<8x8x32xbf16> to vector<8x8x8xbf16>
    %294 = vector.extract_strided_slice %230 {offsets = [0, 0, 24], sizes = [8, 8, 8], strides = [1, 1, 1]} : vector<8x8x32xbf16> to vector<8x8x8xbf16>
    "tpu.trace_start"() <{level = 10 : i32, message = "rqd,rkd->rqk"}> : () -> ()
    %cst_113 = arith.constant dense<0.000000e+00> : vector<8x8x8xf32>
    %295 = tpu.matmul %293, %294, %cst_113 {dimension_numbers = #tpu.dot_dimension_numbers<[2], [2], [1], [1], [0, 0, 0, 1, 1, 1], [0], [0]>} : vector<8x8x8xbf16>, vector<8x8x8xbf16>, vector<8x8x8xf32> -> vector<8x8x8xf32>
    "tpu.trace_stop"() : () -> ()
    %cst_114 = arith.constant 0.353553385 : f32
    %296 = vector.broadcast %cst_114 : f32 to vector<8x8x8xf32>
    %297 = arith.mulf %295, %296 : vector<8x8x8xf32>
    %298 = vector.broadcast %2 : vector<8x1x8xf32> to vector<8x8x8xf32>
    %299 = arith.addf %297, %298 : vector<8x8x8xf32>
    %cst_115 = arith.constant dense<0xFF800000> : vector<8x8xf32>
    %300 = vector.multi_reduction <maximumf>, %299, %cst_115 [2] : vector<8x8x8xf32> to vector<8x8xf32>
    %301 = vector.shape_cast %300 : vector<8x8xf32> to vector<8x8x1xf32>
    %302 = vector.broadcast %301 : vector<8x8x1xf32> to vector<8x8x8xf32>
    %303 = arith.subf %299, %302 : vector<8x8x8xf32>
    %304 = math.exp %303 : vector<8x8x8xf32>
    %cst_116 = arith.constant dense<0.000000e+00> : vector<8x8xf32>
    %305 = vector.multi_reduction <add>, %304, %cst_116 [2] : vector<8x8x8xf32> to vector<8x8xf32>
    %306 = vector.shape_cast %305 : vector<8x8xf32> to vector<8x8x1xf32>
    %307 = tpu.reciprocal %306 {approx = true} : vector<8x8x1xf32> -> vector<8x8x1xf32>
    %308 = vector.broadcast %307 : vector<8x8x1xf32> to vector<8x8x8xf32>
    %309 = arith.mulf %304, %308 : vector<8x8x8xf32>
    %310 = arith.truncf %309 : vector<8x8x8xf32> to vector<8x8x8xbf16>
    %311 = vector.extract_strided_slice %232 {offsets = [0, 0, 24], sizes = [8, 8, 8], strides = [1, 1, 1]} : vector<8x8x32xbf16> to vector<8x8x8xbf16>
    "tpu.trace_start"() <{level = 10 : i32, message = "rqk,rkd->rqd"}> : () -> ()
    %cst_117 = arith.constant dense<0.000000e+00> : vector<8x8x8xf32>
    %312 = tpu.matmul %310, %311, %cst_117 {dimension_numbers = #tpu.dot_dimension_numbers<[2], [1], [1], [2], [0, 0, 0, 1, 1, 2], [0], [0]>} : vector<8x8x8xbf16>, vector<8x8x8xbf16>, vector<8x8x8xf32> -> vector<8x8x8xf32>
    "tpu.trace_stop"() : () -> ()
    %313 = tpu.concatenate %252, %272, %292, %312 in 2 : vector<8x8x8xf32>, vector<8x8x8xf32>, vector<8x8x8xf32>, vector<8x8x8xf32> -> vector<8x8x32xf32>
    %314 = vector.shape_cast %313 : vector<8x8x32xf32> to vector<64x32xf32>
    %315 = arith.truncf %314 : vector<64x32xf32> to vector<64x32xbf16>
    %c1_118 = arith.constant 1 : index
    %c0_119 = arith.constant 0 : index
    %c0_120 = arith.constant 0 : index
    %316 = vector.load %arg8[%c1_118, %c0_119, %c0_120] : memref<2x32x32xbf16, #tpu.memory_space<vmem>>, vector<1x32x32xbf16>
    %317 = vector.shape_cast %316 : vector<1x32x32xbf16> to vector<32x32xbf16>
    %cst_121 = arith.constant dense<0.000000e+00> : vector<64x32xf32>
    %318 = tpu.matmul %315, %317, %cst_121 {dimension_numbers = #tpu.dot_dimension_numbers<[1], [0], [0], [1], [0, 0, 1, 1], [], []>} : vector<64x32xbf16>, vector<32x32xbf16>, vector<64x32xf32> -> vector<64x32xf32>
    %c1_122 = arith.constant 1 : index
    %c0_123 = arith.constant 0 : index
    %c0_124 = arith.constant 0 : index
    %319 = vector.load %arg9[%c1_122, %c0_123, %c0_124] : memref<2x1x32xf32, #tpu.memory_space<vmem>>, vector<1x1x32xf32>
    %320 = vector.shape_cast %319 : vector<1x1x32xf32> to vector<1x32xf32>
    %321 = vector.broadcast %320 : vector<1x32xf32> to vector<64x32xf32>
    %322 = arith.addf %318, %321 : vector<64x32xf32>
    %323 = arith.addf %322, %191 : vector<64x32xf32>
    %c1_125 = arith.constant 1 : index
    %c0_126 = arith.constant 0 : index
    %c0_127 = arith.constant 0 : index
    %324 = vector.load %arg10[%c1_125, %c0_126, %c0_127] : memref<2x1x32xf32, #tpu.memory_space<vmem>>, vector<1x1x32xf32>
    %325 = vector.shape_cast %324 : vector<1x1x32xf32> to vector<1x32xf32>
    %c1_128 = arith.constant 1 : index
    %c0_129 = arith.constant 0 : index
    %c0_130 = arith.constant 0 : index
    %326 = vector.load %arg11[%c1_128, %c0_129, %c0_130] : memref<2x1x32xf32, #tpu.memory_space<vmem>>, vector<1x1x32xf32>
    %327 = vector.shape_cast %326 : vector<1x1x32xf32> to vector<1x32xf32>
    %cst_131 = arith.constant dense<0.000000e+00> : vector<64xf32>
    %328 = vector.multi_reduction <add>, %323, %cst_131 [1] : vector<64x32xf32> to vector<64xf32>
    %329 = vector.shape_cast %328 : vector<64xf32> to vector<64x1xf32>
    %cst_132 = arith.constant 3.200000e+01 : f32
    %330 = vector.broadcast %cst_132 : f32 to vector<64x1xf32>
    %331 = arith.divf %329, %330 : vector<64x1xf32>
    %332 = vector.broadcast %331 : vector<64x1xf32> to vector<64x32xf32>
    %333 = arith.subf %323, %332 : vector<64x32xf32>
    %334 = arith.mulf %333, %333 : vector<64x32xf32>
    %cst_133 = arith.constant dense<0.000000e+00> : vector<64xf32>
    %335 = vector.multi_reduction <add>, %334, %cst_133 [1] : vector<64x32xf32> to vector<64xf32>
    %336 = vector.shape_cast %335 : vector<64xf32> to vector<64x1xf32>
    %cst_134 = arith.constant 3.200000e+01 : f32
    %337 = vector.broadcast %cst_134 : f32 to vector<64x1xf32>
    %338 = arith.divf %336, %337 : vector<64x1xf32>
    %339 = vector.broadcast %331 : vector<64x1xf32> to vector<64x32xf32>
    %340 = arith.subf %323, %339 : vector<64x32xf32>
    %cst_135 = arith.constant 9.99999997E-7 : f32
    %341 = vector.broadcast %cst_135 : f32 to vector<64x1xf32>
    %342 = arith.addf %338, %341 : vector<64x1xf32>
    %343 = math.rsqrt %342 : vector<64x1xf32>
    %344 = vector.broadcast %343 : vector<64x1xf32> to vector<64x32xf32>
    %345 = arith.mulf %340, %344 : vector<64x32xf32>
    %346 = vector.broadcast %325 : vector<1x32xf32> to vector<64x32xf32>
    %347 = arith.mulf %345, %346 : vector<64x32xf32>
    %348 = vector.broadcast %327 : vector<1x32xf32> to vector<64x32xf32>
    %349 = arith.addf %347, %348 : vector<64x32xf32>
    %350 = arith.truncf %349 : vector<64x32xf32> to vector<64x32xbf16>
    %c1_136 = arith.constant 1 : index
    %c0_137 = arith.constant 0 : index
    %c0_138 = arith.constant 0 : index
    %351 = vector.load %arg12[%c1_136, %c0_137, %c0_138] : memref<2x32x64xbf16, #tpu.memory_space<vmem>>, vector<1x32x64xbf16>
    %352 = vector.shape_cast %351 : vector<1x32x64xbf16> to vector<32x64xbf16>
    %cst_139 = arith.constant dense<0.000000e+00> : vector<64x64xf32>
    %353 = tpu.matmul %350, %352, %cst_139 {dimension_numbers = #tpu.dot_dimension_numbers<[1], [0], [0], [1], [0, 0, 1, 1], [], []>} : vector<64x32xbf16>, vector<32x64xbf16>, vector<64x64xf32> -> vector<64x64xf32>
    %c1_140 = arith.constant 1 : index
    %c0_141 = arith.constant 0 : index
    %c0_142 = arith.constant 0 : index
    %354 = vector.load %arg13[%c1_140, %c0_141, %c0_142] : memref<2x1x64xf32, #tpu.memory_space<vmem>>, vector<1x1x64xf32>
    %355 = vector.shape_cast %354 : vector<1x1x64xf32> to vector<1x64xf32>
    %356 = vector.broadcast %355 : vector<1x64xf32> to vector<64x64xf32>
    %357 = arith.addf %353, %356 : vector<64x64xf32>
    %cst_143 = arith.constant 5.000000e-01 : f32
    %358 = vector.broadcast %cst_143 : f32 to vector<64x64xf32>
    %359 = arith.mulf %358, %357 : vector<64x64xf32>
    %cst_144 = arith.constant 4.471500e-02 : f32
    %360 = vector.broadcast %cst_144 : f32 to vector<64x64xf32>
    %361 = arith.mulf %360, %357 : vector<64x64xf32>
    %362 = arith.mulf %361, %357 : vector<64x64xf32>
    %363 = arith.mulf %362, %357 : vector<64x64xf32>
    %364 = arith.addf %357, %363 : vector<64x64xf32>
    %cst_145 = arith.constant 0.797884583 : f32
    %365 = vector.broadcast %cst_145 : f32 to vector<64x64xf32>
    %366 = arith.mulf %365, %364 : vector<64x64xf32>
    %367 = math.tanh %366 : vector<64x64xf32>
    %cst_146 = arith.constant 1.000000e+00 : f32
    %368 = vector.broadcast %cst_146 : f32 to vector<64x64xf32>
    %369 = arith.addf %368, %367 : vector<64x64xf32>
    %370 = arith.mulf %359, %369 : vector<64x64xf32>
    %371 = arith.truncf %370 : vector<64x64xf32> to vector<64x64xbf16>
    %c1_147 = arith.constant 1 : index
    %c0_148 = arith.constant 0 : index
    %c0_149 = arith.constant 0 : index
    %372 = vector.load %arg14[%c1_147, %c0_148, %c0_149] : memref<2x64x32xbf16, #tpu.memory_space<vmem>>, vector<1x64x32xbf16>
    %373 = vector.shape_cast %372 : vector<1x64x32xbf16> to vector<64x32xbf16>
    %cst_150 = arith.constant dense<0.000000e+00> : vector<64x32xf32>
    %374 = tpu.matmul %371, %373, %cst_150 {dimension_numbers = #tpu.dot_dimension_numbers<[1], [0], [0], [1], [0, 0, 1, 1], [], []>} : vector<64x64xbf16>, vector<64x32xbf16>, vector<64x32xf32> -> vector<64x32xf32>
    %c1_151 = arith.constant 1 : index
    %c0_152 = arith.constant 0 : index
    %c0_153 = arith.constant 0 : index
    %375 = vector.load %arg15[%c1_151, %c0_152, %c0_153] : memref<2x1x32xf32, #tpu.memory_space<vmem>>, vector<1x1x32xf32>
    %376 = vector.shape_cast %375 : vector<1x1x32xf32> to vector<1x32xf32>
    %377 = vector.broadcast %376 : vector<1x32xf32> to vector<64x32xf32>
    %378 = arith.addf %374, %377 : vector<64x32xf32>
    %379 = arith.addf %378, %323 : vector<64x32xf32>
    %c0_154 = arith.constant 0 : index
    %c0_155 = arith.constant 0 : index
    %380 = vector.load %arg16[%c0_154, %c0_155] : memref<1x32xf32, #tpu.memory_space<vmem>>, vector<1x32xf32>
    %c0_156 = arith.constant 0 : index
    %c0_157 = arith.constant 0 : index
    %381 = vector.load %arg17[%c0_156, %c0_157] : memref<1x32xf32, #tpu.memory_space<vmem>>, vector<1x32xf32>
    %cst_158 = arith.constant dense<0.000000e+00> : vector<64xf32>
    %382 = vector.multi_reduction <add>, %379, %cst_158 [1] : vector<64x32xf32> to vector<64xf32>
    %383 = vector.shape_cast %382 : vector<64xf32> to vector<64x1xf32>
    %cst_159 = arith.constant 3.200000e+01 : f32
    %384 = vector.broadcast %cst_159 : f32 to vector<64x1xf32>
    %385 = arith.divf %383, %384 : vector<64x1xf32>
    %386 = vector.broadcast %385 : vector<64x1xf32> to vector<64x32xf32>
    %387 = arith.subf %379, %386 : vector<64x32xf32>
    %388 = arith.mulf %387, %387 : vector<64x32xf32>
    %cst_160 = arith.constant dense<0.000000e+00> : vector<64xf32>
    %389 = vector.multi_reduction <add>, %388, %cst_160 [1] : vector<64x32xf32> to vector<64xf32>
    %390 = vector.shape_cast %389 : vector<64xf32> to vector<64x1xf32>
    %cst_161 = arith.constant 3.200000e+01 : f32
    %391 = vector.broadcast %cst_161 : f32 to vector<64x1xf32>
    %392 = arith.divf %390, %391 : vector<64x1xf32>
    %393 = vector.broadcast %385 : vector<64x1xf32> to vector<64x32xf32>
    %394 = arith.subf %379, %393 : vector<64x32xf32>
    %cst_162 = arith.constant 9.99999997E-7 : f32
    %395 = vector.broadcast %cst_162 : f32 to vector<64x1xf32>
    %396 = arith.addf %392, %395 : vector<64x1xf32>
    %397 = math.rsqrt %396 : vector<64x1xf32>
    %398 = vector.broadcast %397 : vector<64x1xf32> to vector<64x32xf32>
    %399 = arith.mulf %394, %398 : vector<64x32xf32>
    %400 = vector.broadcast %380 : vector<1x32xf32> to vector<64x32xf32>
    %401 = arith.mulf %399, %400 : vector<64x32xf32>
    %402 = vector.broadcast %381 : vector<1x32xf32> to vector<64x32xf32>
    %403 = arith.addf %401, %402 : vector<64x32xf32>
    %404 = arith.truncf %403 : vector<64x32xf32> to vector<64x32xbf16>
    %c0_163 = arith.constant 0 : index
    %c0_164 = arith.constant 0 : index
    %405 = vector.load %arg18[%c0_163, %c0_164] : memref<32x4xbf16, #tpu.memory_space<vmem>>, vector<32x4xbf16>
    %cst_165 = arith.constant dense<0.000000e+00> : vector<64x4xf32>
    %406 = tpu.matmul %404, %405, %cst_165 {dimension_numbers = #tpu.dot_dimension_numbers<[1], [0], [0], [1], [0, 0, 1, 1], [], []>} : vector<64x32xbf16>, vector<32x4xbf16>, vector<64x4xf32> -> vector<64x4xf32>
    %c0_166 = arith.constant 0 : index
    %c0_167 = arith.constant 0 : index
    %407 = vector.load %arg19[%c0_166, %c0_167] : memref<1x4xf32, #tpu.memory_space<vmem>>, vector<1x4xf32>
    %408 = vector.broadcast %407 : vector<1x4xf32> to vector<64x4xf32>
    %409 = arith.addf %406, %408 : vector<64x4xf32>
    %c0_168 = arith.constant 0 : index
    %c0_169 = arith.constant 0 : index
    %410 = vector.load %arg20[%c0_168, %c0_169] : memref<32x32xbf16, #tpu.memory_space<vmem>>, vector<32x32xbf16>
    %cst_170 = arith.constant dense<0.000000e+00> : vector<64x32xf32>
    %411 = tpu.matmul %404, %410, %cst_170 {dimension_numbers = #tpu.dot_dimension_numbers<[1], [0], [0], [1], [0, 0, 1, 1], [], []>} : vector<64x32xbf16>, vector<32x32xbf16>, vector<64x32xf32> -> vector<64x32xf32>
    %c0_171 = arith.constant 0 : index
    %c0_172 = arith.constant 0 : index
    %412 = vector.load %arg21[%c0_171, %c0_172] : memref<1x32xf32, #tpu.memory_space<vmem>>, vector<1x32xf32>
    %413 = vector.broadcast %412 : vector<1x32xf32> to vector<64x32xf32>
    %414 = arith.addf %411, %413 : vector<64x32xf32>
    %415 = vector.shape_cast %409 : vector<64x4xf32> to vector<8x8x4xf32>
    %cst_173 = arith.constant 1.000000e+00 : f32
    %416 = vector.broadcast %cst_173 : f32 to vector<8x8x1xf32>
    %417 = arith.subf %3, %416 : vector<8x8x1xf32>
    %cst_174 = arith.constant 1.000000e+09 : f32
    %418 = vector.broadcast %cst_174 : f32 to vector<8x8x1xf32>
    %419 = arith.mulf %417, %418 : vector<8x8x1xf32>
    %420 = vector.broadcast %419 : vector<8x8x1xf32> to vector<8x8x4xf32>
    %421 = arith.addf %415, %420 : vector<8x8x4xf32>
    %cst_175 = arith.constant dense<0xFF800000> : vector<8x4xf32>
    %422 = vector.multi_reduction <maximumf>, %421, %cst_175 [1] : vector<8x8x4xf32> to vector<8x4xf32>
    %423 = vector.shape_cast %422 : vector<8x4xf32> to vector<8x1x4xf32>
    %424 = vector.broadcast %423 : vector<8x1x4xf32> to vector<8x8x4xf32>
    %425 = arith.subf %421, %424 : vector<8x8x4xf32>
    %426 = math.exp %425 : vector<8x8x4xf32>
    %cst_176 = arith.constant dense<0.000000e+00> : vector<8x4xf32>
    %427 = vector.multi_reduction <add>, %426, %cst_176 [1] : vector<8x8x4xf32> to vector<8x4xf32>
    %428 = vector.shape_cast %427 : vector<8x4xf32> to vector<8x1x4xf32>
    %429 = tpu.reciprocal %428 {approx = true} : vector<8x1x4xf32> -> vector<8x1x4xf32>
    %430 = vector.broadcast %429 : vector<8x1x4xf32> to vector<8x8x4xf32>
    %431 = arith.mulf %426, %430 : vector<8x8x4xf32>
    %432 = vector.shape_cast %414 : vector<64x32xf32> to vector<8x8x32xf32>
    %433 = vector.extract_strided_slice %431 {offsets = [0, 0, 0], sizes = [8, 8, 1], strides = [1, 1, 1]} : vector<8x8x4xf32> to vector<8x8x1xf32>
    %434 = vector.extract_strided_slice %432 {offsets = [0, 0, 0], sizes = [8, 8, 8], strides = [1, 1, 1]} : vector<8x8x32xf32> to vector<8x8x8xf32>
    %435 = vector.broadcast %433 : vector<8x8x1xf32> to vector<8x8x8xf32>
    %436 = arith.mulf %435, %434 : vector<8x8x8xf32>
    %cst_177 = arith.constant dense<0.000000e+00> : vector<8x8xf32>
    %437 = vector.multi_reduction <add>, %436, %cst_177 [1] : vector<8x8x8xf32> to vector<8x8xf32>
    %438 = vector.shape_cast %437 : vector<8x8xf32> to vector<8x1x8xf32>
    %c0_178 = arith.constant 0 : index
    %c0_179 = arith.constant 0 : index
    %439 = vector.load %arg22[%c0_178, %c0_179] : memref<1x8xf32, #tpu.memory_space<vmem>>, vector<1x8xf32>
    %c0_180 = arith.constant 0 : index
    %c0_181 = arith.constant 0 : index
    %440 = vector.load %arg23[%c0_180, %c0_181] : memref<1x8xf32, #tpu.memory_space<vmem>>, vector<1x8xf32>
    %cst_182 = arith.constant dense<0.000000e+00> : vector<8x1xf32>
    %441 = vector.multi_reduction <add>, %438, %cst_182 [2] : vector<8x1x8xf32> to vector<8x1xf32>
    %442 = vector.shape_cast %441 : vector<8x1xf32> to vector<8x1x1xf32>
    %cst_183 = arith.constant 8.000000e+00 : f32
    %443 = vector.broadcast %cst_183 : f32 to vector<8x1x1xf32>
    %444 = arith.divf %442, %443 : vector<8x1x1xf32>
    %445 = vector.broadcast %444 : vector<8x1x1xf32> to vector<8x1x8xf32>
    %446 = arith.subf %438, %445 : vector<8x1x8xf32>
    %447 = arith.mulf %446, %446 : vector<8x1x8xf32>
    %cst_184 = arith.constant dense<0.000000e+00> : vector<8x1xf32>
    %448 = vector.multi_reduction <add>, %447, %cst_184 [2] : vector<8x1x8xf32> to vector<8x1xf32>
    %449 = vector.shape_cast %448 : vector<8x1xf32> to vector<8x1x1xf32>
    %cst_185 = arith.constant 8.000000e+00 : f32
    %450 = vector.broadcast %cst_185 : f32 to vector<8x1x1xf32>
    %451 = arith.divf %449, %450 : vector<8x1x1xf32>
    %452 = vector.broadcast %444 : vector<8x1x1xf32> to vector<8x1x8xf32>
    %453 = arith.subf %438, %452 : vector<8x1x8xf32>
    %cst_186 = arith.constant 9.99999997E-7 : f32
    %454 = vector.broadcast %cst_186 : f32 to vector<8x1x1xf32>
    %455 = arith.addf %451, %454 : vector<8x1x1xf32>
    %456 = math.rsqrt %455 : vector<8x1x1xf32>
    %457 = vector.broadcast %456 : vector<8x1x1xf32> to vector<8x1x8xf32>
    %458 = arith.mulf %453, %457 : vector<8x1x8xf32>
    %459 = vector.shape_cast %439 : vector<1x8xf32> to vector<1x1x8xf32>
    %460 = vector.broadcast %459 : vector<1x1x8xf32> to vector<8x1x8xf32>
    %461 = arith.mulf %458, %460 : vector<8x1x8xf32>
    %462 = vector.shape_cast %440 : vector<1x8xf32> to vector<1x1x8xf32>
    %463 = vector.broadcast %462 : vector<1x1x8xf32> to vector<8x1x8xf32>
    %464 = arith.addf %461, %463 : vector<8x1x8xf32>
    %465 = vector.extract_strided_slice %431 {offsets = [0, 0, 1], sizes = [8, 8, 1], strides = [1, 1, 1]} : vector<8x8x4xf32> to vector<8x8x1xf32>
    %466 = vector.extract_strided_slice %432 {offsets = [0, 0, 8], sizes = [8, 8, 8], strides = [1, 1, 1]} : vector<8x8x32xf32> to vector<8x8x8xf32>
    %467 = vector.broadcast %465 : vector<8x8x1xf32> to vector<8x8x8xf32>
    %468 = arith.mulf %467, %466 : vector<8x8x8xf32>
    %cst_187 = arith.constant dense<0.000000e+00> : vector<8x8xf32>
    %469 = vector.multi_reduction <add>, %468, %cst_187 [1] : vector<8x8x8xf32> to vector<8x8xf32>
    %470 = vector.shape_cast %469 : vector<8x8xf32> to vector<8x1x8xf32>
    %c0_188 = arith.constant 0 : index
    %c0_189 = arith.constant 0 : index
    %471 = vector.load %arg22[%c0_188, %c0_189] : memref<1x8xf32, #tpu.memory_space<vmem>>, vector<1x8xf32>
    %c0_190 = arith.constant 0 : index
    %c0_191 = arith.constant 0 : index
    %472 = vector.load %arg23[%c0_190, %c0_191] : memref<1x8xf32, #tpu.memory_space<vmem>>, vector<1x8xf32>
    %cst_192 = arith.constant dense<0.000000e+00> : vector<8x1xf32>
    %473 = vector.multi_reduction <add>, %470, %cst_192 [2] : vector<8x1x8xf32> to vector<8x1xf32>
    %474 = vector.shape_cast %473 : vector<8x1xf32> to vector<8x1x1xf32>
    %cst_193 = arith.constant 8.000000e+00 : f32
    %475 = vector.broadcast %cst_193 : f32 to vector<8x1x1xf32>
    %476 = arith.divf %474, %475 : vector<8x1x1xf32>
    %477 = vector.broadcast %476 : vector<8x1x1xf32> to vector<8x1x8xf32>
    %478 = arith.subf %470, %477 : vector<8x1x8xf32>
    %479 = arith.mulf %478, %478 : vector<8x1x8xf32>
    %cst_194 = arith.constant dense<0.000000e+00> : vector<8x1xf32>
    %480 = vector.multi_reduction <add>, %479, %cst_194 [2] : vector<8x1x8xf32> to vector<8x1xf32>
    %481 = vector.shape_cast %480 : vector<8x1xf32> to vector<8x1x1xf32>
    %cst_195 = arith.constant 8.000000e+00 : f32
    %482 = vector.broadcast %cst_195 : f32 to vector<8x1x1xf32>
    %483 = arith.divf %481, %482 : vector<8x1x1xf32>
    %484 = vector.broadcast %476 : vector<8x1x1xf32> to vector<8x1x8xf32>
    %485 = arith.subf %470, %484 : vector<8x1x8xf32>
    %cst_196 = arith.constant 9.99999997E-7 : f32
    %486 = vector.broadcast %cst_196 : f32 to vector<8x1x1xf32>
    %487 = arith.addf %483, %486 : vector<8x1x1xf32>
    %488 = math.rsqrt %487 : vector<8x1x1xf32>
    %489 = vector.broadcast %488 : vector<8x1x1xf32> to vector<8x1x8xf32>
    %490 = arith.mulf %485, %489 : vector<8x1x8xf32>
    %491 = vector.shape_cast %471 : vector<1x8xf32> to vector<1x1x8xf32>
    %492 = vector.broadcast %491 : vector<1x1x8xf32> to vector<8x1x8xf32>
    %493 = arith.mulf %490, %492 : vector<8x1x8xf32>
    %494 = vector.shape_cast %472 : vector<1x8xf32> to vector<1x1x8xf32>
    %495 = vector.broadcast %494 : vector<1x1x8xf32> to vector<8x1x8xf32>
    %496 = arith.addf %493, %495 : vector<8x1x8xf32>
    %497 = vector.extract_strided_slice %431 {offsets = [0, 0, 2], sizes = [8, 8, 1], strides = [1, 1, 1]} : vector<8x8x4xf32> to vector<8x8x1xf32>
    %498 = vector.extract_strided_slice %432 {offsets = [0, 0, 16], sizes = [8, 8, 8], strides = [1, 1, 1]} : vector<8x8x32xf32> to vector<8x8x8xf32>
    %499 = vector.broadcast %497 : vector<8x8x1xf32> to vector<8x8x8xf32>
    %500 = arith.mulf %499, %498 : vector<8x8x8xf32>
    %cst_197 = arith.constant dense<0.000000e+00> : vector<8x8xf32>
    %501 = vector.multi_reduction <add>, %500, %cst_197 [1] : vector<8x8x8xf32> to vector<8x8xf32>
    %502 = vector.shape_cast %501 : vector<8x8xf32> to vector<8x1x8xf32>
    %c0_198 = arith.constant 0 : index
    %c0_199 = arith.constant 0 : index
    %503 = vector.load %arg22[%c0_198, %c0_199] : memref<1x8xf32, #tpu.memory_space<vmem>>, vector<1x8xf32>
    %c0_200 = arith.constant 0 : index
    %c0_201 = arith.constant 0 : index
    %504 = vector.load %arg23[%c0_200, %c0_201] : memref<1x8xf32, #tpu.memory_space<vmem>>, vector<1x8xf32>
    %cst_202 = arith.constant dense<0.000000e+00> : vector<8x1xf32>
    %505 = vector.multi_reduction <add>, %502, %cst_202 [2] : vector<8x1x8xf32> to vector<8x1xf32>
    %506 = vector.shape_cast %505 : vector<8x1xf32> to vector<8x1x1xf32>
    %cst_203 = arith.constant 8.000000e+00 : f32
    %507 = vector.broadcast %cst_203 : f32 to vector<8x1x1xf32>
    %508 = arith.divf %506, %507 : vector<8x1x1xf32>
    %509 = vector.broadcast %508 : vector<8x1x1xf32> to vector<8x1x8xf32>
    %510 = arith.subf %502, %509 : vector<8x1x8xf32>
    %511 = arith.mulf %510, %510 : vector<8x1x8xf32>
    %cst_204 = arith.constant dense<0.000000e+00> : vector<8x1xf32>
    %512 = vector.multi_reduction <add>, %511, %cst_204 [2] : vector<8x1x8xf32> to vector<8x1xf32>
    %513 = vector.shape_cast %512 : vector<8x1xf32> to vector<8x1x1xf32>
    %cst_205 = arith.constant 8.000000e+00 : f32
    %514 = vector.broadcast %cst_205 : f32 to vector<8x1x1xf32>
    %515 = arith.divf %513, %514 : vector<8x1x1xf32>
    %516 = vector.broadcast %508 : vector<8x1x1xf32> to vector<8x1x8xf32>
    %517 = arith.subf %502, %516 : vector<8x1x8xf32>
    %cst_206 = arith.constant 9.99999997E-7 : f32
    %518 = vector.broadcast %cst_206 : f32 to vector<8x1x1xf32>
    %519 = arith.addf %515, %518 : vector<8x1x1xf32>
    %520 = math.rsqrt %519 : vector<8x1x1xf32>
    %521 = vector.broadcast %520 : vector<8x1x1xf32> to vector<8x1x8xf32>
    %522 = arith.mulf %517, %521 : vector<8x1x8xf32>
    %523 = vector.shape_cast %503 : vector<1x8xf32> to vector<1x1x8xf32>
    %524 = vector.broadcast %523 : vector<1x1x8xf32> to vector<8x1x8xf32>
    %525 = arith.mulf %522, %524 : vector<8x1x8xf32>
    %526 = vector.shape_cast %504 : vector<1x8xf32> to vector<1x1x8xf32>
    %527 = vector.broadcast %526 : vector<1x1x8xf32> to vector<8x1x8xf32>
    %528 = arith.addf %525, %527 : vector<8x1x8xf32>
    %529 = vector.extract_strided_slice %431 {offsets = [0, 0, 3], sizes = [8, 8, 1], strides = [1, 1, 1]} : vector<8x8x4xf32> to vector<8x8x1xf32>
    %530 = vector.extract_strided_slice %432 {offsets = [0, 0, 24], sizes = [8, 8, 8], strides = [1, 1, 1]} : vector<8x8x32xf32> to vector<8x8x8xf32>
    %531 = vector.broadcast %529 : vector<8x8x1xf32> to vector<8x8x8xf32>
    %532 = arith.mulf %531, %530 : vector<8x8x8xf32>
    %cst_207 = arith.constant dense<0.000000e+00> : vector<8x8xf32>
    %533 = vector.multi_reduction <add>, %532, %cst_207 [1] : vector<8x8x8xf32> to vector<8x8xf32>
    %534 = vector.shape_cast %533 : vector<8x8xf32> to vector<8x1x8xf32>
    %c0_208 = arith.constant 0 : index
    %c0_209 = arith.constant 0 : index
    %535 = vector.load %arg22[%c0_208, %c0_209] : memref<1x8xf32, #tpu.memory_space<vmem>>, vector<1x8xf32>
    %c0_210 = arith.constant 0 : index
    %c0_211 = arith.constant 0 : index
    %536 = vector.load %arg23[%c0_210, %c0_211] : memref<1x8xf32, #tpu.memory_space<vmem>>, vector<1x8xf32>
    %cst_212 = arith.constant dense<0.000000e+00> : vector<8x1xf32>
    %537 = vector.multi_reduction <add>, %534, %cst_212 [2] : vector<8x1x8xf32> to vector<8x1xf32>
    %538 = vector.shape_cast %537 : vector<8x1xf32> to vector<8x1x1xf32>
    %cst_213 = arith.constant 8.000000e+00 : f32
    %539 = vector.broadcast %cst_213 : f32 to vector<8x1x1xf32>
    %540 = arith.divf %538, %539 : vector<8x1x1xf32>
    %541 = vector.broadcast %540 : vector<8x1x1xf32> to vector<8x1x8xf32>
    %542 = arith.subf %534, %541 : vector<8x1x8xf32>
    %543 = arith.mulf %542, %542 : vector<8x1x8xf32>
    %cst_214 = arith.constant dense<0.000000e+00> : vector<8x1xf32>
    %544 = vector.multi_reduction <add>, %543, %cst_214 [2] : vector<8x1x8xf32> to vector<8x1xf32>
    %545 = vector.shape_cast %544 : vector<8x1xf32> to vector<8x1x1xf32>
    %cst_215 = arith.constant 8.000000e+00 : f32
    %546 = vector.broadcast %cst_215 : f32 to vector<8x1x1xf32>
    %547 = arith.divf %545, %546 : vector<8x1x1xf32>
    %548 = vector.broadcast %540 : vector<8x1x1xf32> to vector<8x1x8xf32>
    %549 = arith.subf %534, %548 : vector<8x1x8xf32>
    %cst_216 = arith.constant 9.99999997E-7 : f32
    %550 = vector.broadcast %cst_216 : f32 to vector<8x1x1xf32>
    %551 = arith.addf %547, %550 : vector<8x1x1xf32>
    %552 = math.rsqrt %551 : vector<8x1x1xf32>
    %553 = vector.broadcast %552 : vector<8x1x1xf32> to vector<8x1x8xf32>
    %554 = arith.mulf %549, %553 : vector<8x1x8xf32>
    %555 = vector.shape_cast %535 : vector<1x8xf32> to vector<1x1x8xf32>
    %556 = vector.broadcast %555 : vector<1x1x8xf32> to vector<8x1x8xf32>
    %557 = arith.mulf %554, %556 : vector<8x1x8xf32>
    %558 = vector.shape_cast %536 : vector<1x8xf32> to vector<1x1x8xf32>
    %559 = vector.broadcast %558 : vector<1x1x8xf32> to vector<8x1x8xf32>
    %560 = arith.addf %557, %559 : vector<8x1x8xf32>
    %561 = tpu.concatenate %464, %496, %528, %560 in 2 : vector<8x1x8xf32>, vector<8x1x8xf32>, vector<8x1x8xf32>, vector<8x1x8xf32> -> vector<8x1x32xf32>
    %c0_217 = arith.constant 0 : index
    %c0_218 = arith.constant 0 : index
    %c0_219 = arith.constant 0 : index
    %562 = vector.load %arg30[%c0_217, %c0_218, %c0_219] : memref<8x1x32xf32, #tpu.memory_space<vmem>>, vector<8x1x32xf32>
    tpu.vector_store %arg30[%c0_217, %c0_218, %c0_219], %561 {strides = array<i32>} : memref<8x1x32xf32, #tpu.memory_space<vmem>>, vector<8x1x32xf32>,
    %563 = vector.shape_cast %403 : vector<64x32xf32> to vector<8x8x32xf32>
    %564 = vector.broadcast %561 : vector<8x1x32xf32> to vector<8x8x32xf32>
    %565 = arith.addf %563, %564 : vector<8x8x32xf32>
    %566 = vector.shape_cast %565 : vector<8x8x32xf32> to vector<64x32xf32>
    %c0_220 = arith.constant 0 : index
    %c0_221 = arith.constant 0 : index
    %567 = vector.load %arg24[%c0_220, %c0_221] : memref<1x32xf32, #tpu.memory_space<vmem>>, vector<1x32xf32>
    %c0_222 = arith.constant 0 : index
    %c0_223 = arith.constant 0 : index
    %568 = vector.load %arg25[%c0_222, %c0_223] : memref<1x32xf32, #tpu.memory_space<vmem>>, vector<1x32xf32>
    %cst_224 = arith.constant dense<0.000000e+00> : vector<64xf32>
    %569 = vector.multi_reduction <add>, %566, %cst_224 [1] : vector<64x32xf32> to vector<64xf32>
    %570 = vector.shape_cast %569 : vector<64xf32> to vector<64x1xf32>
    %cst_225 = arith.constant 3.200000e+01 : f32
    %571 = vector.broadcast %cst_225 : f32 to vector<64x1xf32>
    %572 = arith.divf %570, %571 : vector<64x1xf32>
    %573 = vector.broadcast %572 : vector<64x1xf32> to vector<64x32xf32>
    %574 = arith.subf %566, %573 : vector<64x32xf32>
    %575 = arith.mulf %574, %574 : vector<64x32xf32>
    %cst_226 = arith.constant dense<0.000000e+00> : vector<64xf32>
    %576 = vector.multi_reduction <add>, %575, %cst_226 [1] : vector<64x32xf32> to vector<64xf32>
    %577 = vector.shape_cast %576 : vector<64xf32> to vector<64x1xf32>
    %cst_227 = arith.constant 3.200000e+01 : f32
    %578 = vector.broadcast %cst_227 : f32 to vector<64x1xf32>
    %579 = arith.divf %577, %578 : vector<64x1xf32>
    %580 = vector.broadcast %572 : vector<64x1xf32> to vector<64x32xf32>
    %581 = arith.subf %566, %580 : vector<64x32xf32>
    %cst_228 = arith.constant 9.99999997E-7 : f32
    %582 = vector.broadcast %cst_228 : f32 to vector<64x1xf32>
    %583 = arith.addf %579, %582 : vector<64x1xf32>
    %584 = math.rsqrt %583 : vector<64x1xf32>
    %585 = vector.broadcast %584 : vector<64x1xf32> to vector<64x32xf32>
    %586 = arith.mulf %581, %585 : vector<64x32xf32>
    %587 = vector.broadcast %567 : vector<1x32xf32> to vector<64x32xf32>
    %588 = arith.mulf %586, %587 : vector<64x32xf32>
    %589 = vector.broadcast %568 : vector<1x32xf32> to vector<64x32xf32>
    %590 = arith.addf %588, %589 : vector<64x32xf32>
    %591 = arith.truncf %590 : vector<64x32xf32> to vector<64x32xbf16>
    %c0_229 = arith.constant 0 : index
    %c0_230 = arith.constant 0 : index
    %592 = vector.load %arg26[%c0_229, %c0_230] : memref<32x64xbf16, #tpu.memory_space<vmem>>, vector<32x64xbf16>
    %cst_231 = arith.constant dense<0.000000e+00> : vector<64x64xf32>
    %593 = tpu.matmul %591, %592, %cst_231 {dimension_numbers = #tpu.dot_dimension_numbers<[1], [0], [0], [1], [0, 0, 1, 1], [], []>} : vector<64x32xbf16>, vector<32x64xbf16>, vector<64x64xf32> -> vector<64x64xf32>
    %c0_232 = arith.constant 0 : index
    %c0_233 = arith.constant 0 : index
    %594 = vector.load %arg27[%c0_232, %c0_233] : memref<1x64xf32, #tpu.memory_space<vmem>>, vector<1x64xf32>
    %595 = vector.broadcast %594 : vector<1x64xf32> to vector<64x64xf32>
    %596 = arith.addf %593, %595 : vector<64x64xf32>
    %cst_234 = arith.constant 5.000000e-01 : f32
    %597 = vector.broadcast %cst_234 : f32 to vector<64x64xf32>
    %598 = arith.mulf %597, %596 : vector<64x64xf32>
    %cst_235 = arith.constant 4.471500e-02 : f32
    %599 = vector.broadcast %cst_235 : f32 to vector<64x64xf32>
    %600 = arith.mulf %599, %596 : vector<64x64xf32>
    %601 = arith.mulf %600, %596 : vector<64x64xf32>
    %602 = arith.mulf %601, %596 : vector<64x64xf32>
    %603 = arith.addf %596, %602 : vector<64x64xf32>
    %cst_236 = arith.constant 0.797884583 : f32
    %604 = vector.broadcast %cst_236 : f32 to vector<64x64xf32>
    %605 = arith.mulf %604, %603 : vector<64x64xf32>
    %606 = math.tanh %605 : vector<64x64xf32>
    %cst_237 = arith.constant 1.000000e+00 : f32
    %607 = vector.broadcast %cst_237 : f32 to vector<64x64xf32>
    %608 = arith.addf %607, %606 : vector<64x64xf32>
    %609 = arith.mulf %598, %608 : vector<64x64xf32>
    %610 = arith.truncf %609 : vector<64x64xf32> to vector<64x64xbf16>
    %c0_238 = arith.constant 0 : index
    %c0_239 = arith.constant 0 : index
    %611 = vector.load %arg28[%c0_238, %c0_239] : memref<64x32xbf16, #tpu.memory_space<vmem>>, vector<64x32xbf16>
    %cst_240 = arith.constant dense<0.000000e+00> : vector<64x32xf32>
    %612 = tpu.matmul %610, %611, %cst_240 {dimension_numbers = #tpu.dot_dimension_numbers<[1], [0], [0], [1], [0, 0, 1, 1], [], []>} : vector<64x64xbf16>, vector<64x32xbf16>, vector<64x32xf32> -> vector<64x32xf32>
    %c0_241 = arith.constant 0 : index
    %c0_242 = arith.constant 0 : index
    %613 = vector.load %arg29[%c0_241, %c0_242] : memref<1x32xf32, #tpu.memory_space<vmem>>, vector<1x32xf32>
    %614 = vector.broadcast %613 : vector<1x32xf32> to vector<64x32xf32>
    %615 = arith.addf %612, %614 : vector<64x32xf32>
    %616 = arith.addf %615, %566 : vector<64x32xf32>
    %617 = vector.shape_cast %616 : vector<64x32xf32> to vector<8x8x32xf32>
    %618 = vector.broadcast %3 : vector<8x8x1xf32> to vector<8x8x32xf32>
    %619 = arith.mulf %617, %618 : vector<8x8x32xf32>
    %c0_243 = arith.constant 0 : index
    %c0_244 = arith.constant 0 : index
    %c0_245 = arith.constant 0 : index
    %620 = vector.load %arg31[%c0_243, %c0_244, %c0_245] : memref<8x8x32xf32, #tpu.memory_space<vmem>>, vector<8x8x32xf32>
    tpu.vector_store %arg31[%c0_243, %c0_244, %c0_245], %619 {strides = array<i32>} : memref<8x8x32xf32, #tpu.memory_space<vmem>>, vector<8x8x32xf32>,
    return
  }
  func.func @transform_0(%arg0: i32) -> (i32, i32, i32) {
    %c0_i32 = arith.constant 0 : i32
    %c0_i32_0 = arith.constant 0 : i32
    %c0_i32_1 = arith.constant 0 : i32
    return %arg0, %c0_i32, %c0_i32_0 : i32, i32, i32
  }
  func.func @transform_1(%arg0: i32) -> (i32, i32, i32) {
    %c0_i32 = arith.constant 0 : i32
    %c0_i32_0 = arith.constant 0 : i32
    %c0_i32_1 = arith.constant 0 : i32
    return %arg0, %c0_i32, %c0_i32_0 : i32, i32, i32
  }
  func.func @transform_2(%arg0: i32) -> (i32, i32, i32) {
    %c0_i32 = arith.constant 0 : i32
    %c0_i32_0 = arith.constant 0 : i32
    %c0_i32_1 = arith.constant 0 : i32
    return %arg0, %c0_i32, %c0_i32_0 : i32, i32, i32
  }
  func.func @transform_3(%arg0: i32) -> (i32, i32, i32) {
    %c0_i32 = arith.constant 0 : i32
    %c0_i32_0 = arith.constant 0 : i32
    %c0_i32_1 = arith.constant 0 : i32
    %c0_i32_2 = arith.constant 0 : i32
    return %c0_i32, %c0_i32_0, %c0_i32_1 : i32, i32, i32
  }
  func.func @transform_4(%arg0: i32) -> (i32, i32, i32) {
    %c0_i32 = arith.constant 0 : i32
    %c0_i32_0 = arith.constant 0 : i32
    %c0_i32_1 = arith.constant 0 : i32
    %c0_i32_2 = arith.constant 0 : i32
    return %c0_i32, %c0_i32_0, %c0_i32_1 : i32, i32, i32
  }
  func.func @transform_5(%arg0: i32) -> (i32, i32, i32) {
    %c0_i32 = arith.constant 0 : i32
    %c0_i32_0 = arith.constant 0 : i32
    %c0_i32_1 = arith.constant 0 : i32
    %c0_i32_2 = arith.constant 0 : i32
    return %c0_i32, %c0_i32_0, %c0_i32_1 : i32, i32, i32
  }
  func.func @transform_6(%arg0: i32) -> (i32, i32, i32) {
    %c0_i32 = arith.constant 0 : i32
    %c0_i32_0 = arith.constant 0 : i32
    %c0_i32_1 = arith.constant 0 : i32
    %c0_i32_2 = arith.constant 0 : i32
    return %c0_i32, %c0_i32_0, %c0_i32_1 : i32, i32, i32
  }
  func.func @transform_7(%arg0: i32) -> (i32, i32, i32) {
    %c0_i32 = arith.constant 0 : i32
    %c0_i32_0 = arith.constant 0 : i32
    %c0_i32_1 = arith.constant 0 : i32
    %c0_i32_2 = arith.constant 0 : i32
    return %c0_i32, %c0_i32_0, %c0_i32_1 : i32, i32, i32
  }
  func.func @transform_8(%arg0: i32) -> (i32, i32, i32) {
    %c0_i32 = arith.constant 0 : i32
    %c0_i32_0 = arith.constant 0 : i32
    %c0_i32_1 = arith.constant 0 : i32
    %c0_i32_2 = arith.constant 0 : i32
    return %c0_i32, %c0_i32_0, %c0_i32_1 : i32, i32, i32
  }
  func.func @transform_9(%arg0: i32) -> (i32, i32, i32) {
    %c0_i32 = arith.constant 0 : i32
    %c0_i32_0 = arith.constant 0 : i32
    %c0_i32_1 = arith.constant 0 : i32
    %c0_i32_2 = arith.constant 0 : i32
    return %c0_i32, %c0_i32_0, %c0_i32_1 : i32, i32, i32
  }
  func.func @transform_10(%arg0: i32) -> (i32, i32, i32) {
    %c0_i32 = arith.constant 0 : i32
    %c0_i32_0 = arith.constant 0 : i32
    %c0_i32_1 = arith.constant 0 : i32
    %c0_i32_2 = arith.constant 0 : i32
    return %c0_i32, %c0_i32_0, %c0_i32_1 : i32, i32, i32
  }
  func.func @transform_11(%arg0: i32) -> (i32, i32, i32) {
    %c0_i32 = arith.constant 0 : i32
    %c0_i32_0 = arith.constant 0 : i32
    %c0_i32_1 = arith.constant 0 : i32
    %c0_i32_2 = arith.constant 0 : i32
    return %c0_i32, %c0_i32_0, %c0_i32_1 : i32, i32, i32
  }
  func.func @transform_12(%arg0: i32) -> (i32, i32, i32) {
    %c0_i32 = arith.constant 0 : i32
    %c0_i32_0 = arith.constant 0 : i32
    %c0_i32_1 = arith.constant 0 : i32
    %c0_i32_2 = arith.constant 0 : i32
    return %c0_i32, %c0_i32_0, %c0_i32_1 : i32, i32, i32
  }
  func.func @transform_13(%arg0: i32) -> (i32, i32, i32) {
    %c0_i32 = arith.constant 0 : i32
    %c0_i32_0 = arith.constant 0 : i32
    %c0_i32_1 = arith.constant 0 : i32
    %c0_i32_2 = arith.constant 0 : i32
    return %c0_i32, %c0_i32_0, %c0_i32_1 : i32, i32, i32
  }
  func.func @transform_14(%arg0: i32) -> (i32, i32, i32) {
    %c0_i32 = arith.constant 0 : i32
    %c0_i32_0 = arith.constant 0 : i32
    %c0_i32_1 = arith.constant 0 : i32
    %c0_i32_2 = arith.constant 0 : i32
    return %c0_i32, %c0_i32_0, %c0_i32_1 : i32, i32, i32
  }
  func.func @transform_15(%arg0: i32) -> (i32, i32) {
    %c0_i32 = arith.constant 0 : i32
    %c0_i32_0 = arith.constant 0 : i32
    %c0_i32_1 = arith.constant 0 : i32
    return %c0_i32, %c0_i32_0 : i32, i32
  }
  func.func @transform_16(%arg0: i32) -> (i32, i32) {
    %c0_i32 = arith.constant 0 : i32
    %c0_i32_0 = arith.constant 0 : i32
    %c0_i32_1 = arith.constant 0 : i32
    return %c0_i32, %c0_i32_0 : i32, i32
  }
  func.func @transform_17(%arg0: i32) -> (i32, i32) {
    %c0_i32 = arith.constant 0 : i32
    %c0_i32_0 = arith.constant 0 : i32
    %c0_i32_1 = arith.constant 0 : i32
    return %c0_i32, %c0_i32_0 : i32, i32
  }
  func.func @transform_18(%arg0: i32) -> (i32, i32) {
    %c0_i32 = arith.constant 0 : i32
    %c0_i32_0 = arith.constant 0 : i32
    %c0_i32_1 = arith.constant 0 : i32
    return %c0_i32, %c0_i32_0 : i32, i32
  }
  func.func @transform_19(%arg0: i32) -> (i32, i32) {
    %c0_i32 = arith.constant 0 : i32
    %c0_i32_0 = arith.constant 0 : i32
    %c0_i32_1 = arith.constant 0 : i32
    return %c0_i32, %c0_i32_0 : i32, i32
  }
  func.func @transform_20(%arg0: i32) -> (i32, i32) {
    %c0_i32 = arith.constant 0 : i32
    %c0_i32_0 = arith.constant 0 : i32
    %c0_i32_1 = arith.constant 0 : i32
    return %c0_i32, %c0_i32_0 : i32, i32
  }
  func.func @transform_21(%arg0: i32) -> (i32, i32) {
    %c0_i32 = arith.constant 0 : i32
    %c0_i32_0 = arith.constant 0 : i32
    %c0_i32_1 = arith.constant 0 : i32
    return %c0_i32, %c0_i32_0 : i32, i32
  }
  func.func @transform_22(%arg0: i32) -> (i32, i32) {
    %c0_i32 = arith.constant 0 : i32
    %c0_i32_0 = arith.constant 0 : i32
    %c0_i32_1 = arith.constant 0 : i32
    return %c0_i32, %c0_i32_0 : i32, i32
  }
  func.func @transform_23(%arg0: i32) -> (i32, i32) {
    %c0_i32 = arith.constant 0 : i32
    %c0_i32_0 = arith.constant 0 : i32
    %c0_i32_1 = arith.constant 0 : i32
    return %c0_i32, %c0_i32_0 : i32, i32
  }
  func.func @transform_24(%arg0: i32) -> (i32, i32) {
    %c0_i32 = arith.constant 0 : i32
    %c0_i32_0 = arith.constant 0 : i32
    %c0_i32_1 = arith.constant 0 : i32
    return %c0_i32, %c0_i32_0 : i32, i32
  }
  func.func @transform_25(%arg0: i32) -> (i32, i32) {
    %c0_i32 = arith.constant 0 : i32
    %c0_i32_0 = arith.constant 0 : i32
    %c0_i32_1 = arith.constant 0 : i32
    return %c0_i32, %c0_i32_0 : i32, i32
  }
  func.func @transform_26(%arg0: i32) -> (i32, i32) {
    %c0_i32 = arith.constant 0 : i32
    %c0_i32_0 = arith.constant 0 : i32
    %c0_i32_1 = arith.constant 0 : i32
    return %c0_i32, %c0_i32_0 : i32, i32
  }
  func.func @transform_27(%arg0: i32) -> (i32, i32) {
    %c0_i32 = arith.constant 0 : i32
    %c0_i32_0 = arith.constant 0 : i32
    %c0_i32_1 = arith.constant 0 : i32
    return %c0_i32, %c0_i32_0 : i32, i32
  }
  func.func @transform_28(%arg0: i32) -> (i32, i32) {
    %c0_i32 = arith.constant 0 : i32
    %c0_i32_0 = arith.constant 0 : i32
    %c0_i32_1 = arith.constant 0 : i32
    return %c0_i32, %c0_i32_0 : i32, i32
  }
  func.func @transform_29(%arg0: i32) -> (i32, i32, i32) {
    %c0_i32 = arith.constant 0 : i32
    %c0_i32_0 = arith.constant 0 : i32
    %c0_i32_1 = arith.constant 0 : i32
    return %arg0, %c0_i32, %c0_i32_0 : i32, i32, i32
  }
  func.func @transform_30(%arg0: i32) -> (i32, i32, i32) {
    %c0_i32 = arith.constant 0 : i32
    %c0_i32_0 = arith.constant 0 : i32
    %c0_i32_1 = arith.constant 0 : i32
    return %arg0, %c0_i32, %c0_i32_0 : i32, i32, i32
  }
}

</mosaic_0001>

<llo_original>
// kernel: squeeze.1
$region0: #{squeeze.1}
  %s0 = inlined_call_operand.vmem [shape: f32[6,32], index: 0, kind: input, shape index: {}]
  %s1 = inlined_call_operand.vmem [shape: f32[2,3,32], index: 1, kind: output, shape index: {}]
  $region1: #{squeeze.1} parent=0
    #allocation0 [shape = 'u8[8192]{0}', space=vmem, size = 0x2000, scoped, tag = 'scoped mem for output reshape']
    %v2 = vld [vmem:[%s0] sm:$0x3f]
    %vm3 = vcmask 261120
    %4 = vst.msk [vmem:[#allocation0] sm:$0x7] %vm3, %v2
    %s5 = scalar_lea.vmem [#allocation0], 5
    %6 = vst.msk [vmem:[%s5] sm:$0x38] %vm3, %v2
    %s8 = sshllo.u32 0, 4
    %v10 = vld [vmem:[#allocation0] sm:%s8]
    %s11 = sshllo.u32 0, 4
    %12 = vst [vmem:[%s1] sm:%s11] %v10
    %s13 = scalar_lea.vmem [#allocation0], 8
    %v14 = vld [vmem:[%s13] sm:%s8]
    %s15 = sshllo.u32 0, 4
    %s16 = scalar_lea.vmem %s1, 4
    %17 = vst [vmem:[%s16] sm:%s15] %v14

// kernel: new_transformer_encoder_forward.1
$region0: #{new_transformer_encoder_forward.1}
  #allocation0 [shape = 'u32[]', space=smem, size = 0x4, offset = 0x4, fixed_abs, tag = 'smem constant byte address 0x4 - core index']
  #allocation1 [shape = 'u32[144,128]{1,0:T(1,128)}', space=vmem, size = 0x12000, scoped, tag = 'internal scratch']
  %s0 = inlined_call_operand.smem [shape: u32[31], index: -1, kind: input, shape index: {}]
  %s1 = sld [smem:[%s0]]
  %s2 = scalar_lea.smem %s0, 1
  %s3 = sld [smem:[%s2]]
  %s4 = scalar_lea.smem %s0, 2
  %s5 = sld [smem:[%s4]]
  %s6 = scalar_lea.smem %s0, 3
  %s7 = sld [smem:[%s6]]
  %s8 = scalar_lea.smem %s0, 4
  %s9 = sld [smem:[%s8]]
  %s10 = scalar_lea.smem %s0, 5
  %s11 = sld [smem:[%s10]]
  %s12 = scalar_lea.smem %s0, 6
  %s13 = sld [smem:[%s12]]
  %s14 = scalar_lea.smem %s0, 7
  %s15 = sld [smem:[%s14]]
  %s16 = scalar_lea.smem %s0, 8
  %s17 = sld [smem:[%s16]]
  %s18 = scalar_lea.smem %s0, 9
  %s19 = sld [smem:[%s18]]
  %s20 = scalar_lea.smem %s0, 10
  %s21 = sld [smem:[%s20]]
  %s22 = scalar_lea.smem %s0, 11
  %s23 = sld [smem:[%s22]]
  %s24 = scalar_lea.smem %s0, 12
  %s25 = sld [smem:[%s24]]
  %s26 = scalar_lea.smem %s0, 13
  %s27 = sld [smem:[%s26]]
  %s28 = scalar_lea.smem %s0, 14
  %s29 = sld [smem:[%s28]]
  %s30 = scalar_lea.smem %s0, 15
  %s31 = sld [smem:[%s30]]
  %s32 = scalar_lea.smem %s0, 16
  %s33 = sld [smem:[%s32]]
  %s34 = scalar_lea.smem %s0, 17
  %s35 = sld [smem:[%s34]]
  %s36 = scalar_lea.smem %s0, 18
  %s37 = sld [smem:[%s36]]
  %s38 = scalar_lea.smem %s0, 19
  %s39 = sld [smem:[%s38]]
  %s40 = scalar_lea.smem %s0, 20
  %s41 = sld [smem:[%s40]]
  %s42 = scalar_lea.smem %s0, 21
  %s43 = sld [smem:[%s42]]
  %s44 = scalar_lea.smem %s0, 22
  %s45 = sld [smem:[%s44]]
  %s46 = scalar_lea.smem %s0, 23
  %s47 = sld [smem:[%s46]]
  %s48 = scalar_lea.smem %s0, 24
  %s49 = sld [smem:[%s48]]
  %s50 = scalar_lea.smem %s0, 25
  %s51 = sld [smem:[%s50]]
  %s52 = scalar_lea.smem %s0, 26
  %s53 = sld [smem:[%s52]]
  %s54 = scalar_lea.smem %s0, 27
  %s55 = sld [smem:[%s54]]
  %s56 = scalar_lea.smem %s0, 28
  %s57 = sld [smem:[%s56]]
  %s58 = scalar_lea.smem %s0, 29
  %s59 = sld [smem:[%s58]]
  %s60 = scalar_lea.smem %s0, 30
  %s61 = sld [smem:[%s60]]
  %62 = xla_tuple %s59, %s61
  %s63 = sld [smem:[#allocation0]]
  $region134: #{new_transformer_encoder_forward.1} parent=0
    _
  %s65 = ssub.s32 1, %s63
  %s66 = scalar_select 0, %s65, %s63
  // Predicated region
  $region2: #{new_transformer_encoder_forward.1} parent=0 // pred_check
    _
  $region3: #{new_transformer_encoder_forward.1} parent=0 // pred_check_branch
    %68 = sbr.rel (0) target = $region5
  $region4: #{new_transformer_encoder_forward.1} parent=0 // pred_region
    _
  $region5: #{new_transformer_encoder_forward.1} parent=0 // pred_fallthru
    _
  // Predicated region
  $region6: #{new_transformer_encoder_forward.1} parent=0 // pred_check
    _
  $region7: #{new_transformer_encoder_forward.1} parent=0 // pred_check_branch
    %70 = sbr.rel (0) target = $region9
  $region8: #{new_transformer_encoder_forward.1} parent=0 // pred_region
    _
  $region9: #{new_transformer_encoder_forward.1} parent=0 // pred_fallthru
    _
  // Predicated region
  $region10: #{new_transformer_encoder_forward.1} parent=0 // pred_check
    _
  $region11: #{new_transformer_encoder_forward.1} parent=0 // pred_check_branch
    %72 = sbr.rel (0) target = $region13
  $region12: #{new_transformer_encoder_forward.1} parent=0 // pred_region
    _
  $region13: #{new_transformer_encoder_forward.1} parent=0 // pred_fallthru
    _
  // Predicated region
  $region14: #{new_transformer_encoder_forward.1} parent=0 // pred_check
    _
  $region15: #{new_transformer_encoder_forward.1} parent=0 // pred_check_branch
    %74 = sbr.rel (0) target = $region17
  $region16: #{new_transformer_encoder_forward.1} parent=0 // pred_region
    _
  $region17: #{new_transformer_encoder_forward.1} parent=0 // pred_fallthru
    _
  // Predicated region
  $region18: #{new_transformer_encoder_forward.1} parent=0 // pred_check
    _
  $region19: #{new_transformer_encoder_forward.1} parent=0 // pred_check_branch
    %76 = sbr.rel (0) target = $region21
  $region20: #{new_transformer_encoder_forward.1} parent=0 // pred_region
    _
  $region21: #{new_transformer_encoder_forward.1} parent=0 // pred_fallthru
    _
  // Predicated region
  $region22: #{new_transformer_encoder_forward.1} parent=0 // pred_check
    _
  $region23: #{new_transformer_encoder_forward.1} parent=0 // pred_check_branch
    %78 = sbr.rel (0) target = $region25
  $region24: #{new_transformer_encoder_forward.1} parent=0 // pred_region
    _
  $region25: #{new_transformer_encoder_forward.1} parent=0 // pred_fallthru
    _
  // Predicated region
  $region26: #{new_transformer_encoder_forward.1} parent=0 // pred_check
    _
  $region27: #{new_transformer_encoder_forward.1} parent=0 // pred_check_branch
    %80 = sbr.rel (0) target = $region29
  $region28: #{new_transformer_encoder_forward.1} parent=0 // pred_region
    _
  $region29: #{new_transformer_encoder_forward.1} parent=0 // pred_fallthru
    _
  // Predicated region
  $region30: #{new_transformer_encoder_forward.1} parent=0 // pred_check
    _
  $region31: #{new_transformer_encoder_forward.1} parent=0 // pred_check_branch
    %82 = sbr.rel (0) target = $region33
  $region32: #{new_transformer_encoder_forward.1} parent=0 // pred_region
    _
  $region33: #{new_transformer_encoder_forward.1} parent=0 // pred_fallthru
    _
  // Predicated region
  $region34: #{new_transformer_encoder_forward.1} parent=0 // pred_check
    _
  $region35: #{new_transformer_encoder_forward.1} parent=0 // pred_check_branch
    %84 = sbr.rel (0) target = $region37
  $region36: #{new_transformer_encoder_forward.1} parent=0 // pred_region
    _
  $region37: #{new_transformer_encoder_forward.1} parent=0 // pred_fallthru
    _
  // Predicated region
  $region38: #{new_transformer_encoder_forward.1} parent=0 // pred_check
    _
  $region39: #{new_transformer_encoder_forward.1} parent=0 // pred_check_branch
    %86 = sbr.rel (0) target = $region41
  $region40: #{new_transformer_encoder_forward.1} parent=0 // pred_region
    _
  $region41: #{new_transformer_encoder_forward.1} parent=0 // pred_fallthru
    _
  // Predicated region
  $region42: #{new_transformer_encoder_forward.1} parent=0 // pred_check
    _
  $region43: #{new_transformer_encoder_forward.1} parent=0 // pred_check_branch
    %88 = sbr.rel (0) target = $region45
  $region44: #{new_transformer_encoder_forward.1} parent=0 // pred_region
    _
  $region45: #{new_transformer_encoder_forward.1} parent=0 // pred_fallthru
    _
  // Predicated region
  $region46: #{new_transformer_encoder_forward.1} parent=0 // pred_check
    _
  $region47: #{new_transformer_encoder_forward.1} parent=0 // pred_check_branch
    %90 = sbr.rel (0) target = $region49
  $region48: #{new_transformer_encoder_forward.1} parent=0 // pred_region
    _
  $region49: #{new_transformer_encoder_forward.1} parent=0 // pred_fallthru
    _
  // Predicated region
  $region50: #{new_transformer_encoder_forward.1} parent=0 // pred_check
    _
  $region51: #{new_transformer_encoder_forward.1} parent=0 // pred_check_branch
    %92 = sbr.rel (0) target = $region53
  $region52: #{new_transformer_encoder_forward.1} parent=0 // pred_region
    _
  $region53: #{new_transformer_encoder_forward.1} parent=0 // pred_fallthru
    _
  // Predicated region
  $region54: #{new_transformer_encoder_forward.1} parent=0 // pred_check
    _
  $region55: #{new_transformer_encoder_forward.1} parent=0 // pred_check_branch
    %94 = sbr.rel (0) target = $region57
  $region56: #{new_transformer_encoder_forward.1} parent=0 // pred_region
    _
  $region57: #{new_transformer_encoder_forward.1} parent=0 // pred_fallthru
    _
  // Predicated region
  $region58: #{new_transformer_encoder_forward.1} parent=0 // pred_check
    _
  $region59: #{new_transformer_encoder_forward.1} parent=0 // pred_check_branch
    %96 = sbr.rel (0) target = $region61
  $region60: #{new_transformer_encoder_forward.1} parent=0 // pred_region
    _
  $region61: #{new_transformer_encoder_forward.1} parent=0 // pred_fallthru
    _
  // Predicated region
  $region62: #{new_transformer_encoder_forward.1} parent=0 // pred_check
    _
  $region63: #{new_transformer_encoder_forward.1} parent=0 // pred_check_branch
    %98 = sbr.rel (0) target = $region65
  $region64: #{new_transformer_encoder_forward.1} parent=0 // pred_region
    _
  $region65: #{new_transformer_encoder_forward.1} parent=0 // pred_fallthru
    _
  // Predicated region
  $region66: #{new_transformer_encoder_forward.1} parent=0 // pred_check
    _
  $region67: #{new_transformer_encoder_forward.1} parent=0 // pred_check_branch
    %100 = sbr.rel (0) target = $region69
  $region68: #{new_transformer_encoder_forward.1} parent=0 // pred_region
    _
  $region69: #{new_transformer_encoder_forward.1} parent=0 // pred_fallthru
    _
  // Predicated region
  $region70: #{new_transformer_encoder_forward.1} parent=0 // pred_check
    _
  $region71: #{new_transformer_encoder_forward.1} parent=0 // pred_check_branch
    %102 = sbr.rel (0) target = $region73
  $region72: #{new_transformer_encoder_forward.1} parent=0 // pred_region
    _
  $region73: #{new_transformer_encoder_forward.1} parent=0 // pred_fallthru
    _
  // Predicated region
  $region74: #{new_transformer_encoder_forward.1} parent=0 // pred_check
    _
  $region75: #{new_transformer_encoder_forward.1} parent=0 // pred_check_branch
    %104 = sbr.rel (0) target = $region77
  $region76: #{new_transformer_encoder_forward.1} parent=0 // pred_region
    _
  $region77: #{new_transformer_encoder_forward.1} parent=0 // pred_fallthru
    _
  // Predicated region
  $region78: #{new_transformer_encoder_forward.1} parent=0 // pred_check
    _
  $region79: #{new_transformer_encoder_forward.1} parent=0 // pred_check_branch
    %106 = sbr.rel (0) target = $region81
  $region80: #{new_transformer_encoder_forward.1} parent=0 // pred_region
    _
  $region81: #{new_transformer_encoder_forward.1} parent=0 // pred_fallthru
    _
  // Predicated region
  $region82: #{new_transformer_encoder_forward.1} parent=0 // pred_check
    _
  $region83: #{new_transformer_encoder_forward.1} parent=0 // pred_check_branch
    %108 = sbr.rel (0) target = $region85
  $region84: #{new_transformer_encoder_forward.1} parent=0 // pred_region
    _
  $region85: #{new_transformer_encoder_forward.1} parent=0 // pred_fallthru
    _
  // Predicated region
  $region86: #{new_transformer_encoder_forward.1} parent=0 // pred_check
    _
  $region87: #{new_transformer_encoder_forward.1} parent=0 // pred_check_branch
    %110 = sbr.rel (0) target = $region89
  $region88: #{new_transformer_encoder_forward.1} parent=0 // pred_region
    _
  $region89: #{new_transformer_encoder_forward.1} parent=0 // pred_fallthru
    _
  // Predicated region
  $region90: #{new_transformer_encoder_forward.1} parent=0 // pred_check
    _
  $region91: #{new_transformer_encoder_forward.1} parent=0 // pred_check_branch
    %112 = sbr.rel (0) target = $region93
  $region92: #{new_transformer_encoder_forward.1} parent=0 // pred_region
    _
  $region93: #{new_transformer_encoder_forward.1} parent=0 // pred_fallthru
    _
  // Predicated region
  $region94: #{new_transformer_encoder_forward.1} parent=0 // pred_check
    _
  $region95: #{new_transformer_encoder_forward.1} parent=0 // pred_check_branch
    %114 = sbr.rel (0) target = $region97
  $region96: #{new_transformer_encoder_forward.1} parent=0 // pred_region
    _
  $region97: #{new_transformer_encoder_forward.1} parent=0 // pred_fallthru
    _
  // Predicated region
  $region98: #{new_transformer_encoder_forward.1} parent=0 // pred_check
    _
  $region99: #{new_transformer_encoder_forward.1} parent=0 // pred_check_branch
    %116 = sbr.rel (0) target = $region101
  $region100: #{new_transformer_encoder_forward.1} parent=0 // pred_region
    _
  $region101: #{new_transformer_encoder_forward.1} parent=0 // pred_fallthru
    _
  // Predicated region
  $region102: #{new_transformer_encoder_forward.1} parent=0 // pred_check
    _
  $region103: #{new_transformer_encoder_forward.1} parent=0 // pred_check_branch
    %118 = sbr.rel (0) target = $region105
  $region104: #{new_transformer_encoder_forward.1} parent=0 // pred_region
    _
  $region105: #{new_transformer_encoder_forward.1} parent=0 // pred_fallthru
    _
  // Predicated region
  $region106: #{new_transformer_encoder_forward.1} parent=0 // pred_check
    _
  $region107: #{new_transformer_encoder_forward.1} parent=0 // pred_check_branch
    %120 = sbr.rel (0) target = $region109
  $region108: #{new_transformer_encoder_forward.1} parent=0 // pred_region
    _
  $region109: #{new_transformer_encoder_forward.1} parent=0 // pred_fallthru
    _
  // Predicated region
  $region110: #{new_transformer_encoder_forward.1} parent=0 // pred_check
    _
  $region111: #{new_transformer_encoder_forward.1} parent=0 // pred_check_branch
    %122 = sbr.rel (0) target = $region113
  $region112: #{new_transformer_encoder_forward.1} parent=0 // pred_region
    _
  $region113: #{new_transformer_encoder_forward.1} parent=0 // pred_fallthru
    _
  // Predicated region
  $region114: #{new_transformer_encoder_forward.1} parent=0 // pred_check
    _
  $region115: #{new_transformer_encoder_forward.1} parent=0 // pred_check_branch
    %124 = sbr.rel (0) target = $region117
  $region116: #{new_transformer_encoder_forward.1} parent=0 // pred_region
    _
  $region117: #{new_transformer_encoder_forward.1} parent=0 // pred_fallthru
    _
  %v126 = vld [vmem:[%s1] sm:$0xff]
  %v127 = vld [vmem:[%s1 + $0x8] sm:$0xff]
  %v128 = vld [vmem:[%s1 + $0x10] sm:$0xff]
  %v129 = vld [vmem:[%s1 + $0x18] sm:$0xff]
  %v130 = vld [vmem:[%s1 + $0x20] sm:$0xff]
  %v131 = vld [vmem:[%s1 + $0x28] sm:$0xff]
  %v132 = vld [vmem:[%s1 + $0x30] sm:$0xff]
  %v133 = vld [vmem:[%s1 + $0x38] sm:$0xff]
  %v134 = vld [vmem:[%s3] sm:$0x1]
  %v135 = vld [vmem:[%s3 + $0x1] sm:$0x1]
  %v136 = vld [vmem:[%s3 + $0x2] sm:$0x1]
  %v137 = vld [vmem:[%s3 + $0x3] sm:$0x1]
  %v138 = vld [vmem:[%s3 + $0x4] sm:$0x1]
  %v139 = vld [vmem:[%s3 + $0x5] sm:$0x1]
  %v140 = vld [vmem:[%s3 + $0x6] sm:$0x1]
  %v141 = vld [vmem:[%s3 + $0x7] sm:$0x1]
  %v142 = vld [vmem:[%s5] sm:$0xff]
  %v143 = vld [vmem:[%s5 + $0x8] sm:$0xff]
  %v144 = vld [vmem:[%s5 + $0x10] sm:$0xff]
  %v145 = vld [vmem:[%s5 + $0x18] sm:$0xff]
  %v146 = vld [vmem:[%s5 + $0x20] sm:$0xff]
  %v147 = vld [vmem:[%s5 + $0x28] sm:$0xff]
  %v148 = vld [vmem:[%s5 + $0x30] sm:$0xff]
  %v149 = vld [vmem:[%s5 + $0x38] sm:$0xff]
  %v150 = vld [vmem:[%s7] sm:$0x1]
  %v151 = vld [vmem:[%s9] sm:$0x1]
  %vm152 = vcmask 261120
  %v153 = vsel %vm152, %v126, 0.0
  %154 = vadd.xlane.f32.xlu0 %v153
  %v155 = vpop.xlane.xlu0 %154
  %v156 = vsel %vm152, %v127, 0.0
  %157 = vadd.xlane.f32.xlu0 %v156
  %v158 = vpop.xlane.xlu0 %157
  %v159 = vsel %vm152, %v128, 0.0
  %160 = vadd.xlane.f32.xlu0 %v159
  %v161 = vpop.xlane.xlu0 %160
  %v162 = vsel %vm152, %v129, 0.0
  %163 = vadd.xlane.f32.xlu0 %v162
  %v164 = vpop.xlane.xlu0 %163
  %v165 = vsel %vm152, %v130, 0.0
  %166 = vadd.xlane.f32.xlu0 %v165
  %v167 = vpop.xlane.xlu0 %166
  %v168 = vsel %vm152, %v131, 0.0
  %169 = vadd.xlane.f32.xlu0 %v168
  %v170 = vpop.xlane.xlu0 %169
  %v171 = vsel %vm152, %v132, 0.0
  %172 = vadd.xlane.f32.xlu0 %v171
  %v173 = vpop.xlane.xlu0 %172
  %v174 = vsel %vm152, %v133, 0.0
  %175 = vadd.xlane.f32.xlu0 %v174
  %v176 = vpop.xlane.xlu0 %175
  %v177 = vrcp.pop 32.0
  %v178 = vmul.f32 %v155, %v177
  %v179 = vmul.f32 %v158, %v177
  %v180 = vmul.f32 %v161, %v177
  %v181 = vmul.f32 %v164, %v177
  %v182 = vmul.f32 %v167, %v177
  %v183 = vmul.f32 %v170, %v177
  %v184 = vmul.f32 %v173, %v177
  %v185 = vmul.f32 %v176, %v177
  %v186 = vsub.f32 %v126, %v178
  %v187 = vsub.f32 %v127, %v179
  %v188 = vsub.f32 %v128, %v180
  %v189 = vsub.f32 %v129, %v181
  %v190 = vsub.f32 %v130, %v182
  %v191 = vsub.f32 %v131, %v183
  %v192 = vsub.f32 %v132, %v184
  %v193 = vsub.f32 %v133, %v185
  %v194 = vmul.f32 %v186, %v186
  %v195 = vmul.f32 %v187, %v187
  %v196 = vmul.f32 %v188, %v188
  %v197 = vmul.f32 %v189, %v189
  %v198 = vmul.f32 %v190, %v190
  %v199 = vmul.f32 %v191, %v191
  %v200 = vmul.f32 %v192, %v192
  %v201 = vmul.f32 %v193, %v193
  %v202 = vsel %vm152, %v194, 0.0
  %203 = vadd.xlane.f32.xlu0 %v202
  %v204 = vpop.xlane.xlu0 %203
  %v205 = vsel %vm152, %v195, 0.0
  %206 = vadd.xlane.f32.xlu0 %v205
  %v207 = vpop.xlane.xlu0 %206
  %v208 = vsel %vm152, %v196, 0.0
  %209 = vadd.xlane.f32.xlu0 %v208
  %v210 = vpop.xlane.xlu0 %209
  %v211 = vsel %vm152, %v197, 0.0
  %212 = vadd.xlane.f32.xlu0 %v211
  %v213 = vpop.xlane.xlu0 %212
  %v214 = vsel %vm152, %v198, 0.0
  %215 = vadd.xlane.f32.xlu0 %v214
  %v216 = vpop.xlane.xlu0 %215
  %v217 = vsel %vm152, %v199, 0.0
  %218 = vadd.xlane.f32.xlu0 %v217
  %v219 = vpop.xlane.xlu0 %218
  %v220 = vsel %vm152, %v200, 0.0
  %221 = vadd.xlane.f32.xlu0 %v220
  %v222 = vpop.xlane.xlu0 %221
  %v223 = vsel %vm152, %v201, 0.0
  %224 = vadd.xlane.f32.xlu0 %v223
  %v225 = vpop.xlane.xlu0 %224
  %v226 = vmul.f32 %v204, %v177
  %v227 = vmul.f32 %v207, %v177
  %v228 = vmul.f32 %v210, %v177
  %v229 = vmul.f32 %v213, %v177
  %v230 = vmul.f32 %v216, %v177
  %v231 = vmul.f32 %v219, %v177
  %v232 = vmul.f32 %v222, %v177
  %v233 = vmul.f32 %v225, %v177
  %v234 = vadd.f32 %v226, 1e-06
  %v235 = vadd.f32 %v227, 1e-06
  %v236 = vadd.f32 %v228, 1e-06
  %v237 = vadd.f32 %v229, 1e-06
  %v238 = vadd.f32 %v230, 1e-06
  %v239 = vadd.f32 %v231, 1e-06
  %v240 = vadd.f32 %v232, 1e-06
  %v241 = vadd.f32 %v233, 1e-06
  %v242 = vrsqrt.pop %v234
  %v243 = vrsqrt.pop %v235
  %v244 = vrsqrt.pop %v236
  %v245 = vrsqrt.pop %v237
  %v246 = vrsqrt.pop %v238
  %v247 = vrsqrt.pop %v239
  %v248 = vrsqrt.pop %v240
  %v249 = vrsqrt.pop %v241
  %v250 = vmul.f32 %v186, %v242
  %v251 = vmul.f32 %v187, %v243
  %v252 = vmul.f32 %v188, %v244
  %v253 = vmul.f32 %v189, %v245
  %v254 = vmul.f32 %v190, %v246
  %v255 = vmul.f32 %v191, %v247
  %v256 = vmul.f32 %v192, %v248
  %v257 = vmul.f32 %v193, %v249
  %v259 = vlaneseq
  %v260 = vshrl.u32 %v259, 7
  %v261 = vsub.s32 0, %v260
  %v262 = vrot.slane %v150, %v261
  %v264 = vmul.f32 %v250, %v262
  %v265 = vmul.f32 %v251, %v262
  %v266 = vmul.f32 %v252, %v262
  %v267 = vmul.f32 %v253, %v262
  %v268 = vmul.f32 %v254, %v262
  %v269 = vmul.f32 %v255, %v262
  %v270 = vmul.f32 %v256, %v262
  %v271 = vmul.f32 %v257, %v262
  %v273 = vlaneseq
  %v274 = vshrl.u32 %v273, 7
  %v275 = vsub.s32 0, %v274
  %v276 = vrot.slane %v151, %v275
  %v278 = vadd.f32 %v264, %v276
  %v279 = vadd.f32 %v265, %v276
  %v280 = vadd.f32 %v266, %v276
  %v281 = vadd.f32 %v267, %v276
  %v282 = vadd.f32 %v268, %v276
  %v283 = vadd.f32 %v269, %v276
  %v284 = vadd.f32 %v270, %v276
  %v285 = vadd.f32 %v271, %v276
  %v286 = vpack.c.bf16 %v279, %v278
  %v287 = vpack.c.bf16 %v281, %v280
  %v288 = vpack.c.bf16 %v283, %v282
  %v289 = vpack.c.bf16 %v285, %v284
  %v290 = vld [vmem:[%s11] sm:$0xf]
  %v291 = vld [vmem:[%s11 + $0x4] sm:$0xf]
  %v292 = vld [vmem:[%s11 + $0x8] sm:$0xf]
  %v293 = vld [vmem:[%s11 + $0xc] sm:$0xf]
  %v294 = vld [vmem:[%s13] sm:$0x1]
  %v296 = vlaneseq
  %v297 = vshrl.u32 %v296, 7
  %v298 = vsub.s32 0, %v297
  %v299 = vrot.slane %v294, %v298
  %v305 = vunpack.c.l.b16 %v290
  %v306 = vunpack.c.l.b16 %v291
  %v307 = vunpack.c.l.b16 %v292
  %v308 = vunpack.c.l.b16 %v293
  %v309 = vpack.c.b16 %v306, %v305
  %v310 = vpack.c.b16 %v308, %v307
  %v314 = vsel %vm152, %v286, 0
  %v317 = vsel %vm152, %v287, 0
  %v320 = vsel %vm152, %v288, 0
  %v323 = vsel %vm152, %v289, 0
  %325 = vmatprep.subr.bf16.mxu0 0
  %326 = vmatpush1.bf16.msra.mxu0 %v309
  %327 = vmatprep.subr.bf16.mxu0 0
  %328 = vmatpush1.bf16.msra.mxu0 %v310
  %329 = vmatprep.subr.bf16.mxu0 0
  %330 = vmatpush1.bf16.msra.mxu0 0
  %331 = vmatprep.subr.bf16.mxu0 0
  %332 = vmatpush1.bf16.msra.mxu0 0
  %333 = vmatprep.subr.bf16.mxu0 0
  %334 = vmatpush1.bf16.msra.mxu0 0
  %335 = vmatprep.subr.bf16.mxu0 0
  %336 = vmatpush1.bf16.msra.mxu0 0
  %337 = vmatprep.subr.bf16.mxu0 0
  %338 = vmatpush1.bf16.msra.mxu0 0
  %339 = vmatprep.subr.bf16.mxu0 0
  %340 = vmatpush1.bf16.msra.mxu0 0
  %341 = vmatprep.subr.bf16.mxu0 0
  %342 = vmatpush1.bf16.msra.mxu0 0
  %343 = vmatprep.subr.bf16.mxu0 0
  %344 = vmatpush1.bf16.msra.mxu0 0
  %345 = vmatprep.subr.bf16.mxu0 0
  %346 = vmatpush1.bf16.msra.mxu0 0
  %347 = vmatprep.subr.bf16.mxu0 0
  %348 = vmatpush1.bf16.msra.mxu0 0
  %349 = vmatprep.subr.bf16.mxu0 0
  %350 = vmatpush1.bf16.msra.mxu0 0
  %351 = vmatprep.subr.bf16.mxu0 0
  %352 = vmatpush1.bf16.msra.mxu0 0
  %353 = vmatprep.subr.bf16.mxu0 0
  %354 = vmatpush1.bf16.msra.mxu0 0
  %355 = vmatprep.subr.bf16.mxu0 0
  %356 = vmatpush1.bf16.msra.mxu0 0
  %357 = vmatprep.mubr.bf16.mxu0 0
  %358 = vmatmul.mubr.bf16.gmra.mrb[0].mxu0 %v314
  %v359 = vpop.f32.mrb[0].mxu0
  %v360 = vadd.f32 %v299, %v359
  %v361 = vpop.f32.mrb[0].mxu0
  %v362 = vpop.f32.mrb[0].mxu0
  %v363 = vadd.f32 %v299, %v362
  %v364 = vpop.f32.mrb[0].mxu0
  %365 = vmatprep.mubr.bf16.mxu0 0
  %366 = vmatmul.mubr.bf16.gmra.mrb[0].mxu0 %v317
  %v367 = vpop.f32.mrb[0].mxu0
  %v368 = vadd.f32 %v299, %v367
  %v369 = vpop.f32.mrb[0].mxu0
  %v370 = vpop.f32.mrb[0].mxu0
  %v371 = vadd.f32 %v299, %v370
  %v372 = vpop.f32.mrb[0].mxu0
  %373 = vmatprep.mubr.bf16.mxu0 0
  %374 = vmatmul.mubr.bf16.gmra.mrb[0].mxu0 %v320
  %v375 = vpop.f32.mrb[0].mxu0
  %v376 = vadd.f32 %v299, %v375
  %v377 = vpop.f32.mrb[0].mxu0
  %v378 = vpop.f32.mrb[0].mxu0
  %v379 = vadd.f32 %v299, %v378
  %v380 = vpop.f32.mrb[0].mxu0
  %381 = vmatprep.mubr.bf16.mxu0 0
  %382 = vmatmul.mubr.bf16.gmra.mrb[0].mxu0 %v323
  %v383 = vpop.f32.mrb[0].mxu0
  %v384 = vadd.f32 %v299, %v383
  %v385 = vpop.f32.mrb[0].mxu0
  %v386 = vpop.f32.mrb[0].mxu0
  %v387 = vadd.f32 %v299, %v386
  %v388 = vpop.f32.mrb[0].mxu0
  %389 = vdwg.mxu0
  %v390 = vpack.c.bf16 %v360, %v360
  %v391 = vpack.c.bf16 %v363, %v363
  %v392 = vpack.c.bf16 %v368, %v368
  %v393 = vpack.c.bf16 %v371, %v371
  %v394 = vpack.c.bf16 %v376, %v376
  %v395 = vpack.c.bf16 %v379, %v379
  %v396 = vpack.c.bf16 %v384, %v384
  %v397 = vpack.c.bf16 %v387, %v387
  %399 = vrot.lane.b32.xlu0 %v390, 96
  %v400 = vpop.permute.xlu0 %399
  %vm401 = vcmask 64512
  %v403 = vsel %vm401, %v390, 0
  %v406 = vsel %vm401, %v400, 0
  %408 = vmatprep.subr.bf16.mxu0 0
  %409 = vmatpush1.bf16.xpose.msra.mxu0 %v406
  %410 = vmatprep.subr.bf16.mxu0 0
  %411 = vmatpush1.bf16.xpose.msra.mxu0 0
  %412 = vmatprep.subr.bf16.mxu0 0
  %413 = vmatpush1.bf16.xpose.msra.mxu0 0
  %414 = vmatprep.subr.bf16.mxu0 0
  %415 = vmatpush1.bf16.xpose.msra.mxu0 0
  %416 = vmatprep.subr.bf16.mxu0 0
  %417 = vmatpush1.bf16.xpose.msra.mxu0 0
  %418 = vmatprep.subr.bf16.mxu0 0
  %419 = vmatpush1.bf16.xpose.msra.mxu0 0
  %420 = vmatprep.subr.bf16.mxu0 0
  %421 = vmatpush1.bf16.xpose.msra.mxu0 0
  %422 = vmatprep.subr.bf16.mxu0 0
  %423 = vmatpush1.bf16.xpose.msra.mxu0 0
  %424 = vmatprep.subr.bf16.mxu0 0
  %425 = vmatpush1.bf16.xpose.msra.mxu0 0
  %426 = vmatprep.subr.bf16.mxu0 0
  %427 = vmatpush1.bf16.xpose.msra.mxu0 0
  %428 = vmatprep.subr.bf16.mxu0 0
  %429 = vmatpush1.bf16.xpose.msra.mxu0 0
  %430 = vmatprep.subr.bf16.mxu0 0
  %431 = vmatpush1.bf16.xpose.msra.mxu0 0
  %432 = vmatprep.subr.bf16.mxu0 0
  %433 = vmatpush1.bf16.xpose.msra.mxu0 0
  %434 = vmatprep.subr.bf16.mxu0 0
  %435 = vmatpush1.bf16.xpose.msra.mxu0 0
  %436 = vmatprep.subr.bf16.mxu0 0
  %437 = vmatpush1.bf16.xpose.msra.mxu0 0
  %438 = vmatprep.subr.bf16.mxu0 0
  %439 = vmatpush1.bf16.xpose.msra.mxu0 0
  %440 = vmatprep.mubr.bf16.mxu0 0
  %441 = vmatmul.mubr.bf16.gmra.mrb[0].mxu0 %v403
  %v442 = vpop.f32.mrb[0].mxu0
  %v443 = vadd.f32 0.0, %v442
  %v444 = vpop.f32.mrb[0].mxu0
  %v445 = vpop.f32.mrb[0].mxu0
  %v446 = vpop.f32.mrb[0].mxu0
  %447 = vdwg.mxu0
  %449 = vrot.lane.b32.xlu0 %v391, 96
  %v450 = vpop.permute.xlu0 %449
  %v452 = vsel %vm401, %v391, 0
  %v455 = vsel %vm401, %v450, 0
  %457 = vmatprep.subr.bf16.mxu0 0
  %458 = vmatpush1.bf16.xpose.msra.mxu0 %v455
  %459 = vmatprep.subr.bf16.mxu0 0
  %460 = vmatpush1.bf16.xpose.msra.mxu0 0
  %461 = vmatprep.subr.bf16.mxu0 0
  %462 = vmatpush1.bf16.xpose.msra.mxu0 0
  %463 = vmatprep.subr.bf16.mxu0 0
  %464 = vmatpush1.bf16.xpose.msra.mxu0 0
  %465 = vmatprep.subr.bf16.mxu0 0
  %466 = vmatpush1.bf16.xpose.msra.mxu0 0
  %467 = vmatprep.subr.bf16.mxu0 0
  %468 = vmatpush1.bf16.xpose.msra.mxu0 0
  %469 = vmatprep.subr.bf16.mxu0 0
  %470 = vmatpush1.bf16.xpose.msra.mxu0 0
  %471 = vmatprep.subr.bf16.mxu0 0
  %472 = vmatpush1.bf16.xpose.msra.mxu0 0
  %473 = vmatprep.subr.bf16.mxu0 0
  %474 = vmatpush1.bf16.xpose.msra.mxu0 0
  %475 = vmatprep.subr.bf16.mxu0 0
  %476 = vmatpush1.bf16.xpose.msra.mxu0 0
  %477 = vmatprep.subr.bf16.mxu0 0
  %478 = vmatpush1.bf16.xpose.msra.mxu0 0
  %479 = vmatprep.subr.bf16.mxu0 0
  %480 = vmatpush1.bf16.xpose.msra.mxu0 0
  %481 = vmatprep.subr.bf16.mxu0 0
  %482 = vmatpush1.bf16.xpose.msra.mxu0 0
  %483 = vmatprep.subr.bf16.mxu0 0
  %484 = vmatpush1.bf16.xpose.msra.mxu0 0
  %485 = vmatprep.subr.bf16.mxu0 0
  %486 = vmatpush1.bf16.xpose.msra.mxu0 0
  %487 = vmatprep.subr.bf16.mxu0 0
  %488 = vmatpush1.bf16.xpose.msra.mxu0 0
  %489 = vmatprep.mubr.bf16.mxu0 0
  %490 = vmatmul.mubr.bf16.gmra.mrb[0].mxu0 %v452
  %v491 = vpop.f32.mrb[0].mxu0
  %v492 = vadd.f32 0.0, %v491
  %v493 = vpop.f32.mrb[0].mxu0
  %v494 = vpop.f32.mrb[0].mxu0
  %v495 = vpop.f32.mrb[0].mxu0
  %496 = vdwg.mxu0
  %498 = vrot.lane.b32.xlu0 %v392, 96
  %v499 = vpop.permute.xlu0 %498
  %v501 = vsel %vm401, %v392, 0
  %v504 = vsel %vm401, %v499, 0
  %506 = vmatprep.subr.bf16.mxu0 0
  %507 = vmatpush1.bf16.xpose.msra.mxu0 %v504
  %508 = vmatprep.subr.bf16.mxu0 0
  %509 = vmatpush1.bf16.xpose.msra.mxu0 0
  %510 = vmatprep.subr.bf16.mxu0 0
  %511 = vmatpush1.bf16.xpose.msra.mxu0 0
  %512 = vmatprep.subr.bf16.mxu0 0
  %513 = vmatpush1.bf16.xpose.msra.mxu0 0
  %514 = vmatprep.subr.bf16.mxu0 0
  %515 = vmatpush1.bf16.xpose.msra.mxu0 0
  %516 = vmatprep.subr.bf16.mxu0 0
  %517 = vmatpush1.bf16.xpose.msra.mxu0 0
  %518 = vmatprep.subr.bf16.mxu0 0
  %519 = vmatpush1.bf16.xpose.msra.mxu0 0
  %520 = vmatprep.subr.bf16.mxu0 0
  %521 = vmatpush1.bf16.xpose.msra.mxu0 0
  %522 = vmatprep.subr.bf16.mxu0 0
  %523 = vmatpush1.bf16.xpose.msra.mxu0 0
  %524 = vmatprep.subr.bf16.mxu0 0
  %525 = vmatpush1.bf16.xpose.msra.mxu0 0
  %526 = vmatprep.subr.bf16.mxu0 0
  %527 = vmatpush1.bf16.xpose.msra.mxu0 0
  %528 = vmatprep.subr.bf16.mxu0 0
  %529 = vmatpush1.bf16.xpose.msra.mxu0 0
  %530 = vmatprep.subr.bf16.mxu0 0
  %531 = vmatpush1.bf16.xpose.msra.mxu0 0
  %532 = vmatprep.subr.bf16.mxu0 0
  %533 = vmatpush1.bf16.xpose.msra.mxu0 0
  %534 = vmatprep.subr.bf16.mxu0 0
  %535 = vmatpush1.bf16.xpose.msra.mxu0 0
  %536 = vmatprep.subr.bf16.mxu0 0
  %537 = vmatpush1.bf16.xpose.msra.mxu0 0
  %538 = vmatprep.mubr.bf16.mxu0 0
  %539 = vmatmul.mubr.bf16.gmra.mrb[0].mxu0 %v501
  %v540 = vpop.f32.mrb[0].mxu0
  %v541 = vadd.f32 0.0, %v540
  %v542 = vpop.f32.mrb[0].mxu0
  %v543 = vpop.f32.mrb[0].mxu0
  %v544 = vpop.f32.mrb[0].mxu0
  %545 = vdwg.mxu0
  %547 = vrot.lane.b32.xlu0 %v393, 96
  %v548 = vpop.permute.xlu0 %547
  %v550 = vsel %vm401, %v393, 0
  %v553 = vsel %vm401, %v548, 0
  %555 = vmatprep.subr.bf16.mxu0 0
  %556 = vmatpush1.bf16.xpose.msra.mxu0 %v553
  %557 = vmatprep.subr.bf16.mxu0 0
  %558 = vmatpush1.bf16.xpose.msra.mxu0 0
  %559 = vmatprep.subr.bf16.mxu0 0
  %560 = vmatpush1.bf16.xpose.msra.mxu0 0
  %561 = vmatprep.subr.bf16.mxu0 0
  %562 = vmatpush1.bf16.xpose.msra.mxu0 0
  %563 = vmatprep.subr.bf16.mxu0 0
  %564 = vmatpush1.bf16.xpose.msra.mxu0 0
  %565 = vmatprep.subr.bf16.mxu0 0
  %566 = vmatpush1.bf16.xpose.msra.mxu0 0
  %567 = vmatprep.subr.bf16.mxu0 0
  %568 = vmatpush1.bf16.xpose.msra.mxu0 0
  %569 = vmatprep.subr.bf16.mxu0 0
  %570 = vmatpush1.bf16.xpose.msra.mxu0 0
  %571 = vmatprep.subr.bf16.mxu0 0
  %572 = vmatpush1.bf16.xpose.msra.mxu0 0
  %573 = vmatprep.subr.bf16.mxu0 0
  %574 = vmatpush1.bf16.xpose.msra.mxu0 0
  %575 = vmatprep.subr.bf16.mxu0 0
  %576 = vmatpush1.bf16.xpose.msra.mxu0 0
  %577 = vmatprep.subr.bf16.mxu0 0
  %578 = vmatpush1.bf16.xpose.msra.mxu0 0
  %579 = vmatprep.subr.bf16.mxu0 0
  %580 = vmatpush1.bf16.xpose.msra.mxu0 0
  %581 = vmatprep.subr.bf16.mxu0 0
  %582 = vmatpush1.bf16.xpose.msra.mxu0 0
  %583 = vmatprep.subr.bf16.mxu0 0
  %584 = vmatpush1.bf16.xpose.msra.mxu0 0
  %585 = vmatprep.subr.bf16.mxu0 0
  %586 = vmatpush1.bf16.xpose.msra.mxu0 0
  %587 = vmatprep.mubr.bf16.mxu0 0
  %588 = vmatmul.mubr.bf16.gmra.mrb[0].mxu0 %v550
  %v589 = vpop.f32.mrb[0].mxu0
  %v590 = vadd.f32 0.0, %v589
  %v591 = vpop.f32.mrb[0].mxu0
  %v592 = vpop.f32.mrb[0].mxu0
  %v593 = vpop.f32.mrb[0].mxu0
  %594 = vdwg.mxu0
  %596 = vrot.lane.b32.xlu0 %v394, 96
  %v597 = vpop.permute.xlu0 %596
  %v599 = vsel %vm401, %v394, 0
  %v602 = vsel %vm401, %v597, 0
  %604 = vmatprep.subr.bf16.mxu0 0
  %605 = vmatpush1.bf16.xpose.msra.mxu0 %v602
  %606 = vmatprep.subr.bf16.mxu0 0
  %607 = vmatpush1.bf16.xpose.msra.mxu0 0
  %608 = vmatprep.subr.bf16.mxu0 0
  %609 = vmatpush1.bf16.xpose.msra.mxu0 0
  %610 = vmatprep.subr.bf16.mxu0 0
  %611 = vmatpush1.bf16.xpose.msra.mxu0 0
  %612 = vmatprep.subr.bf16.mxu0 0
  %613 = vmatpush1.bf16.xpose.msra.mxu0 0
  %614 = vmatprep.subr.bf16.mxu0 0
  %615 = vmatpush1.bf16.xpose.msra.mxu0 0
  %616 = vmatprep.subr.bf16.mxu0 0
  %617 = vmatpush1.bf16.xpose.msra.mxu0 0
  %618 = vmatprep.subr.bf16.mxu0 0
  %619 = vmatpush1.bf16.xpose.msra.mxu0 0
  %620 = vmatprep.subr.bf16.mxu0 0
  %621 = vmatpush1.bf16.xpose.msra.mxu0 0
  %622 = vmatprep.subr.bf16.mxu0 0
  %623 = vmatpush1.bf16.xpose.msra.mxu0 0
  %624 = vmatprep.subr.bf16.mxu0 0
  %625 = vmatpush1.bf16.xpose.msra.mxu0 0
  %626 = vmatprep.subr.bf16.mxu0 0
  %627 = vmatpush1.bf16.xpose.msra.mxu0 0
  %628 = vmatprep.subr.bf16.mxu0 0
  %629 = vmatpush1.bf16.xpose.msra.mxu0 0
  %630 = vmatprep.subr.bf16.mxu0 0
  %631 = vmatpush1.bf16.xpose.msra.mxu0 0
  %632 = vmatprep.subr.bf16.mxu0 0
  %633 = vmatpush1.bf16.xpose.msra.mxu0 0
  %634 = vmatprep.subr.bf16.mxu0 0
  %635 = vmatpush1.bf16.xpose.msra.mxu0 0
  %636 = vmatprep.mubr.bf16.mxu0 0
  %637 = vmatmul.mubr.bf16.gmra.mrb[0].mxu0 %v599
  %v638 = vpop.f32.mrb[0].mxu0
  %v639 = vadd.f32 0.0, %v638
  %v640 = vpop.f32.mrb[0].mxu0
  %v641 = vpop.f32.mrb[0].mxu0
  %v642 = vpop.f32.mrb[0].mxu0
  %643 = vdwg.mxu0
  %645 = vrot.lane.b32.xlu0 %v395, 96
  %v646 = vpop.permute.xlu0 %645
  %v648 = vsel %vm401, %v395, 0
  %v651 = vsel %vm401, %v646, 0
  %653 = vmatprep.subr.bf16.mxu0 0
  %654 = vmatpush1.bf16.xpose.msra.mxu0 %v651
  %655 = vmatprep.subr.bf16.mxu0 0
  %656 = vmatpush1.bf16.xpose.msra.mxu0 0
  %657 = vmatprep.subr.bf16.mxu0 0
  %658 = vmatpush1.bf16.xpose.msra.mxu0 0
  %659 = vmatprep.subr.bf16.mxu0 0
  %660 = vmatpush1.bf16.xpose.msra.mxu0 0
  %661 = vmatprep.subr.bf16.mxu0 0
  %662 = vmatpush1.bf16.xpose.msra.mxu0 0
  %663 = vmatprep.subr.bf16.mxu0 0
  %664 = vmatpush1.bf16.xpose.msra.mxu0 0
  %665 = vmatprep.subr.bf16.mxu0 0
  %666 = vmatpush1.bf16.xpose.msra.mxu0 0
  %667 = vmatprep.subr.bf16.mxu0 0
  %668 = vmatpush1.bf16.xpose.msra.mxu0 0
  %669 = vmatprep.subr.bf16.mxu0 0
  %670 = vmatpush1.bf16.xpose.msra.mxu0 0
  %671 = vmatprep.subr.bf16.mxu0 0
  %672 = vmatpush1.bf16.xpose.msra.mxu0 0
  %673 = vmatprep.subr.bf16.mxu0 0
  %674 = vmatpush1.bf16.xpose.msra.mxu0 0
  %675 = vmatprep.subr.bf16.mxu0 0
  %676 = vmatpush1.bf16.xpose.msra.mxu0 0
  %677 = vmatprep.subr.bf16.mxu0 0
  %678 = vmatpush1.bf16.xpose.msra.mxu0 0
  %679 = vmatprep.subr.bf16.mxu0 0
  %680 = vmatpush1.bf16.xpose.msra.mxu0 0
  %681 = vmatprep.subr.bf16.mxu0 0
  %682 = vmatpush1.bf16.xpose.msra.mxu0 0
  %683 = vmatprep.subr.bf16.mxu0 0
  %684 = vmatpush1.bf16.xpose.msra.mxu0 0
  %685 = vmatprep.mubr.bf16.mxu0 0
  %686 = vmatmul.mubr.bf16.gmra.mrb[0].mxu0 %v648
  %v687 = vpop.f32.mrb[0].mxu0
  %v688 = vadd.f32 0.0, %v687
  %v689 = vpop.f32.mrb[0].mxu0
  %v690 = vpop.f32.mrb[0].mxu0
  %v691 = vpop.f32.mrb[0].mxu0
  %692 = vdwg.mxu0
  %694 = vrot.lane.b32.xlu0 %v396, 96
  %v695 = vpop.permute.xlu0 %694
  %v697 = vsel %vm401, %v396, 0
  %v700 = vsel %vm401, %v695, 0
  %702 = vmatprep.subr.bf16.mxu0 0
  %703 = vmatpush1.bf16.xpose.msra.mxu0 %v700
  %704 = vmatprep.subr.bf16.mxu0 0
  %705 = vmatpush1.bf16.xpose.msra.mxu0 0
  %706 = vmatprep.subr.bf16.mxu0 0
  %707 = vmatpush1.bf16.xpose.msra.mxu0 0
  %708 = vmatprep.subr.bf16.mxu0 0
  %709 = vmatpush1.bf16.xpose.msra.mxu0 0
  %710 = vmatprep.subr.bf16.mxu0 0
  %711 = vmatpush1.bf16.xpose.msra.mxu0 0
  %712 = vmatprep.subr.bf16.mxu0 0
  %713 = vmatpush1.bf16.xpose.msra.mxu0 0
  %714 = vmatprep.subr.bf16.mxu0 0
  %715 = vmatpush1.bf16.xpose.msra.mxu0 0
  %716 = vmatprep.subr.bf16.mxu0 0
  %717 = vmatpush1.bf16.xpose.msra.mxu0 0
  %718 = vmatprep.subr.bf16.mxu0 0
  %719 = vmatpush1.bf16.xpose.msra.mxu0 0
  %720 = vmatprep.subr.bf16.mxu0 0
  %721 = vmatpush1.bf16.xpose.msra.mxu0 0
  %722 = vmatprep.subr.bf16.mxu0 0
  %723 = vmatpush1.bf16.xpose.msra.mxu0 0
  %724 = vmatprep.subr.bf16.mxu0 0
  %725 = vmatpush1.bf16.xpose.msra.mxu0 0
  %726 = vmatprep.subr.bf16.mxu0 0
  %727 = vmatpush1.bf16.xpose.msra.mxu0 0
  %728 = vmatprep.subr.bf16.mxu0 0
  %729 = vmatpush1.bf16.xpose.msra.mxu0 0
  %730 = vmatprep.subr.bf16.mxu0 0
  %731 = vmatpush1.bf16.xpose.msra.mxu0 0
  %732 = vmatprep.subr.bf16.mxu0 0
  %733 = vmatpush1.bf16.xpose.msra.mxu0 0
  %734 = vmatprep.mubr.bf16.mxu0 0
  %735 = vmatmul.mubr.bf16.gmra.mrb[0].mxu0 %v697
  %v736 = vpop.f32.mrb[0].mxu0
  %v737 = vadd.f32 0.0, %v736
  %v738 = vpop.f32.mrb[0].mxu0
  %v739 = vpop.f32.mrb[0].mxu0
  %v740 = vpop.f32.mrb[0].mxu0
  %741 = vdwg.mxu0
  %743 = vrot.lane.b32.xlu0 %v397, 96
  %v744 = vpop.permute.xlu0 %743
  %v746 = vsel %vm401, %v397, 0
  %v749 = vsel %vm401, %v744, 0
  %751 = vmatprep.subr.bf16.mxu0 0
  %752 = vmatpush1.bf16.xpose.msra.mxu0 %v749
  %753 = vmatprep.subr.bf16.mxu0 0
  %754 = vmatpush1.bf16.xpose.msra.mxu0 0
  %755 = vmatprep.subr.bf16.mxu0 0
  %756 = vmatpush1.bf16.xpose.msra.mxu0 0
  %757 = vmatprep.subr.bf16.mxu0 0
  %758 = vmatpush1.bf16.xpose.msra.mxu0 0
  %759 = vmatprep.subr.bf16.mxu0 0
  %760 = vmatpush1.bf16.xpose.msra.mxu0 0
  %761 = vmatprep.subr.bf16.mxu0 0
  %762 = vmatpush1.bf16.xpose.msra.mxu0 0
  %763 = vmatprep.subr.bf16.mxu0 0
  %764 = vmatpush1.bf16.xpose.msra.mxu0 0
  %765 = vmatprep.subr.bf16.mxu0 0
  %766 = vmatpush1.bf16.xpose.msra.mxu0 0
  %767 = vmatprep.subr.bf16.mxu0 0
  %768 = vmatpush1.bf16.xpose.msra.mxu0 0
  %769 = vmatprep.subr.bf16.mxu0 0
  %770 = vmatpush1.bf16.xpose.msra.mxu0 0
  %771 = vmatprep.subr.bf16.mxu0 0
  %772 = vmatpush1.bf16.xpose.msra.mxu0 0
  %773 = vmatprep.subr.bf16.mxu0 0
  %774 = vmatpush1.bf16.xpose.msra.mxu0 0
  %775 = vmatprep.subr.bf16.mxu0 0
  %776 = vmatpush1.bf16.xpose.msra.mxu0 0
  %777 = vmatprep.subr.bf16.mxu0 0
  %778 = vmatpush1.bf16.xpose.msra.mxu0 0
  %779 = vmatprep.subr.bf16.mxu0 0
  %780 = vmatpush1.bf16.xpose.msra.mxu0 0
  %781 = vmatprep.subr.bf16.mxu0 0
  %782 = vmatpush1.bf16.xpose.msra.mxu0 0
  %783 = vmatprep.mubr.bf16.mxu0 0
  %784 = vmatmul.mubr.bf16.gmra.mrb[0].mxu0 %v746
  %v785 = vpop.f32.mrb[0].mxu0
  %v786 = vadd.f32 0.0, %v785
  %v787 = vpop.f32.mrb[0].mxu0
  %v788 = vpop.f32.mrb[0].mxu0
  %v789 = vpop.f32.mrb[0].mxu0
  %790 = vdwg.mxu0
  %v791 = vmul.f32 %v443, 0.35355338
  %v792 = vmul.f32 %v492, 0.35355338
  %v793 = vmul.f32 %v541, 0.35355338
  %v794 = vmul.f32 %v590, 0.35355338
  %v795 = vmul.f32 %v639, 0.35355338
  %v796 = vmul.f32 %v688, 0.35355338
  %v797 = vmul.f32 %v737, 0.35355338
  %v798 = vmul.f32 %v786, 0.35355338
  %v807 = vlaneseq
  %v808 = vshrl.u32 %v807, 7
  %v809 = vsub.s32 0, %v808
  %v810 = vrot.slane %v134, %v809
  %v811 = vlaneseq
  %v812 = vshrl.u32 %v811, 7
  %v813 = vsub.s32 0, %v812
  %v814 = vrot.slane %v135, %v813
  %v815 = vlaneseq
  %v816 = vshrl.u32 %v815, 7
  %v817 = vsub.s32 0, %v816
  %v818 = vrot.slane %v136, %v817
  %v819 = vlaneseq
  %v820 = vshrl.u32 %v819, 7
  %v821 = vsub.s32 0, %v820
  %v822 = vrot.slane %v137, %v821
  %v823 = vlaneseq
  %v824 = vshrl.u32 %v823, 7
  %v825 = vsub.s32 0, %v824
  %v826 = vrot.slane %v138, %v825
  %v827 = vlaneseq
  %v828 = vshrl.u32 %v827, 7
  %v829 = vsub.s32 0, %v828
  %v830 = vrot.slane %v139, %v829
  %v831 = vlaneseq
  %v832 = vshrl.u32 %v831, 7
  %v833 = vsub.s32 0, %v832
  %v834 = vrot.slane %v140, %v833
  %v835 = vlaneseq
  %v836 = vshrl.u32 %v835, 7
  %v837 = vsub.s32 0, %v836
  %v838 = vrot.slane %v141, %v837
  %v847 = vadd.f32 %v791, %v810
  %v848 = vadd.f32 %v792, %v814
  %v849 = vadd.f32 %v793, %v818
  %v850 = vadd.f32 %v794, %v822
  %v851 = vadd.f32 %v795, %v826
  %v852 = vadd.f32 %v796, %v830
  %v853 = vadd.f32 %v797, %v834
  %v854 = vadd.f32 %v798, %v838
  %v855 = vsel %vm401, %v847, -inf
  %856 = vmax.xlane.f32.xlu0 %v855
  %v857 = vpop.xlane.xlu0 %856
  %v858 = vsel %vm401, %v848, -inf
  %859 = vmax.xlane.f32.xlu0 %v858
  %v860 = vpop.xlane.xlu0 %859
  %v861 = vsel %vm401, %v849, -inf
  %862 = vmax.xlane.f32.xlu0 %v861
  %v863 = vpop.xlane.xlu0 %862
  %v864 = vsel %vm401, %v850, -inf
  %865 = vmax.xlane.f32.xlu0 %v864
  %v866 = vpop.xlane.xlu0 %865
  %v867 = vsel %vm401, %v851, -inf
  %868 = vmax.xlane.f32.xlu0 %v867
  %v869 = vpop.xlane.xlu0 %868
  %v870 = vsel %vm401, %v852, -inf
  %871 = vmax.xlane.f32.xlu0 %v870
  %v872 = vpop.xlane.xlu0 %871
  %v873 = vsel %vm401, %v853, -inf
  %874 = vmax.xlane.f32.xlu0 %v873
  %v875 = vpop.xlane.xlu0 %874
  %v876 = vsel %vm401, %v854, -inf
  %877 = vmax.xlane.f32.xlu0 %v876
  %v878 = vpop.xlane.xlu0 %877
  %v879 = vsub.f32 %v847, %v857
  %v880 = vsub.f32 %v848, %v860
  %v881 = vsub.f32 %v849, %v863
  %v882 = vsub.f32 %v850, %v866
  %v883 = vsub.f32 %v851, %v869
  %v884 = vsub.f32 %v852, %v872
  %v885 = vsub.f32 %v853, %v875
  %v886 = vsub.f32 %v854, %v878
  %v887 = vmul.f32 %v879, 1.442695
  %v888 = vpow.pop %v887
  %v889 = vmul.f32 %v880, 1.442695
  %v890 = vpow.pop %v889
  %v891 = vmul.f32 %v881, 1.442695
  %v892 = vpow.pop %v891
  %v893 = vmul.f32 %v882, 1.442695
  %v894 = vpow.pop %v893
  %v895 = vmul.f32 %v883, 1.442695
  %v896 = vpow.pop %v895
  %v897 = vmul.f32 %v884, 1.442695
  %v898 = vpow.pop %v897
  %v899 = vmul.f32 %v885, 1.442695
  %v900 = vpow.pop %v899
  %v901 = vmul.f32 %v886, 1.442695
  %v902 = vpow.pop %v901
  %v903 = vsel %vm401, %v888, 0.0
  %904 = vadd.xlane.f32.xlu0 %v903
  %v905 = vpop.xlane.xlu0 %904
  %v906 = vsel %vm401, %v890, 0.0
  %907 = vadd.xlane.f32.xlu0 %v906
  %v908 = vpop.xlane.xlu0 %907
  %v909 = vsel %vm401, %v892, 0.0
  %910 = vadd.xlane.f32.xlu0 %v909
  %v911 = vpop.xlane.xlu0 %910
  %v912 = vsel %vm401, %v894, 0.0
  %913 = vadd.xlane.f32.xlu0 %v912
  %v914 = vpop.xlane.xlu0 %913
  %v915 = vsel %vm401, %v896, 0.0
  %916 = vadd.xlane.f32.xlu0 %v915
  %v917 = vpop.xlane.xlu0 %916
  %v918 = vsel %vm401, %v898, 0.0
  %919 = vadd.xlane.f32.xlu0 %v918
  %v920 = vpop.xlane.xlu0 %919
  %v921 = vsel %vm401, %v900, 0.0
  %922 = vadd.xlane.f32.xlu0 %v921
  %v923 = vpop.xlane.xlu0 %922
  %v924 = vsel %vm401, %v902, 0.0
  %925 = vadd.xlane.f32.xlu0 %v924
  %v926 = vpop.xlane.xlu0 %925
  %v927 = vrcp.pop %v905
  %v928 = vrcp.pop %v908
  %v929 = vrcp.pop %v911
  %v930 = vrcp.pop %v914
  %v931 = vrcp.pop %v917
  %v932 = vrcp.pop %v920
  %v933 = vrcp.pop %v923
  %v934 = vrcp.pop %v926
  %v935 = vmul.f32 %v888, %v927
  %v936 = vmul.f32 %v890, %v928
  %v937 = vmul.f32 %v892, %v929
  %v938 = vmul.f32 %v894, %v930
  %v939 = vmul.f32 %v896, %v931
  %v940 = vmul.f32 %v898, %v932
  %v941 = vmul.f32 %v900, %v933
  %v942 = vmul.f32 %v902, %v934
  %v943 = vpack.c.bf16 %v935, %v935
  %v944 = vpack.c.bf16 %v936, %v936
  %v945 = vpack.c.bf16 %v937, %v937
  %v946 = vpack.c.bf16 %v938, %v938
  %v947 = vpack.c.bf16 %v939, %v939
  %v948 = vpack.c.bf16 %v940, %v940
  %v949 = vpack.c.bf16 %v941, %v941
  %v950 = vpack.c.bf16 %v942, %v942
  %951 = vrot.lane.b32.xlu0 %v390, 64
  %v952 = vpop.permute.xlu0 %951
  %v954 = vsel %vm401, %v943, 0
  %vm956 = vcmask 1043456
  %v958 = vsel %vm956, %v952, 0
  %960 = vmatprep.subr.bf16.mxu0 0
  %961 = vmatpush1.bf16.msra.mxu0 %v958
  %962 = vmatprep.subr.bf16.mxu0 0
  %963 = vmatpush1.bf16.msra.mxu0 0
  %964 = vmatprep.subr.bf16.mxu0 0
  %965 = vmatpush1.bf16.msra.mxu0 0
  %966 = vmatprep.subr.bf16.mxu0 0
  %967 = vmatpush1.bf16.msra.mxu0 0
  %968 = vmatprep.subr.bf16.mxu0 0
  %969 = vmatpush1.bf16.msra.mxu0 0
  %970 = vmatprep.subr.bf16.mxu0 0
  %971 = vmatpush1.bf16.msra.mxu0 0
  %972 = vmatprep.subr.bf16.mxu0 0
  %973 = vmatpush1.bf16.msra.mxu0 0
  %974 = vmatprep.subr.bf16.mxu0 0
  %975 = vmatpush1.bf16.msra.mxu0 0
  %976 = vmatprep.subr.bf16.mxu0 0
  %977 = vmatpush1.bf16.msra.mxu0 0
  %978 = vmatprep.subr.bf16.mxu0 0
  %979 = vmatpush1.bf16.msra.mxu0 0
  %980 = vmatprep.subr.bf16.mxu0 0
  %981 = vmatpush1.bf16.msra.mxu0 0
  %982 = vmatprep.subr.bf16.mxu0 0
  %983 = vmatpush1.bf16.msra.mxu0 0
  %984 = vmatprep.subr.bf16.mxu0 0
  %985 = vmatpush1.bf16.msra.mxu0 0
  %986 = vmatprep.subr.bf16.mxu0 0
  %987 = vmatpush1.bf16.msra.mxu0 0
  %988 = vmatprep.subr.bf16.mxu0 0
  %989 = vmatpush1.bf16.msra.mxu0 0
  %990 = vmatprep.subr.bf16.mxu0 0
  %991 = vmatpush1.bf16.msra.mxu0 0
  %992 = vmatprep.mubr.bf16.mxu0 0
  %993 = vmatmul.mubr.bf16.gmra.mrb[0].mxu0 %v954
  %v994 = vpop.f32.mrb[0].mxu0
  %v995 = vadd.f32 0.0, %v994
  %v996 = vpop.f32.mrb[0].mxu0
  %v997 = vpop.f32.mrb[0].mxu0
  %v998 = vpop.f32.mrb[0].mxu0
  %999 = vdwg.mxu0
  %1000 = vrot.lane.b32.xlu0 %v391, 64
  %v1001 = vpop.permute.xlu0 %1000
  %v1003 = vsel %vm401, %v944, 0
  %v1006 = vsel %vm956, %v1001, 0
  %1008 = vmatprep.subr.bf16.mxu0 0
  %1009 = vmatpush1.bf16.msra.mxu0 %v1006
  %1010 = vmatprep.subr.bf16.mxu0 0
  %1011 = vmatpush1.bf16.msra.mxu0 0
  %1012 = vmatprep.subr.bf16.mxu0 0
  %1013 = vmatpush1.bf16.msra.mxu0 0
  %1014 = vmatprep.subr.bf16.mxu0 0
  %1015 = vmatpush1.bf16.msra.mxu0 0
  %1016 = vmatprep.subr.bf16.mxu0 0
  %1017 = vmatpush1.bf16.msra.mxu0 0
  %1018 = vmatprep.subr.bf16.mxu0 0
  %1019 = vmatpush1.bf16.msra.mxu0 0
  %1020 = vmatprep.subr.bf16.mxu0 0
  %1021 = vmatpush1.bf16.msra.mxu0 0
  %1022 = vmatprep.subr.bf16.mxu0 0
  %1023 = vmatpush1.bf16.msra.mxu0 0
  %1024 = vmatprep.subr.bf16.mxu0 0
  %1025 = vmatpush1.bf16.msra.mxu0 0
  %1026 = vmatprep.subr.bf16.mxu0 0
  %1027 = vmatpush1.bf16.msra.mxu0 0
  %1028 = vmatprep.subr.bf16.mxu0 0
  %1029 = vmatpush1.bf16.msra.mxu0 0
  %1030 = vmatprep.subr.bf16.mxu0 0
  %1031 = vmatpush1.bf16.msra.mxu0 0
  %1032 = vmatprep.subr.bf16.mxu0 0
  %1033 = vmatpush1.bf16.msra.mxu0 0
  %1034 = vmatprep.subr.bf16.mxu0 0
  %1035 = vmatpush1.bf16.msra.mxu0 0
  %1036 = vmatprep.subr.bf16.mxu0 0
  %1037 = vmatpush1.bf16.msra.mxu0 0
  %1038 = vmatprep.subr.bf16.mxu0 0
  %1039 = vmatpush1.bf16.msra.mxu0 0
  %1040 = vmatprep.mubr.bf16.mxu0 0
  %1041 = vmatmul.mubr.bf16.gmra.mrb[0].mxu0 %v1003
  %v1042 = vpop.f32.mrb[0].mxu0
  %v1043 = vadd.f32 0.0, %v1042
  %v1044 = vpop.f32.mrb[0].mxu0
  %v1045 = vpop.f32.mrb[0].mxu0
  %v1046 = vpop.f32.mrb[0].mxu0
  %1047 = vdwg.mxu0
  %1048 = vrot.lane.b32.xlu0 %v392, 64
  %v1049 = vpop.permute.xlu0 %1048
  %v1051 = vsel %vm401, %v945, 0
  %v1054 = vsel %vm956, %v1049, 0
  %1056 = vmatprep.subr.bf16.mxu0 0
  %1057 = vmatpush1.bf16.msra.mxu0 %v1054
  %1058 = vmatprep.subr.bf16.mxu0 0
  %1059 = vmatpush1.bf16.msra.mxu0 0
  %1060 = vmatprep.subr.bf16.mxu0 0
  %1061 = vmatpush1.bf16.msra.mxu0 0
  %1062 = vmatprep.subr.bf16.mxu0 0
  %1063 = vmatpush1.bf16.msra.mxu0 0
  %1064 = vmatprep.subr.bf16.mxu0 0
  %1065 = vmatpush1.bf16.msra.mxu0 0
  %1066 = vmatprep.subr.bf16.mxu0 0
  %1067 = vmatpush1.bf16.msra.mxu0 0
  %1068 = vmatprep.subr.bf16.mxu0 0
  %1069 = vmatpush1.bf16.msra.mxu0 0
  %1070 = vmatprep.subr.bf16.mxu0 0
  %1071 = vmatpush1.bf16.msra.mxu0 0
  %1072 = vmatprep.subr.bf16.mxu0 0
  %1073 = vmatpush1.bf16.msra.mxu0 0
  %1074 = vmatprep.subr.bf16.mxu0 0
  %1075 = vmatpush1.bf16.msra.mxu0 0
  %1076 = vmatprep.subr.bf16.mxu0 0
  %1077 = vmatpush1.bf16.msra.mxu0 0
  %1078 = vmatprep.subr.bf16.mxu0 0
  %1079 = vmatpush1.bf16.msra.mxu0 0
  %1080 = vmatprep.subr.bf16.mxu0 0
  %1081 = vmatpush1.bf16.msra.mxu0 0
  %1082 = vmatprep.subr.bf16.mxu0 0
  %1083 = vmatpush1.bf16.msra.mxu0 0
  %1084 = vmatprep.subr.bf16.mxu0 0
  %1085 = vmatpush1.bf16.msra.mxu0 0
  %1086 = vmatprep.subr.bf16.mxu0 0
  %1087 = vmatpush1.bf16.msra.mxu0 0
  %1088 = vmatprep.mubr.bf16.mxu0 0
  %1089 = vmatmul.mubr.bf16.gmra.mrb[0].mxu0 %v1051
  %v1090 = vpop.f32.mrb[0].mxu0
  %v1091 = vadd.f32 0.0, %v1090
  %v1092 = vpop.f32.mrb[0].mxu0
  %v1093 = vpop.f32.mrb[0].mxu0
  %v1094 = vpop.f32.mrb[0].mxu0
  %1095 = vdwg.mxu0
  %1096 = vrot.lane.b32.xlu0 %v393, 64
  %v1097 = vpop.permute.xlu0 %1096
  %v1099 = vsel %vm401, %v946, 0
  %v1102 = vsel %vm956, %v1097, 0
  %1104 = vmatprep.subr.bf16.mxu0 0
  %1105 = vmatpush1.bf16.msra.mxu0 %v1102
  %1106 = vmatprep.subr.bf16.mxu0 0
  %1107 = vmatpush1.bf16.msra.mxu0 0
  %1108 = vmatprep.subr.bf16.mxu0 0
  %1109 = vmatpush1.bf16.msra.mxu0 0
  %1110 = vmatprep.subr.bf16.mxu0 0
  %1111 = vmatpush1.bf16.msra.mxu0 0
  %1112 = vmatprep.subr.bf16.mxu0 0
  %1113 = vmatpush1.bf16.msra.mxu0 0
  %1114 = vmatprep.subr.bf16.mxu0 0
  %1115 = vmatpush1.bf16.msra.mxu0 0
  %1116 = vmatprep.subr.bf16.mxu0 0
  %1117 = vmatpush1.bf16.msra.mxu0 0
  %1118 = vmatprep.subr.bf16.mxu0 0
  %1119 = vmatpush1.bf16.msra.mxu0 0
  %1120 = vmatprep.subr.bf16.mxu0 0
  %1121 = vmatpush1.bf16.msra.mxu0 0
  %1122 = vmatprep.subr.bf16.mxu0 0
  %1123 = vmatpush1.bf16.msra.mxu0 0
  %1124 = vmatprep.subr.bf16.mxu0 0
  %1125 = vmatpush1.bf16.msra.mxu0 0
  %1126 = vmatprep.subr.bf16.mxu0 0
  %1127 = vmatpush1.bf16.msra.mxu0 0
  %1128 = vmatprep.subr.bf16.mxu0 0
  %1129 = vmatpush1.bf16.msra.mxu0 0
  %1130 = vmatprep.subr.bf16.mxu0 0
  %1131 = vmatpush1.bf16.msra.mxu0 0
  %1132 = vmatprep.subr.bf16.mxu0 0
  %1133 = vmatpush1.bf16.msra.mxu0 0
  %1134 = vmatprep.subr.bf16.mxu0 0
  %1135 = vmatpush1.bf16.msra.mxu0 0
  %1136 = vmatprep.mubr.bf16.mxu0 0
  %1137 = vmatmul.mubr.bf16.gmra.mrb[0].mxu0 %v1099
  %v1138 = vpop.f32.mrb[0].mxu0
  %v1139 = vadd.f32 0.0, %v1138
  %v1140 = vpop.f32.mrb[0].mxu0
  %v1141 = vpop.f32.mrb[0].mxu0
  %v1142 = vpop.f32.mrb[0].mxu0
  %1143 = vdwg.mxu0
  %1144 = vrot.lane.b32.xlu0 %v394, 64
  %v1145 = vpop.permute.xlu0 %1144
  %v1147 = vsel %vm401, %v947, 0
  %v1150 = vsel %vm956, %v1145, 0
  %1152 = vmatprep.subr.bf16.mxu0 0
  %1153 = vmatpush1.bf16.msra.mxu0 %v1150
  %1154 = vmatprep.subr.bf16.mxu0 0
  %1155 = vmatpush1.bf16.msra.mxu0 0
  %1156 = vmatprep.subr.bf16.mxu0 0
  %1157 = vmatpush1.bf16.msra.mxu0 0
  %1158 = vmatprep.subr.bf16.mxu0 0
  %1159 = vmatpush1.bf16.msra.mxu0 0
  %1160 = vmatprep.subr.bf16.mxu0 0
  %1161 = vmatpush1.bf16.msra.mxu0 0
  %1162 = vmatprep.subr.bf16.mxu0 0
  %1163 = vmatpush1.bf16.msra.mxu0 0
  %1164 = vmatprep.subr.bf16.mxu0 0
  %1165 = vmatpush1.bf16.msra.mxu0 0
  %1166 = vmatprep.subr.bf16.mxu0 0
  %1167 = vmatpush1.bf16.msra.mxu0 0
  %1168 = vmatprep.subr.bf16.mxu0 0
  %1169 = vmatpush1.bf16.msra.mxu0 0
  %1170 = vmatprep.subr.bf16.mxu0 0
  %1171 = vmatpush1.bf16.msra.mxu0 0
  %1172 = vmatprep.subr.bf16.mxu0 0
  %1173 = vmatpush1.bf16.msra.mxu0 0
  %1174 = vmatprep.subr.bf16.mxu0 0
  %1175 = vmatpush1.bf16.msra.mxu0 0
  %1176 = vmatprep.subr.bf16.mxu0 0
  %1177 = vmatpush1.bf16.msra.mxu0 0
  %1178 = vmatprep.subr.bf16.mxu0 0
  %1179 = vmatpush1.bf16.msra.mxu0 0
  %1180 = vmatprep.subr.bf16.mxu0 0
  %1181 = vmatpush1.bf16.msra.mxu0 0
  %1182 = vmatprep.subr.bf16.mxu0 0
  %1183 = vmatpush1.bf16.msra.mxu0 0
  %1184 = vmatprep.mubr.bf16.mxu0 0
  %1185 = vmatmul.mubr.bf16.gmra.mrb[0].mxu0 %v1147
  %v1186 = vpop.f32.mrb[0].mxu0
  %v1187 = vadd.f32 0.0, %v1186
  %v1188 = vpop.f32.mrb[0].mxu0
  %v1189 = vpop.f32.mrb[0].mxu0
  %v1190 = vpop.f32.mrb[0].mxu0
  %1191 = vdwg.mxu0
  %1192 = vrot.lane.b32.xlu0 %v395, 64
  %v1193 = vpop.permute.xlu0 %1192
  %v1195 = vsel %vm401, %v948, 0
  %v1198 = vsel %vm956, %v1193, 0
  %1200 = vmatprep.subr.bf16.mxu0 0
  %1201 = vmatpush1.bf16.msra.mxu0 %v1198
  %1202 = vmatprep.subr.bf16.mxu0 0
  %1203 = vmatpush1.bf16.msra.mxu0 0
  %1204 = vmatprep.subr.bf16.mxu0 0
  %1205 = vmatpush1.bf16.msra.mxu0 0
  %1206 = vmatprep.subr.bf16.mxu0 0
  %1207 = vmatpush1.bf16.msra.mxu0 0
  %1208 = vmatprep.subr.bf16.mxu0 0
  %1209 = vmatpush1.bf16.msra.mxu0 0
  %1210 = vmatprep.subr.bf16.mxu0 0
  %1211 = vmatpush1.bf16.msra.mxu0 0
  %1212 = vmatprep.subr.bf16.mxu0 0
  %1213 = vmatpush1.bf16.msra.mxu0 0
  %1214 = vmatprep.subr.bf16.mxu0 0
  %1215 = vmatpush1.bf16.msra.mxu0 0
  %1216 = vmatprep.subr.bf16.mxu0 0
  %1217 = vmatpush1.bf16.msra.mxu0 0
  %1218 = vmatprep.subr.bf16.mxu0 0
  %1219 = vmatpush1.bf16.msra.mxu0 0
  %1220 = vmatprep.subr.bf16.mxu0 0
  %1221 = vmatpush1.bf16.msra.mxu0 0
  %1222 = vmatprep.subr.bf16.mxu0 0
  %1223 = vmatpush1.bf16.msra.mxu0 0
  %1224 = vmatprep.subr.bf16.mxu0 0
  %1225 = vmatpush1.bf16.msra.mxu0 0
  %1226 = vmatprep.subr.bf16.mxu0 0
  %1227 = vmatpush1.bf16.msra.mxu0 0
  %1228 = vmatprep.subr.bf16.mxu0 0
  %1229 = vmatpush1.bf16.msra.mxu0 0
  %1230 = vmatprep.subr.bf16.mxu0 0
  %1231 = vmatpush1.bf16.msra.mxu0 0
  %1232 = vmatprep.mubr.bf16.mxu0 0
  %1233 = vmatmul.mubr.bf16.gmra.mrb[0].mxu0 %v1195
  %v1234 = vpop.f32.mrb[0].mxu0
  %v1235 = vadd.f32 0.0, %v1234
  %v1236 = vpop.f32.mrb[0].mxu0
  %v1237 = vpop.f32.mrb[0].mxu0
  %v1238 = vpop.f32.mrb[0].mxu0
  %1239 = vdwg.mxu0
  %1240 = vrot.lane.b32.xlu0 %v396, 64
  %v1241 = vpop.permute.xlu0 %1240
  %v1243 = vsel %vm401, %v949, 0
  %v1246 = vsel %vm956, %v1241, 0
  %1248 = vmatprep.subr.bf16.mxu0 0
  %1249 = vmatpush1.bf16.msra.mxu0 %v1246
  %1250 = vmatprep.subr.bf16.mxu0 0
  %1251 = vmatpush1.bf16.msra.mxu0 0
  %1252 = vmatprep.subr.bf16.mxu0 0
  %1253 = vmatpush1.bf16.msra.mxu0 0
  %1254 = vmatprep.subr.bf16.mxu0 0
  %1255 = vmatpush1.bf16.msra.mxu0 0
  %1256 = vmatprep.subr.bf16.mxu0 0
  %1257 = vmatpush1.bf16.msra.mxu0 0
  %1258 = vmatprep.subr.bf16.mxu0 0
  %1259 = vmatpush1.bf16.msra.mxu0 0
  %1260 = vmatprep.subr.bf16.mxu0 0
  %1261 = vmatpush1.bf16.msra.mxu0 0
  %1262 = vmatprep.subr.bf16.mxu0 0
  %1263 = vmatpush1.bf16.msra.mxu0 0
  %1264 = vmatprep.subr.bf16.mxu0 0
  %1265 = vmatpush1.bf16.msra.mxu0 0
  %1266 = vmatprep.subr.bf16.mxu0 0
  %1267 = vmatpush1.bf16.msra.mxu0 0
  %1268 = vmatprep.subr.bf16.mxu0 0
  %1269 = vmatpush1.bf16.msra.mxu0 0
  %1270 = vmatprep.subr.bf16.mxu0 0
  %1271 = vmatpush1.bf16.msra.mxu0 0
  %1272 = vmatprep.subr.bf16.mxu0 0
  %1273 = vmatpush1.bf16.msra.mxu0 0
  %1274 = vmatprep.subr.bf16.mxu0 0
  %1275 = vmatpush1.bf16.msra.mxu0 0
  %1276 = vmatprep.subr.bf16.mxu0 0
  %1277 = vmatpush1.bf16.msra.mxu0 0
  %1278 = vmatprep.subr.bf16.mxu0 0
  %1279 = vmatpush1.bf16.msra.mxu0 0
  %1280 = vmatprep.mubr.bf16.mxu0 0
  %1281 = vmatmul.mubr.bf16.gmra.mrb[0].mxu0 %v1243
  %v1282 = vpop.f32.mrb[0].mxu0
  %v1283 = vadd.f32 0.0, %v1282
  %v1284 = vpop.f32.mrb[0].mxu0
  %v1285 = vpop.f32.mrb[0].mxu0
  %v1286 = vpop.f32.mrb[0].mxu0
  %1287 = vdwg.mxu0
  %1288 = vrot.lane.b32.xlu0 %v397, 64
  %v1289 = vpop.permute.xlu0 %1288
  %v1291 = vsel %vm401, %v950, 0
  %v1294 = vsel %vm956, %v1289, 0
  %1296 = vmatprep.subr.bf16.mxu0 0
  %1297 = vmatpush1.bf16.msra.mxu0 %v1294
  %1298 = vmatprep.subr.bf16.mxu0 0
  %1299 = vmatpush1.bf16.msra.mxu0 0
  %1300 = vmatprep.subr.bf16.mxu0 0
  %1301 = vmatpush1.bf16.msra.mxu0 0
  %1302 = vmatprep.subr.bf16.mxu0 0
  %1303 = vmatpush1.bf16.msra.mxu0 0
  %1304 = vmatprep.subr.bf16.mxu0 0
  %1305 = vmatpush1.bf16.msra.mxu0 0
  %1306 = vmatprep.subr.bf16.mxu0 0
  %1307 = vmatpush1.bf16.msra.mxu0 0
  %1308 = vmatprep.subr.bf16.mxu0 0
  %1309 = vmatpush1.bf16.msra.mxu0 0
  %1310 = vmatprep.subr.bf16.mxu0 0
  %1311 = vmatpush1.bf16.msra.mxu0 0
  %1312 = vmatprep.subr.bf16.mxu0 0
  %1313 = vmatpush1.bf16.msra.mxu0 0
  %1314 = vmatprep.subr.bf16.mxu0 0
  %1315 = vmatpush1.bf16.msra.mxu0 0
  %1316 = vmatprep.subr.bf16.mxu0 0
  %1317 = vmatpush1.bf16.msra.mxu0 0
  %1318 = vmatprep.subr.bf16.mxu0 0
  %1319 = vmatpush1.bf16.msra.mxu0 0
  %1320 = vmatprep.subr.bf16.mxu0 0
  %1321 = vmatpush1.bf16.msra.mxu0 0
  %1322 = vmatprep.subr.bf16.mxu0 0
  %1323 = vmatpush1.bf16.msra.mxu0 0
  %1324 = vmatprep.subr.bf16.mxu0 0
  %1325 = vmatpush1.bf16.msra.mxu0 0
  %1326 = vmatprep.subr.bf16.mxu0 0
  %1327 = vmatpush1.bf16.msra.mxu0 0
  %1328 = vmatprep.mubr.bf16.mxu0 0
  %1329 = vmatmul.mubr.bf16.gmra.mrb[0].mxu0 %v1291
  %v1330 = vpop.f32.mrb[0].mxu0
  %v1331 = vadd.f32 0.0, %v1330
  %v1332 = vpop.f32.mrb[0].mxu0
  %v1333 = vpop.f32.mrb[0].mxu0
  %v1334 = vpop.f32.mrb[0].mxu0
  %1335 = vdwg.mxu0
  %1336 = vrot.lane.b32.xlu0 %v390, 120
  %v1337 = vpop.permute.xlu0 %1336
  %1338 = vrot.lane.b32.xlu0 %v390, 88
  %v1339 = vpop.permute.xlu0 %1338
  %v1341 = vsel %vm401, %v1337, 0
  %v1344 = vsel %vm401, %v1339, 0
  %1346 = vmatprep.subr.bf16.mxu0 0
  %1347 = vmatpush1.bf16.xpose.msra.mxu0 %v1344
  %1348 = vmatprep.subr.bf16.mxu0 0
  %1349 = vmatpush1.bf16.xpose.msra.mxu0 0
  %1350 = vmatprep.subr.bf16.mxu0 0
  %1351 = vmatpush1.bf16.xpose.msra.mxu0 0
  %1352 = vmatprep.subr.bf16.mxu0 0
  %1353 = vmatpush1.bf16.xpose.msra.mxu0 0
  %1354 = vmatprep.subr.bf16.mxu0 0
  %1355 = vmatpush1.bf16.xpose.msra.mxu0 0
  %1356 = vmatprep.subr.bf16.mxu0 0
  %1357 = vmatpush1.bf16.xpose.msra.mxu0 0
  %1358 = vmatprep.subr.bf16.mxu0 0
  %1359 = vmatpush1.bf16.xpose.msra.mxu0 0
  %1360 = vmatprep.subr.bf16.mxu0 0
  %1361 = vmatpush1.bf16.xpose.msra.mxu0 0
  %1362 = vmatprep.subr.bf16.mxu0 0
  %1363 = vmatpush1.bf16.xpose.msra.mxu0 0
  %1364 = vmatprep.subr.bf16.mxu0 0
  %1365 = vmatpush1.bf16.xpose.msra.mxu0 0
  %1366 = vmatprep.subr.bf16.mxu0 0
  %1367 = vmatpush1.bf16.xpose.msra.mxu0 0
  %1368 = vmatprep.subr.bf16.mxu0 0
  %1369 = vmatpush1.bf16.xpose.msra.mxu0 0
  %1370 = vmatprep.subr.bf16.mxu0 0
  %1371 = vmatpush1.bf16.xpose.msra.mxu0 0
  %1372 = vmatprep.subr.bf16.mxu0 0
  %1373 = vmatpush1.bf16.xpose.msra.mxu0 0
  %1374 = vmatprep.subr.bf16.mxu0 0
  %1375 = vmatpush1.bf16.xpose.msra.mxu0 0
  %1376 = vmatprep.subr.bf16.mxu0 0
  %1377 = vmatpush1.bf16.xpose.msra.mxu0 0
  %1378 = vmatprep.mubr.bf16.mxu0 0
  %1379 = vmatmul.mubr.bf16.gmra.mrb[0].mxu0 %v1341
  %v1380 = vpop.f32.mrb[0].mxu0
  %v1381 = vadd.f32 0.0, %v1380
  %v1382 = vpop.f32.mrb[0].mxu0
  %v1383 = vpop.f32.mrb[0].mxu0
  %v1384 = vpop.f32.mrb[0].mxu0
  %1385 = vdwg.mxu0
  %1386 = vrot.lane.b32.xlu0 %v391, 120
  %v1387 = vpop.permute.xlu0 %1386
  %1388 = vrot.lane.b32.xlu0 %v391, 88
  %v1389 = vpop.permute.xlu0 %1388
  %v1391 = vsel %vm401, %v1387, 0
  %v1394 = vsel %vm401, %v1389, 0
  %1396 = vmatprep.subr.bf16.mxu0 0
  %1397 = vmatpush1.bf16.xpose.msra.mxu0 %v1394
  %1398 = vmatprep.subr.bf16.mxu0 0
  %1399 = vmatpush1.bf16.xpose.msra.mxu0 0
  %1400 = vmatprep.subr.bf16.mxu0 0
  %1401 = vmatpush1.bf16.xpose.msra.mxu0 0
  %1402 = vmatprep.subr.bf16.mxu0 0
  %1403 = vmatpush1.bf16.xpose.msra.mxu0 0
  %1404 = vmatprep.subr.bf16.mxu0 0
  %1405 = vmatpush1.bf16.xpose.msra.mxu0 0
  %1406 = vmatprep.subr.bf16.mxu0 0
  %1407 = vmatpush1.bf16.xpose.msra.mxu0 0
  %1408 = vmatprep.subr.bf16.mxu0 0
  %1409 = vmatpush1.bf16.xpose.msra.mxu0 0
  %1410 = vmatprep.subr.bf16.mxu0 0
  %1411 = vmatpush1.bf16.xpose.msra.mxu0 0
  %1412 = vmatprep.subr.bf16.mxu0 0
  %1413 = vmatpush1.bf16.xpose.msra.mxu0 0
  %1414 = vmatprep.subr.bf16.mxu0 0
  %1415 = vmatpush1.bf16.xpose.msra.mxu0 0
  %1416 = vmatprep.subr.bf16.mxu0 0
  %1417 = vmatpush1.bf16.xpose.msra.mxu0 0
  %1418 = vmatprep.subr.bf16.mxu0 0
  %1419 = vmatpush1.bf16.xpose.msra.mxu0 0
  %1420 = vmatprep.subr.bf16.mxu0 0
  %1421 = vmatpush1.bf16.xpose.msra.mxu0 0
  %1422 = vmatprep.subr.bf16.mxu0 0
  %1423 = vmatpush1.bf16.xpose.msra.mxu0 0
  %1424 = vmatprep.subr.bf16.mxu0 0
  %1425 = vmatpush1.bf16.xpose.msra.mxu0 0
  %1426 = vmatprep.subr.bf16.mxu0 0
  %1427 = vmatpush1.bf16.xpose.msra.mxu0 0
  %1428 = vmatprep.mubr.bf16.mxu0 0
  %1429 = vmatmul.mubr.bf16.gmra.mrb[0].mxu0 %v1391
  %v1430 = vpop.f32.mrb[0].mxu0
  %v1431 = vadd.f32 0.0, %v1430
  %v1432 = vpop.f32.mrb[0].mxu0
  %v1433 = vpop.f32.mrb[0].mxu0
  %v1434 = vpop.f32.mrb[0].mxu0
  %1435 = vdwg.mxu0
  %1436 = vrot.lane.b32.xlu0 %v392, 120
  %v1437 = vpop.permute.xlu0 %1436
  %1438 = vrot.lane.b32.xlu0 %v392, 88
  %v1439 = vpop.permute.xlu0 %1438
  %v1441 = vsel %vm401, %v1437, 0
  %v1444 = vsel %vm401, %v1439, 0
  %1446 = vmatprep.subr.bf16.mxu0 0
  %1447 = vmatpush1.bf16.xpose.msra.mxu0 %v1444
  %1448 = vmatprep.subr.bf16.mxu0 0
  %1449 = vmatpush1.bf16.xpose.msra.mxu0 0
  %1450 = vmatprep.subr.bf16.mxu0 0
  %1451 = vmatpush1.bf16.xpose.msra.mxu0 0
  %1452 = vmatprep.subr.bf16.mxu0 0
  %1453 = vmatpush1.bf16.xpose.msra.mxu0 0
  %1454 = vmatprep.subr.bf16.mxu0 0
  %1455 = vmatpush1.bf16.xpose.msra.mxu0 0
  %1456 = vmatprep.subr.bf16.mxu0 0
  %1457 = vmatpush1.bf16.xpose.msra.mxu0 0
  %1458 = vmatprep.subr.bf16.mxu0 0
  %1459 = vmatpush1.bf16.xpose.msra.mxu0 0
  %1460 = vmatprep.subr.bf16.mxu0 0
  %1461 = vmatpush1.bf16.xpose.msra.mxu0 0
  %1462 = vmatprep.subr.bf16.mxu0 0
  %1463 = vmatpush1.bf16.xpose.msra.mxu0 0
  %1464 = vmatprep.subr.bf16.mxu0 0
  %1465 = vmatpush1.bf16.xpose.msra.mxu0 0
  %1466 = vmatprep.subr.bf16.mxu0 0
  %1467 = vmatpush1.bf16.xpose.msra.mxu0 0
  %1468 = vmatprep.subr.bf16.mxu0 0
  %1469 = vmatpush1.bf16.xpose.msra.mxu0 0
  %1470 = vmatprep.subr.bf16.mxu0 0
  %1471 = vmatpush1.bf16.xpose.msra.mxu0 0
  %1472 = vmatprep.subr.bf16.mxu0 0
  %1473 = vmatpush1.bf16.xpose.msra.mxu0 0
  %1474 = vmatprep.subr.bf16.mxu0 0
  %1475 = vmatpush1.bf16.xpose.msra.mxu0 0
  %1476 = vmatprep.subr.bf16.mxu0 0
  %1477 = vmatpush1.bf16.xpose.msra.mxu0 0
  %1478 = vmatprep.mubr.bf16.mxu0 0
  %1479 = vmatmul.mubr.bf16.gmra.mrb[0].mxu0 %v1441
  %v1480 = vpop.f32.mrb[0].mxu0
  %v1481 = vadd.f32 0.0, %v1480
  %v1482 = vpop.f32.mrb[0].mxu0
  %v1483 = vpop.f32.mrb[0].mxu0
  %v1484 = vpop.f32.mrb[0].mxu0
  %1485 = vdwg.mxu0
  %1486 = vrot.lane.b32.xlu0 %v393, 120
  %v1487 = vpop.permute.xlu0 %1486
  %1488 = vrot.lane.b32.xlu0 %v393, 88
  %v1489 = vpop.permute.xlu0 %1488
  %v1491 = vsel %vm401, %v1487, 0
  %v1494 = vsel %vm401, %v1489, 0
  %1496 = vmatprep.subr.bf16.mxu0 0
  %1497 = vmatpush1.bf16.xpose.msra.mxu0 %v1494
  %1498 = vmatprep.subr.bf16.mxu0 0
  %1499 = vmatpush1.bf16.xpose.msra.mxu0 0
  %1500 = vmatprep.subr.bf16.mxu0 0
  %1501 = vmatpush1.bf16.xpose.msra.mxu0 0
  %1502 = vmatprep.subr.bf16.mxu0 0
  %1503 = vmatpush1.bf16.xpose.msra.mxu0 0
  %1504 = vmatprep.subr.bf16.mxu0 0
  %1505 = vmatpush1.bf16.xpose.msra.mxu0 0
  %1506 = vmatprep.subr.bf16.mxu0 0
  %1507 = vmatpush1.bf16.xpose.msra.mxu0 0
  %1508 = vmatprep.subr.bf16.mxu0 0
  %1509 = vmatpush1.bf16.xpose.msra.mxu0 0
  %1510 = vmatprep.subr.bf16.mxu0 0
  %1511 = vmatpush1.bf16.xpose.msra.mxu0 0
  %1512 = vmatprep.subr.bf16.mxu0 0
  %1513 = vmatpush1.bf16.xpose.msra.mxu0 0
  %1514 = vmatprep.subr.bf16.mxu0 0
  %1515 = vmatpush1.bf16.xpose.msra.mxu0 0
  %1516 = vmatprep.subr.bf16.mxu0 0
  %1517 = vmatpush1.bf16.xpose.msra.mxu0 0
  %1518 = vmatprep.subr.bf16.mxu0 0
  %1519 = vmatpush1.bf16.xpose.msra.mxu0 0
  %1520 = vmatprep.subr.bf16.mxu0 0
  %1521 = vmatpush1.bf16.xpose.msra.mxu0 0
  %1522 = vmatprep.subr.bf16.mxu0 0
  %1523 = vmatpush1.bf16.xpose.msra.mxu0 0
  %1524 = vmatprep.subr.bf16.mxu0 0
  %1525 = vmatpush1.bf16.xpose.msra.mxu0 0
  %1526 = vmatprep.subr.bf16.mxu0 0
  %1527 = vmatpush1.bf16.xpose.msra.mxu0 0
  %1528 = vmatprep.mubr.bf16.mxu0 0
  %1529 = vmatmul.mubr.bf16.gmra.mrb[0].mxu0 %v1491
  %v1530 = vpop.f32.mrb[0].mxu0
  %v1531 = vadd.f32 0.0, %v1530
  %v1532 = vpop.f32.mrb[0].mxu0
  %v1533 = vpop.f32.mrb[0].mxu0
  %v1534 = vpop.f32.mrb[0].mxu0
  %1535 = vdwg.mxu0
  %1536 = vrot.lane.b32.xlu0 %v394, 120
  %v1537 = vpop.permute.xlu0 %1536
  %1538 = vrot.lane.b32.xlu0 %v394, 88
  %v1539 = vpop.permute.xlu0 %1538
  %v1541 = vsel %vm401, %v1537, 0
  %v1544 = vsel %vm401, %v1539, 0
  %1546 = vmatprep.subr.bf16.mxu0 0
  %1547 = vmatpush1.bf16.xpose.msra.mxu0 %v1544
  %1548 = vmatprep.subr.bf16.mxu0 0
  %1549 = vmatpush1.bf16.xpose.msra.mxu0 0
  %1550 = vmatprep.subr.bf16.mxu0 0
  %1551 = vmatpush1.bf16.xpose.msra.mxu0 0
  %1552 = vmatprep.subr.bf16.mxu0 0
  %1553 = vmatpush1.bf16.xpose.msra.mxu0 0
  %1554 = vmatprep.subr.bf16.mxu0 0
  %1555 = vmatpush1.bf16.xpose.msra.mxu0 0
  %1556 = vmatprep.subr.bf16.mxu0 0
  %1557 = vmatpush1.bf16.xpose.msra.mxu0 0
  %1558 = vmatprep.subr.bf16.mxu0 0
  %1559 = vmatpush1.bf16.xpose.msra.mxu0 0
  %1560 = vmatprep.subr.bf16.mxu0 0
  %1561 = vmatpush1.bf16.xpose.msra.mxu0 0
  %1562 = vmatprep.subr.bf16.mxu0 0
  %1563 = vmatpush1.bf16.xpose.msra.mxu0 0
  %1564 = vmatprep.subr.bf16.mxu0 0
  %1565 = vmatpush1.bf16.xpose.msra.mxu0 0
  %1566 = vmatprep.subr.bf16.mxu0 0
  %1567 = vmatpush1.bf16.xpose.msra.mxu0 0
  %1568 = vmatprep.subr.bf16.mxu0 0
  %1569 = vmatpush1.bf16.xpose.msra.mxu0 0
  %1570 = vmatprep.subr.bf16.mxu0 0
  %1571 = vmatpush1.bf16.xpose.msra.mxu0 0
  %1572 = vmatprep.subr.bf16.mxu0 0
  %1573 = vmatpush1.bf16.xpose.msra.mxu0 0
  %1574 = vmatprep.subr.bf16.mxu0 0
  %1575 = vmatpush1.bf16.xpose.msra.mxu0 0
  %1576 = vmatprep.subr.bf16.mxu0 0
  %1577 = vmatpush1.bf16.xpose.msra.mxu0 0
  %1578 = vmatprep.mubr.bf16.mxu0 0
  %1579 = vmatmul.mubr.bf16.gmra.mrb[0].mxu0 %v1541
  %v1580 = vpop.f32.mrb[0].mxu0
  %v1581 = vadd.f32 0.0, %v1580
  %v1582 = vpop.f32.mrb[0].mxu0
  %v1583 = vpop.f32.mrb[0].mxu0
  %v1584 = vpop.f32.mrb[0].mxu0
  %1585 = vdwg.mxu0
  %1586 = vrot.lane.b32.xlu0 %v395, 120
  %v1587 = vpop.permute.xlu0 %1586
  %1588 = vrot.lane.b32.xlu0 %v395, 88
  %v1589 = vpop.permute.xlu0 %1588
  %v1591 = vsel %vm401, %v1587, 0
  %v1594 = vsel %vm401, %v1589, 0
  %1596 = vmatprep.subr.bf16.mxu0 0
  %1597 = vmatpush1.bf16.xpose.msra.mxu0 %v1594
  %1598 = vmatprep.subr.bf16.mxu0 0
  %1599 = vmatpush1.bf16.xpose.msra.mxu0 0
  %1600 = vmatprep.subr.bf16.mxu0 0
  %1601 = vmatpush1.bf16.xpose.msra.mxu0 0
  %1602 = vmatprep.subr.bf16.mxu0 0
  %1603 = vmatpush1.bf16.xpose.msra.mxu0 0
  %1604 = vmatprep.subr.bf16.mxu0 0
  %1605 = vmatpush1.bf16.xpose.msra.mxu0 0
  %1606 = vmatprep.subr.bf16.mxu0 0
  %1607 = vmatpush1.bf16.xpose.msra.mxu0 0
  %1608 = vmatprep.subr.bf16.mxu0 0
  %1609 = vmatpush1.bf16.xpose.msra.mxu0 0
  %1610 = vmatprep.subr.bf16.mxu0 0
  %1611 = vmatpush1.bf16.xpose.msra.mxu0 0
  %1612 = vmatprep.subr.bf16.mxu0 0
  %1613 = vmatpush1.bf16.xpose.msra.mxu0 0
  %1614 = vmatprep.subr.bf16.mxu0 0
  %1615 = vmatpush1.bf16.xpose.msra.mxu0 0
  %1616 = vmatprep.subr.bf16.mxu0 0
  %1617 = vmatpush1.bf16.xpose.msra.mxu0 0
  %1618 = vmatprep.subr.bf16.mxu0 0
  %1619 = vmatpush1.bf16.xpose.msra.mxu0 0
  %1620 = vmatprep.subr.bf16.mxu0 0
  %1621 = vmatpush1.bf16.xpose.msra.mxu0 0
  %1622 = vmatprep.subr.bf16.mxu0 0
  %1623 = vmatpush1.bf16.xpose.msra.mxu0 0
  %1624 = vmatprep.subr.bf16.mxu0 0
  %1625 = vmatpush1.bf16.xpose.msra.mxu0 0
  %1626 = vmatprep.subr.bf16.mxu0 0
  %1627 = vmatpush1.bf16.xpose.msra.mxu0 0
  %1628 = vmatprep.mubr.bf16.mxu0 0
  %1629 = vmatmul.mubr.bf16.gmra.mrb[0].mxu0 %v1591
  %v1630 = vpop.f32.mrb[0].mxu0
  %v1631 = vadd.f32 0.0, %v1630
  %v1632 = vpop.f32.mrb[0].mxu0
  %v1633 = vpop.f32.mrb[0].mxu0
  %v1634 = vpop.f32.mrb[0].mxu0
  %1635 = vdwg.mxu0
  %1636 = vrot.lane.b32.xlu0 %v396, 120
  %v1637 = vpop.permute.xlu0 %1636
  %1638 = vrot.lane.b32.xlu0 %v396, 88
  %v1639 = vpop.permute.xlu0 %1638
  %v1641 = vsel %vm401, %v1637, 0
  %v1644 = vsel %vm401, %v1639, 0
  %1646 = vmatprep.subr.bf16.mxu0 0
  %1647 = vmatpush1.bf16.xpose.msra.mxu0 %v1644
  %1648 = vmatprep.subr.bf16.mxu0 0
  %1649 = vmatpush1.bf16.xpose.msra.mxu0 0
  %1650 = vmatprep.subr.bf16.mxu0 0
  %1651 = vmatpush1.bf16.xpose.msra.mxu0 0
  %1652 = vmatprep.subr.bf16.mxu0 0
  %1653 = vmatpush1.bf16.xpose.msra.mxu0 0
  %1654 = vmatprep.subr.bf16.mxu0 0
  %1655 = vmatpush1.bf16.xpose.msra.mxu0 0
  %1656 = vmatprep.subr.bf16.mxu0 0
  %1657 = vmatpush1.bf16.xpose.msra.mxu0 0
  %1658 = vmatprep.subr.bf16.mxu0 0
  %1659 = vmatpush1.bf16.xpose.msra.mxu0 0
  %1660 = vmatprep.subr.bf16.mxu0 0
  %1661 = vmatpush1.bf16.xpose.msra.mxu0 0
  %1662 = vmatprep.subr.bf16.mxu0 0
  %1663 = vmatpush1.bf16.xpose.msra.mxu0 0
  %1664 = vmatprep.subr.bf16.mxu0 0
  %1665 = vmatpush1.bf16.xpose.msra.mxu0 0
  %1666 = vmatprep.subr.bf16.mxu0 0
  %1667 = vmatpush1.bf16.xpose.msra.mxu0 0
  %1668 = vmatprep.subr.bf16.mxu0 0
  %1669 = vmatpush1.bf16.xpose.msra.mxu0 0
  %1670 = vmatprep.subr.bf16.mxu0 0
  %1671 = vmatpush1.bf16.xpose.msra.mxu0 0
  %1672 = vmatprep.subr.bf16.mxu0 0
  %1673 = vmatpush1.bf16.xpose.msra.mxu0 0
  %1674 = vmatprep.subr.bf16.mxu0 0
  %1675 = vmatpush1.bf16.xpose.msra.mxu0 0
  %1676 = vmatprep.subr.bf16.mxu0 0
  %1677 = vmatpush1.bf16.xpose.msra.mxu0 0
  %1678 = vmatprep.mubr.bf16.mxu0 0
  %1679 = vmatmul.mubr.bf16.gmra.mrb[0].mxu0 %v1641
  %v1680 = vpop.f32.mrb[0].mxu0
  %v1681 = vadd.f32 0.0, %v1680
  %v1682 = vpop.f32.mrb[0].mxu0
  %v1683 = vpop.f32.mrb[0].mxu0
  %v1684 = vpop.f32.mrb[0].mxu0
  %1685 = vdwg.mxu0
  %1686 = vrot.lane.b32.xlu0 %v397, 120
  %v1687 = vpop.permute.xlu0 %1686
  %1688 = vrot.lane.b32.xlu0 %v397, 88
  %v1689 = vpop.permute.xlu0 %1688
  %v1691 = vsel %vm401, %v1687, 0
  %v1694 = vsel %vm401, %v1689, 0
  %1696 = vmatprep.subr.bf16.mxu0 0
  %1697 = vmatpush1.bf16.xpose.msra.mxu0 %v1694
  %1698 = vmatprep.subr.bf16.mxu0 0
  %1699 = vmatpush1.bf16.xpose.msra.mxu0 0
  %1700 = vmatprep.subr.bf16.mxu0 0
  %1701 = vmatpush1.bf16.xpose.msra.mxu0 0
  %1702 = vmatprep.subr.bf16.mxu0 0
  %1703 = vmatpush1.bf16.xpose.msra.mxu0 0
  %1704 = vmatprep.subr.bf16.mxu0 0
  %1705 = vmatpush1.bf16.xpose.msra.mxu0 0
  %1706 = vmatprep.subr.bf16.mxu0 0
  %1707 = vmatpush1.bf16.xpose.msra.mxu0 0
  %1708 = vmatprep.subr.bf16.mxu0 0
  %1709 = vmatpush1.bf16.xpose.msra.mxu0 0
  %1710 = vmatprep.subr.bf16.mxu0 0
  %1711 = vmatpush1.bf16.xpose.msra.mxu0 0
  %1712 = vmatprep.subr.bf16.mxu0 0
  %1713 = vmatpush1.bf16.xpose.msra.mxu0 0
  %1714 = vmatprep.subr.bf16.mxu0 0
  %1715 = vmatpush1.bf16.xpose.msra.mxu0 0
  %1716 = vmatprep.subr.bf16.mxu0 0
  %1717 = vmatpush1.bf16.xpose.msra.mxu0 0
  %1718 = vmatprep.subr.bf16.mxu0 0
  %1719 = vmatpush1.bf16.xpose.msra.mxu0 0
  %1720 = vmatprep.subr.bf16.mxu0 0
  %1721 = vmatpush1.bf16.xpose.msra.mxu0 0
  %1722 = vmatprep.subr.bf16.mxu0 0
  %1723 = vmatpush1.bf16.xpose.msra.mxu0 0
  %1724 = vmatprep.subr.bf16.mxu0 0
  %1725 = vmatpush1.bf16.xpose.msra.mxu0 0
  %1726 = vmatprep.subr.bf16.mxu0 0
  %1727 = vmatpush1.bf16.xpose.msra.mxu0 0
  %1728 = vmatprep.mubr.bf16.mxu0 0
  %1729 = vmatmul.mubr.bf16.gmra.mrb[0].mxu0 %v1691
  %v1730 = vpop.f32.mrb[0].mxu0
  %v1731 = vadd.f32 0.0, %v1730
  %v1732 = vpop.f32.mrb[0].mxu0
  %v1733 = vpop.f32.mrb[0].mxu0
  %v1734 = vpop.f32.mrb[0].mxu0
  %1735 = vdwg.mxu0
  %v1736 = vmul.f32 %v1381, 0.35355338
  %v1737 = vmul.f32 %v1431, 0.35355338
  %v1738 = vmul.f32 %v1481, 0.35355338
  %v1739 = vmul.f32 %v1531, 0.35355338
  %v1740 = vmul.f32 %v1581, 0.35355338
  %v1741 = vmul.f32 %v1631, 0.35355338
  %v1742 = vmul.f32 %v1681, 0.35355338
  %v1743 = vmul.f32 %v1731, 0.35355338
  %v1744 = vadd.f32 %v1736, %v810
  %v1745 = vadd.f32 %v1737, %v814
  %v1746 = vadd.f32 %v1738, %v818
  %v1747 = vadd.f32 %v1739, %v822
  %v1748 = vadd.f32 %v1740, %v826
  %v1749 = vadd.f32 %v1741, %v830
  %v1750 = vadd.f32 %v1742, %v834
  %v1751 = vadd.f32 %v1743, %v838
  %v1752 = vsel %vm401, %v1744, -inf
  %1753 = vmax.xlane.f32.xlu0 %v1752
  %v1754 = vpop.xlane.xlu0 %1753
  %v1755 = vsel %vm401, %v1745, -inf
  %1756 = vmax.xlane.f32.xlu0 %v1755
  %v1757 = vpop.xlane.xlu0 %1756
  %v1758 = vsel %vm401, %v1746, -inf
  %1759 = vmax.xlane.f32.xlu0 %v1758
  %v1760 = vpop.xlane.xlu0 %1759
  %v1761 = vsel %vm401, %v1747, -inf
  %1762 = vmax.xlane.f32.xlu0 %v1761
  %v1763 = vpop.xlane.xlu0 %1762
  %v1764 = vsel %vm401, %v1748, -inf
  %1765 = vmax.xlane.f32.xlu0 %v1764
  %v1766 = vpop.xlane.xlu0 %1765
  %v1767 = vsel %vm401, %v1749, -inf
  %1768 = vmax.xlane.f32.xlu0 %v1767
  %v1769 = vpop.xlane.xlu0 %1768
  %v1770 = vsel %vm401, %v1750, -inf
  %1771 = vmax.xlane.f32.xlu0 %v1770
  %v1772 = vpop.xlane.xlu0 %1771
  %v1773 = vsel %vm401, %v1751, -inf
  %1774 = vmax.xlane.f32.xlu0 %v1773
  %v1775 = vpop.xlane.xlu0 %1774
  %v1776 = vsub.f32 %v1744, %v1754
  %v1777 = vsub.f32 %v1745, %v1757
  %v1778 = vsub.f32 %v1746, %v1760
  %v1779 = vsub.f32 %v1747, %v1763
  %v1780 = vsub.f32 %v1748, %v1766
  %v1781 = vsub.f32 %v1749, %v1769
  %v1782 = vsub.f32 %v1750, %v1772
  %v1783 = vsub.f32 %v1751, %v1775
  %v1784 = vmul.f32 %v1776, 1.442695
  %v1785 = vpow.pop %v1784
  %v1786 = vmul.f32 %v1777, 1.442695
  %v1787 = vpow.pop %v1786
  %v1788 = vmul.f32 %v1778, 1.442695
  %v1789 = vpow.pop %v1788
  %v1790 = vmul.f32 %v1779, 1.442695
  %v1791 = vpow.pop %v1790
  %v1792 = vmul.f32 %v1780, 1.442695
  %v1793 = vpow.pop %v1792
  %v1794 = vmul.f32 %v1781, 1.442695
  %v1795 = vpow.pop %v1794
  %v1796 = vmul.f32 %v1782, 1.442695
  %v1797 = vpow.pop %v1796
  %v1798 = vmul.f32 %v1783, 1.442695
  %v1799 = vpow.pop %v1798
  %v1800 = vsel %vm401, %v1785, 0.0
  %1801 = vadd.xlane.f32.xlu0 %v1800
  %v1802 = vpop.xlane.xlu0 %1801
  %v1803 = vsel %vm401, %v1787, 0.0
  %1804 = vadd.xlane.f32.xlu0 %v1803
  %v1805 = vpop.xlane.xlu0 %1804
  %v1806 = vsel %vm401, %v1789, 0.0
  %1807 = vadd.xlane.f32.xlu0 %v1806
  %v1808 = vpop.xlane.xlu0 %1807
  %v1809 = vsel %vm401, %v1791, 0.0
  %1810 = vadd.xlane.f32.xlu0 %v1809
  %v1811 = vpop.xlane.xlu0 %1810
  %v1812 = vsel %vm401, %v1793, 0.0
  %1813 = vadd.xlane.f32.xlu0 %v1812
  %v1814 = vpop.xlane.xlu0 %1813
  %v1815 = vsel %vm401, %v1795, 0.0
  %1816 = vadd.xlane.f32.xlu0 %v1815
  %v1817 = vpop.xlane.xlu0 %1816
  %v1818 = vsel %vm401, %v1797, 0.0
  %1819 = vadd.xlane.f32.xlu0 %v1818
  %v1820 = vpop.xlane.xlu0 %1819
  %v1821 = vsel %vm401, %v1799, 0.0
  %1822 = vadd.xlane.f32.xlu0 %v1821
  %v1823 = vpop.xlane.xlu0 %1822
  %v1824 = vrcp.pop %v1802
  %v1825 = vrcp.pop %v1805
  %v1826 = vrcp.pop %v1808
  %v1827 = vrcp.pop %v1811
  %v1828 = vrcp.pop %v1814
  %v1829 = vrcp.pop %v1817
  %v1830 = vrcp.pop %v1820
  %v1831 = vrcp.pop %v1823
  %v1832 = vmul.f32 %v1785, %v1824
  %v1833 = vmul.f32 %v1787, %v1825
  %v1834 = vmul.f32 %v1789, %v1826
  %v1835 = vmul.f32 %v1791, %v1827
  %v1836 = vmul.f32 %v1793, %v1828
  %v1837 = vmul.f32 %v1795, %v1829
  %v1838 = vmul.f32 %v1797, %v1830
  %v1839 = vmul.f32 %v1799, %v1831
  %v1840 = vpack.c.bf16 %v1832, %v1832
  %v1841 = vpack.c.bf16 %v1833, %v1833
  %v1842 = vpack.c.bf16 %v1834, %v1834
  %v1843 = vpack.c.bf16 %v1835, %v1835
  %v1844 = vpack.c.bf16 %v1836, %v1836
  %v1845 = vpack.c.bf16 %v1837, %v1837
  %v1846 = vpack.c.bf16 %v1838, %v1838
  %v1847 = vpack.c.bf16 %v1839, %v1839
  %1848 = vrot.lane.b32.xlu0 %v390, 56
  %v1849 = vpop.permute.xlu0 %1848
  %v1851 = vsel %vm401, %v1840, 0
  %v1854 = vsel %vm956, %v1849, 0
  %1856 = vmatprep.subr.bf16.mxu0 0
  %1857 = vmatpush1.bf16.msra.mxu0 %v1854
  %1858 = vmatprep.subr.bf16.mxu0 0
  %1859 = vmatpush1.bf16.msra.mxu0 0
  %1860 = vmatprep.subr.bf16.mxu0 0
  %1861 = vmatpush1.bf16.msra.mxu0 0
  %1862 = vmatprep.subr.bf16.mxu0 0
  %1863 = vmatpush1.bf16.msra.mxu0 0
  %1864 = vmatprep.subr.bf16.mxu0 0
  %1865 = vmatpush1.bf16.msra.mxu0 0
  %1866 = vmatprep.subr.bf16.mxu0 0
  %1867 = vmatpush1.bf16.msra.mxu0 0
  %1868 = vmatprep.subr.bf16.mxu0 0
  %1869 = vmatpush1.bf16.msra.mxu0 0
  %1870 = vmatprep.subr.bf16.mxu0 0
  %1871 = vmatpush1.bf16.msra.mxu0 0
  %1872 = vmatprep.subr.bf16.mxu0 0
  %1873 = vmatpush1.bf16.msra.mxu0 0
  %1874 = vmatprep.subr.bf16.mxu0 0
  %1875 = vmatpush1.bf16.msra.mxu0 0
  %1876 = vmatprep.subr.bf16.mxu0 0
  %1877 = vmatpush1.bf16.msra.mxu0 0
  %1878 = vmatprep.subr.bf16.mxu0 0
  %1879 = vmatpush1.bf16.msra.mxu0 0
  %1880 = vmatprep.subr.bf16.mxu0 0
  %1881 = vmatpush1.bf16.msra.mxu0 0
  %1882 = vmatprep.subr.bf16.mxu0 0
  %1883 = vmatpush1.bf16.msra.mxu0 0
  %1884 = vmatprep.subr.bf16.mxu0 0
  %1885 = vmatpush1.bf16.msra.mxu0 0
  %1886 = vmatprep.subr.bf16.mxu0 0
  %1887 = vmatpush1.bf16.msra.mxu0 0
  %1888 = vmatprep.mubr.bf16.mxu0 0
  %1889 = vmatmul.mubr.bf16.gmra.mrb[0].mxu0 %v1851
  %v1890 = vpop.f32.mrb[0].mxu0
  %v1891 = vadd.f32 0.0, %v1890
  %v1892 = vpop.f32.mrb[0].mxu0
  %v1893 = vpop.f32.mrb[0].mxu0
  %v1894 = vpop.f32.mrb[0].mxu0
  %1895 = vdwg.mxu0
  %1896 = vrot.lane.b32.xlu0 %v391, 56
  %v1897 = vpop.permute.xlu0 %1896
  %v1899 = vsel %vm401, %v1841, 0
  %v1902 = vsel %vm956, %v1897, 0
  %1904 = vmatprep.subr.bf16.mxu0 0
  %1905 = vmatpush1.bf16.msra.mxu0 %v1902
  %1906 = vmatprep.subr.bf16.mxu0 0
  %1907 = vmatpush1.bf16.msra.mxu0 0
  %1908 = vmatprep.subr.bf16.mxu0 0
  %1909 = vmatpush1.bf16.msra.mxu0 0
  %1910 = vmatprep.subr.bf16.mxu0 0
  %1911 = vmatpush1.bf16.msra.mxu0 0
  %1912 = vmatprep.subr.bf16.mxu0 0
  %1913 = vmatpush1.bf16.msra.mxu0 0
  %1914 = vmatprep.subr.bf16.mxu0 0
  %1915 = vmatpush1.bf16.msra.mxu0 0
  %1916 = vmatprep.subr.bf16.mxu0 0
  %1917 = vmatpush1.bf16.msra.mxu0 0
  %1918 = vmatprep.subr.bf16.mxu0 0
  %1919 = vmatpush1.bf16.msra.mxu0 0
  %1920 = vmatprep.subr.bf16.mxu0 0
  %1921 = vmatpush1.bf16.msra.mxu0 0
  %1922 = vmatprep.subr.bf16.mxu0 0
  %1923 = vmatpush1.bf16.msra.mxu0 0
  %1924 = vmatprep.subr.bf16.mxu0 0
  %1925 = vmatpush1.bf16.msra.mxu0 0
  %1926 = vmatprep.subr.bf16.mxu0 0
  %1927 = vmatpush1.bf16.msra.mxu0 0
  %1928 = vmatprep.subr.bf16.mxu0 0
  %1929 = vmatpush1.bf16.msra.mxu0 0
  %1930 = vmatprep.subr.bf16.mxu0 0
  %1931 = vmatpush1.bf16.msra.mxu0 0
  %1932 = vmatprep.subr.bf16.mxu0 0
  %1933 = vmatpush1.bf16.msra.mxu0 0
  %1934 = vmatprep.subr.bf16.mxu0 0
  %1935 = vmatpush1.bf16.msra.mxu0 0
  %1936 = vmatprep.mubr.bf16.mxu0 0
  %1937 = vmatmul.mubr.bf16.gmra.mrb[0].mxu0 %v1899
  %v1938 = vpop.f32.mrb[0].mxu0
  %v1939 = vadd.f32 0.0, %v1938
  %v1940 = vpop.f32.mrb[0].mxu0
  %v1941 = vpop.f32.mrb[0].mxu0
  %v1942 = vpop.f32.mrb[0].mxu0
  %1943 = vdwg.mxu0
  %1944 = vrot.lane.b32.xlu0 %v392, 56
  %v1945 = vpop.permute.xlu0 %1944
  %v1947 = vsel %vm401, %v1842, 0
  %v1950 = vsel %vm956, %v1945, 0
  %1952 = vmatprep.subr.bf16.mxu0 0
  %1953 = vmatpush1.bf16.msra.mxu0 %v1950
  %1954 = vmatprep.subr.bf16.mxu0 0
  %1955 = vmatpush1.bf16.msra.mxu0 0
  %1956 = vmatprep.subr.bf16.mxu0 0
  %1957 = vmatpush1.bf16.msra.mxu0 0
  %1958 = vmatprep.subr.bf16.mxu0 0
  %1959 = vmatpush1.bf16.msra.mxu0 0
  %1960 = vmatprep.subr.bf16.mxu0 0
  %1961 = vmatpush1.bf16.msra.mxu0 0
  %1962 = vmatprep.subr.bf16.mxu0 0
  %1963 = vmatpush1.bf16.msra.mxu0 0
  %1964 = vmatprep.subr.bf16.mxu0 0
  %1965 = vmatpush1.bf16.msra.mxu0 0
  %1966 = vmatprep.subr.bf16.mxu0 0
  %1967 = vmatpush1.bf16.msra.mxu0 0
  %1968 = vmatprep.subr.bf16.mxu0 0
  %1969 = vmatpush1.bf16.msra.mxu0 0
  %1970 = vmatprep.subr.bf16.mxu0 0
  %1971 = vmatpush1.bf16.msra.mxu0 0
  %1972 = vmatprep.subr.bf16.mxu0 0
  %1973 = vmatpush1.bf16.msra.mxu0 0
  %1974 = vmatprep.subr.bf16.mxu0 0
  %1975 = vmatpush1.bf16.msra.mxu0 0
  %1976 = vmatprep.subr.bf16.mxu0 0
  %1977 = vmatpush1.bf16.msra.mxu0 0
  %1978 = vmatprep.subr.bf16.mxu0 0
  %1979 = vmatpush1.bf16.msra.mxu0 0
  %1980 = vmatprep.subr.bf16.mxu0 0
  %1981 = vmatpush1.bf16.msra.mxu0 0
  %1982 = vmatprep.subr.bf16.mxu0 0
  %1983 = vmatpush1.bf16.msra.mxu0 0
  %1984 = vmatprep.mubr.bf16.mxu0 0
  %1985 = vmatmul.mubr.bf16.gmra.mrb[0].mxu0 %v1947
  %v1986 = vpop.f32.mrb[0].mxu0
  %v1987 = vadd.f32 0.0, %v1986
  %v1988 = vpop.f32.mrb[0].mxu0
  %v1989 = vpop.f32.mrb[0].mxu0
  %v1990 = vpop.f32.mrb[0].mxu0
  %1991 = vdwg.mxu0
  %1992 = vrot.lane.b32.xlu0 %v393, 56
  %v1993 = vpop.permute.xlu0 %1992
  %v1995 = vsel %vm401, %v1843, 0
  %v1998 = vsel %vm956, %v1993, 0
  %2000 = vmatprep.subr.bf16.mxu0 0
  %2001 = vmatpush1.bf16.msra.mxu0 %v1998
  %2002 = vmatprep.subr.bf16.mxu0 0
  %2003 = vmatpush1.bf16.msra.mxu0 0
  %2004 = vmatprep.subr.bf16.mxu0 0
  %2005 = vmatpush1.bf16.msra.mxu0 0
  %2006 = vmatprep.subr.bf16.mxu0 0
  %2007 = vmatpush1.bf16.msra.mxu0 0
  %2008 = vmatprep.subr.bf16.mxu0 0
  %2009 = vmatpush1.bf16.msra.mxu0 0
  %2010 = vmatprep.subr.bf16.mxu0 0
  %2011 = vmatpush1.bf16.msra.mxu0 0
  %2012 = vmatprep.subr.bf16.mxu0 0
  %2013 = vmatpush1.bf16.msra.mxu0 0
  %2014 = vmatprep.subr.bf16.mxu0 0
  %2015 = vmatpush1.bf16.msra.mxu0 0
  %2016 = vmatprep.subr.bf16.mxu0 0
  %2017 = vmatpush1.bf16.msra.mxu0 0
  %2018 = vmatprep.subr.bf16.mxu0 0
  %2019 = vmatpush1.bf16.msra.mxu0 0
  %2020 = vmatprep.subr.bf16.mxu0 0
  %2021 = vmatpush1.bf16.msra.mxu0 0
  %2022 = vmatprep.subr.bf16.mxu0 0
  %2023 = vmatpush1.bf16.msra.mxu0 0
  %2024 = vmatprep.subr.bf16.mxu0 0
  %2025 = vmatpush1.bf16.msra.mxu0 0
  %2026 = vmatprep.subr.bf16.mxu0 0
  %2027 = vmatpush1.bf16.msra.mxu0 0
  %2028 = vmatprep.subr.bf16.mxu0 0
  %2029 = vmatpush1.bf16.msra.mxu0 0
  %2030 = vmatprep.subr.bf16.mxu0 0
  %2031 = vmatpush1.bf16.msra.mxu0 0
  %2032 = vmatprep.mubr.bf16.mxu0 0
  %2033 = vmatmul.mubr.bf16.gmra.mrb[0].mxu0 %v1995
  %v2034 = vpop.f32.mrb[0].mxu0
  %v2035 = vadd.f32 0.0, %v2034
  %v2036 = vpop.f32.mrb[0].mxu0
  %v2037 = vpop.f32.mrb[0].mxu0
  %v2038 = vpop.f32.mrb[0].mxu0
  %2039 = vdwg.mxu0
  %2040 = vrot.lane.b32.xlu0 %v394, 56
  %v2041 = vpop.permute.xlu0 %2040
  %v2043 = vsel %vm401, %v1844, 0
  %v2046 = vsel %vm956, %v2041, 0
  %2048 = vmatprep.subr.bf16.mxu0 0
  %2049 = vmatpush1.bf16.msra.mxu0 %v2046
  %2050 = vmatprep.subr.bf16.mxu0 0
  %2051 = vmatpush1.bf16.msra.mxu0 0
  %2052 = vmatprep.subr.bf16.mxu0 0
  %2053 = vmatpush1.bf16.msra.mxu0 0
  %2054 = vmatprep.subr.bf16.mxu0 0
  %2055 = vmatpush1.bf16.msra.mxu0 0
  %2056 = vmatprep.subr.bf16.mxu0 0
  %2057 = vmatpush1.bf16.msra.mxu0 0
  %2058 = vmatprep.subr.bf16.mxu0 0
  %2059 = vmatpush1.bf16.msra.mxu0 0
  %2060 = vmatprep.subr.bf16.mxu0 0
  %2061 = vmatpush1.bf16.msra.mxu0 0
  %2062 = vmatprep.subr.bf16.mxu0 0
  %2063 = vmatpush1.bf16.msra.mxu0 0
  %2064 = vmatprep.subr.bf16.mxu0 0
  %2065 = vmatpush1.bf16.msra.mxu0 0
  %2066 = vmatprep.subr.bf16.mxu0 0
  %2067 = vmatpush1.bf16.msra.mxu0 0
  %2068 = vmatprep.subr.bf16.mxu0 0
  %2069 = vmatpush1.bf16.msra.mxu0 0
  %2070 = vmatprep.subr.bf16.mxu0 0
  %2071 = vmatpush1.bf16.msra.mxu0 0
  %2072 = vmatprep.subr.bf16.mxu0 0
  %2073 = vmatpush1.bf16.msra.mxu0 0
  %2074 = vmatprep.subr.bf16.mxu0 0
  %2075 = vmatpush1.bf16.msra.mxu0 0
  %2076 = vmatprep.subr.bf16.mxu0 0
  %2077 = vmatpush1.bf16.msra.mxu0 0
  %2078 = vmatprep.subr.bf16.mxu0 0
  %2079 = vmatpush1.bf16.msra.mxu0 0
  %2080 = vmatprep.mubr.bf16.mxu0 0
  %2081 = vmatmul.mubr.bf16.gmra.mrb[0].mxu0 %v2043
  %v2082 = vpop.f32.mrb[0].mxu0
  %v2083 = vadd.f32 0.0, %v2082
  %v2084 = vpop.f32.mrb[0].mxu0
  %v2085 = vpop.f32.mrb[0].mxu0
  %v2086 = vpop.f32.mrb[0].mxu0
  %2087 = vdwg.mxu0
  %2088 = vrot.lane.b32.xlu0 %v395, 56
  %v2089 = vpop.permute.xlu0 %2088
  %v2091 = vsel %vm401, %v1845, 0
  %v2094 = vsel %vm956, %v2089, 0
  %2096 = vmatprep.subr.bf16.mxu0 0
  %2097 = vmatpush1.bf16.msra.mxu0 %v2094
  %2098 = vmatprep.subr.bf16.mxu0 0
  %2099 = vmatpush1.bf16.msra.mxu0 0
  %2100 = vmatprep.subr.bf16.mxu0 0
  %2101 = vmatpush1.bf16.msra.mxu0 0
  %2102 = vmatprep.subr.bf16.mxu0 0
  %2103 = vmatpush1.bf16.msra.mxu0 0
  %2104 = vmatprep.subr.bf16.mxu0 0
  %2105 = vmatpush1.bf16.msra.mxu0 0
  %2106 = vmatprep.subr.bf16.mxu0 0
  %2107 = vmatpush1.bf16.msra.mxu0 0
  %2108 = vmatprep.subr.bf16.mxu0 0
  %2109 = vmatpush1.bf16.msra.mxu0 0
  %2110 = vmatprep.subr.bf16.mxu0 0
  %2111 = vmatpush1.bf16.msra.mxu0 0
  %2112 = vmatprep.subr.bf16.mxu0 0
  %2113 = vmatpush1.bf16.msra.mxu0 0
  %2114 = vmatprep.subr.bf16.mxu0 0
  %2115 = vmatpush1.bf16.msra.mxu0 0
  %2116 = vmatprep.subr.bf16.mxu0 0
  %2117 = vmatpush1.bf16.msra.mxu0 0
  %2118 = vmatprep.subr.bf16.mxu0 0
  %2119 = vmatpush1.bf16.msra.mxu0 0
  %2120 = vmatprep.subr.bf16.mxu0 0
  %2121 = vmatpush1.bf16.msra.mxu0 0
  %2122 = vmatprep.subr.bf16.mxu0 0
  %2123 = vmatpush1.bf16.msra.mxu0 0
  %2124 = vmatprep.subr.bf16.mxu0 0
  %2125 = vmatpush1.bf16.msra.mxu0 0
  %2126 = vmatprep.subr.bf16.mxu0 0
  %2127 = vmatpush1.bf16.msra.mxu0 0
  %2128 = vmatprep.mubr.bf16.mxu0 0
  %2129 = vmatmul.mubr.bf16.gmra.mrb[0].mxu0 %v2091
  %v2130 = vpop.f32.mrb[0].mxu0
  %v2131 = vadd.f32 0.0, %v2130
  %v2132 = vpop.f32.mrb[0].mxu0
  %v2133 = vpop.f32.mrb[0].mxu0
  %v2134 = vpop.f32.mrb[0].mxu0
  %2135 = vdwg.mxu0
  %2136 = vrot.lane.b32.xlu0 %v396, 56
  %v2137 = vpop.permute.xlu0 %2136
  %v2139 = vsel %vm401, %v1846, 0
  %v2142 = vsel %vm956, %v2137, 0
  %2144 = vmatprep.subr.bf16.mxu0 0
  %2145 = vmatpush1.bf16.msra.mxu0 %v2142
  %2146 = vmatprep.subr.bf16.mxu0 0
  %2147 = vmatpush1.bf16.msra.mxu0 0
  %2148 = vmatprep.subr.bf16.mxu0 0
  %2149 = vmatpush1.bf16.msra.mxu0 0
  %2150 = vmatprep.subr.bf16.mxu0 0
  %2151 = vmatpush1.bf16.msra.mxu0 0
  %2152 = vmatprep.subr.bf16.mxu0 0
  %2153 = vmatpush1.bf16.msra.mxu0 0
  %2154 = vmatprep.subr.bf16.mxu0 0
  %2155 = vmatpush1.bf16.msra.mxu0 0
  %2156 = vmatprep.subr.bf16.mxu0 0
  %2157 = vmatpush1.bf16.msra.mxu0 0
  %2158 = vmatprep.subr.bf16.mxu0 0
  %2159 = vmatpush1.bf16.msra.mxu0 0
  %2160 = vmatprep.subr.bf16.mxu0 0
  %2161 = vmatpush1.bf16.msra.mxu0 0
  %2162 = vmatprep.subr.bf16.mxu0 0
  %2163 = vmatpush1.bf16.msra.mxu0 0
  %2164 = vmatprep.subr.bf16.mxu0 0
  %2165 = vmatpush1.bf16.msra.mxu0 0
  %2166 = vmatprep.subr.bf16.mxu0 0
  %2167 = vmatpush1.bf16.msra.mxu0 0
  %2168 = vmatprep.subr.bf16.mxu0 0
  %2169 = vmatpush1.bf16.msra.mxu0 0
  %2170 = vmatprep.subr.bf16.mxu0 0
  %2171 = vmatpush1.bf16.msra.mxu0 0
  %2172 = vmatprep.subr.bf16.mxu0 0
  %2173 = vmatpush1.bf16.msra.mxu0 0
  %2174 = vmatprep.subr.bf16.mxu0 0
  %2175 = vmatpush1.bf16.msra.mxu0 0
  %2176 = vmatprep.mubr.bf16.mxu0 0
  %2177 = vmatmul.mubr.bf16.gmra.mrb[0].mxu0 %v2139
  %v2178 = vpop.f32.mrb[0].mxu0
  %v2179 = vadd.f32 0.0, %v2178
  %v2180 = vpop.f32.mrb[0].mxu0
  %v2181 = vpop.f32.mrb[0].mxu0
  %v2182 = vpop.f32.mrb[0].mxu0
  %2183 = vdwg.mxu0
  %2184 = vrot.lane.b32.xlu0 %v397, 56
  %v2185 = vpop.permute.xlu0 %2184
  %v2187 = vsel %vm401, %v1847, 0
  %v2190 = vsel %vm956, %v2185, 0
  %2192 = vmatprep.subr.bf16.mxu0 0
  %2193 = vmatpush1.bf16.msra.mxu0 %v2190
  %2194 = vmatprep.subr.bf16.mxu0 0
  %2195 = vmatpush1.bf16.msra.mxu0 0
  %2196 = vmatprep.subr.bf16.mxu0 0
  %2197 = vmatpush1.bf16.msra.mxu0 0
  %2198 = vmatprep.subr.bf16.mxu0 0
  %2199 = vmatpush1.bf16.msra.mxu0 0
  %2200 = vmatprep.subr.bf16.mxu0 0
  %2201 = vmatpush1.bf16.msra.mxu0 0
  %2202 = vmatprep.subr.bf16.mxu0 0
  %2203 = vmatpush1.bf16.msra.mxu0 0
  %2204 = vmatprep.subr.bf16.mxu0 0
  %2205 = vmatpush1.bf16.msra.mxu0 0
  %2206 = vmatprep.subr.bf16.mxu0 0
  %2207 = vmatpush1.bf16.msra.mxu0 0
  %2208 = vmatprep.subr.bf16.mxu0 0
  %2209 = vmatpush1.bf16.msra.mxu0 0
  %2210 = vmatprep.subr.bf16.mxu0 0
  %2211 = vmatpush1.bf16.msra.mxu0 0
  %2212 = vmatprep.subr.bf16.mxu0 0
  %2213 = vmatpush1.bf16.msra.mxu0 0
  %2214 = vmatprep.subr.bf16.mxu0 0
  %2215 = vmatpush1.bf16.msra.mxu0 0
  %2216 = vmatprep.subr.bf16.mxu0 0
  %2217 = vmatpush1.bf16.msra.mxu0 0
  %2218 = vmatprep.subr.bf16.mxu0 0
  %2219 = vmatpush1.bf16.msra.mxu0 0
  %2220 = vmatprep.subr.bf16.mxu0 0
  %2221 = vmatpush1.bf16.msra.mxu0 0
  %2222 = vmatprep.subr.bf16.mxu0 0
  %2223 = vmatpush1.bf16.msra.mxu0 0
  %2224 = vmatprep.mubr.bf16.mxu0 0
  %2225 = vmatmul.mubr.bf16.gmra.mrb[0].mxu0 %v2187
  %v2226 = vpop.f32.mrb[0].mxu0
  %v2227 = vadd.f32 0.0, %v2226
  %v2228 = vpop.f32.mrb[0].mxu0
  %v2229 = vpop.f32.mrb[0].mxu0
  %v2230 = vpop.f32.mrb[0].mxu0
  %2231 = vdwg.mxu0
  %2232 = vrot.lane.b32.xlu0 %v390, 112
  %v2233 = vpop.permute.xlu0 %2232
  %2234 = vrot.lane.b32.xlu0 %v390, 80
  %v2235 = vpop.permute.xlu0 %2234
  %v2237 = vsel %vm401, %v2233, 0
  %v2240 = vsel %vm401, %v2235, 0
  %2242 = vmatprep.subr.bf16.mxu0 0
  %2243 = vmatpush1.bf16.xpose.msra.mxu0 %v2240
  %2244 = vmatprep.subr.bf16.mxu0 0
  %2245 = vmatpush1.bf16.xpose.msra.mxu0 0
  %2246 = vmatprep.subr.bf16.mxu0 0
  %2247 = vmatpush1.bf16.xpose.msra.mxu0 0
  %2248 = vmatprep.subr.bf16.mxu0 0
  %2249 = vmatpush1.bf16.xpose.msra.mxu0 0
  %2250 = vmatprep.subr.bf16.mxu0 0
  %2251 = vmatpush1.bf16.xpose.msra.mxu0 0
  %2252 = vmatprep.subr.bf16.mxu0 0
  %2253 = vmatpush1.bf16.xpose.msra.mxu0 0
  %2254 = vmatprep.subr.bf16.mxu0 0
  %2255 = vmatpush1.bf16.xpose.msra.mxu0 0
  %2256 = vmatprep.subr.bf16.mxu0 0
  %2257 = vmatpush1.bf16.xpose.msra.mxu0 0
  %2258 = vmatprep.subr.bf16.mxu0 0
  %2259 = vmatpush1.bf16.xpose.msra.mxu0 0
  %2260 = vmatprep.subr.bf16.mxu0 0
  %2261 = vmatpush1.bf16.xpose.msra.mxu0 0
  %2262 = vmatprep.subr.bf16.mxu0 0
  %2263 = vmatpush1.bf16.xpose.msra.mxu0 0
  %2264 = vmatprep.subr.bf16.mxu0 0
  %2265 = vmatpush1.bf16.xpose.msra.mxu0 0
  %2266 = vmatprep.subr.bf16.mxu0 0
  %2267 = vmatpush1.bf16.xpose.msra.mxu0 0
  %2268 = vmatprep.subr.bf16.mxu0 0
  %2269 = vmatpush1.bf16.xpose.msra.mxu0 0
  %2270 = vmatprep.subr.bf16.mxu0 0
  %2271 = vmatpush1.bf16.xpose.msra.mxu0 0
  %2272 = vmatprep.subr.bf16.mxu0 0
  %2273 = vmatpush1.bf16.xpose.msra.mxu0 0
  %2274 = vmatprep.mubr.bf16.mxu0 0
  %2275 = vmatmul.mubr.bf16.gmra.mrb[0].mxu0 %v2237
  %v2276 = vpop.f32.mrb[0].mxu0
  %v2277 = vadd.f32 0.0, %v2276
  %v2278 = vpop.f32.mrb[0].mxu0
  %v2279 = vpop.f32.mrb[0].mxu0
  %v2280 = vpop.f32.mrb[0].mxu0
  %2281 = vdwg.mxu0
  %2282 = vrot.lane.b32.xlu0 %v391, 112
  %v2283 = vpop.permute.xlu0 %2282
  %2284 = vrot.lane.b32.xlu0 %v391, 80
  %v2285 = vpop.permute.xlu0 %2284
  %v2287 = vsel %vm401, %v2283, 0
  %v2290 = vsel %vm401, %v2285, 0
  %2292 = vmatprep.subr.bf16.mxu0 0
  %2293 = vmatpush1.bf16.xpose.msra.mxu0 %v2290
  %2294 = vmatprep.subr.bf16.mxu0 0
  %2295 = vmatpush1.bf16.xpose.msra.mxu0 0
  %2296 = vmatprep.subr.bf16.mxu0 0
  %2297 = vmatpush1.bf16.xpose.msra.mxu0 0
  %2298 = vmatprep.subr.bf16.mxu0 0
  %2299 = vmatpush1.bf16.xpose.msra.mxu0 0
  %2300 = vmatprep.subr.bf16.mxu0 0
  %2301 = vmatpush1.bf16.xpose.msra.mxu0 0
  %2302 = vmatprep.subr.bf16.mxu0 0
  %2303 = vmatpush1.bf16.xpose.msra.mxu0 0
  %2304 = vmatprep.subr.bf16.mxu0 0
  %2305 = vmatpush1.bf16.xpose.msra.mxu0 0
  %2306 = vmatprep.subr.bf16.mxu0 0
  %2307 = vmatpush1.bf16.xpose.msra.mxu0 0
  %2308 = vmatprep.subr.bf16.mxu0 0
  %2309 = vmatpush1.bf16.xpose.msra.mxu0 0
  %2310 = vmatprep.subr.bf16.mxu0 0
  %2311 = vmatpush1.bf16.xpose.msra.mxu0 0
  %2312 = vmatprep.subr.bf16.mxu0 0
  %2313 = vmatpush1.bf16.xpose.msra.mxu0 0
  %2314 = vmatprep.subr.bf16.mxu0 0
  %2315 = vmatpush1.bf16.xpose.msra.mxu0 0
  %2316 = vmatprep.subr.bf16.mxu0 0
  %2317 = vmatpush1.bf16.xpose.msra.mxu0 0
  %2318 = vmatprep.subr.bf16.mxu0 0
  %2319 = vmatpush1.bf16.xpose.msra.mxu0 0
  %2320 = vmatprep.subr.bf16.mxu0 0
  %2321 = vmatpush1.bf16.xpose.msra.mxu0 0
  %2322 = vmatprep.subr.bf16.mxu0 0
  %2323 = vmatpush1.bf16.xpose.msra.mxu0 0
  %2324 = vmatprep.mubr.bf16.mxu0 0
  %2325 = vmatmul.mubr.bf16.gmra.mrb[0].mxu0 %v2287
  %v2326 = vpop.f32.mrb[0].mxu0
  %v2327 = vadd.f32 0.0, %v2326
  %v2328 = vpop.f32.mrb[0].mxu0
  %v2329 = vpop.f32.mrb[0].mxu0
  %v2330 = vpop.f32.mrb[0].mxu0
  %2331 = vdwg.mxu0
  %2332 = vrot.lane.b32.xlu0 %v392, 112
  %v2333 = vpop.permute.xlu0 %2332
  %2334 = vrot.lane.b32.xlu0 %v392, 80
  %v2335 = vpop.permute.xlu0 %2334
  %v2337 = vsel %vm401, %v2333, 0
  %v2340 = vsel %vm401, %v2335, 0
  %2342 = vmatprep.subr.bf16.mxu0 0
  %2343 = vmatpush1.bf16.xpose.msra.mxu0 %v2340
  %2344 = vmatprep.subr.bf16.mxu0 0
  %2345 = vmatpush1.bf16.xpose.msra.mxu0 0
  %2346 = vmatprep.subr.bf16.mxu0 0
  %2347 = vmatpush1.bf16.xpose.msra.mxu0 0
  %2348 = vmatprep.subr.bf16.mxu0 0
  %2349 = vmatpush1.bf16.xpose.msra.mxu0 0
  %2350 = vmatprep.subr.bf16.mxu0 0
  %2351 = vmatpush1.bf16.xpose.msra.mxu0 0
  %2352 = vmatprep.subr.bf16.mxu0 0
  %2353 = vmatpush1.bf16.xpose.msra.mxu0 0
  %2354 = vmatprep.subr.bf16.mxu0 0
  %2355 = vmatpush1.bf16.xpose.msra.mxu0 0
  %2356 = vmatprep.subr.bf16.mxu0 0
  %2357 = vmatpush1.bf16.xpose.msra.mxu0 0
  %2358 = vmatprep.subr.bf16.mxu0 0
  %2359 = vmatpush1.bf16.xpose.msra.mxu0 0
  %2360 = vmatprep.subr.bf16.mxu0 0
  %2361 = vmatpush1.bf16.xpose.msra.mxu0 0
  %2362 = vmatprep.subr.bf16.mxu0 0
  %2363 = vmatpush1.bf16.xpose.msra.mxu0 0
  %2364 = vmatprep.subr.bf16.mxu0 0
  %2365 = vmatpush1.bf16.xpose.msra.mxu0 0
  %2366 = vmatprep.subr.bf16.mxu0 0
  %2367 = vmatpush1.bf16.xpose.msra.mxu0 0
  %2368 = vmatprep.subr.bf16.mxu0 0
  %2369 = vmatpush1.bf16.xpose.msra.mxu0 0
  %2370 = vmatprep.subr.bf16.mxu0 0
  %2371 = vmatpush1.bf16.xpose.msra.mxu0 0
  %2372 = vmatprep.subr.bf16.mxu0 0
  %2373 = vmatpush1.bf16.xpose.msra.mxu0 0
  %2374 = vmatprep.mubr.bf16.mxu0 0
  %2375 = vmatmul.mubr.bf16.gmra.mrb[0].mxu0 %v2337
  %v2376 = vpop.f32.mrb[0].mxu0
  %v2377 = vadd.f32 0.0, %v2376
  %v2378 = vpop.f32.mrb[0].mxu0
  %v2379 = vpop.f32.mrb[0].mxu0
  %v2380 = vpop.f32.mrb[0].mxu0
  %2381 = vdwg.mxu0
  %2382 = vrot.lane.b32.xlu0 %v393, 112
  %v2383 = vpop.permute.xlu0 %2382
  %2384 = vrot.lane.b32.xlu0 %v393, 80
  %v2385 = vpop.permute.xlu0 %2384
  %v2387 = vsel %vm401, %v2383, 0
  %v2390 = vsel %vm401, %v2385, 0
  %2392 = vmatprep.subr.bf16.mxu0 0
  %2393 = vmatpush1.bf16.xpose.msra.mxu0 %v2390
  %2394 = vmatprep.subr.bf16.mxu0 0
  %2395 = vmatpush1.bf16.xpose.msra.mxu0 0
  %2396 = vmatprep.subr.bf16.mxu0 0
  %2397 = vmatpush1.bf16.xpose.msra.mxu0 0
  %2398 = vmatprep.subr.bf16.mxu0 0
  %2399 = vmatpush1.bf16.xpose.msra.mxu0 0
  %2400 = vmatprep.subr.bf16.mxu0 0
  %2401 = vmatpush1.bf16.xpose.msra.mxu0 0
  %2402 = vmatprep.subr.bf16.mxu0 0
  %2403 = vmatpush1.bf16.xpose.msra.mxu0 0
  %2404 = vmatprep.subr.bf16.mxu0 0
  %2405 = vmatpush1.bf16.xpose.msra.mxu0 0
  %2406 = vmatprep.subr.bf16.mxu0 0
  %2407 = vmatpush1.bf16.xpose.msra.mxu0 0
  %2408 = vmatprep.subr.bf16.mxu0 0
  %2409 = vmatpush1.bf16.xpose.msra.mxu0 0
  %2410 = vmatprep.subr.bf16.mxu0 0
  %2411 = vmatpush1.bf16.xpose.msra.mxu0 0
  %2412 = vmatprep.subr.bf16.mxu0 0
  %2413 = vmatpush1.bf16.xpose.msra.mxu0 0
  %2414 = vmatprep.subr.bf16.mxu0 0
  %2415 = vmatpush1.bf16.xpose.msra.mxu0 0
  %2416 = vmatprep.subr.bf16.mxu0 0
  %2417 = vmatpush1.bf16.xpose.msra.mxu0 0
  %2418 = vmatprep.subr.bf16.mxu0 0
  %2419 = vmatpush1.bf16.xpose.msra.mxu0 0
  %2420 = vmatprep.subr.bf16.mxu0 0
  %2421 = vmatpush1.bf16.xpose.msra.mxu0 0
  %2422 = vmatprep.subr.bf16.mxu0 0
  %2423 = vmatpush1.bf16.xpose.msra.mxu0 0
  %2424 = vmatprep.mubr.bf16.mxu0 0
  %2425 = vmatmul.mubr.bf16.gmra.mrb[0].mxu0 %v2387
  %v2426 = vpop.f32.mrb[0].mxu0
  %v2427 = vadd.f32 0.0, %v2426
  %v2428 = vpop.f32.mrb[0].mxu0
  %v2429 = vpop.f32.mrb[0].mxu0
  %v2430 = vpop.f32.mrb[0].mxu0
  %2431 = vdwg.mxu0
  %2432 = vrot.lane.b32.xlu0 %v394, 112
  %v2433 = vpop.permute.xlu0 %2432
  %2434 = vrot.lane.b32.xlu0 %v394, 80
  %v2435 = vpop.permute.xlu0 %2434
  %v2437 = vsel %vm401, %v2433, 0
  %v2440 = vsel %vm401, %v2435, 0
  %2442 = vmatprep.subr.bf16.mxu0 0
  %2443 = vmatpush1.bf16.xpose.msra.mxu0 %v2440
  %2444 = vmatprep.subr.bf16.mxu0 0
  %2445 = vmatpush1.bf16.xpose.msra.mxu0 0
  %2446 = vmatprep.subr.bf16.mxu0 0
  %2447 = vmatpush1.bf16.xpose.msra.mxu0 0
  %2448 = vmatprep.subr.bf16.mxu0 0
  %2449 = vmatpush1.bf16.xpose.msra.mxu0 0
  %2450 = vmatprep.subr.bf16.mxu0 0
  %2451 = vmatpush1.bf16.xpose.msra.mxu0 0
  %2452 = vmatprep.subr.bf16.mxu0 0
  %2453 = vmatpush1.bf16.xpose.msra.mxu0 0
  %2454 = vmatprep.subr.bf16.mxu0 0
  %2455 = vmatpush1.bf16.xpose.msra.mxu0 0
  %2456 = vmatprep.subr.bf16.mxu0 0
  %2457 = vmatpush1.bf16.xpose.msra.mxu0 0
  %2458 = vmatprep.subr.bf16.mxu0 0
  %2459 = vmatpush1.bf16.xpose.msra.mxu0 0
  %2460 = vmatprep.subr.bf16.mxu0 0
  %2461 = vmatpush1.bf16.xpose.msra.mxu0 0
  %2462 = vmatprep.subr.bf16.mxu0 0
  %2463 = vmatpush1.bf16.xpose.msra.mxu0 0
  %2464 = vmatprep.subr.bf16.mxu0 0
  %2465 = vmatpush1.bf16.xpose.msra.mxu0 0
  %2466 = vmatprep.subr.bf16.mxu0 0
  %2467 = vmatpush1.bf16.xpose.msra.mxu0 0
  %2468 = vmatprep.subr.bf16.mxu0 0
  %2469 = vmatpush1.bf16.xpose.msra.mxu0 0
  %2470 = vmatprep.subr.bf16.mxu0 0
  %2471 = vmatpush1.bf16.xpose.msra.mxu0 0
  %2472 = vmatprep.subr.bf16.mxu0 0
  %2473 = vmatpush1.bf16.xpose.msra.mxu0 0
  %2474 = vmatprep.mubr.bf16.mxu0 0
  %2475 = vmatmul.mubr.bf16.gmra.mrb[0].mxu0 %v2437
  %v2476 = vpop.f32.mrb[0].mxu0
  %v2477 = vadd.f32 0.0, %v2476
  %v2478 = vpop.f32.mrb[0].mxu0
  %v2479 = vpop.f32.mrb[0].mxu0
  %v2480 = vpop.f32.mrb[0].mxu0
  %2481 = vdwg.mxu0
  %2482 = vrot.lane.b32.xlu0 %v395, 112
  %v2483 = vpop.permute.xlu0 %2482
  %2484 = vrot.lane.b32.xlu0 %v395, 80
  %v2485 = vpop.permute.xlu0 %2484
  %v2487 = vsel %vm401, %v2483, 0
  %v2490 = vsel %vm401, %v2485, 0
  %2492 = vmatprep.subr.bf16.mxu0 0
  %2493 = vmatpush1.bf16.xpose.msra.mxu0 %v2490
  %2494 = vmatprep.subr.bf16.mxu0 0
  %2495 = vmatpush1.bf16.xpose.msra.mxu0 0
  %2496 = vmatprep.subr.bf16.mxu0 0
  %2497 = vmatpush1.bf16.xpose.msra.mxu0 0
  %2498 = vmatprep.subr.bf16.mxu0 0
  %2499 = vmatpush1.bf16.xpose.msra.mxu0 0
  %2500 = vmatprep.subr.bf16.mxu0 0
  %2501 = vmatpush1.bf16.xpose.msra.mxu0 0
  %2502 = vmatprep.subr.bf16.mxu0 0
  %2503 = vmatpush1.bf16.xpose.msra.mxu0 0
  %2504 = vmatprep.subr.bf16.mxu0 0
  %2505 = vmatpush1.bf16.xpose.msra.mxu0 0
  %2506 = vmatprep.subr.bf16.mxu0 0
  %2507 = vmatpush1.bf16.xpose.msra.mxu0 0
  %2508 = vmatprep.subr.bf16.mxu0 0
  %2509 = vmatpush1.bf16.xpose.msra.mxu0 0
  %2510 = vmatprep.subr.bf16.mxu0 0
  %2511 = vmatpush1.bf16.xpose.msra.mxu0 0
  %2512 = vmatprep.subr.bf16.mxu0 0
  %2513 = vmatpush1.bf16.xpose.msra.mxu0 0
  %2514 = vmatprep.subr.bf16.mxu0 0
  %2515 = vmatpush1.bf16.xpose.msra.mxu0 0
  %2516 = vmatprep.subr.bf16.mxu0 0
  %2517 = vmatpush1.bf16.xpose.msra.mxu0 0
  %2518 = vmatprep.subr.bf16.mxu0 0
  %2519 = vmatpush1.bf16.xpose.msra.mxu0 0
  %2520 = vmatprep.subr.bf16.mxu0 0
  %2521 = vmatpush1.bf16.xpose.msra.mxu0 0
  %2522 = vmatprep.subr.bf16.mxu0 0
  %2523 = vmatpush1.bf16.xpose.msra.mxu0 0
  %2524 = vmatprep.mubr.bf16.mxu0 0
  %2525 = vmatmul.mubr.bf16.gmra.mrb[0].mxu0 %v2487
  %v2526 = vpop.f32.mrb[0].mxu0
  %v2527 = vadd.f32 0.0, %v2526
  %v2528 = vpop.f32.mrb[0].mxu0
  %v2529 = vpop.f32.mrb[0].mxu0
  %v2530 = vpop.f32.mrb[0].mxu0
  %2531 = vdwg.mxu0
  %2532 = vrot.lane.b32.xlu0 %v396, 112
  %v2533 = vpop.permute.xlu0 %2532
  %2534 = vrot.lane.b32.xlu0 %v396, 80
  %v2535 = vpop.permute.xlu0 %2534
  %v2537 = vsel %vm401, %v2533, 0
  %v2540 = vsel %vm401, %v2535, 0
  %2542 = vmatprep.subr.bf16.mxu0 0
  %2543 = vmatpush1.bf16.xpose.msra.mxu0 %v2540
  %2544 = vmatprep.subr.bf16.mxu0 0
  %2545 = vmatpush1.bf16.xpose.msra.mxu0 0
  %2546 = vmatprep.subr.bf16.mxu0 0
  %2547 = vmatpush1.bf16.xpose.msra.mxu0 0
  %2548 = vmatprep.subr.bf16.mxu0 0
  %2549 = vmatpush1.bf16.xpose.msra.mxu0 0
  %2550 = vmatprep.subr.bf16.mxu0 0
  %2551 = vmatpush1.bf16.xpose.msra.mxu0 0
  %2552 = vmatprep.subr.bf16.mxu0 0
  %2553 = vmatpush1.bf16.xpose.msra.mxu0 0
  %2554 = vmatprep.subr.bf16.mxu0 0
  %2555 = vmatpush1.bf16.xpose.msra.mxu0 0
  %2556 = vmatprep.subr.bf16.mxu0 0
  %2557 = vmatpush1.bf16.xpose.msra.mxu0 0
  %2558 = vmatprep.subr.bf16.mxu0 0
  %2559 = vmatpush1.bf16.xpose.msra.mxu0 0
  %2560 = vmatprep.subr.bf16.mxu0 0
  %2561 = vmatpush1.bf16.xpose.msra.mxu0 0
  %2562 = vmatprep.subr.bf16.mxu0 0
  %2563 = vmatpush1.bf16.xpose.msra.mxu0 0
  %2564 = vmatprep.subr.bf16.mxu0 0
  %2565 = vmatpush1.bf16.xpose.msra.mxu0 0
  %2566 = vmatprep.subr.bf16.mxu0 0
  %2567 = vmatpush1.bf16.xpose.msra.mxu0 0
  %2568 = vmatprep.subr.bf16.mxu0 0
  %2569 = vmatpush1.bf16.xpose.msra.mxu0 0
  %2570 = vmatprep.subr.bf16.mxu0 0
  %2571 = vmatpush1.bf16.xpose.msra.mxu0 0
  %2572 = vmatprep.subr.bf16.mxu0 0
  %2573 = vmatpush1.bf16.xpose.msra.mxu0 0
  %2574 = vmatprep.mubr.bf16.mxu0 0
  %2575 = vmatmul.mubr.bf16.gmra.mrb[0].mxu0 %v2537
  %v2576 = vpop.f32.mrb[0].mxu0
  %v2577 = vadd.f32 0.0, %v2576
  %v2578 = vpop.f32.mrb[0].mxu0
  %v2579 = vpop.f32.mrb[0].mxu0
  %v2580 = vpop.f32.mrb[0].mxu0
  %2581 = vdwg.mxu0
  %2582 = vrot.lane.b32.xlu0 %v397, 112
  %v2583 = vpop.permute.xlu0 %2582
  %2584 = vrot.lane.b32.xlu0 %v397, 80
  %v2585 = vpop.permute.xlu0 %2584
  %v2587 = vsel %vm401, %v2583, 0
  %v2590 = vsel %vm401, %v2585, 0
  %2592 = vmatprep.subr.bf16.mxu0 0
  %2593 = vmatpush1.bf16.xpose.msra.mxu0 %v2590
  %2594 = vmatprep.subr.bf16.mxu0 0
  %2595 = vmatpush1.bf16.xpose.msra.mxu0 0
  %2596 = vmatprep.subr.bf16.mxu0 0
  %2597 = vmatpush1.bf16.xpose.msra.mxu0 0
  %2598 = vmatprep.subr.bf16.mxu0 0
  %2599 = vmatpush1.bf16.xpose.msra.mxu0 0
  %2600 = vmatprep.subr.bf16.mxu0 0
  %2601 = vmatpush1.bf16.xpose.msra.mxu0 0
  %2602 = vmatprep.subr.bf16.mxu0 0
  %2603 = vmatpush1.bf16.xpose.msra.mxu0 0
  %2604 = vmatprep.subr.bf16.mxu0 0
  %2605 = vmatpush1.bf16.xpose.msra.mxu0 0
  %2606 = vmatprep.subr.bf16.mxu0 0
  %2607 = vmatpush1.bf16.xpose.msra.mxu0 0
  %2608 = vmatprep.subr.bf16.mxu0 0
  %2609 = vmatpush1.bf16.xpose.msra.mxu0 0
  %2610 = vmatprep.subr.bf16.mxu0 0
  %2611 = vmatpush1.bf16.xpose.msra.mxu0 0
  %2612 = vmatprep.subr.bf16.mxu0 0
  %2613 = vmatpush1.bf16.xpose.msra.mxu0 0
  %2614 = vmatprep.subr.bf16.mxu0 0
  %2615 = vmatpush1.bf16.xpose.msra.mxu0 0
  %2616 = vmatprep.subr.bf16.mxu0 0
  %2617 = vmatpush1.bf16.xpose.msra.mxu0 0
  %2618 = vmatprep.subr.bf16.mxu0 0
  %2619 = vmatpush1.bf16.xpose.msra.mxu0 0
  %2620 = vmatprep.subr.bf16.mxu0 0
  %2621 = vmatpush1.bf16.xpose.msra.mxu0 0
  %2622 = vmatprep.subr.bf16.mxu0 0
  %2623 = vmatpush1.bf16.xpose.msra.mxu0 0
  %2624 = vmatprep.mubr.bf16.mxu0 0
  %2625 = vmatmul.mubr.bf16.gmra.mrb[0].mxu0 %v2587
  %v2626 = vpop.f32.mrb[0].mxu0
  %v2627 = vadd.f32 0.0, %v2626
  %v2628 = vpop.f32.mrb[0].mxu0
  %v2629 = vpop.f32.mrb[0].mxu0
  %v2630 = vpop.f32.mrb[0].mxu0
  %2631 = vdwg.mxu0
  %v2632 = vmul.f32 %v2277, 0.35355338
  %v2633 = vmul.f32 %v2327, 0.35355338
  %v2634 = vmul.f32 %v2377, 0.35355338
  %v2635 = vmul.f32 %v2427, 0.35355338
  %v2636 = vmul.f32 %v2477, 0.35355338
  %v2637 = vmul.f32 %v2527, 0.35355338
  %v2638 = vmul.f32 %v2577, 0.35355338
  %v2639 = vmul.f32 %v2627, 0.35355338
  %v2640 = vadd.f32 %v2632, %v810
  %v2641 = vadd.f32 %v2633, %v814
  %v2642 = vadd.f32 %v2634, %v818
  %v2643 = vadd.f32 %v2635, %v822
  %v2644 = vadd.f32 %v2636, %v826
  %v2645 = vadd.f32 %v2637, %v830
  %v2646 = vadd.f32 %v2638, %v834
  %v2647 = vadd.f32 %v2639, %v838
  %v2648 = vsel %vm401, %v2640, -inf
  %2649 = vmax.xlane.f32.xlu0 %v2648
  %v2650 = vpop.xlane.xlu0 %2649
  %v2651 = vsel %vm401, %v2641, -inf
  %2652 = vmax.xlane.f32.xlu0 %v2651
  %v2653 = vpop.xlane.xlu0 %2652
  %v2654 = vsel %vm401, %v2642, -inf
  %2655 = vmax.xlane.f32.xlu0 %v2654
  %v2656 = vpop.xlane.xlu0 %2655
  %v2657 = vsel %vm401, %v2643, -inf
  %2658 = vmax.xlane.f32.xlu0 %v2657
  %v2659 = vpop.xlane.xlu0 %2658
  %v2660 = vsel %vm401, %v2644, -inf
  %2661 = vmax.xlane.f32.xlu0 %v2660
  %v2662 = vpop.xlane.xlu0 %2661
  %v2663 = vsel %vm401, %v2645, -inf
  %2664 = vmax.xlane.f32.xlu0 %v2663
  %v2665 = vpop.xlane.xlu0 %2664
  %v2666 = vsel %vm401, %v2646, -inf
  %2667 = vmax.xlane.f32.xlu0 %v2666
  %v2668 = vpop.xlane.xlu0 %2667
  %v2669 = vsel %vm401, %v2647, -inf
  %2670 = vmax.xlane.f32.xlu0 %v2669
  %v2671 = vpop.xlane.xlu0 %2670
  %v2672 = vsub.f32 %v2640, %v2650
  %v2673 = vsub.f32 %v2641, %v2653
  %v2674 = vsub.f32 %v2642, %v2656
  %v2675 = vsub.f32 %v2643, %v2659
  %v2676 = vsub.f32 %v2644, %v2662
  %v2677 = vsub.f32 %v2645, %v2665
  %v2678 = vsub.f32 %v2646, %v2668
  %v2679 = vsub.f32 %v2647, %v2671
  %v2680 = vmul.f32 %v2672, 1.442695
  %v2681 = vpow.pop %v2680
  %v2682 = vmul.f32 %v2673, 1.442695
  %v2683 = vpow.pop %v2682
  %v2684 = vmul.f32 %v2674, 1.442695
  %v2685 = vpow.pop %v2684
  %v2686 = vmul.f32 %v2675, 1.442695
  %v2687 = vpow.pop %v2686
  %v2688 = vmul.f32 %v2676, 1.442695
  %v2689 = vpow.pop %v2688
  %v2690 = vmul.f32 %v2677, 1.442695
  %v2691 = vpow.pop %v2690
  %v2692 = vmul.f32 %v2678, 1.442695
  %v2693 = vpow.pop %v2692
  %v2694 = vmul.f32 %v2679, 1.442695
  %v2695 = vpow.pop %v2694
  %v2696 = vsel %vm401, %v2681, 0.0
  %2697 = vadd.xlane.f32.xlu0 %v2696
  %v2698 = vpop.xlane.xlu0 %2697
  %v2699 = vsel %vm401, %v2683, 0.0
  %2700 = vadd.xlane.f32.xlu0 %v2699
  %v2701 = vpop.xlane.xlu0 %2700
  %v2702 = vsel %vm401, %v2685, 0.0
  %2703 = vadd.xlane.f32.xlu0 %v2702
  %v2704 = vpop.xlane.xlu0 %2703
  %v2705 = vsel %vm401, %v2687, 0.0
  %2706 = vadd.xlane.f32.xlu0 %v2705
  %v2707 = vpop.xlane.xlu0 %2706
  %v2708 = vsel %vm401, %v2689, 0.0
  %2709 = vadd.xlane.f32.xlu0 %v2708
  %v2710 = vpop.xlane.xlu0 %2709
  %v2711 = vsel %vm401, %v2691, 0.0
  %2712 = vadd.xlane.f32.xlu0 %v2711
  %v2713 = vpop.xlane.xlu0 %2712
  %v2714 = vsel %vm401, %v2693, 0.0
  %2715 = vadd.xlane.f32.xlu0 %v2714
  %v2716 = vpop.xlane.xlu0 %2715
  %v2717 = vsel %vm401, %v2695, 0.0
  %2718 = vadd.xlane.f32.xlu0 %v2717
  %v2719 = vpop.xlane.xlu0 %2718
  %v2720 = vrcp.pop %v2698
  %v2721 = vrcp.pop %v2701
  %v2722 = vrcp.pop %v2704
  %v2723 = vrcp.pop %v2707
  %v2724 = vrcp.pop %v2710
  %v2725 = vrcp.pop %v2713
  %v2726 = vrcp.pop %v2716
  %v2727 = vrcp.pop %v2719
  %v2728 = vmul.f32 %v2681, %v2720
  %v2729 = vmul.f32 %v2683, %v2721
  %v2730 = vmul.f32 %v2685, %v2722
  %v2731 = vmul.f32 %v2687, %v2723
  %v2732 = vmul.f32 %v2689, %v2724
  %v2733 = vmul.f32 %v2691, %v2725
  %v2734 = vmul.f32 %v2693, %v2726
  %v2735 = vmul.f32 %v2695, %v2727
  %v2736 = vpack.c.bf16 %v2728, %v2728
  %v2737 = vpack.c.bf16 %v2729, %v2729
  %v2738 = vpack.c.bf16 %v2730, %v2730
  %v2739 = vpack.c.bf16 %v2731, %v2731
  %v2740 = vpack.c.bf16 %v2732, %v2732
  %v2741 = vpack.c.bf16 %v2733, %v2733
  %v2742 = vpack.c.bf16 %v2734, %v2734
  %v2743 = vpack.c.bf16 %v2735, %v2735
  %2744 = vrot.lane.b32.xlu0 %v390, 48
  %v2745 = vpop.permute.xlu0 %2744
  %v2747 = vsel %vm401, %v2736, 0
  %v2750 = vsel %vm956, %v2745, 0
  %2752 = vmatprep.subr.bf16.mxu0 0
  %2753 = vmatpush1.bf16.msra.mxu0 %v2750
  %2754 = vmatprep.subr.bf16.mxu0 0
  %2755 = vmatpush1.bf16.msra.mxu0 0
  %2756 = vmatprep.subr.bf16.mxu0 0
  %2757 = vmatpush1.bf16.msra.mxu0 0
  %2758 = vmatprep.subr.bf16.mxu0 0
  %2759 = vmatpush1.bf16.msra.mxu0 0
  %2760 = vmatprep.subr.bf16.mxu0 0
  %2761 = vmatpush1.bf16.msra.mxu0 0
  %2762 = vmatprep.subr.bf16.mxu0 0
  %2763 = vmatpush1.bf16.msra.mxu0 0
  %2764 = vmatprep.subr.bf16.mxu0 0
  %2765 = vmatpush1.bf16.msra.mxu0 0
  %2766 = vmatprep.subr.bf16.mxu0 0
  %2767 = vmatpush1.bf16.msra.mxu0 0
  %2768 = vmatprep.subr.bf16.mxu0 0
  %2769 = vmatpush1.bf16.msra.mxu0 0
  %2770 = vmatprep.subr.bf16.mxu0 0
  %2771 = vmatpush1.bf16.msra.mxu0 0
  %2772 = vmatprep.subr.bf16.mxu0 0
  %2773 = vmatpush1.bf16.msra.mxu0 0
  %2774 = vmatprep.subr.bf16.mxu0 0
  %2775 = vmatpush1.bf16.msra.mxu0 0
  %2776 = vmatprep.subr.bf16.mxu0 0
  %2777 = vmatpush1.bf16.msra.mxu0 0
  %2778 = vmatprep.subr.bf16.mxu0 0
  %2779 = vmatpush1.bf16.msra.mxu0 0
  %2780 = vmatprep.subr.bf16.mxu0 0
  %2781 = vmatpush1.bf16.msra.mxu0 0
  %2782 = vmatprep.subr.bf16.mxu0 0
  %2783 = vmatpush1.bf16.msra.mxu0 0
  %2784 = vmatprep.mubr.bf16.mxu0 0
  %2785 = vmatmul.mubr.bf16.gmra.mrb[0].mxu0 %v2747
  %v2786 = vpop.f32.mrb[0].mxu0
  %v2787 = vadd.f32 0.0, %v2786
  %v2788 = vpop.f32.mrb[0].mxu0
  %v2789 = vpop.f32.mrb[0].mxu0
  %v2790 = vpop.f32.mrb[0].mxu0
  %2791 = vdwg.mxu0
  %2792 = vrot.lane.b32.xlu0 %v391, 48
  %v2793 = vpop.permute.xlu0 %2792
  %v2795 = vsel %vm401, %v2737, 0
  %v2798 = vsel %vm956, %v2793, 0
  %2800 = vmatprep.subr.bf16.mxu0 0
  %2801 = vmatpush1.bf16.msra.mxu0 %v2798
  %2802 = vmatprep.subr.bf16.mxu0 0
  %2803 = vmatpush1.bf16.msra.mxu0 0
  %2804 = vmatprep.subr.bf16.mxu0 0
  %2805 = vmatpush1.bf16.msra.mxu0 0
  %2806 = vmatprep.subr.bf16.mxu0 0
  %2807 = vmatpush1.bf16.msra.mxu0 0
  %2808 = vmatprep.subr.bf16.mxu0 0
  %2809 = vmatpush1.bf16.msra.mxu0 0
  %2810 = vmatprep.subr.bf16.mxu0 0
  %2811 = vmatpush1.bf16.msra.mxu0 0
  %2812 = vmatprep.subr.bf16.mxu0 0
  %2813 = vmatpush1.bf16.msra.mxu0 0
  %2814 = vmatprep.subr.bf16.mxu0 0
  %2815 = vmatpush1.bf16.msra.mxu0 0
  %2816 = vmatprep.subr.bf16.mxu0 0
  %2817 = vmatpush1.bf16.msra.mxu0 0
  %2818 = vmatprep.subr.bf16.mxu0 0
  %2819 = vmatpush1.bf16.msra.mxu0 0
  %2820 = vmatprep.subr.bf16.mxu0 0
  %2821 = vmatpush1.bf16.msra.mxu0 0
  %2822 = vmatprep.subr.bf16.mxu0 0
  %2823 = vmatpush1.bf16.msra.mxu0 0
  %2824 = vmatprep.subr.bf16.mxu0 0
  %2825 = vmatpush1.bf16.msra.mxu0 0
  %2826 = vmatprep.subr.bf16.mxu0 0
  %2827 = vmatpush1.bf16.msra.mxu0 0
  %2828 = vmatprep.subr.bf16.mxu0 0
  %2829 = vmatpush1.bf16.msra.mxu0 0
  %2830 = vmatprep.subr.bf16.mxu0 0
  %2831 = vmatpush1.bf16.msra.mxu0 0
  %2832 = vmatprep.mubr.bf16.mxu0 0
  %2833 = vmatmul.mubr.bf16.gmra.mrb[0].mxu0 %v2795
  %v2834 = vpop.f32.mrb[0].mxu0
  %v2835 = vadd.f32 0.0, %v2834
  %v2836 = vpop.f32.mrb[0].mxu0
  %v2837 = vpop.f32.mrb[0].mxu0
  %v2838 = vpop.f32.mrb[0].mxu0
  %2839 = vdwg.mxu0
  %2840 = vrot.lane.b32.xlu0 %v392, 48
  %v2841 = vpop.permute.xlu0 %2840
  %v2843 = vsel %vm401, %v2738, 0
  %v2846 = vsel %vm956, %v2841, 0
  %2848 = vmatprep.subr.bf16.mxu0 0
  %2849 = vmatpush1.bf16.msra.mxu0 %v2846
  %2850 = vmatprep.subr.bf16.mxu0 0
  %2851 = vmatpush1.bf16.msra.mxu0 0
  %2852 = vmatprep.subr.bf16.mxu0 0
  %2853 = vmatpush1.bf16.msra.mxu0 0
  %2854 = vmatprep.subr.bf16.mxu0 0
  %2855 = vmatpush1.bf16.msra.mxu0 0
  %2856 = vmatprep.subr.bf16.mxu0 0
  %2857 = vmatpush1.bf16.msra.mxu0 0
  %2858 = vmatprep.subr.bf16.mxu0 0
  %2859 = vmatpush1.bf16.msra.mxu0 0
  %2860 = vmatprep.subr.bf16.mxu0 0
  %2861 = vmatpush1.bf16.msra.mxu0 0
  %2862 = vmatprep.subr.bf16.mxu0 0
  %2863 = vmatpush1.bf16.msra.mxu0 0
  %2864 = vmatprep.subr.bf16.mxu0 0
  %2865 = vmatpush1.bf16.msra.mxu0 0
  %2866 = vmatprep.subr.bf16.mxu0 0
  %2867 = vmatpush1.bf16.msra.mxu0 0
  %2868 = vmatprep.subr.bf16.mxu0 0
  %2869 = vmatpush1.bf16.msra.mxu0 0
  %2870 = vmatprep.subr.bf16.mxu0 0
  %2871 = vmatpush1.bf16.msra.mxu0 0
  %2872 = vmatprep.subr.bf16.mxu0 0
  %2873 = vmatpush1.bf16.msra.mxu0 0
  %2874 = vmatprep.subr.bf16.mxu0 0
  %2875 = vmatpush1.bf16.msra.mxu0 0
  %2876 = vmatprep.subr.bf16.mxu0 0
  %2877 = vmatpush1.bf16.msra.mxu0 0
  %2878 = vmatprep.subr.bf16.mxu0 0
  %2879 = vmatpush1.bf16.msra.mxu0 0
  %2880 = vmatprep.mubr.bf16.mxu0 0
  %2881 = vmatmul.mubr.bf16.gmra.mrb[0].mxu0 %v2843
  %v2882 = vpop.f32.mrb[0].mxu0
  %v2883 = vadd.f32 0.0, %v2882
  %v2884 = vpop.f32.mrb[0].mxu0
  %v2885 = vpop.f32.mrb[0].mxu0
  %v2886 = vpop.f32.mrb[0].mxu0
  %2887 = vdwg.mxu0
  %2888 = vrot.lane.b32.xlu0 %v393, 48
  %v2889 = vpop.permute.xlu0 %2888
  %v2891 = vsel %vm401, %v2739, 0
  %v2894 = vsel %vm956, %v2889, 0
  %2896 = vmatprep.subr.bf16.mxu0 0
  %2897 = vmatpush1.bf16.msra.mxu0 %v2894
  %2898 = vmatprep.subr.bf16.mxu0 0
  %2899 = vmatpush1.bf16.msra.mxu0 0
  %2900 = vmatprep.subr.bf16.mxu0 0
  %2901 = vmatpush1.bf16.msra.mxu0 0
  %2902 = vmatprep.subr.bf16.mxu0 0
  %2903 = vmatpush1.bf16.msra.mxu0 0
  %2904 = vmatprep.subr.bf16.mxu0 0
  %2905 = vmatpush1.bf16.msra.mxu0 0
  %2906 = vmatprep.subr.bf16.mxu0 0
  %2907 = vmatpush1.bf16.msra.mxu0 0
  %2908 = vmatprep.subr.bf16.mxu0 0
  %2909 = vmatpush1.bf16.msra.mxu0 0
  %2910 = vmatprep.subr.bf16.mxu0 0
  %2911 = vmatpush1.bf16.msra.mxu0 0
  %2912 = vmatprep.subr.bf16.mxu0 0
  %2913 = vmatpush1.bf16.msra.mxu0 0
  %2914 = vmatprep.subr.bf16.mxu0 0
  %2915 = vmatpush1.bf16.msra.mxu0 0
  %2916 = vmatprep.subr.bf16.mxu0 0
  %2917 = vmatpush1.bf16.msra.mxu0 0
  %2918 = vmatprep.subr.bf16.mxu0 0
  %2919 = vmatpush1.bf16.msra.mxu0 0
  %2920 = vmatprep.subr.bf16.mxu0 0
  %2921 = vmatpush1.bf16.msra.mxu0 0
  %2922 = vmatprep.subr.bf16.mxu0 0
  %2923 = vmatpush1.bf16.msra.mxu0 0
  %2924 = vmatprep.subr.bf16.mxu0 0
  %2925 = vmatpush1.bf16.msra.mxu0 0
  %2926 = vmatprep.subr.bf16.mxu0 0
  %2927 = vmatpush1.bf16.msra.mxu0 0
  %2928 = vmatprep.mubr.bf16.mxu0 0
  %2929 = vmatmul.mubr.bf16.gmra.mrb[0].mxu0 %v2891
  %v2930 = vpop.f32.mrb[0].mxu0
  %v2931 = vadd.f32 0.0, %v2930
  %v2932 = vpop.f32.mrb[0].mxu0
  %v2933 = vpop.f32.mrb[0].mxu0
  %v2934 = vpop.f32.mrb[0].mxu0
  %2935 = vdwg.mxu0
  %2936 = vrot.lane.b32.xlu0 %v394, 48
  %v2937 = vpop.permute.xlu0 %2936
  %v2939 = vsel %vm401, %v2740, 0
  %v2942 = vsel %vm956, %v2937, 0
  %2944 = vmatprep.subr.bf16.mxu0 0
  %2945 = vmatpush1.bf16.msra.mxu0 %v2942
  %2946 = vmatprep.subr.bf16.mxu0 0
  %2947 = vmatpush1.bf16.msra.mxu0 0
  %2948 = vmatprep.subr.bf16.mxu0 0
  %2949 = vmatpush1.bf16.msra.mxu0 0
  %2950 = vmatprep.subr.bf16.mxu0 0
  %2951 = vmatpush1.bf16.msra.mxu0 0
  %2952 = vmatprep.subr.bf16.mxu0 0
  %2953 = vmatpush1.bf16.msra.mxu0 0
  %2954 = vmatprep.subr.bf16.mxu0 0
  %2955 = vmatpush1.bf16.msra.mxu0 0
  %2956 = vmatprep.subr.bf16.mxu0 0
  %2957 = vmatpush1.bf16.msra.mxu0 0
  %2958 = vmatprep.subr.bf16.mxu0 0
  %2959 = vmatpush1.bf16.msra.mxu0 0
  %2960 = vmatprep.subr.bf16.mxu0 0
  %2961 = vmatpush1.bf16.msra.mxu0 0
  %2962 = vmatprep.subr.bf16.mxu0 0
  %2963 = vmatpush1.bf16.msra.mxu0 0
  %2964 = vmatprep.subr.bf16.mxu0 0
  %2965 = vmatpush1.bf16.msra.mxu0 0
  %2966 = vmatprep.subr.bf16.mxu0 0
  %2967 = vmatpush1.bf16.msra.mxu0 0
  %2968 = vmatprep.subr.bf16.mxu0 0
  %2969 = vmatpush1.bf16.msra.mxu0 0
  %2970 = vmatprep.subr.bf16.mxu0 0
  %2971 = vmatpush1.bf16.msra.mxu0 0
  %2972 = vmatprep.subr.bf16.mxu0 0
  %2973 = vmatpush1.bf16.msra.mxu0 0
  %2974 = vmatprep.subr.bf16.mxu0 0
  %2975 = vmatpush1.bf16.msra.mxu0 0
  %2976 = vmatprep.mubr.bf16.mxu0 0
  %2977 = vmatmul.mubr.bf16.gmra.mrb[0].mxu0 %v2939
  %v2978 = vpop.f32.mrb[0].mxu0
  %v2979 = vadd.f32 0.0, %v2978
  %v2980 = vpop.f32.mrb[0].mxu0
  %v2981 = vpop.f32.mrb[0].mxu0
  %v2982 = vpop.f32.mrb[0].mxu0
  %2983 = vdwg.mxu0
  %2984 = vrot.lane.b32.xlu0 %v395, 48
  %v2985 = vpop.permute.xlu0 %2984
  %v2987 = vsel %vm401, %v2741, 0
  %v2990 = vsel %vm956, %v2985, 0
  %2992 = vmatprep.subr.bf16.mxu0 0
  %2993 = vmatpush1.bf16.msra.mxu0 %v2990
  %2994 = vmatprep.subr.bf16.mxu0 0
  %2995 = vmatpush1.bf16.msra.mxu0 0
  %2996 = vmatprep.subr.bf16.mxu0 0
  %2997 = vmatpush1.bf16.msra.mxu0 0
  %2998 = vmatprep.subr.bf16.mxu0 0
  %2999 = vmatpush1.bf16.msra.mxu0 0
  %3000 = vmatprep.subr.bf16.mxu0 0
  %3001 = vmatpush1.bf16.msra.mxu0 0
  %3002 = vmatprep.subr.bf16.mxu0 0
  %3003 = vmatpush1.bf16.msra.mxu0 0
  %3004 = vmatprep.subr.bf16.mxu0 0
  %3005 = vmatpush1.bf16.msra.mxu0 0
  %3006 = vmatprep.subr.bf16.mxu0 0
  %3007 = vmatpush1.bf16.msra.mxu0 0
  %3008 = vmatprep.subr.bf16.mxu0 0
  %3009 = vmatpush1.bf16.msra.mxu0 0
  %3010 = vmatprep.subr.bf16.mxu0 0
  %3011 = vmatpush1.bf16.msra.mxu0 0
  %3012 = vmatprep.subr.bf16.mxu0 0
  %3013 = vmatpush1.bf16.msra.mxu0 0
  %3014 = vmatprep.subr.bf16.mxu0 0
  %3015 = vmatpush1.bf16.msra.mxu0 0
  %3016 = vmatprep.subr.bf16.mxu0 0
  %3017 = vmatpush1.bf16.msra.mxu0 0
  %3018 = vmatprep.subr.bf16.mxu0 0
  %3019 = vmatpush1.bf16.msra.mxu0 0
  %3020 = vmatprep.subr.bf16.mxu0 0
  %3021 = vmatpush1.bf16.msra.mxu0 0
  %3022 = vmatprep.subr.bf16.mxu0 0
  %3023 = vmatpush1.bf16.msra.mxu0 0
  %3024 = vmatprep.mubr.bf16.mxu0 0
  %3025 = vmatmul.mubr.bf16.gmra.mrb[0].mxu0 %v2987
  %v3026 = vpop.f32.mrb[0].mxu0
  %v3027 = vadd.f32 0.0, %v3026
  %v3028 = vpop.f32.mrb[0].mxu0
  %v3029 = vpop.f32.mrb[0].mxu0
  %v3030 = vpop.f32.mrb[0].mxu0
  %3031 = vdwg.mxu0
  %3032 = vrot.lane.b32.xlu0 %v396, 48
  %v3033 = vpop.permute.xlu0 %3032
  %v3035 = vsel %vm401, %v2742, 0
  %v3038 = vsel %vm956, %v3033, 0
  %3040 = vmatprep.subr.bf16.mxu0 0
  %3041 = vmatpush1.bf16.msra.mxu0 %v3038
  %3042 = vmatprep.subr.bf16.mxu0 0
  %3043 = vmatpush1.bf16.msra.mxu0 0
  %3044 = vmatprep.subr.bf16.mxu0 0
  %3045 = vmatpush1.bf16.msra.mxu0 0
  %3046 = vmatprep.subr.bf16.mxu0 0
  %3047 = vmatpush1.bf16.msra.mxu0 0
  %3048 = vmatprep.subr.bf16.mxu0 0
  %3049 = vmatpush1.bf16.msra.mxu0 0
  %3050 = vmatprep.subr.bf16.mxu0 0
  %3051 = vmatpush1.bf16.msra.mxu0 0
  %3052 = vmatprep.subr.bf16.mxu0 0
  %3053 = vmatpush1.bf16.msra.mxu0 0
  %3054 = vmatprep.subr.bf16.mxu0 0
  %3055 = vmatpush1.bf16.msra.mxu0 0
  %3056 = vmatprep.subr.bf16.mxu0 0
  %3057 = vmatpush1.bf16.msra.mxu0 0
  %3058 = vmatprep.subr.bf16.mxu0 0
  %3059 = vmatpush1.bf16.msra.mxu0 0
  %3060 = vmatprep.subr.bf16.mxu0 0
  %3061 = vmatpush1.bf16.msra.mxu0 0
  %3062 = vmatprep.subr.bf16.mxu0 0
  %3063 = vmatpush1.bf16.msra.mxu0 0
  %3064 = vmatprep.subr.bf16.mxu0 0
  %3065 = vmatpush1.bf16.msra.mxu0 0
  %3066 = vmatprep.subr.bf16.mxu0 0
  %3067 = vmatpush1.bf16.msra.mxu0 0
  %3068 = vmatprep.subr.bf16.mxu0 0
  %3069 = vmatpush1.bf16.msra.mxu0 0
  %3070 = vmatprep.subr.bf16.mxu0 0
  %3071 = vmatpush1.bf16.msra.mxu0 0
  %3072 = vmatprep.mubr.bf16.mxu0 0
  %3073 = vmatmul.mubr.bf16.gmra.mrb[0].mxu0 %v3035
  %v3074 = vpop.f32.mrb[0].mxu0
  %v3075 = vadd.f32 0.0, %v3074
  %v3076 = vpop.f32.mrb[0].mxu0
  %v3077 = vpop.f32.mrb[0].mxu0
  %v3078 = vpop.f32.mrb[0].mxu0
  %3079 = vdwg.mxu0
  %3080 = vrot.lane.b32.xlu0 %v397, 48
  %v3081 = vpop.permute.xlu0 %3080
  %v3083 = vsel %vm401, %v2743, 0
  %v3086 = vsel %vm956, %v3081, 0
  %3088 = vmatprep.subr.bf16.mxu0 0
  %3089 = vmatpush1.bf16.msra.mxu0 %v3086
  %3090 = vmatprep.subr.bf16.mxu0 0
  %3091 = vmatpush1.bf16.msra.mxu0 0
  %3092 = vmatprep.subr.bf16.mxu0 0
  %3093 = vmatpush1.bf16.msra.mxu0 0
  %3094 = vmatprep.subr.bf16.mxu0 0
  %3095 = vmatpush1.bf16.msra.mxu0 0
  %3096 = vmatprep.subr.bf16.mxu0 0
  %3097 = vmatpush1.bf16.msra.mxu0 0
  %3098 = vmatprep.subr.bf16.mxu0 0
  %3099 = vmatpush1.bf16.msra.mxu0 0
  %3100 = vmatprep.subr.bf16.mxu0 0
  %3101 = vmatpush1.bf16.msra.mxu0 0
  %3102 = vmatprep.subr.bf16.mxu0 0
  %3103 = vmatpush1.bf16.msra.mxu0 0
  %3104 = vmatprep.subr.bf16.mxu0 0
  %3105 = vmatpush1.bf16.msra.mxu0 0
  %3106 = vmatprep.subr.bf16.mxu0 0
  %3107 = vmatpush1.bf16.msra.mxu0 0
  %3108 = vmatprep.subr.bf16.mxu0 0
  %3109 = vmatpush1.bf16.msra.mxu0 0
  %3110 = vmatprep.subr.bf16.mxu0 0
  %3111 = vmatpush1.bf16.msra.mxu0 0
  %3112 = vmatprep.subr.bf16.mxu0 0
  %3113 = vmatpush1.bf16.msra.mxu0 0
  %3114 = vmatprep.subr.bf16.mxu0 0
  %3115 = vmatpush1.bf16.msra.mxu0 0
  %3116 = vmatprep.subr.bf16.mxu0 0
  %3117 = vmatpush1.bf16.msra.mxu0 0
  %3118 = vmatprep.subr.bf16.mxu0 0
  %3119 = vmatpush1.bf16.msra.mxu0 0
  %3120 = vmatprep.mubr.bf16.mxu0 0
  %3121 = vmatmul.mubr.bf16.gmra.mrb[0].mxu0 %v3083
  %v3122 = vpop.f32.mrb[0].mxu0
  %v3123 = vadd.f32 0.0, %v3122
  %v3124 = vpop.f32.mrb[0].mxu0
  %v3125 = vpop.f32.mrb[0].mxu0
  %v3126 = vpop.f32.mrb[0].mxu0
  %3127 = vdwg.mxu0
  %3128 = vrot.lane.b32.xlu0 %v390, 104
  %v3129 = vpop.permute.xlu0 %3128
  %3130 = vrot.lane.b32.xlu0 %v390, 72
  %v3131 = vpop.permute.xlu0 %3130
  %v3133 = vsel %vm401, %v3129, 0
  %v3136 = vsel %vm401, %v3131, 0
  %3138 = vmatprep.subr.bf16.mxu0 0
  %3139 = vmatpush1.bf16.xpose.msra.mxu0 %v3136
  %3140 = vmatprep.subr.bf16.mxu0 0
  %3141 = vmatpush1.bf16.xpose.msra.mxu0 0
  %3142 = vmatprep.subr.bf16.mxu0 0
  %3143 = vmatpush1.bf16.xpose.msra.mxu0 0
  %3144 = vmatprep.subr.bf16.mxu0 0
  %3145 = vmatpush1.bf16.xpose.msra.mxu0 0
  %3146 = vmatprep.subr.bf16.mxu0 0
  %3147 = vmatpush1.bf16.xpose.msra.mxu0 0
  %3148 = vmatprep.subr.bf16.mxu0 0
  %3149 = vmatpush1.bf16.xpose.msra.mxu0 0
  %3150 = vmatprep.subr.bf16.mxu0 0
  %3151 = vmatpush1.bf16.xpose.msra.mxu0 0
  %3152 = vmatprep.subr.bf16.mxu0 0
  %3153 = vmatpush1.bf16.xpose.msra.mxu0 0
  %3154 = vmatprep.subr.bf16.mxu0 0
  %3155 = vmatpush1.bf16.xpose.msra.mxu0 0
  %3156 = vmatprep.subr.bf16.mxu0 0
  %3157 = vmatpush1.bf16.xpose.msra.mxu0 0
  %3158 = vmatprep.subr.bf16.mxu0 0
  %3159 = vmatpush1.bf16.xpose.msra.mxu0 0
  %3160 = vmatprep.subr.bf16.mxu0 0
  %3161 = vmatpush1.bf16.xpose.msra.mxu0 0
  %3162 = vmatprep.subr.bf16.mxu0 0
  %3163 = vmatpush1.bf16.xpose.msra.mxu0 0
  %3164 = vmatprep.subr.bf16.mxu0 0
  %3165 = vmatpush1.bf16.xpose.msra.mxu0 0
  %3166 = vmatprep.subr.bf16.mxu0 0
  %3167 = vmatpush1.bf16.xpose.msra.mxu0 0
  %3168 = vmatprep.subr.bf16.mxu0 0
  %3169 = vmatpush1.bf16.xpose.msra.mxu0 0
  %3170 = vmatprep.mubr.bf16.mxu0 0
  %3171 = vmatmul.mubr.bf16.gmra.mrb[0].mxu0 %v3133
  %v3172 = vpop.f32.mrb[0].mxu0
  %v3173 = vadd.f32 0.0, %v3172
  %v3174 = vpop.f32.mrb[0].mxu0
  %v3175 = vpop.f32.mrb[0].mxu0
  %v3176 = vpop.f32.mrb[0].mxu0
  %3177 = vdwg.mxu0
  %3178 = vrot.lane.b32.xlu0 %v391, 104
  %v3179 = vpop.permute.xlu0 %3178
  %3180 = vrot.lane.b32.xlu0 %v391, 72
  %v3181 = vpop.permute.xlu0 %3180
  %v3183 = vsel %vm401, %v3179, 0
  %v3186 = vsel %vm401, %v3181, 0
  %3188 = vmatprep.subr.bf16.mxu0 0
  %3189 = vmatpush1.bf16.xpose.msra.mxu0 %v3186
  %3190 = vmatprep.subr.bf16.mxu0 0
  %3191 = vmatpush1.bf16.xpose.msra.mxu0 0
  %3192 = vmatprep.subr.bf16.mxu0 0
  %3193 = vmatpush1.bf16.xpose.msra.mxu0 0
  %3194 = vmatprep.subr.bf16.mxu0 0
  %3195 = vmatpush1.bf16.xpose.msra.mxu0 0
  %3196 = vmatprep.subr.bf16.mxu0 0
  %3197 = vmatpush1.bf16.xpose.msra.mxu0 0
  %3198 = vmatprep.subr.bf16.mxu0 0
  %3199 = vmatpush1.bf16.xpose.msra.mxu0 0
  %3200 = vmatprep.subr.bf16.mxu0 0
  %3201 = vmatpush1.bf16.xpose.msra.mxu0 0
  %3202 = vmatprep.subr.bf16.mxu0 0
  %3203 = vmatpush1.bf16.xpose.msra.mxu0 0
  %3204 = vmatprep.subr.bf16.mxu0 0
  %3205 = vmatpush1.bf16.xpose.msra.mxu0 0
  %3206 = vmatprep.subr.bf16.mxu0 0
  %3207 = vmatpush1.bf16.xpose.msra.mxu0 0
  %3208 = vmatprep.subr.bf16.mxu0 0
  %3209 = vmatpush1.bf16.xpose.msra.mxu0 0
  %3210 = vmatprep.subr.bf16.mxu0 0
  %3211 = vmatpush1.bf16.xpose.msra.mxu0 0
  %3212 = vmatprep.subr.bf16.mxu0 0
  %3213 = vmatpush1.bf16.xpose.msra.mxu0 0
  %3214 = vmatprep.subr.bf16.mxu0 0
  %3215 = vmatpush1.bf16.xpose.msra.mxu0 0
  %3216 = vmatprep.subr.bf16.mxu0 0
  %3217 = vmatpush1.bf16.xpose.msra.mxu0 0
  %3218 = vmatprep.subr.bf16.mxu0 0
  %3219 = vmatpush1.bf16.xpose.msra.mxu0 0
  %3220 = vmatprep.mubr.bf16.mxu0 0
  %3221 = vmatmul.mubr.bf16.gmra.mrb[0].mxu0 %v3183
  %v3222 = vpop.f32.mrb[0].mxu0
  %v3223 = vadd.f32 0.0, %v3222
  %v3224 = vpop.f32.mrb[0].mxu0
  %v3225 = vpop.f32.mrb[0].mxu0
  %v3226 = vpop.f32.mrb[0].mxu0
  %3227 = vdwg.mxu0
  %3228 = vrot.lane.b32.xlu0 %v392, 104
  %v3229 = vpop.permute.xlu0 %3228
  %3230 = vrot.lane.b32.xlu0 %v392, 72
  %v3231 = vpop.permute.xlu0 %3230
  %v3233 = vsel %vm401, %v3229, 0
  %v3236 = vsel %vm401, %v3231, 0
  %3238 = vmatprep.subr.bf16.mxu0 0
  %3239 = vmatpush1.bf16.xpose.msra.mxu0 %v3236
  %3240 = vmatprep.subr.bf16.mxu0 0
  %3241 = vmatpush1.bf16.xpose.msra.mxu0 0
  %3242 = vmatprep.subr.bf16.mxu0 0
  %3243 = vmatpush1.bf16.xpose.msra.mxu0 0
  %3244 = vmatprep.subr.bf16.mxu0 0
  %3245 = vmatpush1.bf16.xpose.msra.mxu0 0
  %3246 = vmatprep.subr.bf16.mxu0 0
  %3247 = vmatpush1.bf16.xpose.msra.mxu0 0
  %3248 = vmatprep.subr.bf16.mxu0 0
  %3249 = vmatpush1.bf16.xpose.msra.mxu0 0
  %3250 = vmatprep.subr.bf16.mxu0 0
  %3251 = vmatpush1.bf16.xpose.msra.mxu0 0
  %3252 = vmatprep.subr.bf16.mxu0 0
  %3253 = vmatpush1.bf16.xpose.msra.mxu0 0
  %3254 = vmatprep.subr.bf16.mxu0 0
  %3255 = vmatpush1.bf16.xpose.msra.mxu0 0
  %3256 = vmatprep.subr.bf16.mxu0 0
  %3257 = vmatpush1.bf16.xpose.msra.mxu0 0
  %3258 = vmatprep.subr.bf16.mxu0 0
  %3259 = vmatpush1.bf16.xpose.msra.mxu0 0
  %3260 = vmatprep.subr.bf16.mxu0 0
  %3261 = vmatpush1.bf16.xpose.msra.mxu0 0
  %3262 = vmatprep.subr.bf16.mxu0 0
  %3263 = vmatpush1.bf16.xpose.msra.mxu0 0
  %3264 = vmatprep.subr.bf16.mxu0 0
  %3265 = vmatpush1.bf16.xpose.msra.mxu0 0
  %3266 = vmatprep.subr.bf16.mxu0 0
  %3267 = vmatpush1.bf16.xpose.msra.mxu0 0
  %3268 = vmatprep.subr.bf16.mxu0 0
  %3269 = vmatpush1.bf16.xpose.msra.mxu0 0
  %3270 = vmatprep.mubr.bf16.mxu0 0
  %3271 = vmatmul.mubr.bf16.gmra.mrb[0].mxu0 %v3233
  %v3272 = vpop.f32.mrb[0].mxu0
  %v3273 = vadd.f32 0.0, %v3272
  %v3274 = vpop.f32.mrb[0].mxu0
  %v3275 = vpop.f32.mrb[0].mxu0
  %v3276 = vpop.f32.mrb[0].mxu0
  %3277 = vdwg.mxu0
  %3278 = vrot.lane.b32.xlu0 %v393, 104
  %v3279 = vpop.permute.xlu0 %3278
  %3280 = vrot.lane.b32.xlu0 %v393, 72
  %v3281 = vpop.permute.xlu0 %3280
  %v3283 = vsel %vm401, %v3279, 0
  %v3286 = vsel %vm401, %v3281, 0
  %3288 = vmatprep.subr.bf16.mxu0 0
  %3289 = vmatpush1.bf16.xpose.msra.mxu0 %v3286
  %3290 = vmatprep.subr.bf16.mxu0 0
  %3291 = vmatpush1.bf16.xpose.msra.mxu0 0
  %3292 = vmatprep.subr.bf16.mxu0 0
  %3293 = vmatpush1.bf16.xpose.msra.mxu0 0
  %3294 = vmatprep.subr.bf16.mxu0 0
  %3295 = vmatpush1.bf16.xpose.msra.mxu0 0
  %3296 = vmatprep.subr.bf16.mxu0 0
  %3297 = vmatpush1.bf16.xpose.msra.mxu0 0
  %3298 = vmatprep.subr.bf16.mxu0 0
  %3299 = vmatpush1.bf16.xpose.msra.mxu0 0
  %3300 = vmatprep.subr.bf16.mxu0 0
  %3301 = vmatpush1.bf16.xpose.msra.mxu0 0
  %3302 = vmatprep.subr.bf16.mxu0 0
  %3303 = vmatpush1.bf16.xpose.msra.mxu0 0
  %3304 = vmatprep.subr.bf16.mxu0 0
  %3305 = vmatpush1.bf16.xpose.msra.mxu0 0
  %3306 = vmatprep.subr.bf16.mxu0 0
  %3307 = vmatpush1.bf16.xpose.msra.mxu0 0
  %3308 = vmatprep.subr.bf16.mxu0 0
  %3309 = vmatpush1.bf16.xpose.msra.mxu0 0
  %3310 = vmatprep.subr.bf16.mxu0 0
  %3311 = vmatpush1.bf16.xpose.msra.mxu0 0
  %3312 = vmatprep.subr.bf16.mxu0 0
  %3313 = vmatpush1.bf16.xpose.msra.mxu0 0
  %3314 = vmatprep.subr.bf16.mxu0 0
  %3315 = vmatpush1.bf16.xpose.msra.mxu0 0
  %3316 = vmatprep.subr.bf16.mxu0 0
  %3317 = vmatpush1.bf16.xpose.msra.mxu0 0
  %3318 = vmatprep.subr.bf16.mxu0 0
  %3319 = vmatpush1.bf16.xpose.msra.mxu0 0
  %3320 = vmatprep.mubr.bf16.mxu0 0
  %3321 = vmatmul.mubr.bf16.gmra.mrb[0].mxu0 %v3283
  %v3322 = vpop.f32.mrb[0].mxu0
  %v3323 = vadd.f32 0.0, %v3322
  %v3324 = vpop.f32.mrb[0].mxu0
  %v3325 = vpop.f32.mrb[0].mxu0
  %v3326 = vpop.f32.mrb[0].mxu0
  %3327 = vdwg.mxu0
  %3328 = vrot.lane.b32.xlu0 %v394, 104
  %v3329 = vpop.permute.xlu0 %3328
  %3330 = vrot.lane.b32.xlu0 %v394, 72
  %v3331 = vpop.permute.xlu0 %3330
  %v3333 = vsel %vm401, %v3329, 0
  %v3336 = vsel %vm401, %v3331, 0
  %3338 = vmatprep.subr.bf16.mxu0 0
  %3339 = vmatpush1.bf16.xpose.msra.mxu0 %v3336
  %3340 = vmatprep.subr.bf16.mxu0 0
  %3341 = vmatpush1.bf16.xpose.msra.mxu0 0
  %3342 = vmatprep.subr.bf16.mxu0 0
  %3343 = vmatpush1.bf16.xpose.msra.mxu0 0
  %3344 = vmatprep.subr.bf16.mxu0 0
  %3345 = vmatpush1.bf16.xpose.msra.mxu0 0
  %3346 = vmatprep.subr.bf16.mxu0 0
  %3347 = vmatpush1.bf16.xpose.msra.mxu0 0
  %3348 = vmatprep.subr.bf16.mxu0 0
  %3349 = vmatpush1.bf16.xpose.msra.mxu0 0
  %3350 = vmatprep.subr.bf16.mxu0 0
  %3351 = vmatpush1.bf16.xpose.msra.mxu0 0
  %3352 = vmatprep.subr.bf16.mxu0 0
  %3353 = vmatpush1.bf16.xpose.msra.mxu0 0
  %3354 = vmatprep.subr.bf16.mxu0 0
  %3355 = vmatpush1.bf16.xpose.msra.mxu0 0
  %3356 = vmatprep.subr.bf16.mxu0 0
  %3357 = vmatpush1.bf16.xpose.msra.mxu0 0
  %3358 = vmatprep.subr.bf16.mxu0 0
  %3359 = vmatpush1.bf16.xpose.msra.mxu0 0
  %3360 = vmatprep.subr.bf16.mxu0 0
  %3361 = vmatpush1.bf16.xpose.msra.mxu0 0
  %3362 = vmatprep.subr.bf16.mxu0 0
  %3363 = vmatpush1.bf16.xpose.msra.mxu0 0
  %3364 = vmatprep.subr.bf16.mxu0 0
  %3365 = vmatpush1.bf16.xpose.msra.mxu0 0
  %3366 = vmatprep.subr.bf16.mxu0 0
  %3367 = vmatpush1.bf16.xpose.msra.mxu0 0
  %3368 = vmatprep.subr.bf16.mxu0 0
  %3369 = vmatpush1.bf16.xpose.msra.mxu0 0
  %3370 = vmatprep.mubr.bf16.mxu0 0
  %3371 = vmatmul.mubr.bf16.gmra.mrb[0].mxu0 %v3333
  %v3372 = vpop.f32.mrb[0].mxu0
  %v3373 = vadd.f32 0.0, %v3372
  %v3374 = vpop.f32.mrb[0].mxu0
  %v3375 = vpop.f32.mrb[0].mxu0
  %v3376 = vpop.f32.mrb[0].mxu0
  %3377 = vdwg.mxu0
  %3378 = vrot.lane.b32.xlu0 %v395, 104
  %v3379 = vpop.permute.xlu0 %3378
  %3380 = vrot.lane.b32.xlu0 %v395, 72
  %v3381 = vpop.permute.xlu0 %3380
  %v3383 = vsel %vm401, %v3379, 0
  %v3386 = vsel %vm401, %v3381, 0
  %3388 = vmatprep.subr.bf16.mxu0 0
  %3389 = vmatpush1.bf16.xpose.msra.mxu0 %v3386
  %3390 = vmatprep.subr.bf16.mxu0 0
  %3391 = vmatpush1.bf16.xpose.msra.mxu0 0
  %3392 = vmatprep.subr.bf16.mxu0 0
  %3393 = vmatpush1.bf16.xpose.msra.mxu0 0
  %3394 = vmatprep.subr.bf16.mxu0 0
  %3395 = vmatpush1.bf16.xpose.msra.mxu0 0
  %3396 = vmatprep.subr.bf16.mxu0 0
  %3397 = vmatpush1.bf16.xpose.msra.mxu0 0
  %3398 = vmatprep.subr.bf16.mxu0 0
  %3399 = vmatpush1.bf16.xpose.msra.mxu0 0
  %3400 = vmatprep.subr.bf16.mxu0 0
  %3401 = vmatpush1.bf16.xpose.msra.mxu0 0
  %3402 = vmatprep.subr.bf16.mxu0 0
  %3403 = vmatpush1.bf16.xpose.msra.mxu0 0
  %3404 = vmatprep.subr.bf16.mxu0 0
  %3405 = vmatpush1.bf16.xpose.msra.mxu0 0
  %3406 = vmatprep.subr.bf16.mxu0 0
  %3407 = vmatpush1.bf16.xpose.msra.mxu0 0
  %3408 = vmatprep.subr.bf16.mxu0 0
  %3409 = vmatpush1.bf16.xpose.msra.mxu0 0
  %3410 = vmatprep.subr.bf16.mxu0 0
  %3411 = vmatpush1.bf16.xpose.msra.mxu0 0
  %3412 = vmatprep.subr.bf16.mxu0 0
  %3413 = vmatpush1.bf16.xpose.msra.mxu0 0
  %3414 = vmatprep.subr.bf16.mxu0 0
  %3415 = vmatpush1.bf16.xpose.msra.mxu0 0
  %3416 = vmatprep.subr.bf16.mxu0 0
  %3417 = vmatpush1.bf16.xpose.msra.mxu0 0
  %3418 = vmatprep.subr.bf16.mxu0 0
  %3419 = vmatpush1.bf16.xpose.msra.mxu0 0
  %3420 = vmatprep.mubr.bf16.mxu0 0
  %3421 = vmatmul.mubr.bf16.gmra.mrb[0].mxu0 %v3383
  %v3422 = vpop.f32.mrb[0].mxu0
  %v3423 = vadd.f32 0.0, %v3422
  %v3424 = vpop.f32.mrb[0].mxu0
  %v3425 = vpop.f32.mrb[0].mxu0
  %v3426 = vpop.f32.mrb[0].mxu0
  %3427 = vdwg.mxu0
  %3428 = vrot.lane.b32.xlu0 %v396, 104
  %v3429 = vpop.permute.xlu0 %3428
  %3430 = vrot.lane.b32.xlu0 %v396, 72
  %v3431 = vpop.permute.xlu0 %3430
  %v3433 = vsel %vm401, %v3429, 0
  %v3436 = vsel %vm401, %v3431, 0
  %3438 = vmatprep.subr.bf16.mxu0 0
  %3439 = vmatpush1.bf16.xpose.msra.mxu0 %v3436
  %3440 = vmatprep.subr.bf16.mxu0 0
  %3441 = vmatpush1.bf16.xpose.msra.mxu0 0
  %3442 = vmatprep.subr.bf16.mxu0 0
  %3443 = vmatpush1.bf16.xpose.msra.mxu0 0
  %3444 = vmatprep.subr.bf16.mxu0 0
  %3445 = vmatpush1.bf16.xpose.msra.mxu0 0
  %3446 = vmatprep.subr.bf16.mxu0 0
  %3447 = vmatpush1.bf16.xpose.msra.mxu0 0
  %3448 = vmatprep.subr.bf16.mxu0 0
  %3449 = vmatpush1.bf16.xpose.msra.mxu0 0
  %3450 = vmatprep.subr.bf16.mxu0 0
  %3451 = vmatpush1.bf16.xpose.msra.mxu0 0
  %3452 = vmatprep.subr.bf16.mxu0 0
  %3453 = vmatpush1.bf16.xpose.msra.mxu0 0
  %3454 = vmatprep.subr.bf16.mxu0 0
  %3455 = vmatpush1.bf16.xpose.msra.mxu0 0
  %3456 = vmatprep.subr.bf16.mxu0 0
  %3457 = vmatpush1.bf16.xpose.msra.mxu0 0
  %3458 = vmatprep.subr.bf16.mxu0 0
  %3459 = vmatpush1.bf16.xpose.msra.mxu0 0
  %3460 = vmatprep.subr.bf16.mxu0 0
  %3461 = vmatpush1.bf16.xpose.msra.mxu0 0
  %3462 = vmatprep.subr.bf16.mxu0 0
  %3463 = vmatpush1.bf16.xpose.msra.mxu0 0
  %3464 = vmatprep.subr.bf16.mxu0 0
  %3465 = vmatpush1.bf16.xpose.msra.mxu0 0
  %3466 = vmatprep.subr.bf16.mxu0 0
  %3467 = vmatpush1.bf16.xpose.msra.mxu0 0
  %3468 = vmatprep.subr.bf16.mxu0 0
  %3469 = vmatpush1.bf16.xpose.msra.mxu0 0
  %3470 = vmatprep.mubr.bf16.mxu0 0
  %3471 = vmatmul.mubr.bf16.gmra.mrb[0].mxu0 %v3433
  %v3472 = vpop.f32.mrb[0].mxu0
  %v3473 = vadd.f32 0.0, %v3472
  %v3474 = vpop.f32.mrb[0].mxu0
  %v3475 = vpop.f32.mrb[0].mxu0
  %v3476 = vpop.f32.mrb[0].mxu0
  %3477 = vdwg.mxu0
  %3478 = vrot.lane.b32.xlu0 %v397, 104
  %v3479 = vpop.permute.xlu0 %3478
  %3480 = vrot.lane.b32.xlu0 %v397, 72
  %v3481 = vpop.permute.xlu0 %3480
  %v3483 = vsel %vm401, %v3479, 0
  %v3486 = vsel %vm401, %v3481, 0
  %3488 = vmatprep.subr.bf16.mxu0 0
  %3489 = vmatpush1.bf16.xpose.msra.mxu0 %v3486
  %3490 = vmatprep.subr.bf16.mxu0 0
  %3491 = vmatpush1.bf16.xpose.msra.mxu0 0
  %3492 = vmatprep.subr.bf16.mxu0 0
  %3493 = vmatpush1.bf16.xpose.msra.mxu0 0
  %3494 = vmatprep.subr.bf16.mxu0 0
  %3495 = vmatpush1.bf16.xpose.msra.mxu0 0
  %3496 = vmatprep.subr.bf16.mxu0 0
  %3497 = vmatpush1.bf16.xpose.msra.mxu0 0
  %3498 = vmatprep.subr.bf16.mxu0 0
  %3499 = vmatpush1.bf16.xpose.msra.mxu0 0
  %3500 = vmatprep.subr.bf16.mxu0 0
  %3501 = vmatpush1.bf16.xpose.msra.mxu0 0
  %3502 = vmatprep.subr.bf16.mxu0 0
  %3503 = vmatpush1.bf16.xpose.msra.mxu0 0
  %3504 = vmatprep.subr.bf16.mxu0 0
  %3505 = vmatpush1.bf16.xpose.msra.mxu0 0
  %3506 = vmatprep.subr.bf16.mxu0 0
  %3507 = vmatpush1.bf16.xpose.msra.mxu0 0
  %3508 = vmatprep.subr.bf16.mxu0 0
  %3509 = vmatpush1.bf16.xpose.msra.mxu0 0
  %3510 = vmatprep.subr.bf16.mxu0 0
  %3511 = vmatpush1.bf16.xpose.msra.mxu0 0
  %3512 = vmatprep.subr.bf16.mxu0 0
  %3513 = vmatpush1.bf16.xpose.msra.mxu0 0
  %3514 = vmatprep.subr.bf16.mxu0 0
  %3515 = vmatpush1.bf16.xpose.msra.mxu0 0
  %3516 = vmatprep.subr.bf16.mxu0 0
  %3517 = vmatpush1.bf16.xpose.msra.mxu0 0
  %3518 = vmatprep.subr.bf16.mxu0 0
  %3519 = vmatpush1.bf16.xpose.msra.mxu0 0
  %3520 = vmatprep.mubr.bf16.mxu0 0
  %3521 = vmatmul.mubr.bf16.gmra.mrb[0].mxu0 %v3483
  %v3522 = vpop.f32.mrb[0].mxu0
  %v3523 = vadd.f32 0.0, %v3522
  %v3524 = vpop.f32.mrb[0].mxu0
  %v3525 = vpop.f32.mrb[0].mxu0
  %v3526 = vpop.f32.mrb[0].mxu0
  %3527 = vdwg.mxu0
  %v3528 = vmul.f32 %v3173, 0.35355338
  %v3529 = vmul.f32 %v3223, 0.35355338
  %v3530 = vmul.f32 %v3273, 0.35355338
  %v3531 = vmul.f32 %v3323, 0.35355338
  %v3532 = vmul.f32 %v3373, 0.35355338
  %v3533 = vmul.f32 %v3423, 0.35355338
  %v3534 = vmul.f32 %v3473, 0.35355338
  %v3535 = vmul.f32 %v3523, 0.35355338
  %v3536 = vadd.f32 %v3528, %v810
  %v3537 = vadd.f32 %v3529, %v814
  %v3538 = vadd.f32 %v3530, %v818
  %v3539 = vadd.f32 %v3531, %v822
  %v3540 = vadd.f32 %v3532, %v826
  %v3541 = vadd.f32 %v3533, %v830
  %v3542 = vadd.f32 %v3534, %v834
  %v3543 = vadd.f32 %v3535, %v838
  %v3544 = vsel %vm401, %v3536, -inf
  %3545 = vmax.xlane.f32.xlu0 %v3544
  %v3546 = vpop.xlane.xlu0 %3545
  %v3547 = vsel %vm401, %v3537, -inf
  %3548 = vmax.xlane.f32.xlu0 %v3547
  %v3549 = vpop.xlane.xlu0 %3548
  %v3550 = vsel %vm401, %v3538, -inf
  %3551 = vmax.xlane.f32.xlu0 %v3550
  %v3552 = vpop.xlane.xlu0 %3551
  %v3553 = vsel %vm401, %v3539, -inf
  %3554 = vmax.xlane.f32.xlu0 %v3553
  %v3555 = vpop.xlane.xlu0 %3554
  %v3556 = vsel %vm401, %v3540, -inf
  %3557 = vmax.xlane.f32.xlu0 %v3556
  %v3558 = vpop.xlane.xlu0 %3557
  %v3559 = vsel %vm401, %v3541, -inf
  %3560 = vmax.xlane.f32.xlu0 %v3559
  %v3561 = vpop.xlane.xlu0 %3560
  %v3562 = vsel %vm401, %v3542, -inf
  %3563 = vmax.xlane.f32.xlu0 %v3562
  %v3564 = vpop.xlane.xlu0 %3563
  %v3565 = vsel %vm401, %v3543, -inf
  %3566 = vmax.xlane.f32.xlu0 %v3565
  %v3567 = vpop.xlane.xlu0 %3566
  %v3568 = vsub.f32 %v3536, %v3546
  %v3569 = vsub.f32 %v3537, %v3549
  %v3570 = vsub.f32 %v3538, %v3552
  %v3571 = vsub.f32 %v3539, %v3555
  %v3572 = vsub.f32 %v3540, %v3558
  %v3573 = vsub.f32 %v3541, %v3561
  %v3574 = vsub.f32 %v3542, %v3564
  %v3575 = vsub.f32 %v3543, %v3567
  %v3576 = vmul.f32 %v3568, 1.442695
  %v3577 = vpow.pop %v3576
  %v3578 = vmul.f32 %v3569, 1.442695
  %v3579 = vpow.pop %v3578
  %v3580 = vmul.f32 %v3570, 1.442695
  %v3581 = vpow.pop %v3580
  %v3582 = vmul.f32 %v3571, 1.442695
  %v3583 = vpow.pop %v3582
  %v3584 = vmul.f32 %v3572, 1.442695
  %v3585 = vpow.pop %v3584
  %v3586 = vmul.f32 %v3573, 1.442695
  %v3587 = vpow.pop %v3586
  %v3588 = vmul.f32 %v3574, 1.442695
  %v3589 = vpow.pop %v3588
  %v3590 = vmul.f32 %v3575, 1.442695
  %v3591 = vpow.pop %v3590
  %v3592 = vsel %vm401, %v3577, 0.0
  %3593 = vadd.xlane.f32.xlu0 %v3592
  %v3594 = vpop.xlane.xlu0 %3593
  %v3595 = vsel %vm401, %v3579, 0.0
  %3596 = vadd.xlane.f32.xlu0 %v3595
  %v3597 = vpop.xlane.xlu0 %3596
  %v3598 = vsel %vm401, %v3581, 0.0
  %3599 = vadd.xlane.f32.xlu0 %v3598
  %v3600 = vpop.xlane.xlu0 %3599
  %v3601 = vsel %vm401, %v3583, 0.0
  %3602 = vadd.xlane.f32.xlu0 %v3601
  %v3603 = vpop.xlane.xlu0 %3602
  %v3604 = vsel %vm401, %v3585, 0.0
  %3605 = vadd.xlane.f32.xlu0 %v3604
  %v3606 = vpop.xlane.xlu0 %3605
  %v3607 = vsel %vm401, %v3587, 0.0
  %3608 = vadd.xlane.f32.xlu0 %v3607
  %v3609 = vpop.xlane.xlu0 %3608
  %v3610 = vsel %vm401, %v3589, 0.0
  %3611 = vadd.xlane.f32.xlu0 %v3610
  %v3612 = vpop.xlane.xlu0 %3611
  %v3613 = vsel %vm401, %v3591, 0.0
  %3614 = vadd.xlane.f32.xlu0 %v3613
  %v3615 = vpop.xlane.xlu0 %3614
  %v3616 = vrcp.pop %v3594
  %v3617 = vrcp.pop %v3597
  %v3618 = vrcp.pop %v3600
  %v3619 = vrcp.pop %v3603
  %v3620 = vrcp.pop %v3606
  %v3621 = vrcp.pop %v3609
  %v3622 = vrcp.pop %v3612
  %v3623 = vrcp.pop %v3615
  %v3624 = vmul.f32 %v3577, %v3616
  %v3625 = vmul.f32 %v3579, %v3617
  %v3626 = vmul.f32 %v3581, %v3618
  %v3627 = vmul.f32 %v3583, %v3619
  %v3628 = vmul.f32 %v3585, %v3620
  %v3629 = vmul.f32 %v3587, %v3621
  %v3630 = vmul.f32 %v3589, %v3622
  %v3631 = vmul.f32 %v3591, %v3623
  %v3632 = vpack.c.bf16 %v3624, %v3624
  %v3633 = vpack.c.bf16 %v3625, %v3625
  %v3634 = vpack.c.bf16 %v3626, %v3626
  %v3635 = vpack.c.bf16 %v3627, %v3627
  %v3636 = vpack.c.bf16 %v3628, %v3628
  %v3637 = vpack.c.bf16 %v3629, %v3629
  %v3638 = vpack.c.bf16 %v3630, %v3630
  %v3639 = vpack.c.bf16 %v3631, %v3631
  %3640 = vrot.lane.b32.xlu0 %v390, 40
  %v3641 = vpop.permute.xlu0 %3640
  %v3643 = vsel %vm401, %v3632, 0
  %v3646 = vsel %vm956, %v3641, 0
  %3648 = vmatprep.subr.bf16.mxu0 0
  %3649 = vmatpush1.bf16.msra.mxu0 %v3646
  %3650 = vmatprep.subr.bf16.mxu0 0
  %3651 = vmatpush1.bf16.msra.mxu0 0
  %3652 = vmatprep.subr.bf16.mxu0 0
  %3653 = vmatpush1.bf16.msra.mxu0 0
  %3654 = vmatprep.subr.bf16.mxu0 0
  %3655 = vmatpush1.bf16.msra.mxu0 0
  %3656 = vmatprep.subr.bf16.mxu0 0
  %3657 = vmatpush1.bf16.msra.mxu0 0
  %3658 = vmatprep.subr.bf16.mxu0 0
  %3659 = vmatpush1.bf16.msra.mxu0 0
  %3660 = vmatprep.subr.bf16.mxu0 0
  %3661 = vmatpush1.bf16.msra.mxu0 0
  %3662 = vmatprep.subr.bf16.mxu0 0
  %3663 = vmatpush1.bf16.msra.mxu0 0
  %3664 = vmatprep.subr.bf16.mxu0 0
  %3665 = vmatpush1.bf16.msra.mxu0 0
  %3666 = vmatprep.subr.bf16.mxu0 0
  %3667 = vmatpush1.bf16.msra.mxu0 0
  %3668 = vmatprep.subr.bf16.mxu0 0
  %3669 = vmatpush1.bf16.msra.mxu0 0
  %3670 = vmatprep.subr.bf16.mxu0 0
  %3671 = vmatpush1.bf16.msra.mxu0 0
  %3672 = vmatprep.subr.bf16.mxu0 0
  %3673 = vmatpush1.bf16.msra.mxu0 0
  %3674 = vmatprep.subr.bf16.mxu0 0
  %3675 = vmatpush1.bf16.msra.mxu0 0
  %3676 = vmatprep.subr.bf16.mxu0 0
  %3677 = vmatpush1.bf16.msra.mxu0 0
  %3678 = vmatprep.subr.bf16.mxu0 0
  %3679 = vmatpush1.bf16.msra.mxu0 0
  %3680 = vmatprep.mubr.bf16.mxu0 0
  %3681 = vmatmul.mubr.bf16.gmra.mrb[0].mxu0 %v3643
  %v3682 = vpop.f32.mrb[0].mxu0
  %v3683 = vadd.f32 0.0, %v3682
  %v3684 = vpop.f32.mrb[0].mxu0
  %v3685 = vpop.f32.mrb[0].mxu0
  %v3686 = vpop.f32.mrb[0].mxu0
  %3687 = vdwg.mxu0
  %3688 = vrot.lane.b32.xlu0 %v391, 40
  %v3689 = vpop.permute.xlu0 %3688
  %v3691 = vsel %vm401, %v3633, 0
  %v3694 = vsel %vm956, %v3689, 0
  %3696 = vmatprep.subr.bf16.mxu0 0
  %3697 = vmatpush1.bf16.msra.mxu0 %v3694
  %3698 = vmatprep.subr.bf16.mxu0 0
  %3699 = vmatpush1.bf16.msra.mxu0 0
  %3700 = vmatprep.subr.bf16.mxu0 0
  %3701 = vmatpush1.bf16.msra.mxu0 0
  %3702 = vmatprep.subr.bf16.mxu0 0
  %3703 = vmatpush1.bf16.msra.mxu0 0
  %3704 = vmatprep.subr.bf16.mxu0 0
  %3705 = vmatpush1.bf16.msra.mxu0 0
  %3706 = vmatprep.subr.bf16.mxu0 0
  %3707 = vmatpush1.bf16.msra.mxu0 0
  %3708 = vmatprep.subr.bf16.mxu0 0
  %3709 = vmatpush1.bf16.msra.mxu0 0
  %3710 = vmatprep.subr.bf16.mxu0 0
  %3711 = vmatpush1.bf16.msra.mxu0 0
  %3712 = vmatprep.subr.bf16.mxu0 0
  %3713 = vmatpush1.bf16.msra.mxu0 0
  %3714 = vmatprep.subr.bf16.mxu0 0
  %3715 = vmatpush1.bf16.msra.mxu0 0
  %3716 = vmatprep.subr.bf16.mxu0 0
  %3717 = vmatpush1.bf16.msra.mxu0 0
  %3718 = vmatprep.subr.bf16.mxu0 0
  %3719 = vmatpush1.bf16.msra.mxu0 0
  %3720 = vmatprep.subr.bf16.mxu0 0
  %3721 = vmatpush1.bf16.msra.mxu0 0
  %3722 = vmatprep.subr.bf16.mxu0 0
  %3723 = vmatpush1.bf16.msra.mxu0 0
  %3724 = vmatprep.subr.bf16.mxu0 0
  %3725 = vmatpush1.bf16.msra.mxu0 0
  %3726 = vmatprep.subr.bf16.mxu0 0
  %3727 = vmatpush1.bf16.msra.mxu0 0
  %3728 = vmatprep.mubr.bf16.mxu0 0
  %3729 = vmatmul.mubr.bf16.gmra.mrb[0].mxu0 %v3691
  %v3730 = vpop.f32.mrb[0].mxu0
  %v3731 = vadd.f32 0.0, %v3730
  %v3732 = vpop.f32.mrb[0].mxu0
  %v3733 = vpop.f32.mrb[0].mxu0
  %v3734 = vpop.f32.mrb[0].mxu0
  %3735 = vdwg.mxu0
  %3736 = vrot.lane.b32.xlu0 %v392, 40
  %v3737 = vpop.permute.xlu0 %3736
  %v3739 = vsel %vm401, %v3634, 0
  %v3742 = vsel %vm956, %v3737, 0
  %3744 = vmatprep.subr.bf16.mxu0 0
  %3745 = vmatpush1.bf16.msra.mxu0 %v3742
  %3746 = vmatprep.subr.bf16.mxu0 0
  %3747 = vmatpush1.bf16.msra.mxu0 0
  %3748 = vmatprep.subr.bf16.mxu0 0
  %3749 = vmatpush1.bf16.msra.mxu0 0
  %3750 = vmatprep.subr.bf16.mxu0 0
  %3751 = vmatpush1.bf16.msra.mxu0 0
  %3752 = vmatprep.subr.bf16.mxu0 0
  %3753 = vmatpush1.bf16.msra.mxu0 0
  %3754 = vmatprep.subr.bf16.mxu0 0
  %3755 = vmatpush1.bf16.msra.mxu0 0
  %3756 = vmatprep.subr.bf16.mxu0 0
  %3757 = vmatpush1.bf16.msra.mxu0 0
  %3758 = vmatprep.subr.bf16.mxu0 0
  %3759 = vmatpush1.bf16.msra.mxu0 0
  %3760 = vmatprep.subr.bf16.mxu0 0
  %3761 = vmatpush1.bf16.msra.mxu0 0
  %3762 = vmatprep.subr.bf16.mxu0 0
  %3763 = vmatpush1.bf16.msra.mxu0 0
  %3764 = vmatprep.subr.bf16.mxu0 0
  %3765 = vmatpush1.bf16.msra.mxu0 0
  %3766 = vmatprep.subr.bf16.mxu0 0
  %3767 = vmatpush1.bf16.msra.mxu0 0
  %3768 = vmatprep.subr.bf16.mxu0 0
  %3769 = vmatpush1.bf16.msra.mxu0 0
  %3770 = vmatprep.subr.bf16.mxu0 0
  %3771 = vmatpush1.bf16.msra.mxu0 0
  %3772 = vmatprep.subr.bf16.mxu0 0
  %3773 = vmatpush1.bf16.msra.mxu0 0
  %3774 = vmatprep.subr.bf16.mxu0 0
  %3775 = vmatpush1.bf16.msra.mxu0 0
  %3776 = vmatprep.mubr.bf16.mxu0 0
  %3777 = vmatmul.mubr.bf16.gmra.mrb[0].mxu0 %v3739
  %v3778 = vpop.f32.mrb[0].mxu0
  %v3779 = vadd.f32 0.0, %v3778
  %v3780 = vpop.f32.mrb[0].mxu0
  %v3781 = vpop.f32.mrb[0].mxu0
  %v3782 = vpop.f32.mrb[0].mxu0
  %3783 = vdwg.mxu0
  %3784 = vrot.lane.b32.xlu0 %v393, 40
  %v3785 = vpop.permute.xlu0 %3784
  %v3787 = vsel %vm401, %v3635, 0
  %v3790 = vsel %vm956, %v3785, 0
  %3792 = vmatprep.subr.bf16.mxu0 0
  %3793 = vmatpush1.bf16.msra.mxu0 %v3790
  %3794 = vmatprep.subr.bf16.mxu0 0
  %3795 = vmatpush1.bf16.msra.mxu0 0
  %3796 = vmatprep.subr.bf16.mxu0 0
  %3797 = vmatpush1.bf16.msra.mxu0 0
  %3798 = vmatprep.subr.bf16.mxu0 0
  %3799 = vmatpush1.bf16.msra.mxu0 0
  %3800 = vmatprep.subr.bf16.mxu0 0
  %3801 = vmatpush1.bf16.msra.mxu0 0
  %3802 = vmatprep.subr.bf16.mxu0 0
  %3803 = vmatpush1.bf16.msra.mxu0 0
  %3804 = vmatprep.subr.bf16.mxu0 0
  %3805 = vmatpush1.bf16.msra.mxu0 0
  %3806 = vmatprep.subr.bf16.mxu0 0
  %3807 = vmatpush1.bf16.msra.mxu0 0
  %3808 = vmatprep.subr.bf16.mxu0 0
  %3809 = vmatpush1.bf16.msra.mxu0 0
  %3810 = vmatprep.subr.bf16.mxu0 0
  %3811 = vmatpush1.bf16.msra.mxu0 0
  %3812 = vmatprep.subr.bf16.mxu0 0
  %3813 = vmatpush1.bf16.msra.mxu0 0
  %3814 = vmatprep.subr.bf16.mxu0 0
  %3815 = vmatpush1.bf16.msra.mxu0 0
  %3816 = vmatprep.subr.bf16.mxu0 0
  %3817 = vmatpush1.bf16.msra.mxu0 0
  %3818 = vmatprep.subr.bf16.mxu0 0
  %3819 = vmatpush1.bf16.msra.mxu0 0
  %3820 = vmatprep.subr.bf16.mxu0 0
  %3821 = vmatpush1.bf16.msra.mxu0 0
  %3822 = vmatprep.subr.bf16.mxu0 0
  %3823 = vmatpush1.bf16.msra.mxu0 0
  %3824 = vmatprep.mubr.bf16.mxu0 0
  %3825 = vmatmul.mubr.bf16.gmra.mrb[0].mxu0 %v3787
  %v3826 = vpop.f32.mrb[0].mxu0
  %v3827 = vadd.f32 0.0, %v3826
  %v3828 = vpop.f32.mrb[0].mxu0
  %v3829 = vpop.f32.mrb[0].mxu0
  %v3830 = vpop.f32.mrb[0].mxu0
  %3831 = vdwg.mxu0
  %3832 = vrot.lane.b32.xlu0 %v394, 40
  %v3833 = vpop.permute.xlu0 %3832
  %v3835 = vsel %vm401, %v3636, 0
  %v3838 = vsel %vm956, %v3833, 0
  %3840 = vmatprep.subr.bf16.mxu0 0
  %3841 = vmatpush1.bf16.msra.mxu0 %v3838
  %3842 = vmatprep.subr.bf16.mxu0 0
  %3843 = vmatpush1.bf16.msra.mxu0 0
  %3844 = vmatprep.subr.bf16.mxu0 0
  %3845 = vmatpush1.bf16.msra.mxu0 0
  %3846 = vmatprep.subr.bf16.mxu0 0
  %3847 = vmatpush1.bf16.msra.mxu0 0
  %3848 = vmatprep.subr.bf16.mxu0 0
  %3849 = vmatpush1.bf16.msra.mxu0 0
  %3850 = vmatprep.subr.bf16.mxu0 0
  %3851 = vmatpush1.bf16.msra.mxu0 0
  %3852 = vmatprep.subr.bf16.mxu0 0
  %3853 = vmatpush1.bf16.msra.mxu0 0
  %3854 = vmatprep.subr.bf16.mxu0 0
  %3855 = vmatpush1.bf16.msra.mxu0 0
  %3856 = vmatprep.subr.bf16.mxu0 0
  %3857 = vmatpush1.bf16.msra.mxu0 0
  %3858 = vmatprep.subr.bf16.mxu0 0
  %3859 = vmatpush1.bf16.msra.mxu0 0
  %3860 = vmatprep.subr.bf16.mxu0 0
  %3861 = vmatpush1.bf16.msra.mxu0 0
  %3862 = vmatprep.subr.bf16.mxu0 0
  %3863 = vmatpush1.bf16.msra.mxu0 0
  %3864 = vmatprep.subr.bf16.mxu0 0
  %3865 = vmatpush1.bf16.msra.mxu0 0
  %3866 = vmatprep.subr.bf16.mxu0 0
  %3867 = vmatpush1.bf16.msra.mxu0 0
  %3868 = vmatprep.subr.bf16.mxu0 0
  %3869 = vmatpush1.bf16.msra.mxu0 0
  %3870 = vmatprep.subr.bf16.mxu0 0
  %3871 = vmatpush1.bf16.msra.mxu0 0
  %3872 = vmatprep.mubr.bf16.mxu0 0
  %3873 = vmatmul.mubr.bf16.gmra.mrb[0].mxu0 %v3835
  %v3874 = vpop.f32.mrb[0].mxu0
  %v3875 = vadd.f32 0.0, %v3874
  %v3876 = vpop.f32.mrb[0].mxu0
  %v3877 = vpop.f32.mrb[0].mxu0
  %v3878 = vpop.f32.mrb[0].mxu0
  %3879 = vdwg.mxu0
  %3880 = vrot.lane.b32.xlu0 %v395, 40
  %v3881 = vpop.permute.xlu0 %3880
  %v3883 = vsel %vm401, %v3637, 0
  %v3886 = vsel %vm956, %v3881, 0
  %3888 = vmatprep.subr.bf16.mxu0 0
  %3889 = vmatpush1.bf16.msra.mxu0 %v3886
  %3890 = vmatprep.subr.bf16.mxu0 0
  %3891 = vmatpush1.bf16.msra.mxu0 0
  %3892 = vmatprep.subr.bf16.mxu0 0
  %3893 = vmatpush1.bf16.msra.mxu0 0
  %3894 = vmatprep.subr.bf16.mxu0 0
  %3895 = vmatpush1.bf16.msra.mxu0 0
  %3896 = vmatprep.subr.bf16.mxu0 0
  %3897 = vmatpush1.bf16.msra.mxu0 0
  %3898 = vmatprep.subr.bf16.mxu0 0
  %3899 = vmatpush1.bf16.msra.mxu0 0
  %3900 = vmatprep.subr.bf16.mxu0 0
  %3901 = vmatpush1.bf16.msra.mxu0 0
  %3902 = vmatprep.subr.bf16.mxu0 0
  %3903 = vmatpush1.bf16.msra.mxu0 0
  %3904 = vmatprep.subr.bf16.mxu0 0
  %3905 = vmatpush1.bf16.msra.mxu0 0
  %3906 = vmatprep.subr.bf16.mxu0 0
  %3907 = vmatpush1.bf16.msra.mxu0 0
  %3908 = vmatprep.subr.bf16.mxu0 0
  %3909 = vmatpush1.bf16.msra.mxu0 0
  %3910 = vmatprep.subr.bf16.mxu0 0
  %3911 = vmatpush1.bf16.msra.mxu0 0
  %3912 = vmatprep.subr.bf16.mxu0 0
  %3913 = vmatpush1.bf16.msra.mxu0 0
  %3914 = vmatprep.subr.bf16.mxu0 0
  %3915 = vmatpush1.bf16.msra.mxu0 0
  %3916 = vmatprep.subr.bf16.mxu0 0
  %3917 = vmatpush1.bf16.msra.mxu0 0
  %3918 = vmatprep.subr.bf16.mxu0 0
  %3919 = vmatpush1.bf16.msra.mxu0 0
  %3920 = vmatprep.mubr.bf16.mxu0 0
  %3921 = vmatmul.mubr.bf16.gmra.mrb[0].mxu0 %v3883
  %v3922 = vpop.f32.mrb[0].mxu0
  %v3923 = vadd.f32 0.0, %v3922
  %v3924 = vpop.f32.mrb[0].mxu0
  %v3925 = vpop.f32.mrb[0].mxu0
  %v3926 = vpop.f32.mrb[0].mxu0
  %3927 = vdwg.mxu0
  %3928 = vrot.lane.b32.xlu0 %v396, 40
  %v3929 = vpop.permute.xlu0 %3928
  %v3931 = vsel %vm401, %v3638, 0
  %v3934 = vsel %vm956, %v3929, 0
  %3936 = vmatprep.subr.bf16.mxu0 0
  %3937 = vmatpush1.bf16.msra.mxu0 %v3934
  %3938 = vmatprep.subr.bf16.mxu0 0
  %3939 = vmatpush1.bf16.msra.mxu0 0
  %3940 = vmatprep.subr.bf16.mxu0 0
  %3941 = vmatpush1.bf16.msra.mxu0 0
  %3942 = vmatprep.subr.bf16.mxu0 0
  %3943 = vmatpush1.bf16.msra.mxu0 0
  %3944 = vmatprep.subr.bf16.mxu0 0
  %3945 = vmatpush1.bf16.msra.mxu0 0
  %3946 = vmatprep.subr.bf16.mxu0 0
  %3947 = vmatpush1.bf16.msra.mxu0 0
  %3948 = vmatprep.subr.bf16.mxu0 0
  %3949 = vmatpush1.bf16.msra.mxu0 0
  %3950 = vmatprep.subr.bf16.mxu0 0
  %3951 = vmatpush1.bf16.msra.mxu0 0
  %3952 = vmatprep.subr.bf16.mxu0 0
  %3953 = vmatpush1.bf16.msra.mxu0 0
  %3954 = vmatprep.subr.bf16.mxu0 0
  %3955 = vmatpush1.bf16.msra.mxu0 0
  %3956 = vmatprep.subr.bf16.mxu0 0
  %3957 = vmatpush1.bf16.msra.mxu0 0
  %3958 = vmatprep.subr.bf16.mxu0 0
  %3959 = vmatpush1.bf16.msra.mxu0 0
  %3960 = vmatprep.subr.bf16.mxu0 0
  %3961 = vmatpush1.bf16.msra.mxu0 0
  %3962 = vmatprep.subr.bf16.mxu0 0
  %3963 = vmatpush1.bf16.msra.mxu0 0
  %3964 = vmatprep.subr.bf16.mxu0 0
  %3965 = vmatpush1.bf16.msra.mxu0 0
  %3966 = vmatprep.subr.bf16.mxu0 0
  %3967 = vmatpush1.bf16.msra.mxu0 0
  %3968 = vmatprep.mubr.bf16.mxu0 0
  %3969 = vmatmul.mubr.bf16.gmra.mrb[0].mxu0 %v3931
  %v3970 = vpop.f32.mrb[0].mxu0
  %v3971 = vadd.f32 0.0, %v3970
  %v3972 = vpop.f32.mrb[0].mxu0
  %v3973 = vpop.f32.mrb[0].mxu0
  %v3974 = vpop.f32.mrb[0].mxu0
  %3975 = vdwg.mxu0
  %3976 = vrot.lane.b32.xlu0 %v397, 40
  %v3977 = vpop.permute.xlu0 %3976
  %v3979 = vsel %vm401, %v3639, 0
  %v3982 = vsel %vm956, %v3977, 0
  %3984 = vmatprep.subr.bf16.mxu0 0
  %3985 = vmatpush1.bf16.msra.mxu0 %v3982
  %3986 = vmatprep.subr.bf16.mxu0 0
  %3987 = vmatpush1.bf16.msra.mxu0 0
  %3988 = vmatprep.subr.bf16.mxu0 0
  %3989 = vmatpush1.bf16.msra.mxu0 0
  %3990 = vmatprep.subr.bf16.mxu0 0
  %3991 = vmatpush1.bf16.msra.mxu0 0
  %3992 = vmatprep.subr.bf16.mxu0 0
  %3993 = vmatpush1.bf16.msra.mxu0 0
  %3994 = vmatprep.subr.bf16.mxu0 0
  %3995 = vmatpush1.bf16.msra.mxu0 0
  %3996 = vmatprep.subr.bf16.mxu0 0
  %3997 = vmatpush1.bf16.msra.mxu0 0
  %3998 = vmatprep.subr.bf16.mxu0 0
  %3999 = vmatpush1.bf16.msra.mxu0 0
  %4000 = vmatprep.subr.bf16.mxu0 0
  %4001 = vmatpush1.bf16.msra.mxu0 0
  %4002 = vmatprep.subr.bf16.mxu0 0
  %4003 = vmatpush1.bf16.msra.mxu0 0
  %4004 = vmatprep.subr.bf16.mxu0 0
  %4005 = vmatpush1.bf16.msra.mxu0 0
  %4006 = vmatprep.subr.bf16.mxu0 0
  %4007 = vmatpush1.bf16.msra.mxu0 0
  %4008 = vmatprep.subr.bf16.mxu0 0
  %4009 = vmatpush1.bf16.msra.mxu0 0
  %4010 = vmatprep.subr.bf16.mxu0 0
  %4011 = vmatpush1.bf16.msra.mxu0 0
  %4012 = vmatprep.subr.bf16.mxu0 0
  %4013 = vmatpush1.bf16.msra.mxu0 0
  %4014 = vmatprep.subr.bf16.mxu0 0
  %4015 = vmatpush1.bf16.msra.mxu0 0
  %4016 = vmatprep.mubr.bf16.mxu0 0
  %4017 = vmatmul.mubr.bf16.gmra.mrb[0].mxu0 %v3979
  %v4018 = vpop.f32.mrb[0].mxu0
  %v4019 = vadd.f32 0.0, %v4018
  %v4020 = vpop.f32.mrb[0].mxu0
  %v4021 = vpop.f32.mrb[0].mxu0
  %v4022 = vpop.f32.mrb[0].mxu0
  %4023 = vdwg.mxu0
  %4032 = vrot.lane.b32.xlu0 %v1891, 8
  %v4033 = vpop.permute.xlu0 %4032
  %4034 = vrot.lane.b32.xlu0 %v1939, 8
  %v4035 = vpop.permute.xlu0 %4034
  %4036 = vrot.lane.b32.xlu0 %v1987, 8
  %v4037 = vpop.permute.xlu0 %4036
  %4038 = vrot.lane.b32.xlu0 %v2035, 8
  %v4039 = vpop.permute.xlu0 %4038
  %4040 = vrot.lane.b32.xlu0 %v2083, 8
  %v4041 = vpop.permute.xlu0 %4040
  %4042 = vrot.lane.b32.xlu0 %v2131, 8
  %v4043 = vpop.permute.xlu0 %4042
  %4044 = vrot.lane.b32.xlu0 %v2179, 8
  %v4045 = vpop.permute.xlu0 %4044
  %4046 = vrot.lane.b32.xlu0 %v2227, 8
  %v4047 = vpop.permute.xlu0 %4046
  %4064 = vrot.lane.b32.xlu0 %v2787, 16
  %v4065 = vpop.permute.xlu0 %4064
  %4066 = vrot.lane.b32.xlu0 %v2835, 16
  %v4067 = vpop.permute.xlu0 %4066
  %4068 = vrot.lane.b32.xlu0 %v2883, 16
  %v4069 = vpop.permute.xlu0 %4068
  %4070 = vrot.lane.b32.xlu0 %v2931, 16
  %v4071 = vpop.permute.xlu0 %4070
  %4072 = vrot.lane.b32.xlu0 %v2979, 16
  %v4073 = vpop.permute.xlu0 %4072
  %4074 = vrot.lane.b32.xlu0 %v3027, 16
  %v4075 = vpop.permute.xlu0 %4074
  %4076 = vrot.lane.b32.xlu0 %v3075, 16
  %v4077 = vpop.permute.xlu0 %4076
  %4078 = vrot.lane.b32.xlu0 %v3123, 16
  %v4079 = vpop.permute.xlu0 %4078
  %4096 = vrot.lane.b32.xlu0 %v3683, 24
  %v4097 = vpop.permute.xlu0 %4096
  %4098 = vrot.lane.b32.xlu0 %v3731, 24
  %v4099 = vpop.permute.xlu0 %4098
  %4100 = vrot.lane.b32.xlu0 %v3779, 24
  %v4101 = vpop.permute.xlu0 %4100
  %4102 = vrot.lane.b32.xlu0 %v3827, 24
  %v4103 = vpop.permute.xlu0 %4102
  %4104 = vrot.lane.b32.xlu0 %v3875, 24
  %v4105 = vpop.permute.xlu0 %4104
  %4106 = vrot.lane.b32.xlu0 %v3923, 24
  %v4107 = vpop.permute.xlu0 %4106
  %4108 = vrot.lane.b32.xlu0 %v3971, 24
  %v4109 = vpop.permute.xlu0 %4108
  %4110 = vrot.lane.b32.xlu0 %v4019, 24
  %v4111 = vpop.permute.xlu0 %4110
  %v4120 = vsel %vm401, %v995, %v4033
  %v4121 = vsel %vm401, %v1043, %v4035
  %v4122 = vsel %vm401, %v1091, %v4037
  %v4123 = vsel %vm401, %v1139, %v4039
  %v4124 = vsel %vm401, %v1187, %v4041
  %v4125 = vsel %vm401, %v1235, %v4043
  %v4126 = vsel %vm401, %v1283, %v4045
  %v4127 = vsel %vm401, %v1331, %v4047
  %vm4128 = vcmask 130048
  %v4129 = vsel %vm4128, %v4120, %v4065
  %v4130 = vsel %vm4128, %v4121, %v4067
  %v4131 = vsel %vm4128, %v4122, %v4069
  %v4132 = vsel %vm4128, %v4123, %v4071
  %v4133 = vsel %vm4128, %v4124, %v4073
  %v4134 = vsel %vm4128, %v4125, %v4075
  %v4135 = vsel %vm4128, %v4126, %v4077
  %v4136 = vsel %vm4128, %v4127, %v4079
  %vm4137 = vcmask 195584
  %v4138 = vsel %vm4137, %v4129, %v4097
  %v4139 = vsel %vm4137, %v4130, %v4099
  %v4140 = vsel %vm4137, %v4131, %v4101
  %v4141 = vsel %vm4137, %v4132, %v4103
  %v4142 = vsel %vm4137, %v4133, %v4105
  %v4143 = vsel %vm4137, %v4134, %v4107
  %v4144 = vsel %vm4137, %v4135, %v4109
  %v4145 = vsel %vm4137, %v4136, %v4111
  %v4146 = vpack.c.bf16 %v4139, %v4138
  %v4147 = vpack.c.bf16 %v4141, %v4140
  %v4148 = vpack.c.bf16 %v4143, %v4142
  %v4149 = vpack.c.bf16 %v4145, %v4144
  %v4150 = vld [vmem:[%s15] sm:$0xf]
  %v4151 = vld [vmem:[%s15 + $0x4] sm:$0xf]
  %v4152 = vld [vmem:[%s15 + $0x8] sm:$0xf]
  %v4153 = vld [vmem:[%s15 + $0xc] sm:$0xf]
  %v4154 = vld [vmem:[%s17] sm:$0x1]
  %v4156 = vlaneseq
  %v4157 = vshrl.u32 %v4156, 7
  %v4158 = vsub.s32 0, %v4157
  %v4159 = vrot.slane %v4154, %v4158
  %v4165 = vunpack.c.l.b16 %v4150
  %v4166 = vunpack.c.l.b16 %v4151
  %v4167 = vunpack.c.l.b16 %v4152
  %v4168 = vunpack.c.l.b16 %v4153
  %v4169 = vpack.c.b16 %v4166, %v4165
  %v4170 = vpack.c.b16 %v4168, %v4167
  %v4174 = vsel %vm152, %v4146, 0
  %v4177 = vsel %vm152, %v4147, 0
  %v4180 = vsel %vm152, %v4148, 0
  %v4183 = vsel %vm152, %v4149, 0
  %4185 = vmatprep.subr.bf16.mxu0 0
  %4186 = vmatpush1.bf16.msra.mxu0 %v4169
  %4187 = vmatprep.subr.bf16.mxu0 0
  %4188 = vmatpush1.bf16.msra.mxu0 %v4170
  %4189 = vmatprep.subr.bf16.mxu0 0
  %4190 = vmatpush1.bf16.msra.mxu0 0
  %4191 = vmatprep.subr.bf16.mxu0 0
  %4192 = vmatpush1.bf16.msra.mxu0 0
  %4193 = vmatprep.subr.bf16.mxu0 0
  %4194 = vmatpush1.bf16.msra.mxu0 0
  %4195 = vmatprep.subr.bf16.mxu0 0
  %4196 = vmatpush1.bf16.msra.mxu0 0
  %4197 = vmatprep.subr.bf16.mxu0 0
  %4198 = vmatpush1.bf16.msra.mxu0 0
  %4199 = vmatprep.subr.bf16.mxu0 0
  %4200 = vmatpush1.bf16.msra.mxu0 0
  %4201 = vmatprep.subr.bf16.mxu0 0
  %4202 = vmatpush1.bf16.msra.mxu0 0
  %4203 = vmatprep.subr.bf16.mxu0 0
  %4204 = vmatpush1.bf16.msra.mxu0 0
  %4205 = vmatprep.subr.bf16.mxu0 0
  %4206 = vmatpush1.bf16.msra.mxu0 0
  %4207 = vmatprep.subr.bf16.mxu0 0
  %4208 = vmatpush1.bf16.msra.mxu0 0
  %4209 = vmatprep.subr.bf16.mxu0 0
  %4210 = vmatpush1.bf16.msra.mxu0 0
  %4211 = vmatprep.subr.bf16.mxu0 0
  %4212 = vmatpush1.bf16.msra.mxu0 0
  %4213 = vmatprep.subr.bf16.mxu0 0
  %4214 = vmatpush1.bf16.msra.mxu0 0
  %4215 = vmatprep.subr.bf16.mxu0 0
  %4216 = vmatpush1.bf16.msra.mxu0 0
  %4217 = vmatprep.mubr.bf16.mxu0 0
  %4218 = vmatmul.mubr.bf16.gmra.mrb[0].mxu0 %v4174
  %v4219 = vpop.f32.mrb[0].mxu0
  %v4220 = vadd.f32 %v4159, %v4219
  %v4221 = vpop.f32.mrb[0].mxu0
  %v4222 = vpop.f32.mrb[0].mxu0
  %v4223 = vadd.f32 %v4159, %v4222
  %v4224 = vpop.f32.mrb[0].mxu0
  %4225 = vmatprep.mubr.bf16.mxu0 0
  %4226 = vmatmul.mubr.bf16.gmra.mrb[0].mxu0 %v4177
  %v4227 = vpop.f32.mrb[0].mxu0
  %v4228 = vadd.f32 %v4159, %v4227
  %v4229 = vpop.f32.mrb[0].mxu0
  %v4230 = vpop.f32.mrb[0].mxu0
  %v4231 = vadd.f32 %v4159, %v4230
  %v4232 = vpop.f32.mrb[0].mxu0
  %4233 = vmatprep.mubr.bf16.mxu0 0
  %4234 = vmatmul.mubr.bf16.gmra.mrb[0].mxu0 %v4180
  %v4235 = vpop.f32.mrb[0].mxu0
  %v4236 = vadd.f32 %v4159, %v4235
  %v4237 = vpop.f32.mrb[0].mxu0
  %v4238 = vpop.f32.mrb[0].mxu0
  %v4239 = vadd.f32 %v4159, %v4238
  %v4240 = vpop.f32.mrb[0].mxu0
  %4241 = vmatprep.mubr.bf16.mxu0 0
  %4242 = vmatmul.mubr.bf16.gmra.mrb[0].mxu0 %v4183
  %v4243 = vpop.f32.mrb[0].mxu0
  %v4244 = vadd.f32 %v4159, %v4243
  %v4245 = vpop.f32.mrb[0].mxu0
  %v4246 = vpop.f32.mrb[0].mxu0
  %v4247 = vadd.f32 %v4159, %v4246
  %v4248 = vpop.f32.mrb[0].mxu0
  %4249 = vdwg.mxu0
  %v4250 = vadd.f32 %v4220, %v126
  %v4251 = vadd.f32 %v4223, %v127
  %v4252 = vadd.f32 %v4228, %v128
  %v4253 = vadd.f32 %v4231, %v129
  %v4254 = vadd.f32 %v4236, %v130
  %v4255 = vadd.f32 %v4239, %v131
  %v4256 = vadd.f32 %v4244, %v132
  %v4257 = vadd.f32 %v4247, %v133
  %v4258 = vld [vmem:[%s19] sm:$0x1]
  %v4259 = vld [vmem:[%s21] sm:$0x1]
  %v4260 = vsel %vm152, %v4250, 0.0
  %4261 = vadd.xlane.f32.xlu0 %v4260
  %v4262 = vpop.xlane.xlu0 %4261
  %v4263 = vsel %vm152, %v4251, 0.0
  %4264 = vadd.xlane.f32.xlu0 %v4263
  %v4265 = vpop.xlane.xlu0 %4264
  %v4266 = vsel %vm152, %v4252, 0.0
  %4267 = vadd.xlane.f32.xlu0 %v4266
  %v4268 = vpop.xlane.xlu0 %4267
  %v4269 = vsel %vm152, %v4253, 0.0
  %4270 = vadd.xlane.f32.xlu0 %v4269
  %v4271 = vpop.xlane.xlu0 %4270
  %v4272 = vsel %vm152, %v4254, 0.0
  %4273 = vadd.xlane.f32.xlu0 %v4272
  %v4274 = vpop.xlane.xlu0 %4273
  %v4275 = vsel %vm152, %v4255, 0.0
  %4276 = vadd.xlane.f32.xlu0 %v4275
  %v4277 = vpop.xlane.xlu0 %4276
  %v4278 = vsel %vm152, %v4256, 0.0
  %4279 = vadd.xlane.f32.xlu0 %v4278
  %v4280 = vpop.xlane.xlu0 %4279
  %v4281 = vsel %vm152, %v4257, 0.0
  %4282 = vadd.xlane.f32.xlu0 %v4281
  %v4283 = vpop.xlane.xlu0 %4282
  %v4284 = vmul.f32 %v4262, %v177
  %v4285 = vmul.f32 %v4265, %v177
  %v4286 = vmul.f32 %v4268, %v177
  %v4287 = vmul.f32 %v4271, %v177
  %v4288 = vmul.f32 %v4274, %v177
  %v4289 = vmul.f32 %v4277, %v177
  %v4290 = vmul.f32 %v4280, %v177
  %v4291 = vmul.f32 %v4283, %v177
  %v4292 = vsub.f32 %v4250, %v4284
  %v4293 = vsub.f32 %v4251, %v4285
  %v4294 = vsub.f32 %v4252, %v4286
  %v4295 = vsub.f32 %v4253, %v4287
  %v4296 = vsub.f32 %v4254, %v4288
  %v4297 = vsub.f32 %v4255, %v4289
  %v4298 = vsub.f32 %v4256, %v4290
  %v4299 = vsub.f32 %v4257, %v4291
  %v4300 = vmul.f32 %v4292, %v4292
  %v4301 = vmul.f32 %v4293, %v4293
  %v4302 = vmul.f32 %v4294, %v4294
  %v4303 = vmul.f32 %v4295, %v4295
  %v4304 = vmul.f32 %v4296, %v4296
  %v4305 = vmul.f32 %v4297, %v4297
  %v4306 = vmul.f32 %v4298, %v4298
  %v4307 = vmul.f32 %v4299, %v4299
  %v4308 = vsel %vm152, %v4300, 0.0
  %4309 = vadd.xlane.f32.xlu0 %v4308
  %v4310 = vpop.xlane.xlu0 %4309
  %v4311 = vsel %vm152, %v4301, 0.0
  %4312 = vadd.xlane.f32.xlu0 %v4311
  %v4313 = vpop.xlane.xlu0 %4312
  %v4314 = vsel %vm152, %v4302, 0.0
  %4315 = vadd.xlane.f32.xlu0 %v4314
  %v4316 = vpop.xlane.xlu0 %4315
  %v4317 = vsel %vm152, %v4303, 0.0
  %4318 = vadd.xlane.f32.xlu0 %v4317
  %v4319 = vpop.xlane.xlu0 %4318
  %v4320 = vsel %vm152, %v4304, 0.0
  %4321 = vadd.xlane.f32.xlu0 %v4320
  %v4322 = vpop.xlane.xlu0 %4321
  %v4323 = vsel %vm152, %v4305, 0.0
  %4324 = vadd.xlane.f32.xlu0 %v4323
  %v4325 = vpop.xlane.xlu0 %4324
  %v4326 = vsel %vm152, %v4306, 0.0
  %4327 = vadd.xlane.f32.xlu0 %v4326
  %v4328 = vpop.xlane.xlu0 %4327
  %v4329 = vsel %vm152, %v4307, 0.0
  %4330 = vadd.xlane.f32.xlu0 %v4329
  %v4331 = vpop.xlane.xlu0 %4330
  %v4332 = vmul.f32 %v4310, %v177
  %v4333 = vmul.f32 %v4313, %v177
  %v4334 = vmul.f32 %v4316, %v177
  %v4335 = vmul.f32 %v4319, %v177
  %v4336 = vmul.f32 %v4322, %v177
  %v4337 = vmul.f32 %v4325, %v177
  %v4338 = vmul.f32 %v4328, %v177
  %v4339 = vmul.f32 %v4331, %v177
  %v4340 = vadd.f32 %v4332, 1e-06
  %v4341 = vadd.f32 %v4333, 1e-06
  %v4342 = vadd.f32 %v4334, 1e-06
  %v4343 = vadd.f32 %v4335, 1e-06
  %v4344 = vadd.f32 %v4336, 1e-06
  %v4345 = vadd.f32 %v4337, 1e-06
  %v4346 = vadd.f32 %v4338, 1e-06
  %v4347 = vadd.f32 %v4339, 1e-06
  %v4348 = vrsqrt.pop %v4340
  %v4349 = vrsqrt.pop %v4341
  %v4350 = vrsqrt.pop %v4342
  %v4351 = vrsqrt.pop %v4343
  %v4352 = vrsqrt.pop %v4344
  %v4353 = vrsqrt.pop %v4345
  %v4354 = vrsqrt.pop %v4346
  %v4355 = vrsqrt.pop %v4347
  %v4356 = vmul.f32 %v4292, %v4348
  %v4357 = vmul.f32 %v4293, %v4349
  %v4358 = vmul.f32 %v4294, %v4350
  %v4359 = vmul.f32 %v4295, %v4351
  %v4360 = vmul.f32 %v4296, %v4352
  %v4361 = vmul.f32 %v4297, %v4353
  %v4362 = vmul.f32 %v4298, %v4354
  %v4363 = vmul.f32 %v4299, %v4355
  %v4365 = vlaneseq
  %v4366 = vshrl.u32 %v4365, 7
  %v4367 = vsub.s32 0, %v4366
  %v4368 = vrot.slane %v4258, %v4367
  %v4370 = vmul.f32 %v4356, %v4368
  %v4371 = vmul.f32 %v4357, %v4368
  %v4372 = vmul.f32 %v4358, %v4368
  %v4373 = vmul.f32 %v4359, %v4368
  %v4374 = vmul.f32 %v4360, %v4368
  %v4375 = vmul.f32 %v4361, %v4368
  %v4376 = vmul.f32 %v4362, %v4368
  %v4377 = vmul.f32 %v4363, %v4368
  %v4379 = vlaneseq
  %v4380 = vshrl.u32 %v4379, 7
  %v4381 = vsub.s32 0, %v4380
  %v4382 = vrot.slane %v4259, %v4381
  %v4384 = vadd.f32 %v4370, %v4382
  %v4385 = vadd.f32 %v4371, %v4382
  %v4386 = vadd.f32 %v4372, %v4382
  %v4387 = vadd.f32 %v4373, %v4382
  %v4388 = vadd.f32 %v4374, %v4382
  %v4389 = vadd.f32 %v4375, %v4382
  %v4390 = vadd.f32 %v4376, %v4382
  %v4391 = vadd.f32 %v4377, %v4382
  %v4392 = vpack.c.bf16 %v4385, %v4384
  %v4393 = vpack.c.bf16 %v4387, %v4386
  %v4394 = vpack.c.bf16 %v4389, %v4388
  %v4395 = vpack.c.bf16 %v4391, %v4390
  %v4396 = vld [vmem:[%s23] sm:$0xf]
  %v4397 = vld [vmem:[%s23 + $0x4] sm:$0xf]
  %v4398 = vld [vmem:[%s23 + $0x8] sm:$0xf]
  %v4399 = vld [vmem:[%s23 + $0xc] sm:$0xf]
  %v4400 = vld [vmem:[%s25] sm:$0x1]
  %v4402 = vlaneseq
  %v4403 = vshrl.u32 %v4402, 7
  %v4404 = vsub.s32 0, %v4403
  %v4405 = vrot.slane %v4400, %v4404
  %v4411 = vunpack.c.l.b16 %v4396
  %v4412 = vunpack.c.l.b16 %v4397
  %v4413 = vunpack.c.l.b16 %v4398
  %v4414 = vunpack.c.l.b16 %v4399
  %v4415 = vpack.c.b16 %v4412, %v4411
  %v4416 = vpack.c.b16 %v4414, %v4413
  %v4420 = vsel %vm152, %v4392, 0
  %v4423 = vsel %vm152, %v4393, 0
  %v4426 = vsel %vm152, %v4394, 0
  %v4429 = vsel %vm152, %v4395, 0
  %4431 = vmatprep.subr.bf16.mxu0 0
  %4432 = vmatpush1.bf16.msra.mxu0 %v4415
  %4433 = vmatprep.subr.bf16.mxu0 0
  %4434 = vmatpush1.bf16.msra.mxu0 %v4416
  %4435 = vmatprep.subr.bf16.mxu0 0
  %4436 = vmatpush1.bf16.msra.mxu0 0
  %4437 = vmatprep.subr.bf16.mxu0 0
  %4438 = vmatpush1.bf16.msra.mxu0 0
  %4439 = vmatprep.subr.bf16.mxu0 0
  %4440 = vmatpush1.bf16.msra.mxu0 0
  %4441 = vmatprep.subr.bf16.mxu0 0
  %4442 = vmatpush1.bf16.msra.mxu0 0
  %4443 = vmatprep.subr.bf16.mxu0 0
  %4444 = vmatpush1.bf16.msra.mxu0 0
  %4445 = vmatprep.subr.bf16.mxu0 0
  %4446 = vmatpush1.bf16.msra.mxu0 0
  %4447 = vmatprep.subr.bf16.mxu0 0
  %4448 = vmatpush1.bf16.msra.mxu0 0
  %4449 = vmatprep.subr.bf16.mxu0 0
  %4450 = vmatpush1.bf16.msra.mxu0 0
  %4451 = vmatprep.subr.bf16.mxu0 0
  %4452 = vmatpush1.bf16.msra.mxu0 0
  %4453 = vmatprep.subr.bf16.mxu0 0
  %4454 = vmatpush1.bf16.msra.mxu0 0
  %4455 = vmatprep.subr.bf16.mxu0 0
  %4456 = vmatpush1.bf16.msra.mxu0 0
  %4457 = vmatprep.subr.bf16.mxu0 0
  %4458 = vmatpush1.bf16.msra.mxu0 0
  %4459 = vmatprep.subr.bf16.mxu0 0
  %4460 = vmatpush1.bf16.msra.mxu0 0
  %4461 = vmatprep.subr.bf16.mxu0 0
  %4462 = vmatpush1.bf16.msra.mxu0 0
  %4463 = vmatprep.mubr.bf16.mxu0 0
  %4464 = vmatmul.mubr.bf16.gmra.mrb[0].mxu0 %v4420
  %v4465 = vpop.f32.mrb[0].mxu0
  %v4466 = vadd.f32 %v4405, %v4465
  %v4467 = vpop.f32.mrb[0].mxu0
  %v4468 = vpop.f32.mrb[0].mxu0
  %v4469 = vadd.f32 %v4405, %v4468
  %v4470 = vpop.f32.mrb[0].mxu0
  %4471 = vmatprep.mubr.bf16.mxu0 0
  %4472 = vmatmul.mubr.bf16.gmra.mrb[0].mxu0 %v4423
  %v4473 = vpop.f32.mrb[0].mxu0
  %v4474 = vadd.f32 %v4405, %v4473
  %v4475 = vpop.f32.mrb[0].mxu0
  %v4476 = vpop.f32.mrb[0].mxu0
  %v4477 = vadd.f32 %v4405, %v4476
  %v4478 = vpop.f32.mrb[0].mxu0
  %4479 = vmatprep.mubr.bf16.mxu0 0
  %4480 = vmatmul.mubr.bf16.gmra.mrb[0].mxu0 %v4426
  %v4481 = vpop.f32.mrb[0].mxu0
  %v4482 = vadd.f32 %v4405, %v4481
  %v4483 = vpop.f32.mrb[0].mxu0
  %v4484 = vpop.f32.mrb[0].mxu0
  %v4485 = vadd.f32 %v4405, %v4484
  %v4486 = vpop.f32.mrb[0].mxu0
  %4487 = vmatprep.mubr.bf16.mxu0 0
  %4488 = vmatmul.mubr.bf16.gmra.mrb[0].mxu0 %v4429
  %v4489 = vpop.f32.mrb[0].mxu0
  %v4490 = vadd.f32 %v4405, %v4489
  %v4491 = vpop.f32.mrb[0].mxu0
  %v4492 = vpop.f32.mrb[0].mxu0
  %v4493 = vadd.f32 %v4405, %v4492
  %v4494 = vpop.f32.mrb[0].mxu0
  %4495 = vdwg.mxu0
  %v4496 = vmul.f32 %v4466, 0.5
  %v4497 = vmul.f32 %v4469, 0.5
  %v4498 = vmul.f32 %v4474, 0.5
  %v4499 = vmul.f32 %v4477, 0.5
  %v4500 = vmul.f32 %v4482, 0.5
  %v4501 = vmul.f32 %v4485, 0.5
  %v4502 = vmul.f32 %v4490, 0.5
  %v4503 = vmul.f32 %v4493, 0.5
  %v4504 = vmul.f32 %v4466, 0.044715
  %v4505 = vmul.f32 %v4469, 0.044715
  %v4506 = vmul.f32 %v4474, 0.044715
  %v4507 = vmul.f32 %v4477, 0.044715
  %v4508 = vmul.f32 %v4482, 0.044715
  %v4509 = vmul.f32 %v4485, 0.044715
  %v4510 = vmul.f32 %v4490, 0.044715
  %v4511 = vmul.f32 %v4493, 0.044715
  %v4512 = vmul.f32 %v4504, %v4466
  %v4513 = vmul.f32 %v4505, %v4469
  %v4514 = vmul.f32 %v4506, %v4474
  %v4515 = vmul.f32 %v4507, %v4477
  %v4516 = vmul.f32 %v4508, %v4482
  %v4517 = vmul.f32 %v4509, %v4485
  %v4518 = vmul.f32 %v4510, %v4490
  %v4519 = vmul.f32 %v4511, %v4493
  %v4520 = vmul.f32 %v4512, %v4466
  %v4521 = vmul.f32 %v4513, %v4469
  %v4522 = vmul.f32 %v4514, %v4474
  %v4523 = vmul.f32 %v4515, %v4477
  %v4524 = vmul.f32 %v4516, %v4482
  %v4525 = vmul.f32 %v4517, %v4485
  %v4526 = vmul.f32 %v4518, %v4490
  %v4527 = vmul.f32 %v4519, %v4493
  %v4528 = vadd.f32 %v4466, %v4520
  %v4529 = vadd.f32 %v4469, %v4521
  %v4530 = vadd.f32 %v4474, %v4522
  %v4531 = vadd.f32 %v4477, %v4523
  %v4532 = vadd.f32 %v4482, %v4524
  %v4533 = vadd.f32 %v4485, %v4525
  %v4534 = vadd.f32 %v4490, %v4526
  %v4535 = vadd.f32 %v4493, %v4527
  %v4536 = vmul.f32 %v4528, 0.7978846
  %v4537 = vmul.f32 %v4529, 0.7978846
  %v4538 = vmul.f32 %v4530, 0.7978846
  %v4539 = vmul.f32 %v4531, 0.7978846
  %v4540 = vmul.f32 %v4532, 0.7978846
  %v4541 = vmul.f32 %v4533, 0.7978846
  %v4542 = vmul.f32 %v4534, 0.7978846
  %v4543 = vmul.f32 %v4535, 0.7978846
  %v4544 = vtanh.pop %v4536
  %v4545 = vtanh.pop %v4537
  %v4546 = vtanh.pop %v4538
  %v4547 = vtanh.pop %v4539
  %v4548 = vtanh.pop %v4540
  %v4549 = vtanh.pop %v4541
  %v4550 = vtanh.pop %v4542
  %v4551 = vtanh.pop %v4543
  %v4552 = vadd.f32 %v4544, 1.0
  %v4553 = vadd.f32 %v4545, 1.0
  %v4554 = vadd.f32 %v4546, 1.0
  %v4555 = vadd.f32 %v4547, 1.0
  %v4556 = vadd.f32 %v4548, 1.0
  %v4557 = vadd.f32 %v4549, 1.0
  %v4558 = vadd.f32 %v4550, 1.0
  %v4559 = vadd.f32 %v4551, 1.0
  %v4560 = vmul.f32 %v4496, %v4552
  %v4561 = vmul.f32 %v4497, %v4553
  %v4562 = vmul.f32 %v4498, %v4554
  %v4563 = vmul.f32 %v4499, %v4555
  %v4564 = vmul.f32 %v4500, %v4556
  %v4565 = vmul.f32 %v4501, %v4557
  %v4566 = vmul.f32 %v4502, %v4558
  %v4567 = vmul.f32 %v4503, %v4559
  %v4568 = vpack.c.bf16 %v4561, %v4560
  %v4569 = vpack.c.bf16 %v4563, %v4562
  %v4570 = vpack.c.bf16 %v4565, %v4564
  %v4571 = vpack.c.bf16 %v4567, %v4566
  %v4572 = vld [vmem:[%s27] sm:$0xf]
  %v4573 = vld [vmem:[%s27 + $0x4] sm:$0xf]
  %v4574 = vld [vmem:[%s27 + $0x8] sm:$0xf]
  %v4575 = vld [vmem:[%s27 + $0xc] sm:$0xf]
  %v4576 = vld [vmem:[%s27 + $0x10] sm:$0xf]
  %v4577 = vld [vmem:[%s27 + $0x14] sm:$0xf]
  %v4578 = vld [vmem:[%s27 + $0x18] sm:$0xf]
  %v4579 = vld [vmem:[%s27 + $0x1c] sm:$0xf]
  %v4580 = vld [vmem:[%s29] sm:$0x1]
  %v4582 = vlaneseq
  %v4583 = vshrl.u32 %v4582, 7
  %v4584 = vsub.s32 0, %v4583
  %v4585 = vrot.slane %v4580, %v4584
  %v4595 = vunpack.c.l.b16 %v4572
  %v4596 = vunpack.c.l.b16 %v4573
  %v4597 = vunpack.c.l.b16 %v4574
  %v4598 = vunpack.c.l.b16 %v4575
  %v4599 = vunpack.c.l.b16 %v4576
  %v4600 = vunpack.c.l.b16 %v4577
  %v4601 = vunpack.c.l.b16 %v4578
  %v4602 = vunpack.c.l.b16 %v4579
  %v4603 = vpack.c.b16 %v4596, %v4595
  %v4604 = vpack.c.b16 %v4598, %v4597
  %v4605 = vpack.c.b16 %v4600, %v4599
  %v4606 = vpack.c.b16 %v4602, %v4601
  %vm4611 = vcmask 523264
  %v4613 = vsel %vm4611, %v4568, 0
  %v4616 = vsel %vm4611, %v4569, 0
  %v4619 = vsel %vm4611, %v4570, 0
  %v4622 = vsel %vm4611, %v4571, 0
  %4624 = vmatprep.subr.bf16.mxu0 0
  %4625 = vmatpush1.bf16.msra.mxu0 %v4603
  %4626 = vmatprep.subr.bf16.mxu0 0
  %4627 = vmatpush1.bf16.msra.mxu0 %v4604
  %4628 = vmatprep.subr.bf16.mxu0 0
  %4629 = vmatpush1.bf16.msra.mxu0 %v4605
  %4630 = vmatprep.subr.bf16.mxu0 0
  %4631 = vmatpush1.bf16.msra.mxu0 %v4606
  %4632 = vmatprep.subr.bf16.mxu0 0
  %4633 = vmatpush1.bf16.msra.mxu0 0
  %4634 = vmatprep.subr.bf16.mxu0 0
  %4635 = vmatpush1.bf16.msra.mxu0 0
  %4636 = vmatprep.subr.bf16.mxu0 0
  %4637 = vmatpush1.bf16.msra.mxu0 0
  %4638 = vmatprep.subr.bf16.mxu0 0
  %4639 = vmatpush1.bf16.msra.mxu0 0
  %4640 = vmatprep.subr.bf16.mxu0 0
  %4641 = vmatpush1.bf16.msra.mxu0 0
  %4642 = vmatprep.subr.bf16.mxu0 0
  %4643 = vmatpush1.bf16.msra.mxu0 0
  %4644 = vmatprep.subr.bf16.mxu0 0
  %4645 = vmatpush1.bf16.msra.mxu0 0
  %4646 = vmatprep.subr.bf16.mxu0 0
  %4647 = vmatpush1.bf16.msra.mxu0 0
  %4648 = vmatprep.subr.bf16.mxu0 0
  %4649 = vmatpush1.bf16.msra.mxu0 0
  %4650 = vmatprep.subr.bf16.mxu0 0
  %4651 = vmatpush1.bf16.msra.mxu0 0
  %4652 = vmatprep.subr.bf16.mxu0 0
  %4653 = vmatpush1.bf16.msra.mxu0 0
  %4654 = vmatprep.subr.bf16.mxu0 0
  %4655 = vmatpush1.bf16.msra.mxu0 0
  %4656 = vmatprep.mubr.bf16.mxu0 0
  %4657 = vmatmul.mubr.bf16.gmra.mrb[0].mxu0 %v4613
  %v4658 = vpop.f32.mrb[0].mxu0
  %v4659 = vadd.f32 %v4585, %v4658
  %v4660 = vpop.f32.mrb[0].mxu0
  %v4661 = vpop.f32.mrb[0].mxu0
  %v4662 = vadd.f32 %v4585, %v4661
  %v4663 = vpop.f32.mrb[0].mxu0
  %4664 = vmatprep.mubr.bf16.mxu0 0
  %4665 = vmatmul.mubr.bf16.gmra.mrb[0].mxu0 %v4616
  %v4666 = vpop.f32.mrb[0].mxu0
  %v4667 = vadd.f32 %v4585, %v4666
  %v4668 = vpop.f32.mrb[0].mxu0
  %v4669 = vpop.f32.mrb[0].mxu0
  %v4670 = vadd.f32 %v4585, %v4669
  %v4671 = vpop.f32.mrb[0].mxu0
  %4672 = vmatprep.mubr.bf16.mxu0 0
  %4673 = vmatmul.mubr.bf16.gmra.mrb[0].mxu0 %v4619
  %v4674 = vpop.f32.mrb[0].mxu0
  %v4675 = vadd.f32 %v4585, %v4674
  %v4676 = vpop.f32.mrb[0].mxu0
  %v4677 = vpop.f32.mrb[0].mxu0
  %v4678 = vadd.f32 %v4585, %v4677
  %v4679 = vpop.f32.mrb[0].mxu0
  %4680 = vmatprep.mubr.bf16.mxu0 0
  %4681 = vmatmul.mubr.bf16.gmra.mrb[0].mxu0 %v4622
  %v4682 = vpop.f32.mrb[0].mxu0
  %v4683 = vadd.f32 %v4585, %v4682
  %v4684 = vpop.f32.mrb[0].mxu0
  %v4685 = vpop.f32.mrb[0].mxu0
  %v4686 = vadd.f32 %v4585, %v4685
  %v4687 = vpop.f32.mrb[0].mxu0
  %4688 = vdwg.mxu0
  %v4689 = vadd.f32 %v4659, %v4250
  %v4690 = vadd.f32 %v4662, %v4251
  %v4691 = vadd.f32 %v4667, %v4252
  %v4692 = vadd.f32 %v4670, %v4253
  %v4693 = vadd.f32 %v4675, %v4254
  %v4694 = vadd.f32 %v4678, %v4255
  %v4695 = vadd.f32 %v4683, %v4256
  %v4696 = vadd.f32 %v4686, %v4257
  %s4697 = scalar_lea.vmem %s7, 1
  %v4698 = vld [vmem:[%s4697] sm:$0x1]
  %s4699 = scalar_lea.vmem %s9, 1
  %v4700 = vld [vmem:[%s4699] sm:$0x1]
  %v4701 = vsel %vm152, %v4689, 0.0
  %4702 = vadd.xlane.f32.xlu0 %v4701
  %v4703 = vpop.xlane.xlu0 %4702
  %v4704 = vsel %vm152, %v4690, 0.0
  %4705 = vadd.xlane.f32.xlu0 %v4704
  %v4706 = vpop.xlane.xlu0 %4705
  %v4707 = vsel %vm152, %v4691, 0.0
  %4708 = vadd.xlane.f32.xlu0 %v4707
  %v4709 = vpop.xlane.xlu0 %4708
  %v4710 = vsel %vm152, %v4692, 0.0
  %4711 = vadd.xlane.f32.xlu0 %v4710
  %v4712 = vpop.xlane.xlu0 %4711
  %v4713 = vsel %vm152, %v4693, 0.0
  %4714 = vadd.xlane.f32.xlu0 %v4713
  %v4715 = vpop.xlane.xlu0 %4714
  %v4716 = vsel %vm152, %v4694, 0.0
  %4717 = vadd.xlane.f32.xlu0 %v4716
  %v4718 = vpop.xlane.xlu0 %4717
  %v4719 = vsel %vm152, %v4695, 0.0
  %4720 = vadd.xlane.f32.xlu0 %v4719
  %v4721 = vpop.xlane.xlu0 %4720
  %v4722 = vsel %vm152, %v4696, 0.0
  %4723 = vadd.xlane.f32.xlu0 %v4722
  %v4724 = vpop.xlane.xlu0 %4723
  %v4725 = vmul.f32 %v4703, %v177
  %v4726 = vmul.f32 %v4706, %v177
  %v4727 = vmul.f32 %v4709, %v177
  %v4728 = vmul.f32 %v4712, %v177
  %v4729 = vmul.f32 %v4715, %v177
  %v4730 = vmul.f32 %v4718, %v177
  %v4731 = vmul.f32 %v4721, %v177
  %v4732 = vmul.f32 %v4724, %v177
  %v4733 = vsub.f32 %v4689, %v4725
  %v4734 = vsub.f32 %v4690, %v4726
  %v4735 = vsub.f32 %v4691, %v4727
  %v4736 = vsub.f32 %v4692, %v4728
  %v4737 = vsub.f32 %v4693, %v4729
  %v4738 = vsub.f32 %v4694, %v4730
  %v4739 = vsub.f32 %v4695, %v4731
  %v4740 = vsub.f32 %v4696, %v4732
  %v4741 = vmul.f32 %v4733, %v4733
  %v4742 = vmul.f32 %v4734, %v4734
  %v4743 = vmul.f32 %v4735, %v4735
  %v4744 = vmul.f32 %v4736, %v4736
  %v4745 = vmul.f32 %v4737, %v4737
  %v4746 = vmul.f32 %v4738, %v4738
  %v4747 = vmul.f32 %v4739, %v4739
  %v4748 = vmul.f32 %v4740, %v4740
  %v4749 = vsel %vm152, %v4741, 0.0
  %4750 = vadd.xlane.f32.xlu0 %v4749
  %v4751 = vpop.xlane.xlu0 %4750
  %v4752 = vsel %vm152, %v4742, 0.0
  %4753 = vadd.xlane.f32.xlu0 %v4752
  %v4754 = vpop.xlane.xlu0 %4753
  %v4755 = vsel %vm152, %v4743, 0.0
  %4756 = vadd.xlane.f32.xlu0 %v4755
  %v4757 = vpop.xlane.xlu0 %4756
  %v4758 = vsel %vm152, %v4744, 0.0
  %4759 = vadd.xlane.f32.xlu0 %v4758
  %v4760 = vpop.xlane.xlu0 %4759
  %v4761 = vsel %vm152, %v4745, 0.0
  %4762 = vadd.xlane.f32.xlu0 %v4761
  %v4763 = vpop.xlane.xlu0 %4762
  %v4764 = vsel %vm152, %v4746, 0.0
  %4765 = vadd.xlane.f32.xlu0 %v4764
  %v4766 = vpop.xlane.xlu0 %4765
  %v4767 = vsel %vm152, %v4747, 0.0
  %4768 = vadd.xlane.f32.xlu0 %v4767
  %v4769 = vpop.xlane.xlu0 %4768
  %v4770 = vsel %vm152, %v4748, 0.0
  %4771 = vadd.xlane.f32.xlu0 %v4770
  %v4772 = vpop.xlane.xlu0 %4771
  %v4773 = vmul.f32 %v4751, %v177
  %v4774 = vmul.f32 %v4754, %v177
  %v4775 = vmul.f32 %v4757, %v177
  %v4776 = vmul.f32 %v4760, %v177
  %v4777 = vmul.f32 %v4763, %v177
  %v4778 = vmul.f32 %v4766, %v177
  %v4779 = vmul.f32 %v4769, %v177
  %v4780 = vmul.f32 %v4772, %v177
  %v4781 = vadd.f32 %v4773, 1e-06
  %v4782 = vadd.f32 %v4774, 1e-06
  %v4783 = vadd.f32 %v4775, 1e-06
  %v4784 = vadd.f32 %v4776, 1e-06
  %v4785 = vadd.f32 %v4777, 1e-06
  %v4786 = vadd.f32 %v4778, 1e-06
  %v4787 = vadd.f32 %v4779, 1e-06
  %v4788 = vadd.f32 %v4780, 1e-06
  %v4789 = vrsqrt.pop %v4781
  %v4790 = vrsqrt.pop %v4782
  %v4791 = vrsqrt.pop %v4783
  %v4792 = vrsqrt.pop %v4784
  %v4793 = vrsqrt.pop %v4785
  %v4794 = vrsqrt.pop %v4786
  %v4795 = vrsqrt.pop %v4787
  %v4796 = vrsqrt.pop %v4788
  %v4797 = vmul.f32 %v4733, %v4789
  %v4798 = vmul.f32 %v4734, %v4790
  %v4799 = vmul.f32 %v4735, %v4791
  %v4800 = vmul.f32 %v4736, %v4792
  %v4801 = vmul.f32 %v4737, %v4793
  %v4802 = vmul.f32 %v4738, %v4794
  %v4803 = vmul.f32 %v4739, %v4795
  %v4804 = vmul.f32 %v4740, %v4796
  %v4806 = vlaneseq
  %v4807 = vshrl.u32 %v4806, 7
  %v4808 = vsub.s32 0, %v4807
  %v4809 = vrot.slane %v4698, %v4808
  %v4811 = vmul.f32 %v4797, %v4809
  %v4812 = vmul.f32 %v4798, %v4809
  %v4813 = vmul.f32 %v4799, %v4809
  %v4814 = vmul.f32 %v4800, %v4809
  %v4815 = vmul.f32 %v4801, %v4809
  %v4816 = vmul.f32 %v4802, %v4809
  %v4817 = vmul.f32 %v4803, %v4809
  %v4818 = vmul.f32 %v4804, %v4809
  %v4820 = vlaneseq
  %v4821 = vshrl.u32 %v4820, 7
  %v4822 = vsub.s32 0, %v4821
  %v4823 = vrot.slane %v4700, %v4822
  %v4825 = vadd.f32 %v4811, %v4823
  %v4826 = vadd.f32 %v4812, %v4823
  %v4827 = vadd.f32 %v4813, %v4823
  %v4828 = vadd.f32 %v4814, %v4823
  %v4829 = vadd.f32 %v4815, %v4823
  %v4830 = vadd.f32 %v4816, %v4823
  %v4831 = vadd.f32 %v4817, %v4823
  %v4832 = vadd.f32 %v4818, %v4823
  %v4833 = vpack.c.bf16 %v4826, %v4825
  %v4834 = vpack.c.bf16 %v4828, %v4827
  %v4835 = vpack.c.bf16 %v4830, %v4829
  %v4836 = vpack.c.bf16 %v4832, %v4831
  %s4837 = scalar_lea.vmem %s11, 16
  %v4838 = vld [vmem:[%s4837] sm:$0xf]
  %v4839 = vld [vmem:[%s4837 + $0x4] sm:$0xf]
  %v4840 = vld [vmem:[%s4837 + $0x8] sm:$0xf]
  %v4841 = vld [vmem:[%s4837 + $0xc] sm:$0xf]
  %s4842 = scalar_lea.vmem %s13, 1
  %v4843 = vld [vmem:[%s4842] sm:$0x1]
  %v4845 = vlaneseq
  %v4846 = vshrl.u32 %v4845, 7
  %v4847 = vsub.s32 0, %v4846
  %v4848 = vrot.slane %v4843, %v4847
  %v4854 = vunpack.c.l.b16 %v4838
  %v4855 = vunpack.c.l.b16 %v4839
  %v4856 = vunpack.c.l.b16 %v4840
  %v4857 = vunpack.c.l.b16 %v4841
  %v4858 = vpack.c.b16 %v4855, %v4854
  %v4859 = vpack.c.b16 %v4857, %v4856
  %v4863 = vsel %vm152, %v4833, 0
  %v4866 = vsel %vm152, %v4834, 0
  %v4869 = vsel %vm152, %v4835, 0
  %v4872 = vsel %vm152, %v4836, 0
  %4874 = vmatprep.subr.bf16.mxu0 0
  %4875 = vmatpush1.bf16.msra.mxu0 %v4858
  %4876 = vmatprep.subr.bf16.mxu0 0
  %4877 = vmatpush1.bf16.msra.mxu0 %v4859
  %4878 = vmatprep.subr.bf16.mxu0 0
  %4879 = vmatpush1.bf16.msra.mxu0 0
  %4880 = vmatprep.subr.bf16.mxu0 0
  %4881 = vmatpush1.bf16.msra.mxu0 0
  %4882 = vmatprep.subr.bf16.mxu0 0
  %4883 = vmatpush1.bf16.msra.mxu0 0
  %4884 = vmatprep.subr.bf16.mxu0 0
  %4885 = vmatpush1.bf16.msra.mxu0 0
  %4886 = vmatprep.subr.bf16.mxu0 0
  %4887 = vmatpush1.bf16.msra.mxu0 0
  %4888 = vmatprep.subr.bf16.mxu0 0
  %4889 = vmatpush1.bf16.msra.mxu0 0
  %4890 = vmatprep.subr.bf16.mxu0 0
  %4891 = vmatpush1.bf16.msra.mxu0 0
  %4892 = vmatprep.subr.bf16.mxu0 0
  %4893 = vmatpush1.bf16.msra.mxu0 0
  %4894 = vmatprep.subr.bf16.mxu0 0
  %4895 = vmatpush1.bf16.msra.mxu0 0
  %4896 = vmatprep.subr.bf16.mxu0 0
  %4897 = vmatpush1.bf16.msra.mxu0 0
  %4898 = vmatprep.subr.bf16.mxu0 0
  %4899 = vmatpush1.bf16.msra.mxu0 0
  %4900 = vmatprep.subr.bf16.mxu0 0
  %4901 = vmatpush1.bf16.msra.mxu0 0
  %4902 = vmatprep.subr.bf16.mxu0 0
  %4903 = vmatpush1.bf16.msra.mxu0 0
  %4904 = vmatprep.subr.bf16.mxu0 0
  %4905 = vmatpush1.bf16.msra.mxu0 0
  %4906 = vmatprep.mubr.bf16.mxu0 0
  %4907 = vmatmul.mubr.bf16.gmra.mrb[0].mxu0 %v4863
  %v4908 = vpop.f32.mrb[0].mxu0
  %v4909 = vadd.f32 %v4848, %v4908
  %v4910 = vpop.f32.mrb[0].mxu0
  %v4911 = vpop.f32.mrb[0].mxu0
  %v4912 = vadd.f32 %v4848, %v4911
  %v4913 = vpop.f32.mrb[0].mxu0
  %4914 = vmatprep.mubr.bf16.mxu0 0
  %4915 = vmatmul.mubr.bf16.gmra.mrb[0].mxu0 %v4866
  %v4916 = vpop.f32.mrb[0].mxu0
  %v4917 = vadd.f32 %v4848, %v4916
  %v4918 = vpop.f32.mrb[0].mxu0
  %v4919 = vpop.f32.mrb[0].mxu0
  %v4920 = vadd.f32 %v4848, %v4919
  %v4921 = vpop.f32.mrb[0].mxu0
  %4922 = vmatprep.mubr.bf16.mxu0 0
  %4923 = vmatmul.mubr.bf16.gmra.mrb[0].mxu0 %v4869
  %v4924 = vpop.f32.mrb[0].mxu0
  %v4925 = vadd.f32 %v4848, %v4924
  %v4926 = vpop.f32.mrb[0].mxu0
  %v4927 = vpop.f32.mrb[0].mxu0
  %v4928 = vadd.f32 %v4848, %v4927
  %v4929 = vpop.f32.mrb[0].mxu0
  %4930 = vmatprep.mubr.bf16.mxu0 0
  %4931 = vmatmul.mubr.bf16.gmra.mrb[0].mxu0 %v4872
  %v4932 = vpop.f32.mrb[0].mxu0
  %v4933 = vadd.f32 %v4848, %v4932
  %v4934 = vpop.f32.mrb[0].mxu0
  %v4935 = vpop.f32.mrb[0].mxu0
  %v4936 = vadd.f32 %v4848, %v4935
  %v4937 = vpop.f32.mrb[0].mxu0
  %4938 = vdwg.mxu0
  %v4939 = vpack.c.bf16 %v4909, %v4909
  %v4940 = vpack.c.bf16 %v4912, %v4912
  %v4941 = vpack.c.bf16 %v4917, %v4917
  %v4942 = vpack.c.bf16 %v4920, %v4920
  %v4943 = vpack.c.bf16 %v4925, %v4925
  %v4944 = vpack.c.bf16 %v4928, %v4928
  %v4945 = vpack.c.bf16 %v4933, %v4933
  %v4946 = vpack.c.bf16 %v4936, %v4936
  %4948 = vrot.lane.b32.xlu0 %v4939, 96
  %v4949 = vpop.permute.xlu0 %4948
  %v4951 = vsel %vm401, %v4939, 0
  %v4954 = vsel %vm401, %v4949, 0
  %4956 = vmatprep.subr.bf16.mxu0 0
  %4957 = vmatpush1.bf16.xpose.msra.mxu0 %v4954
  %4958 = vmatprep.subr.bf16.mxu0 0
  %4959 = vmatpush1.bf16.xpose.msra.mxu0 0
  %4960 = vmatprep.subr.bf16.mxu0 0
  %4961 = vmatpush1.bf16.xpose.msra.mxu0 0
  %4962 = vmatprep.subr.bf16.mxu0 0
  %4963 = vmatpush1.bf16.xpose.msra.mxu0 0
  %4964 = vmatprep.subr.bf16.mxu0 0
  %4965 = vmatpush1.bf16.xpose.msra.mxu0 0
  %4966 = vmatprep.subr.bf16.mxu0 0
  %4967 = vmatpush1.bf16.xpose.msra.mxu0 0
  %4968 = vmatprep.subr.bf16.mxu0 0
  %4969 = vmatpush1.bf16.xpose.msra.mxu0 0
  %4970 = vmatprep.subr.bf16.mxu0 0
  %4971 = vmatpush1.bf16.xpose.msra.mxu0 0
  %4972 = vmatprep.subr.bf16.mxu0 0
  %4973 = vmatpush1.bf16.xpose.msra.mxu0 0
  %4974 = vmatprep.subr.bf16.mxu0 0
  %4975 = vmatpush1.bf16.xpose.msra.mxu0 0
  %4976 = vmatprep.subr.bf16.mxu0 0
  %4977 = vmatpush1.bf16.xpose.msra.mxu0 0
  %4978 = vmatprep.subr.bf16.mxu0 0
  %4979 = vmatpush1.bf16.xpose.msra.mxu0 0
  %4980 = vmatprep.subr.bf16.mxu0 0
  %4981 = vmatpush1.bf16.xpose.msra.mxu0 0
  %4982 = vmatprep.subr.bf16.mxu0 0
  %4983 = vmatpush1.bf16.xpose.msra.mxu0 0
  %4984 = vmatprep.subr.bf16.mxu0 0
  %4985 = vmatpush1.bf16.xpose.msra.mxu0 0
  %4986 = vmatprep.subr.bf16.mxu0 0
  %4987 = vmatpush1.bf16.xpose.msra.mxu0 0
  %4988 = vmatprep.mubr.bf16.mxu0 0
  %4989 = vmatmul.mubr.bf16.gmra.mrb[0].mxu0 %v4951
  %v4990 = vpop.f32.mrb[0].mxu0
  %v4991 = vadd.f32 0.0, %v4990
  %v4992 = vpop.f32.mrb[0].mxu0
  %v4993 = vpop.f32.mrb[0].mxu0
  %v4994 = vpop.f32.mrb[0].mxu0
  %4995 = vdwg.mxu0
  %4997 = vrot.lane.b32.xlu0 %v4940, 96
  %v4998 = vpop.permute.xlu0 %4997
  %v5000 = vsel %vm401, %v4940, 0
  %v5003 = vsel %vm401, %v4998, 0
  %5005 = vmatprep.subr.bf16.mxu0 0
  %5006 = vmatpush1.bf16.xpose.msra.mxu0 %v5003
  %5007 = vmatprep.subr.bf16.mxu0 0
  %5008 = vmatpush1.bf16.xpose.msra.mxu0 0
  %5009 = vmatprep.subr.bf16.mxu0 0
  %5010 = vmatpush1.bf16.xpose.msra.mxu0 0
  %5011 = vmatprep.subr.bf16.mxu0 0
  %5012 = vmatpush1.bf16.xpose.msra.mxu0 0
  %5013 = vmatprep.subr.bf16.mxu0 0
  %5014 = vmatpush1.bf16.xpose.msra.mxu0 0
  %5015 = vmatprep.subr.bf16.mxu0 0
  %5016 = vmatpush1.bf16.xpose.msra.mxu0 0
  %5017 = vmatprep.subr.bf16.mxu0 0
  %5018 = vmatpush1.bf16.xpose.msra.mxu0 0
  %5019 = vmatprep.subr.bf16.mxu0 0
  %5020 = vmatpush1.bf16.xpose.msra.mxu0 0
  %5021 = vmatprep.subr.bf16.mxu0 0
  %5022 = vmatpush1.bf16.xpose.msra.mxu0 0
  %5023 = vmatprep.subr.bf16.mxu0 0
  %5024 = vmatpush1.bf16.xpose.msra.mxu0 0
  %5025 = vmatprep.subr.bf16.mxu0 0
  %5026 = vmatpush1.bf16.xpose.msra.mxu0 0
  %5027 = vmatprep.subr.bf16.mxu0 0
  %5028 = vmatpush1.bf16.xpose.msra.mxu0 0
  %5029 = vmatprep.subr.bf16.mxu0 0
  %5030 = vmatpush1.bf16.xpose.msra.mxu0 0
  %5031 = vmatprep.subr.bf16.mxu0 0
  %5032 = vmatpush1.bf16.xpose.msra.mxu0 0
  %5033 = vmatprep.subr.bf16.mxu0 0
  %5034 = vmatpush1.bf16.xpose.msra.mxu0 0
  %5035 = vmatprep.subr.bf16.mxu0 0
  %5036 = vmatpush1.bf16.xpose.msra.mxu0 0
  %5037 = vmatprep.mubr.bf16.mxu0 0
  %5038 = vmatmul.mubr.bf16.gmra.mrb[0].mxu0 %v5000
  %v5039 = vpop.f32.mrb[0].mxu0
  %v5040 = vadd.f32 0.0, %v5039
  %v5041 = vpop.f32.mrb[0].mxu0
  %v5042 = vpop.f32.mrb[0].mxu0
  %v5043 = vpop.f32.mrb[0].mxu0
  %5044 = vdwg.mxu0
  %5046 = vrot.lane.b32.xlu0 %v4941, 96
  %v5047 = vpop.permute.xlu0 %5046
  %v5049 = vsel %vm401, %v4941, 0
  %v5052 = vsel %vm401, %v5047, 0
  %5054 = vmatprep.subr.bf16.mxu0 0
  %5055 = vmatpush1.bf16.xpose.msra.mxu0 %v5052
  %5056 = vmatprep.subr.bf16.mxu0 0
  %5057 = vmatpush1.bf16.xpose.msra.mxu0 0
  %5058 = vmatprep.subr.bf16.mxu0 0
  %5059 = vmatpush1.bf16.xpose.msra.mxu0 0
  %5060 = vmatprep.subr.bf16.mxu0 0
  %5061 = vmatpush1.bf16.xpose.msra.mxu0 0
  %5062 = vmatprep.subr.bf16.mxu0 0
  %5063 = vmatpush1.bf16.xpose.msra.mxu0 0
  %5064 = vmatprep.subr.bf16.mxu0 0
  %5065 = vmatpush1.bf16.xpose.msra.mxu0 0
  %5066 = vmatprep.subr.bf16.mxu0 0
  %5067 = vmatpush1.bf16.xpose.msra.mxu0 0
  %5068 = vmatprep.subr.bf16.mxu0 0
  %5069 = vmatpush1.bf16.xpose.msra.mxu0 0
  %5070 = vmatprep.subr.bf16.mxu0 0
  %5071 = vmatpush1.bf16.xpose.msra.mxu0 0
  %5072 = vmatprep.subr.bf16.mxu0 0
  %5073 = vmatpush1.bf16.xpose.msra.mxu0 0
  %5074 = vmatprep.subr.bf16.mxu0 0
  %5075 = vmatpush1.bf16.xpose.msra.mxu0 0
  %5076 = vmatprep.subr.bf16.mxu0 0
  %5077 = vmatpush1.bf16.xpose.msra.mxu0 0
  %5078 = vmatprep.subr.bf16.mxu0 0
  %5079 = vmatpush1.bf16.xpose.msra.mxu0 0
  %5080 = vmatprep.subr.bf16.mxu0 0
  %5081 = vmatpush1.bf16.xpose.msra.mxu0 0
  %5082 = vmatprep.subr.bf16.mxu0 0
  %5083 = vmatpush1.bf16.xpose.msra.mxu0 0
  %5084 = vmatprep.subr.bf16.mxu0 0
  %5085 = vmatpush1.bf16.xpose.msra.mxu0 0
  %5086 = vmatprep.mubr.bf16.mxu0 0
  %5087 = vmatmul.mubr.bf16.gmra.mrb[0].mxu0 %v5049
  %v5088 = vpop.f32.mrb[0].mxu0
  %v5089 = vadd.f32 0.0, %v5088
  %v5090 = vpop.f32.mrb[0].mxu0
  %v5091 = vpop.f32.mrb[0].mxu0
  %v5092 = vpop.f32.mrb[0].mxu0
  %5093 = vdwg.mxu0
  %5095 = vrot.lane.b32.xlu0 %v4942, 96
  %v5096 = vpop.permute.xlu0 %5095
  %v5098 = vsel %vm401, %v4942, 0
  %v5101 = vsel %vm401, %v5096, 0
  %5103 = vmatprep.subr.bf16.mxu0 0
  %5104 = vmatpush1.bf16.xpose.msra.mxu0 %v5101
  %5105 = vmatprep.subr.bf16.mxu0 0
  %5106 = vmatpush1.bf16.xpose.msra.mxu0 0
  %5107 = vmatprep.subr.bf16.mxu0 0
  %5108 = vmatpush1.bf16.xpose.msra.mxu0 0
  %5109 = vmatprep.subr.bf16.mxu0 0
  %5110 = vmatpush1.bf16.xpose.msra.mxu0 0
  %5111 = vmatprep.subr.bf16.mxu0 0
  %5112 = vmatpush1.bf16.xpose.msra.mxu0 0
  %5113 = vmatprep.subr.bf16.mxu0 0
  %5114 = vmatpush1.bf16.xpose.msra.mxu0 0
  %5115 = vmatprep.subr.bf16.mxu0 0
  %5116 = vmatpush1.bf16.xpose.msra.mxu0 0
  %5117 = vmatprep.subr.bf16.mxu0 0
  %5118 = vmatpush1.bf16.xpose.msra.mxu0 0
  %5119 = vmatprep.subr.bf16.mxu0 0
  %5120 = vmatpush1.bf16.xpose.msra.mxu0 0
  %5121 = vmatprep.subr.bf16.mxu0 0
  %5122 = vmatpush1.bf16.xpose.msra.mxu0 0
  %5123 = vmatprep.subr.bf16.mxu0 0
  %5124 = vmatpush1.bf16.xpose.msra.mxu0 0
  %5125 = vmatprep.subr.bf16.mxu0 0
  %5126 = vmatpush1.bf16.xpose.msra.mxu0 0
  %5127 = vmatprep.subr.bf16.mxu0 0
  %5128 = vmatpush1.bf16.xpose.msra.mxu0 0
  %5129 = vmatprep.subr.bf16.mxu0 0
  %5130 = vmatpush1.bf16.xpose.msra.mxu0 0
  %5131 = vmatprep.subr.bf16.mxu0 0
  %5132 = vmatpush1.bf16.xpose.msra.mxu0 0
  %5133 = vmatprep.subr.bf16.mxu0 0
  %5134 = vmatpush1.bf16.xpose.msra.mxu0 0
  %5135 = vmatprep.mubr.bf16.mxu0 0
  %5136 = vmatmul.mubr.bf16.gmra.mrb[0].mxu0 %v5098
  %v5137 = vpop.f32.mrb[0].mxu0
  %v5138 = vadd.f32 0.0, %v5137
  %v5139 = vpop.f32.mrb[0].mxu0
  %v5140 = vpop.f32.mrb[0].mxu0
  %v5141 = vpop.f32.mrb[0].mxu0
  %5142 = vdwg.mxu0
  %5144 = vrot.lane.b32.xlu0 %v4943, 96
  %v5145 = vpop.permute.xlu0 %5144
  %v5147 = vsel %vm401, %v4943, 0
  %v5150 = vsel %vm401, %v5145, 0
  %5152 = vmatprep.subr.bf16.mxu0 0
  %5153 = vmatpush1.bf16.xpose.msra.mxu0 %v5150
  %5154 = vmatprep.subr.bf16.mxu0 0
  %5155 = vmatpush1.bf16.xpose.msra.mxu0 0
  %5156 = vmatprep.subr.bf16.mxu0 0
  %5157 = vmatpush1.bf16.xpose.msra.mxu0 0
  %5158 = vmatprep.subr.bf16.mxu0 0
  %5159 = vmatpush1.bf16.xpose.msra.mxu0 0
  %5160 = vmatprep.subr.bf16.mxu0 0
  %5161 = vmatpush1.bf16.xpose.msra.mxu0 0
  %5162 = vmatprep.subr.bf16.mxu0 0
  %5163 = vmatpush1.bf16.xpose.msra.mxu0 0
  %5164 = vmatprep.subr.bf16.mxu0 0
  %5165 = vmatpush1.bf16.xpose.msra.mxu0 0
  %5166 = vmatprep.subr.bf16.mxu0 0
  %5167 = vmatpush1.bf16.xpose.msra.mxu0 0
  %5168 = vmatprep.subr.bf16.mxu0 0
  %5169 = vmatpush1.bf16.xpose.msra.mxu0 0
  %5170 = vmatprep.subr.bf16.mxu0 0
  %5171 = vmatpush1.bf16.xpose.msra.mxu0 0
  %5172 = vmatprep.subr.bf16.mxu0 0
  %5173 = vmatpush1.bf16.xpose.msra.mxu0 0
  %5174 = vmatprep.subr.bf16.mxu0 0
  %5175 = vmatpush1.bf16.xpose.msra.mxu0 0
  %5176 = vmatprep.subr.bf16.mxu0 0
  %5177 = vmatpush1.bf16.xpose.msra.mxu0 0
  %5178 = vmatprep.subr.bf16.mxu0 0
  %5179 = vmatpush1.bf16.xpose.msra.mxu0 0
  %5180 = vmatprep.subr.bf16.mxu0 0
  %5181 = vmatpush1.bf16.xpose.msra.mxu0 0
  %5182 = vmatprep.subr.bf16.mxu0 0
  %5183 = vmatpush1.bf16.xpose.msra.mxu0 0
  %5184 = vmatprep.mubr.bf16.mxu0 0
  %5185 = vmatmul.mubr.bf16.gmra.mrb[0].mxu0 %v5147
  %v5186 = vpop.f32.mrb[0].mxu0
  %v5187 = vadd.f32 0.0, %v5186
  %v5188 = vpop.f32.mrb[0].mxu0
  %v5189 = vpop.f32.mrb[0].mxu0
  %v5190 = vpop.f32.mrb[0].mxu0
  %5191 = vdwg.mxu0
  %5193 = vrot.lane.b32.xlu0 %v4944, 96
  %v5194 = vpop.permute.xlu0 %5193
  %v5196 = vsel %vm401, %v4944, 0
  %v5199 = vsel %vm401, %v5194, 0
  %5201 = vmatprep.subr.bf16.mxu0 0
  %5202 = vmatpush1.bf16.xpose.msra.mxu0 %v5199
  %5203 = vmatprep.subr.bf16.mxu0 0
  %5204 = vmatpush1.bf16.xpose.msra.mxu0 0
  %5205 = vmatprep.subr.bf16.mxu0 0
  %5206 = vmatpush1.bf16.xpose.msra.mxu0 0
  %5207 = vmatprep.subr.bf16.mxu0 0
  %5208 = vmatpush1.bf16.xpose.msra.mxu0 0
  %5209 = vmatprep.subr.bf16.mxu0 0
  %5210 = vmatpush1.bf16.xpose.msra.mxu0 0
  %5211 = vmatprep.subr.bf16.mxu0 0
  %5212 = vmatpush1.bf16.xpose.msra.mxu0 0
  %5213 = vmatprep.subr.bf16.mxu0 0
  %5214 = vmatpush1.bf16.xpose.msra.mxu0 0
  %5215 = vmatprep.subr.bf16.mxu0 0
  %5216 = vmatpush1.bf16.xpose.msra.mxu0 0
  %5217 = vmatprep.subr.bf16.mxu0 0
  %5218 = vmatpush1.bf16.xpose.msra.mxu0 0
  %5219 = vmatprep.subr.bf16.mxu0 0
  %5220 = vmatpush1.bf16.xpose.msra.mxu0 0
  %5221 = vmatprep.subr.bf16.mxu0 0
  %5222 = vmatpush1.bf16.xpose.msra.mxu0 0
  %5223 = vmatprep.subr.bf16.mxu0 0
  %5224 = vmatpush1.bf16.xpose.msra.mxu0 0
  %5225 = vmatprep.subr.bf16.mxu0 0
  %5226 = vmatpush1.bf16.xpose.msra.mxu0 0
  %5227 = vmatprep.subr.bf16.mxu0 0
  %5228 = vmatpush1.bf16.xpose.msra.mxu0 0
  %5229 = vmatprep.subr.bf16.mxu0 0
  %5230 = vmatpush1.bf16.xpose.msra.mxu0 0
  %5231 = vmatprep.subr.bf16.mxu0 0
  %5232 = vmatpush1.bf16.xpose.msra.mxu0 0
  %5233 = vmatprep.mubr.bf16.mxu0 0
  %5234 = vmatmul.mubr.bf16.gmra.mrb[0].mxu0 %v5196
  %v5235 = vpop.f32.mrb[0].mxu0
  %v5236 = vadd.f32 0.0, %v5235
  %v5237 = vpop.f32.mrb[0].mxu0
  %v5238 = vpop.f32.mrb[0].mxu0
  %v5239 = vpop.f32.mrb[0].mxu0
  %5240 = vdwg.mxu0
  %5242 = vrot.lane.b32.xlu0 %v4945, 96
  %v5243 = vpop.permute.xlu0 %5242
  %v5245 = vsel %vm401, %v4945, 0
  %v5248 = vsel %vm401, %v5243, 0
  %5250 = vmatprep.subr.bf16.mxu0 0
  %5251 = vmatpush1.bf16.xpose.msra.mxu0 %v5248
  %5252 = vmatprep.subr.bf16.mxu0 0
  %5253 = vmatpush1.bf16.xpose.msra.mxu0 0
  %5254 = vmatprep.subr.bf16.mxu0 0
  %5255 = vmatpush1.bf16.xpose.msra.mxu0 0
  %5256 = vmatprep.subr.bf16.mxu0 0
  %5257 = vmatpush1.bf16.xpose.msra.mxu0 0
  %5258 = vmatprep.subr.bf16.mxu0 0
  %5259 = vmatpush1.bf16.xpose.msra.mxu0 0
  %5260 = vmatprep.subr.bf16.mxu0 0
  %5261 = vmatpush1.bf16.xpose.msra.mxu0 0
  %5262 = vmatprep.subr.bf16.mxu0 0
  %5263 = vmatpush1.bf16.xpose.msra.mxu0 0
  %5264 = vmatprep.subr.bf16.mxu0 0
  %5265 = vmatpush1.bf16.xpose.msra.mxu0 0
  %5266 = vmatprep.subr.bf16.mxu0 0
  %5267 = vmatpush1.bf16.xpose.msra.mxu0 0
  %5268 = vmatprep.subr.bf16.mxu0 0
  %5269 = vmatpush1.bf16.xpose.msra.mxu0 0
  %5270 = vmatprep.subr.bf16.mxu0 0
  %5271 = vmatpush1.bf16.xpose.msra.mxu0 0
  %5272 = vmatprep.subr.bf16.mxu0 0
  %5273 = vmatpush1.bf16.xpose.msra.mxu0 0
  %5274 = vmatprep.subr.bf16.mxu0 0
  %5275 = vmatpush1.bf16.xpose.msra.mxu0 0
  %5276 = vmatprep.subr.bf16.mxu0 0
  %5277 = vmatpush1.bf16.xpose.msra.mxu0 0
  %5278 = vmatprep.subr.bf16.mxu0 0
  %5279 = vmatpush1.bf16.xpose.msra.mxu0 0
  %5280 = vmatprep.subr.bf16.mxu0 0
  %5281 = vmatpush1.bf16.xpose.msra.mxu0 0
  %5282 = vmatprep.mubr.bf16.mxu0 0
  %5283 = vmatmul.mubr.bf16.gmra.mrb[0].mxu0 %v5245
  %v5284 = vpop.f32.mrb[0].mxu0
  %v5285 = vadd.f32 0.0, %v5284
  %v5286 = vpop.f32.mrb[0].mxu0
  %v5287 = vpop.f32.mrb[0].mxu0
  %v5288 = vpop.f32.mrb[0].mxu0
  %5289 = vdwg.mxu0
  %5291 = vrot.lane.b32.xlu0 %v4946, 96
  %v5292 = vpop.permute.xlu0 %5291
  %v5294 = vsel %vm401, %v4946, 0
  %v5297 = vsel %vm401, %v5292, 0
  %5299 = vmatprep.subr.bf16.mxu0 0
  %5300 = vmatpush1.bf16.xpose.msra.mxu0 %v5297
  %5301 = vmatprep.subr.bf16.mxu0 0
  %5302 = vmatpush1.bf16.xpose.msra.mxu0 0
  %5303 = vmatprep.subr.bf16.mxu0 0
  %5304 = vmatpush1.bf16.xpose.msra.mxu0 0
  %5305 = vmatprep.subr.bf16.mxu0 0
  %5306 = vmatpush1.bf16.xpose.msra.mxu0 0
  %5307 = vmatprep.subr.bf16.mxu0 0
  %5308 = vmatpush1.bf16.xpose.msra.mxu0 0
  %5309 = vmatprep.subr.bf16.mxu0 0
  %5310 = vmatpush1.bf16.xpose.msra.mxu0 0
  %5311 = vmatprep.subr.bf16.mxu0 0
  %5312 = vmatpush1.bf16.xpose.msra.mxu0 0
  %5313 = vmatprep.subr.bf16.mxu0 0
  %5314 = vmatpush1.bf16.xpose.msra.mxu0 0
  %5315 = vmatprep.subr.bf16.mxu0 0
  %5316 = vmatpush1.bf16.xpose.msra.mxu0 0
  %5317 = vmatprep.subr.bf16.mxu0 0
  %5318 = vmatpush1.bf16.xpose.msra.mxu0 0
  %5319 = vmatprep.subr.bf16.mxu0 0
  %5320 = vmatpush1.bf16.xpose.msra.mxu0 0
  %5321 = vmatprep.subr.bf16.mxu0 0
  %5322 = vmatpush1.bf16.xpose.msra.mxu0 0
  %5323 = vmatprep.subr.bf16.mxu0 0
  %5324 = vmatpush1.bf16.xpose.msra.mxu0 0
  %5325 = vmatprep.subr.bf16.mxu0 0
  %5326 = vmatpush1.bf16.xpose.msra.mxu0 0
  %5327 = vmatprep.subr.bf16.mxu0 0
  %5328 = vmatpush1.bf16.xpose.msra.mxu0 0
  %5329 = vmatprep.subr.bf16.mxu0 0
  %5330 = vmatpush1.bf16.xpose.msra.mxu0 0
  %5331 = vmatprep.mubr.bf16.mxu0 0
  %5332 = vmatmul.mubr.bf16.gmra.mrb[0].mxu0 %v5294
  %v5333 = vpop.f32.mrb[0].mxu0
  %v5334 = vadd.f32 0.0, %v5333
  %v5335 = vpop.f32.mrb[0].mxu0
  %v5336 = vpop.f32.mrb[0].mxu0
  %v5337 = vpop.f32.mrb[0].mxu0
  %5338 = vdwg.mxu0
  %v5339 = vmul.f32 %v4991, 0.35355338
  %v5340 = vmul.f32 %v5040, 0.35355338
  %v5341 = vmul.f32 %v5089, 0.35355338
  %v5342 = vmul.f32 %v5138, 0.35355338
  %v5343 = vmul.f32 %v5187, 0.35355338
  %v5344 = vmul.f32 %v5236, 0.35355338
  %v5345 = vmul.f32 %v5285, 0.35355338
  %v5346 = vmul.f32 %v5334, 0.35355338
  %v5347 = vadd.f32 %v5339, %v810
  %v5348 = vadd.f32 %v5340, %v814
  %v5349 = vadd.f32 %v5341, %v818
  %v5350 = vadd.f32 %v5342, %v822
  %v5351 = vadd.f32 %v5343, %v826
  %v5352 = vadd.f32 %v5344, %v830
  %v5353 = vadd.f32 %v5345, %v834
  %v5354 = vadd.f32 %v5346, %v838
  %v5355 = vsel %vm401, %v5347, -inf
  %5356 = vmax.xlane.f32.xlu0 %v5355
  %v5357 = vpop.xlane.xlu0 %5356
  %v5358 = vsel %vm401, %v5348, -inf
  %5359 = vmax.xlane.f32.xlu0 %v5358
  %v5360 = vpop.xlane.xlu0 %5359
  %v5361 = vsel %vm401, %v5349, -inf
  %5362 = vmax.xlane.f32.xlu0 %v5361
  %v5363 = vpop.xlane.xlu0 %5362
  %v5364 = vsel %vm401, %v5350, -inf
  %5365 = vmax.xlane.f32.xlu0 %v5364
  %v5366 = vpop.xlane.xlu0 %5365
  %v5367 = vsel %vm401, %v5351, -inf
  %5368 = vmax.xlane.f32.xlu0 %v5367
  %v5369 = vpop.xlane.xlu0 %5368
  %v5370 = vsel %vm401, %v5352, -inf
  %5371 = vmax.xlane.f32.xlu0 %v5370
  %v5372 = vpop.xlane.xlu0 %5371
  %v5373 = vsel %vm401, %v5353, -inf
  %5374 = vmax.xlane.f32.xlu0 %v5373
  %v5375 = vpop.xlane.xlu0 %5374
  %v5376 = vsel %vm401, %v5354, -inf
  %5377 = vmax.xlane.f32.xlu0 %v5376
  %v5378 = vpop.xlane.xlu0 %5377
  %v5379 = vsub.f32 %v5347, %v5357
  %v5380 = vsub.f32 %v5348, %v5360
  %v5381 = vsub.f32 %v5349, %v5363
  %v5382 = vsub.f32 %v5350, %v5366
  %v5383 = vsub.f32 %v5351, %v5369
  %v5384 = vsub.f32 %v5352, %v5372
  %v5385 = vsub.f32 %v5353, %v5375
  %v5386 = vsub.f32 %v5354, %v5378
  %v5387 = vmul.f32 %v5379, 1.442695
  %v5388 = vpow.pop %v5387
  %v5389 = vmul.f32 %v5380, 1.442695
  %v5390 = vpow.pop %v5389
  %v5391 = vmul.f32 %v5381, 1.442695
  %v5392 = vpow.pop %v5391
  %v5393 = vmul.f32 %v5382, 1.442695
  %v5394 = vpow.pop %v5393
  %v5395 = vmul.f32 %v5383, 1.442695
  %v5396 = vpow.pop %v5395
  %v5397 = vmul.f32 %v5384, 1.442695
  %v5398 = vpow.pop %v5397
  %v5399 = vmul.f32 %v5385, 1.442695
  %v5400 = vpow.pop %v5399
  %v5401 = vmul.f32 %v5386, 1.442695
  %v5402 = vpow.pop %v5401
  %v5403 = vsel %vm401, %v5388, 0.0
  %5404 = vadd.xlane.f32.xlu0 %v5403
  %v5405 = vpop.xlane.xlu0 %5404
  %v5406 = vsel %vm401, %v5390, 0.0
  %5407 = vadd.xlane.f32.xlu0 %v5406
  %v5408 = vpop.xlane.xlu0 %5407
  %v5409 = vsel %vm401, %v5392, 0.0
  %5410 = vadd.xlane.f32.xlu0 %v5409
  %v5411 = vpop.xlane.xlu0 %5410
  %v5412 = vsel %vm401, %v5394, 0.0
  %5413 = vadd.xlane.f32.xlu0 %v5412
  %v5414 = vpop.xlane.xlu0 %5413
  %v5415 = vsel %vm401, %v5396, 0.0
  %5416 = vadd.xlane.f32.xlu0 %v5415
  %v5417 = vpop.xlane.xlu0 %5416
  %v5418 = vsel %vm401, %v5398, 0.0
  %5419 = vadd.xlane.f32.xlu0 %v5418
  %v5420 = vpop.xlane.xlu0 %5419
  %v5421 = vsel %vm401, %v5400, 0.0
  %5422 = vadd.xlane.f32.xlu0 %v5421
  %v5423 = vpop.xlane.xlu0 %5422
  %v5424 = vsel %vm401, %v5402, 0.0
  %5425 = vadd.xlane.f32.xlu0 %v5424
  %v5426 = vpop.xlane.xlu0 %5425
  %v5427 = vrcp.pop %v5405
  %v5428 = vrcp.pop %v5408
  %v5429 = vrcp.pop %v5411
  %v5430 = vrcp.pop %v5414
  %v5431 = vrcp.pop %v5417
  %v5432 = vrcp.pop %v5420
  %v5433 = vrcp.pop %v5423
  %v5434 = vrcp.pop %v5426
  %v5435 = vmul.f32 %v5388, %v5427
  %v5436 = vmul.f32 %v5390, %v5428
  %v5437 = vmul.f32 %v5392, %v5429
  %v5438 = vmul.f32 %v5394, %v5430
  %v5439 = vmul.f32 %v5396, %v5431
  %v5440 = vmul.f32 %v5398, %v5432
  %v5441 = vmul.f32 %v5400, %v5433
  %v5442 = vmul.f32 %v5402, %v5434
  %v5443 = vpack.c.bf16 %v5435, %v5435
  %v5444 = vpack.c.bf16 %v5436, %v5436
  %v5445 = vpack.c.bf16 %v5437, %v5437
  %v5446 = vpack.c.bf16 %v5438, %v5438
  %v5447 = vpack.c.bf16 %v5439, %v5439
  %v5448 = vpack.c.bf16 %v5440, %v5440
  %v5449 = vpack.c.bf16 %v5441, %v5441
  %v5450 = vpack.c.bf16 %v5442, %v5442
  %5451 = vrot.lane.b32.xlu0 %v4939, 64
  %v5452 = vpop.permute.xlu0 %5451
  %v5454 = vsel %vm401, %v5443, 0
  %v5457 = vsel %vm956, %v5452, 0
  %5459 = vmatprep.subr.bf16.mxu0 0
  %5460 = vmatpush1.bf16.msra.mxu0 %v5457
  %5461 = vmatprep.subr.bf16.mxu0 0
  %5462 = vmatpush1.bf16.msra.mxu0 0
  %5463 = vmatprep.subr.bf16.mxu0 0
  %5464 = vmatpush1.bf16.msra.mxu0 0
  %5465 = vmatprep.subr.bf16.mxu0 0
  %5466 = vmatpush1.bf16.msra.mxu0 0
  %5467 = vmatprep.subr.bf16.mxu0 0
  %5468 = vmatpush1.bf16.msra.mxu0 0
  %5469 = vmatprep.subr.bf16.mxu0 0
  %5470 = vmatpush1.bf16.msra.mxu0 0
  %5471 = vmatprep.subr.bf16.mxu0 0
  %5472 = vmatpush1.bf16.msra.mxu0 0
  %5473 = vmatprep.subr.bf16.mxu0 0
  %5474 = vmatpush1.bf16.msra.mxu0 0
  %5475 = vmatprep.subr.bf16.mxu0 0
  %5476 = vmatpush1.bf16.msra.mxu0 0
  %5477 = vmatprep.subr.bf16.mxu0 0
  %5478 = vmatpush1.bf16.msra.mxu0 0
  %5479 = vmatprep.subr.bf16.mxu0 0
  %5480 = vmatpush1.bf16.msra.mxu0 0
  %5481 = vmatprep.subr.bf16.mxu0 0
  %5482 = vmatpush1.bf16.msra.mxu0 0
  %5483 = vmatprep.subr.bf16.mxu0 0
  %5484 = vmatpush1.bf16.msra.mxu0 0
  %5485 = vmatprep.subr.bf16.mxu0 0
  %5486 = vmatpush1.bf16.msra.mxu0 0
  %5487 = vmatprep.subr.bf16.mxu0 0
  %5488 = vmatpush1.bf16.msra.mxu0 0
  %5489 = vmatprep.subr.bf16.mxu0 0
  %5490 = vmatpush1.bf16.msra.mxu0 0
  %5491 = vmatprep.mubr.bf16.mxu0 0
  %5492 = vmatmul.mubr.bf16.gmra.mrb[0].mxu0 %v5454
  %v5493 = vpop.f32.mrb[0].mxu0
  %v5494 = vadd.f32 0.0, %v5493
  %v5495 = vpop.f32.mrb[0].mxu0
  %v5496 = vpop.f32.mrb[0].mxu0
  %v5497 = vpop.f32.mrb[0].mxu0
  %5498 = vdwg.mxu0
  %5499 = vrot.lane.b32.xlu0 %v4940, 64
  %v5500 = vpop.permute.xlu0 %5499
  %v5502 = vsel %vm401, %v5444, 0
  %v5505 = vsel %vm956, %v5500, 0
  %5507 = vmatprep.subr.bf16.mxu0 0
  %5508 = vmatpush1.bf16.msra.mxu0 %v5505
  %5509 = vmatprep.subr.bf16.mxu0 0
  %5510 = vmatpush1.bf16.msra.mxu0 0
  %5511 = vmatprep.subr.bf16.mxu0 0
  %5512 = vmatpush1.bf16.msra.mxu0 0
  %5513 = vmatprep.subr.bf16.mxu0 0
  %5514 = vmatpush1.bf16.msra.mxu0 0
  %5515 = vmatprep.subr.bf16.mxu0 0
  %5516 = vmatpush1.bf16.msra.mxu0 0
  %5517 = vmatprep.subr.bf16.mxu0 0
  %5518 = vmatpush1.bf16.msra.mxu0 0
  %5519 = vmatprep.subr.bf16.mxu0 0
  %5520 = vmatpush1.bf16.msra.mxu0 0
  %5521 = vmatprep.subr.bf16.mxu0 0
  %5522 = vmatpush1.bf16.msra.mxu0 0
  %5523 = vmatprep.subr.bf16.mxu0 0
  %5524 = vmatpush1.bf16.msra.mxu0 0
  %5525 = vmatprep.subr.bf16.mxu0 0
  %5526 = vmatpush1.bf16.msra.mxu0 0
  %5527 = vmatprep.subr.bf16.mxu0 0
  %5528 = vmatpush1.bf16.msra.mxu0 0
  %5529 = vmatprep.subr.bf16.mxu0 0
  %5530 = vmatpush1.bf16.msra.mxu0 0
  %5531 = vmatprep.subr.bf16.mxu0 0
  %5532 = vmatpush1.bf16.msra.mxu0 0
  %5533 = vmatprep.subr.bf16.mxu0 0
  %5534 = vmatpush1.bf16.msra.mxu0 0
  %5535 = vmatprep.subr.bf16.mxu0 0
  %5536 = vmatpush1.bf16.msra.mxu0 0
  %5537 = vmatprep.subr.bf16.mxu0 0
  %5538 = vmatpush1.bf16.msra.mxu0 0
  %5539 = vmatprep.mubr.bf16.mxu0 0
  %5540 = vmatmul.mubr.bf16.gmra.mrb[0].mxu0 %v5502
  %v5541 = vpop.f32.mrb[0].mxu0
  %v5542 = vadd.f32 0.0, %v5541
  %v5543 = vpop.f32.mrb[0].mxu0
  %v5544 = vpop.f32.mrb[0].mxu0
  %v5545 = vpop.f32.mrb[0].mxu0
  %5546 = vdwg.mxu0
  %5547 = vrot.lane.b32.xlu0 %v4941, 64
  %v5548 = vpop.permute.xlu0 %5547
  %v5550 = vsel %vm401, %v5445, 0
  %v5553 = vsel %vm956, %v5548, 0
  %5555 = vmatprep.subr.bf16.mxu0 0
  %5556 = vmatpush1.bf16.msra.mxu0 %v5553
  %5557 = vmatprep.subr.bf16.mxu0 0
  %5558 = vmatpush1.bf16.msra.mxu0 0
  %5559 = vmatprep.subr.bf16.mxu0 0
  %5560 = vmatpush1.bf16.msra.mxu0 0
  %5561 = vmatprep.subr.bf16.mxu0 0
  %5562 = vmatpush1.bf16.msra.mxu0 0
  %5563 = vmatprep.subr.bf16.mxu0 0
  %5564 = vmatpush1.bf16.msra.mxu0 0
  %5565 = vmatprep.subr.bf16.mxu0 0
  %5566 = vmatpush1.bf16.msra.mxu0 0
  %5567 = vmatprep.subr.bf16.mxu0 0
  %5568 = vmatpush1.bf16.msra.mxu0 0
  %5569 = vmatprep.subr.bf16.mxu0 0
  %5570 = vmatpush1.bf16.msra.mxu0 0
  %5571 = vmatprep.subr.bf16.mxu0 0
  %5572 = vmatpush1.bf16.msra.mxu0 0
  %5573 = vmatprep.subr.bf16.mxu0 0
  %5574 = vmatpush1.bf16.msra.mxu0 0
  %5575 = vmatprep.subr.bf16.mxu0 0
  %5576 = vmatpush1.bf16.msra.mxu0 0
  %5577 = vmatprep.subr.bf16.mxu0 0
  %5578 = vmatpush1.bf16.msra.mxu0 0
  %5579 = vmatprep.subr.bf16.mxu0 0
  %5580 = vmatpush1.bf16.msra.mxu0 0
  %5581 = vmatprep.subr.bf16.mxu0 0
  %5582 = vmatpush1.bf16.msra.mxu0 0
  %5583 = vmatprep.subr.bf16.mxu0 0
  %5584 = vmatpush1.bf16.msra.mxu0 0
  %5585 = vmatprep.subr.bf16.mxu0 0
  %5586 = vmatpush1.bf16.msra.mxu0 0
  %5587 = vmatprep.mubr.bf16.mxu0 0
  %5588 = vmatmul.mubr.bf16.gmra.mrb[0].mxu0 %v5550
  %v5589 = vpop.f32.mrb[0].mxu0
  %v5590 = vadd.f32 0.0, %v5589
  %v5591 = vpop.f32.mrb[0].mxu0
  %v5592 = vpop.f32.mrb[0].mxu0
  %v5593 = vpop.f32.mrb[0].mxu0
  %5594 = vdwg.mxu0
  %5595 = vrot.lane.b32.xlu0 %v4942, 64
  %v5596 = vpop.permute.xlu0 %5595
  %v5598 = vsel %vm401, %v5446, 0
  %v5601 = vsel %vm956, %v5596, 0
  %5603 = vmatprep.subr.bf16.mxu0 0
  %5604 = vmatpush1.bf16.msra.mxu0 %v5601
  %5605 = vmatprep.subr.bf16.mxu0 0
  %5606 = vmatpush1.bf16.msra.mxu0 0
  %5607 = vmatprep.subr.bf16.mxu0 0
  %5608 = vmatpush1.bf16.msra.mxu0 0
  %5609 = vmatprep.subr.bf16.mxu0 0
  %5610 = vmatpush1.bf16.msra.mxu0 0
  %5611 = vmatprep.subr.bf16.mxu0 0
  %5612 = vmatpush1.bf16.msra.mxu0 0
  %5613 = vmatprep.subr.bf16.mxu0 0
  %5614 = vmatpush1.bf16.msra.mxu0 0
  %5615 = vmatprep.subr.bf16.mxu0 0
  %5616 = vmatpush1.bf16.msra.mxu0 0
  %5617 = vmatprep.subr.bf16.mxu0 0
  %5618 = vmatpush1.bf16.msra.mxu0 0
  %5619 = vmatprep.subr.bf16.mxu0 0
  %5620 = vmatpush1.bf16.msra.mxu0 0
  %5621 = vmatprep.subr.bf16.mxu0 0
  %5622 = vmatpush1.bf16.msra.mxu0 0
  %5623 = vmatprep.subr.bf16.mxu0 0
  %5624 = vmatpush1.bf16.msra.mxu0 0
  %5625 = vmatprep.subr.bf16.mxu0 0
  %5626 = vmatpush1.bf16.msra.mxu0 0
  %5627 = vmatprep.subr.bf16.mxu0 0
  %5628 = vmatpush1.bf16.msra.mxu0 0
  %5629 = vmatprep.subr.bf16.mxu0 0
  %5630 = vmatpush1.bf16.msra.mxu0 0
  %5631 = vmatprep.subr.bf16.mxu0 0
  %5632 = vmatpush1.bf16.msra.mxu0 0
  %5633 = vmatprep.subr.bf16.mxu0 0
  %5634 = vmatpush1.bf16.msra.mxu0 0
  %5635 = vmatprep.mubr.bf16.mxu0 0
  %5636 = vmatmul.mubr.bf16.gmra.mrb[0].mxu0 %v5598
  %v5637 = vpop.f32.mrb[0].mxu0
  %v5638 = vadd.f32 0.0, %v5637
  %v5639 = vpop.f32.mrb[0].mxu0
  %v5640 = vpop.f32.mrb[0].mxu0
  %v5641 = vpop.f32.mrb[0].mxu0
  %5642 = vdwg.mxu0
  %5643 = vrot.lane.b32.xlu0 %v4943, 64
  %v5644 = vpop.permute.xlu0 %5643
  %v5646 = vsel %vm401, %v5447, 0
  %v5649 = vsel %vm956, %v5644, 0
  %5651 = vmatprep.subr.bf16.mxu0 0
  %5652 = vmatpush1.bf16.msra.mxu0 %v5649
  %5653 = vmatprep.subr.bf16.mxu0 0
  %5654 = vmatpush1.bf16.msra.mxu0 0
  %5655 = vmatprep.subr.bf16.mxu0 0
  %5656 = vmatpush1.bf16.msra.mxu0 0
  %5657 = vmatprep.subr.bf16.mxu0 0
  %5658 = vmatpush1.bf16.msra.mxu0 0
  %5659 = vmatprep.subr.bf16.mxu0 0
  %5660 = vmatpush1.bf16.msra.mxu0 0
  %5661 = vmatprep.subr.bf16.mxu0 0
  %5662 = vmatpush1.bf16.msra.mxu0 0
  %5663 = vmatprep.subr.bf16.mxu0 0
  %5664 = vmatpush1.bf16.msra.mxu0 0
  %5665 = vmatprep.subr.bf16.mxu0 0
  %5666 = vmatpush1.bf16.msra.mxu0 0
  %5667 = vmatprep.subr.bf16.mxu0 0
  %5668 = vmatpush1.bf16.msra.mxu0 0
  %5669 = vmatprep.subr.bf16.mxu0 0
  %5670 = vmatpush1.bf16.msra.mxu0 0
  %5671 = vmatprep.subr.bf16.mxu0 0
  %5672 = vmatpush1.bf16.msra.mxu0 0
  %5673 = vmatprep.subr.bf16.mxu0 0
  %5674 = vmatpush1.bf16.msra.mxu0 0
  %5675 = vmatprep.subr.bf16.mxu0 0
  %5676 = vmatpush1.bf16.msra.mxu0 0
  %5677 = vmatprep.subr.bf16.mxu0 0
  %5678 = vmatpush1.bf16.msra.mxu0 0
  %5679 = vmatprep.subr.bf16.mxu0 0
  %5680 = vmatpush1.bf16.msra.mxu0 0
  %5681 = vmatprep.subr.bf16.mxu0 0
  %5682 = vmatpush1.bf16.msra.mxu0 0
  %5683 = vmatprep.mubr.bf16.mxu0 0
  %5684 = vmatmul.mubr.bf16.gmra.mrb[0].mxu0 %v5646
  %v5685 = vpop.f32.mrb[0].mxu0
  %v5686 = vadd.f32 0.0, %v5685
  %v5687 = vpop.f32.mrb[0].mxu0
  %v5688 = vpop.f32.mrb[0].mxu0
  %v5689 = vpop.f32.mrb[0].mxu0
  %5690 = vdwg.mxu0
  %5691 = vrot.lane.b32.xlu0 %v4944, 64
  %v5692 = vpop.permute.xlu0 %5691
  %v5694 = vsel %vm401, %v5448, 0
  %v5697 = vsel %vm956, %v5692, 0
  %5699 = vmatprep.subr.bf16.mxu0 0
  %5700 = vmatpush1.bf16.msra.mxu0 %v5697
  %5701 = vmatprep.subr.bf16.mxu0 0
  %5702 = vmatpush1.bf16.msra.mxu0 0
  %5703 = vmatprep.subr.bf16.mxu0 0
  %5704 = vmatpush1.bf16.msra.mxu0 0
  %5705 = vmatprep.subr.bf16.mxu0 0
  %5706 = vmatpush1.bf16.msra.mxu0 0
  %5707 = vmatprep.subr.bf16.mxu0 0
  %5708 = vmatpush1.bf16.msra.mxu0 0
  %5709 = vmatprep.subr.bf16.mxu0 0
  %5710 = vmatpush1.bf16.msra.mxu0 0
  %5711 = vmatprep.subr.bf16.mxu0 0
  %5712 = vmatpush1.bf16.msra.mxu0 0
  %5713 = vmatprep.subr.bf16.mxu0 0
  %5714 = vmatpush1.bf16.msra.mxu0 0
  %5715 = vmatprep.subr.bf16.mxu0 0
  %5716 = vmatpush1.bf16.msra.mxu0 0
  %5717 = vmatprep.subr.bf16.mxu0 0
  %5718 = vmatpush1.bf16.msra.mxu0 0
  %5719 = vmatprep.subr.bf16.mxu0 0
  %5720 = vmatpush1.bf16.msra.mxu0 0
  %5721 = vmatprep.subr.bf16.mxu0 0
  %5722 = vmatpush1.bf16.msra.mxu0 0
  %5723 = vmatprep.subr.bf16.mxu0 0
  %5724 = vmatpush1.bf16.msra.mxu0 0
  %5725 = vmatprep.subr.bf16.mxu0 0
  %5726 = vmatpush1.bf16.msra.mxu0 0
  %5727 = vmatprep.subr.bf16.mxu0 0
  %5728 = vmatpush1.bf16.msra.mxu0 0
  %5729 = vmatprep.subr.bf16.mxu0 0
  %5730 = vmatpush1.bf16.msra.mxu0 0
  %5731 = vmatprep.mubr.bf16.mxu0 0
  %5732 = vmatmul.mubr.bf16.gmra.mrb[0].mxu0 %v5694
  %v5733 = vpop.f32.mrb[0].mxu0
  %v5734 = vadd.f32 0.0, %v5733
  %v5735 = vpop.f32.mrb[0].mxu0
  %v5736 = vpop.f32.mrb[0].mxu0
  %v5737 = vpop.f32.mrb[0].mxu0
  %5738 = vdwg.mxu0
  %5739 = vrot.lane.b32.xlu0 %v4945, 64
  %v5740 = vpop.permute.xlu0 %5739
  %v5742 = vsel %vm401, %v5449, 0
  %v5745 = vsel %vm956, %v5740, 0
  %5747 = vmatprep.subr.bf16.mxu0 0
  %5748 = vmatpush1.bf16.msra.mxu0 %v5745
  %5749 = vmatprep.subr.bf16.mxu0 0
  %5750 = vmatpush1.bf16.msra.mxu0 0
  %5751 = vmatprep.subr.bf16.mxu0 0
  %5752 = vmatpush1.bf16.msra.mxu0 0
  %5753 = vmatprep.subr.bf16.mxu0 0
  %5754 = vmatpush1.bf16.msra.mxu0 0
  %5755 = vmatprep.subr.bf16.mxu0 0
  %5756 = vmatpush1.bf16.msra.mxu0 0
  %5757 = vmatprep.subr.bf16.mxu0 0
  %5758 = vmatpush1.bf16.msra.mxu0 0
  %5759 = vmatprep.subr.bf16.mxu0 0
  %5760 = vmatpush1.bf16.msra.mxu0 0
  %5761 = vmatprep.subr.bf16.mxu0 0
  %5762 = vmatpush1.bf16.msra.mxu0 0
  %5763 = vmatprep.subr.bf16.mxu0 0
  %5764 = vmatpush1.bf16.msra.mxu0 0
  %5765 = vmatprep.subr.bf16.mxu0 0
  %5766 = vmatpush1.bf16.msra.mxu0 0
  %5767 = vmatprep.subr.bf16.mxu0 0
  %5768 = vmatpush1.bf16.msra.mxu0 0
  %5769 = vmatprep.subr.bf16.mxu0 0
  %5770 = vmatpush1.bf16.msra.mxu0 0
  %5771 = vmatprep.subr.bf16.mxu0 0
  %5772 = vmatpush1.bf16.msra.mxu0 0
  %5773 = vmatprep.subr.bf16.mxu0 0
  %5774 = vmatpush1.bf16.msra.mxu0 0
  %5775 = vmatprep.subr.bf16.mxu0 0
  %5776 = vmatpush1.bf16.msra.mxu0 0
  %5777 = vmatprep.subr.bf16.mxu0 0
  %5778 = vmatpush1.bf16.msra.mxu0 0
  %5779 = vmatprep.mubr.bf16.mxu0 0
  %5780 = vmatmul.mubr.bf16.gmra.mrb[0].mxu0 %v5742
  %v5781 = vpop.f32.mrb[0].mxu0
  %v5782 = vadd.f32 0.0, %v5781
  %v5783 = vpop.f32.mrb[0].mxu0
  %v5784 = vpop.f32.mrb[0].mxu0
  %v5785 = vpop.f32.mrb[0].mxu0
  %5786 = vdwg.mxu0
  %5787 = vrot.lane.b32.xlu0 %v4946, 64
  %v5788 = vpop.permute.xlu0 %5787
  %v5790 = vsel %vm401, %v5450, 0
  %v5793 = vsel %vm956, %v5788, 0
  %5795 = vmatprep.subr.bf16.mxu0 0
  %5796 = vmatpush1.bf16.msra.mxu0 %v5793
  %5797 = vmatprep.subr.bf16.mxu0 0
  %5798 = vmatpush1.bf16.msra.mxu0 0
  %5799 = vmatprep.subr.bf16.mxu0 0
  %5800 = vmatpush1.bf16.msra.mxu0 0
  %5801 = vmatprep.subr.bf16.mxu0 0
  %5802 = vmatpush1.bf16.msra.mxu0 0
  %5803 = vmatprep.subr.bf16.mxu0 0
  %5804 = vmatpush1.bf16.msra.mxu0 0
  %5805 = vmatprep.subr.bf16.mxu0 0
  %5806 = vmatpush1.bf16.msra.mxu0 0
  %5807 = vmatprep.subr.bf16.mxu0 0
  %5808 = vmatpush1.bf16.msra.mxu0 0
  %5809 = vmatprep.subr.bf16.mxu0 0
  %5810 = vmatpush1.bf16.msra.mxu0 0
  %5811 = vmatprep.subr.bf16.mxu0 0
  %5812 = vmatpush1.bf16.msra.mxu0 0
  %5813 = vmatprep.subr.bf16.mxu0 0
  %5814 = vmatpush1.bf16.msra.mxu0 0
  %5815 = vmatprep.subr.bf16.mxu0 0
  %5816 = vmatpush1.bf16.msra.mxu0 0
  %5817 = vmatprep.subr.bf16.mxu0 0
  %5818 = vmatpush1.bf16.msra.mxu0 0
  %5819 = vmatprep.subr.bf16.mxu0 0
  %5820 = vmatpush1.bf16.msra.mxu0 0
  %5821 = vmatprep.subr.bf16.mxu0 0
  %5822 = vmatpush1.bf16.msra.mxu0 0
  %5823 = vmatprep.subr.bf16.mxu0 0
  %5824 = vmatpush1.bf16.msra.mxu0 0
  %5825 = vmatprep.subr.bf16.mxu0 0
  %5826 = vmatpush1.bf16.msra.mxu0 0
  %5827 = vmatprep.mubr.bf16.mxu0 0
  %5828 = vmatmul.mubr.bf16.gmra.mrb[0].mxu0 %v5790
  %v5829 = vpop.f32.mrb[0].mxu0
  %v5830 = vadd.f32 0.0, %v5829
  %v5831 = vpop.f32.mrb[0].mxu0
  %v5832 = vpop.f32.mrb[0].mxu0
  %v5833 = vpop.f32.mrb[0].mxu0
  %5834 = vdwg.mxu0
  %5835 = vrot.lane.b32.xlu0 %v4939, 120
  %v5836 = vpop.permute.xlu0 %5835
  %5837 = vrot.lane.b32.xlu0 %v4939, 88
  %v5838 = vpop.permute.xlu0 %5837
  %v5840 = vsel %vm401, %v5836, 0
  %v5843 = vsel %vm401, %v5838, 0
  %5845 = vmatprep.subr.bf16.mxu0 0
  %5846 = vmatpush1.bf16.xpose.msra.mxu0 %v5843
  %5847 = vmatprep.subr.bf16.mxu0 0
  %5848 = vmatpush1.bf16.xpose.msra.mxu0 0
  %5849 = vmatprep.subr.bf16.mxu0 0
  %5850 = vmatpush1.bf16.xpose.msra.mxu0 0
  %5851 = vmatprep.subr.bf16.mxu0 0
  %5852 = vmatpush1.bf16.xpose.msra.mxu0 0
  %5853 = vmatprep.subr.bf16.mxu0 0
  %5854 = vmatpush1.bf16.xpose.msra.mxu0 0
  %5855 = vmatprep.subr.bf16.mxu0 0
  %5856 = vmatpush1.bf16.xpose.msra.mxu0 0
  %5857 = vmatprep.subr.bf16.mxu0 0
  %5858 = vmatpush1.bf16.xpose.msra.mxu0 0
  %5859 = vmatprep.subr.bf16.mxu0 0
  %5860 = vmatpush1.bf16.xpose.msra.mxu0 0
  %5861 = vmatprep.subr.bf16.mxu0 0
  %5862 = vmatpush1.bf16.xpose.msra.mxu0 0
  %5863 = vmatprep.subr.bf16.mxu0 0
  %5864 = vmatpush1.bf16.xpose.msra.mxu0 0
  %5865 = vmatprep.subr.bf16.mxu0 0
  %5866 = vmatpush1.bf16.xpose.msra.mxu0 0
  %5867 = vmatprep.subr.bf16.mxu0 0
  %5868 = vmatpush1.bf16.xpose.msra.mxu0 0
  %5869 = vmatprep.subr.bf16.mxu0 0
  %5870 = vmatpush1.bf16.xpose.msra.mxu0 0
  %5871 = vmatprep.subr.bf16.mxu0 0
  %5872 = vmatpush1.bf16.xpose.msra.mxu0 0
  %5873 = vmatprep.subr.bf16.mxu0 0
  %5874 = vmatpush1.bf16.xpose.msra.mxu0 0
  %5875 = vmatprep.subr.bf16.mxu0 0
  %5876 = vmatpush1.bf16.xpose.msra.mxu0 0
  %5877 = vmatprep.mubr.bf16.mxu0 0
  %5878 = vmatmul.mubr.bf16.gmra.mrb[0].mxu0 %v5840
  %v5879 = vpop.f32.mrb[0].mxu0
  %v5880 = vadd.f32 0.0, %v5879
  %v5881 = vpop.f32.mrb[0].mxu0
  %v5882 = vpop.f32.mrb[0].mxu0
  %v5883 = vpop.f32.mrb[0].mxu0
  %5884 = vdwg.mxu0
  %5885 = vrot.lane.b32.xlu0 %v4940, 120
  %v5886 = vpop.permute.xlu0 %5885
  %5887 = vrot.lane.b32.xlu0 %v4940, 88
  %v5888 = vpop.permute.xlu0 %5887
  %v5890 = vsel %vm401, %v5886, 0
  %v5893 = vsel %vm401, %v5888, 0
  %5895 = vmatprep.subr.bf16.mxu0 0
  %5896 = vmatpush1.bf16.xpose.msra.mxu0 %v5893
  %5897 = vmatprep.subr.bf16.mxu0 0
  %5898 = vmatpush1.bf16.xpose.msra.mxu0 0
  %5899 = vmatprep.subr.bf16.mxu0 0
  %5900 = vmatpush1.bf16.xpose.msra.mxu0 0
  %5901 = vmatprep.subr.bf16.mxu0 0
  %5902 = vmatpush1.bf16.xpose.msra.mxu0 0
  %5903 = vmatprep.subr.bf16.mxu0 0
  %5904 = vmatpush1.bf16.xpose.msra.mxu0 0
  %5905 = vmatprep.subr.bf16.mxu0 0
  %5906 = vmatpush1.bf16.xpose.msra.mxu0 0
  %5907 = vmatprep.subr.bf16.mxu0 0
  %5908 = vmatpush1.bf16.xpose.msra.mxu0 0
  %5909 = vmatprep.subr.bf16.mxu0 0
  %5910 = vmatpush1.bf16.xpose.msra.mxu0 0
  %5911 = vmatprep.subr.bf16.mxu0 0
  %5912 = vmatpush1.bf16.xpose.msra.mxu0 0
  %5913 = vmatprep.subr.bf16.mxu0 0
  %5914 = vmatpush1.bf16.xpose.msra.mxu0 0
  %5915 = vmatprep.subr.bf16.mxu0 0
  %5916 = vmatpush1.bf16.xpose.msra.mxu0 0
  %5917 = vmatprep.subr.bf16.mxu0 0
  %5918 = vmatpush1.bf16.xpose.msra.mxu0 0
  %5919 = vmatprep.subr.bf16.mxu0 0
  %5920 = vmatpush1.bf16.xpose.msra.mxu0 0
  %5921 = vmatprep.subr.bf16.mxu0 0
  %5922 = vmatpush1.bf16.xpose.msra.mxu0 0
  %5923 = vmatprep.subr.bf16.mxu0 0
  %5924 = vmatpush1.bf16.xpose.msra.mxu0 0
  %5925 = vmatprep.subr.bf16.mxu0 0
  %5926 = vmatpush1.bf16.xpose.msra.mxu0 0
  %5927 = vmatprep.mubr.bf16.mxu0 0
  %5928 = vmatmul.mubr.bf16.gmra.mrb[0].mxu0 %v5890
  %v5929 = vpop.f32.mrb[0].mxu0
  %v5930 = vadd.f32 0.0, %v5929
  %v5931 = vpop.f32.mrb[0].mxu0
  %v5932 = vpop.f32.mrb[0].mxu0
  %v5933 = vpop.f32.mrb[0].mxu0
  %5934 = vdwg.mxu0
  %5935 = vrot.lane.b32.xlu0 %v4941, 120
  %v5936 = vpop.permute.xlu0 %5935
  %5937 = vrot.lane.b32.xlu0 %v4941, 88
  %v5938 = vpop.permute.xlu0 %5937
  %v5940 = vsel %vm401, %v5936, 0
  %v5943 = vsel %vm401, %v5938, 0
  %5945 = vmatprep.subr.bf16.mxu0 0
  %5946 = vmatpush1.bf16.xpose.msra.mxu0 %v5943
  %5947 = vmatprep.subr.bf16.mxu0 0
  %5948 = vmatpush1.bf16.xpose.msra.mxu0 0
  %5949 = vmatprep.subr.bf16.mxu0 0
  %5950 = vmatpush1.bf16.xpose.msra.mxu0 0
  %5951 = vmatprep.subr.bf16.mxu0 0
  %5952 = vmatpush1.bf16.xpose.msra.mxu0 0
  %5953 = vmatprep.subr.bf16.mxu0 0
  %5954 = vmatpush1.bf16.xpose.msra.mxu0 0
  %5955 = vmatprep.subr.bf16.mxu0 0
  %5956 = vmatpush1.bf16.xpose.msra.mxu0 0
  %5957 = vmatprep.subr.bf16.mxu0 0
  %5958 = vmatpush1.bf16.xpose.msra.mxu0 0
  %5959 = vmatprep.subr.bf16.mxu0 0
  %5960 = vmatpush1.bf16.xpose.msra.mxu0 0
  %5961 = vmatprep.subr.bf16.mxu0 0
  %5962 = vmatpush1.bf16.xpose.msra.mxu0 0
  %5963 = vmatprep.subr.bf16.mxu0 0
  %5964 = vmatpush1.bf16.xpose.msra.mxu0 0
  %5965 = vmatprep.subr.bf16.mxu0 0
  %5966 = vmatpush1.bf16.xpose.msra.mxu0 0
  %5967 = vmatprep.subr.bf16.mxu0 0
  %5968 = vmatpush1.bf16.xpose.msra.mxu0 0
  %5969 = vmatprep.subr.bf16.mxu0 0
  %5970 = vmatpush1.bf16.xpose.msra.mxu0 0
  %5971 = vmatprep.subr.bf16.mxu0 0
  %5972 = vmatpush1.bf16.xpose.msra.mxu0 0
  %5973 = vmatprep.subr.bf16.mxu0 0
  %5974 = vmatpush1.bf16.xpose.msra.mxu0 0
  %5975 = vmatprep.subr.bf16.mxu0 0
  %5976 = vmatpush1.bf16.xpose.msra.mxu0 0
  %5977 = vmatprep.mubr.bf16.mxu0 0
  %5978 = vmatmul.mubr.bf16.gmra.mrb[0].mxu0 %v5940
  %v5979 = vpop.f32.mrb[0].mxu0
  %v5980 = vadd.f32 0.0, %v5979
  %v5981 = vpop.f32.mrb[0].mxu0
  %v5982 = vpop.f32.mrb[0].mxu0
  %v5983 = vpop.f32.mrb[0].mxu0
  %5984 = vdwg.mxu0
  %5985 = vrot.lane.b32.xlu0 %v4942, 120
  %v5986 = vpop.permute.xlu0 %5985
  %5987 = vrot.lane.b32.xlu0 %v4942, 88
  %v5988 = vpop.permute.xlu0 %5987
  %v5990 = vsel %vm401, %v5986, 0
  %v5993 = vsel %vm401, %v5988, 0
  %5995 = vmatprep.subr.bf16.mxu0 0
  %5996 = vmatpush1.bf16.xpose.msra.mxu0 %v5993
  %5997 = vmatprep.subr.bf16.mxu0 0
  %5998 = vmatpush1.bf16.xpose.msra.mxu0 0
  %5999 = vmatprep.subr.bf16.mxu0 0
  %6000 = vmatpush1.bf16.xpose.msra.mxu0 0
  %6001 = vmatprep.subr.bf16.mxu0 0
  %6002 = vmatpush1.bf16.xpose.msra.mxu0 0
  %6003 = vmatprep.subr.bf16.mxu0 0
  %6004 = vmatpush1.bf16.xpose.msra.mxu0 0
  %6005 = vmatprep.subr.bf16.mxu0 0
  %6006 = vmatpush1.bf16.xpose.msra.mxu0 0
  %6007 = vmatprep.subr.bf16.mxu0 0
  %6008 = vmatpush1.bf16.xpose.msra.mxu0 0
  %6009 = vmatprep.subr.bf16.mxu0 0
  %6010 = vmatpush1.bf16.xpose.msra.mxu0 0
  %6011 = vmatprep.subr.bf16.mxu0 0
  %6012 = vmatpush1.bf16.xpose.msra.mxu0 0
  %6013 = vmatprep.subr.bf16.mxu0 0
  %6014 = vmatpush1.bf16.xpose.msra.mxu0 0
  %6015 = vmatprep.subr.bf16.mxu0 0
  %6016 = vmatpush1.bf16.xpose.msra.mxu0 0
  %6017 = vmatprep.subr.bf16.mxu0 0
  %6018 = vmatpush1.bf16.xpose.msra.mxu0 0
  %6019 = vmatprep.subr.bf16.mxu0 0
  %6020 = vmatpush1.bf16.xpose.msra.mxu0 0
  %6021 = vmatprep.subr.bf16.mxu0 0
  %6022 = vmatpush1.bf16.xpose.msra.mxu0 0
  %6023 = vmatprep.subr.bf16.mxu0 0
  %6024 = vmatpush1.bf16.xpose.msra.mxu0 0
  %6025 = vmatprep.subr.bf16.mxu0 0
  %6026 = vmatpush1.bf16.xpose.msra.mxu0 0
  %6027 = vmatprep.mubr.bf16.mxu0 0
  %6028 = vmatmul.mubr.bf16.gmra.mrb[0].mxu0 %v5990
  %v6029 = vpop.f32.mrb[0].mxu0
  %v6030 = vadd.f32 0.0, %v6029
  %v6031 = vpop.f32.mrb[0].mxu0
  %v6032 = vpop.f32.mrb[0].mxu0
  %v6033 = vpop.f32.mrb[0].mxu0
  %6034 = vdwg.mxu0
  %6035 = vrot.lane.b32.xlu0 %v4943, 120
  %v6036 = vpop.permute.xlu0 %6035
  %6037 = vrot.lane.b32.xlu0 %v4943, 88
  %v6038 = vpop.permute.xlu0 %6037
  %v6040 = vsel %vm401, %v6036, 0
  %v6043 = vsel %vm401, %v6038, 0
  %6045 = vmatprep.subr.bf16.mxu0 0
  %6046 = vmatpush1.bf16.xpose.msra.mxu0 %v6043
  %6047 = vmatprep.subr.bf16.mxu0 0
  %6048 = vmatpush1.bf16.xpose.msra.mxu0 0
  %6049 = vmatprep.subr.bf16.mxu0 0
  %6050 = vmatpush1.bf16.xpose.msra.mxu0 0
  %6051 = vmatprep.subr.bf16.mxu0 0
  %6052 = vmatpush1.bf16.xpose.msra.mxu0 0
  %6053 = vmatprep.subr.bf16.mxu0 0
  %6054 = vmatpush1.bf16.xpose.msra.mxu0 0
  %6055 = vmatprep.subr.bf16.mxu0 0
  %6056 = vmatpush1.bf16.xpose.msra.mxu0 0
  %6057 = vmatprep.subr.bf16.mxu0 0
  %6058 = vmatpush1.bf16.xpose.msra.mxu0 0
  %6059 = vmatprep.subr.bf16.mxu0 0
  %6060 = vmatpush1.bf16.xpose.msra.mxu0 0
  %6061 = vmatprep.subr.bf16.mxu0 0
  %6062 = vmatpush1.bf16.xpose.msra.mxu0 0
  %6063 = vmatprep.subr.bf16.mxu0 0
  %6064 = vmatpush1.bf16.xpose.msra.mxu0 0
  %6065 = vmatprep.subr.bf16.mxu0 0
  %6066 = vmatpush1.bf16.xpose.msra.mxu0 0
  %6067 = vmatprep.subr.bf16.mxu0 0
  %6068 = vmatpush1.bf16.xpose.msra.mxu0 0
  %6069 = vmatprep.subr.bf16.mxu0 0
  %6070 = vmatpush1.bf16.xpose.msra.mxu0 0
  %6071 = vmatprep.subr.bf16.mxu0 0
  %6072 = vmatpush1.bf16.xpose.msra.mxu0 0
  %6073 = vmatprep.subr.bf16.mxu0 0
  %6074 = vmatpush1.bf16.xpose.msra.mxu0 0
  %6075 = vmatprep.subr.bf16.mxu0 0
  %6076 = vmatpush1.bf16.xpose.msra.mxu0 0
  %6077 = vmatprep.mubr.bf16.mxu0 0
  %6078 = vmatmul.mubr.bf16.gmra.mrb[0].mxu0 %v6040
  %v6079 = vpop.f32.mrb[0].mxu0
  %v6080 = vadd.f32 0.0, %v6079
  %v6081 = vpop.f32.mrb[0].mxu0
  %v6082 = vpop.f32.mrb[0].mxu0
  %v6083 = vpop.f32.mrb[0].mxu0
  %6084 = vdwg.mxu0
  %6085 = vrot.lane.b32.xlu0 %v4944, 120
  %v6086 = vpop.permute.xlu0 %6085
  %6087 = vrot.lane.b32.xlu0 %v4944, 88
  %v6088 = vpop.permute.xlu0 %6087
  %v6090 = vsel %vm401, %v6086, 0
  %v6093 = vsel %vm401, %v6088, 0
  %6095 = vmatprep.subr.bf16.mxu0 0
  %6096 = vmatpush1.bf16.xpose.msra.mxu0 %v6093
  %6097 = vmatprep.subr.bf16.mxu0 0
  %6098 = vmatpush1.bf16.xpose.msra.mxu0 0
  %6099 = vmatprep.subr.bf16.mxu0 0
  %6100 = vmatpush1.bf16.xpose.msra.mxu0 0
  %6101 = vmatprep.subr.bf16.mxu0 0
  %6102 = vmatpush1.bf16.xpose.msra.mxu0 0
  %6103 = vmatprep.subr.bf16.mxu0 0
  %6104 = vmatpush1.bf16.xpose.msra.mxu0 0
  %6105 = vmatprep.subr.bf16.mxu0 0
  %6106 = vmatpush1.bf16.xpose.msra.mxu0 0
  %6107 = vmatprep.subr.bf16.mxu0 0
  %6108 = vmatpush1.bf16.xpose.msra.mxu0 0
  %6109 = vmatprep.subr.bf16.mxu0 0
  %6110 = vmatpush1.bf16.xpose.msra.mxu0 0
  %6111 = vmatprep.subr.bf16.mxu0 0
  %6112 = vmatpush1.bf16.xpose.msra.mxu0 0
  %6113 = vmatprep.subr.bf16.mxu0 0
  %6114 = vmatpush1.bf16.xpose.msra.mxu0 0
  %6115 = vmatprep.subr.bf16.mxu0 0
  %6116 = vmatpush1.bf16.xpose.msra.mxu0 0
  %6117 = vmatprep.subr.bf16.mxu0 0
  %6118 = vmatpush1.bf16.xpose.msra.mxu0 0
  %6119 = vmatprep.subr.bf16.mxu0 0
  %6120 = vmatpush1.bf16.xpose.msra.mxu0 0
  %6121 = vmatprep.subr.bf16.mxu0 0
  %6122 = vmatpush1.bf16.xpose.msra.mxu0 0
  %6123 = vmatprep.subr.bf16.mxu0 0
  %6124 = vmatpush1.bf16.xpose.msra.mxu0 0
  %6125 = vmatprep.subr.bf16.mxu0 0
  %6126 = vmatpush1.bf16.xpose.msra.mxu0 0
  %6127 = vmatprep.mubr.bf16.mxu0 0
  %6128 = vmatmul.mubr.bf16.gmra.mrb[0].mxu0 %v6090
  %v6129 = vpop.f32.mrb[0].mxu0
  %v6130 = vadd.f32 0.0, %v6129
  %v6131 = vpop.f32.mrb[0].mxu0
  %v6132 = vpop.f32.mrb[0].mxu0
  %v6133 = vpop.f32.mrb[0].mxu0
  %6134 = vdwg.mxu0
  %6135 = vrot.lane.b32.xlu0 %v4945, 120
  %v6136 = vpop.permute.xlu0 %6135
  %6137 = vrot.lane.b32.xlu0 %v4945, 88
  %v6138 = vpop.permute.xlu0 %6137
  %v6140 = vsel %vm401, %v6136, 0
  %v6143 = vsel %vm401, %v6138, 0
  %6145 = vmatprep.subr.bf16.mxu0 0
  %6146 = vmatpush1.bf16.xpose.msra.mxu0 %v6143
  %6147 = vmatprep.subr.bf16.mxu0 0
  %6148 = vmatpush1.bf16.xpose.msra.mxu0 0
  %6149 = vmatprep.subr.bf16.mxu0 0
  %6150 = vmatpush1.bf16.xpose.msra.mxu0 0
  %6151 = vmatprep.subr.bf16.mxu0 0
  %6152 = vmatpush1.bf16.xpose.msra.mxu0 0
  %6153 = vmatprep.subr.bf16.mxu0 0
  %6154 = vmatpush1.bf16.xpose.msra.mxu0 0
  %6155 = vmatprep.subr.bf16.mxu0 0
  %6156 = vmatpush1.bf16.xpose.msra.mxu0 0
  %6157 = vmatprep.subr.bf16.mxu0 0
  %6158 = vmatpush1.bf16.xpose.msra.mxu0 0
  %6159 = vmatprep.subr.bf16.mxu0 0
  %6160 = vmatpush1.bf16.xpose.msra.mxu0 0
  %6161 = vmatprep.subr.bf16.mxu0 0
  %6162 = vmatpush1.bf16.xpose.msra.mxu0 0
  %6163 = vmatprep.subr.bf16.mxu0 0
  %6164 = vmatpush1.bf16.xpose.msra.mxu0 0
  %6165 = vmatprep.subr.bf16.mxu0 0
  %6166 = vmatpush1.bf16.xpose.msra.mxu0 0
  %6167 = vmatprep.subr.bf16.mxu0 0
  %6168 = vmatpush1.bf16.xpose.msra.mxu0 0
  %6169 = vmatprep.subr.bf16.mxu0 0
  %6170 = vmatpush1.bf16.xpose.msra.mxu0 0
  %6171 = vmatprep.subr.bf16.mxu0 0
  %6172 = vmatpush1.bf16.xpose.msra.mxu0 0
  %6173 = vmatprep.subr.bf16.mxu0 0
  %6174 = vmatpush1.bf16.xpose.msra.mxu0 0
  %6175 = vmatprep.subr.bf16.mxu0 0
  %6176 = vmatpush1.bf16.xpose.msra.mxu0 0
  %6177 = vmatprep.mubr.bf16.mxu0 0
  %6178 = vmatmul.mubr.bf16.gmra.mrb[0].mxu0 %v6140
  %v6179 = vpop.f32.mrb[0].mxu0
  %v6180 = vadd.f32 0.0, %v6179
  %v6181 = vpop.f32.mrb[0].mxu0
  %v6182 = vpop.f32.mrb[0].mxu0
  %v6183 = vpop.f32.mrb[0].mxu0
  %6184 = vdwg.mxu0
  %6185 = vrot.lane.b32.xlu0 %v4946, 120
  %v6186 = vpop.permute.xlu0 %6185
  %6187 = vrot.lane.b32.xlu0 %v4946, 88
  %v6188 = vpop.permute.xlu0 %6187
  %v6190 = vsel %vm401, %v6186, 0
  %v6193 = vsel %vm401, %v6188, 0
  %6195 = vmatprep.subr.bf16.mxu0 0
  %6196 = vmatpush1.bf16.xpose.msra.mxu0 %v6193
  %6197 = vmatprep.subr.bf16.mxu0 0
  %6198 = vmatpush1.bf16.xpose.msra.mxu0 0
  %6199 = vmatprep.subr.bf16.mxu0 0
  %6200 = vmatpush1.bf16.xpose.msra.mxu0 0
  %6201 = vmatprep.subr.bf16.mxu0 0
  %6202 = vmatpush1.bf16.xpose.msra.mxu0 0
  %6203 = vmatprep.subr.bf16.mxu0 0
  %6204 = vmatpush1.bf16.xpose.msra.mxu0 0
  %6205 = vmatprep.subr.bf16.mxu0 0
  %6206 = vmatpush1.bf16.xpose.msra.mxu0 0
  %6207 = vmatprep.subr.bf16.mxu0 0
  %6208 = vmatpush1.bf16.xpose.msra.mxu0 0
  %6209 = vmatprep.subr.bf16.mxu0 0
  %6210 = vmatpush1.bf16.xpose.msra.mxu0 0
  %6211 = vmatprep.subr.bf16.mxu0 0
  %6212 = vmatpush1.bf16.xpose.msra.mxu0 0
  %6213 = vmatprep.subr.bf16.mxu0 0
  %6214 = vmatpush1.bf16.xpose.msra.mxu0 0
  %6215 = vmatprep.subr.bf16.mxu0 0
  %6216 = vmatpush1.bf16.xpose.msra.mxu0 0
  %6217 = vmatprep.subr.bf16.mxu0 0
  %6218 = vmatpush1.bf16.xpose.msra.mxu0 0
  %6219 = vmatprep.subr.bf16.mxu0 0
  %6220 = vmatpush1.bf16.xpose.msra.mxu0 0
  %6221 = vmatprep.subr.bf16.mxu0 0
  %6222 = vmatpush1.bf16.xpose.msra.mxu0 0
  %6223 = vmatprep.subr.bf16.mxu0 0
  %6224 = vmatpush1.bf16.xpose.msra.mxu0 0
  %6225 = vmatprep.subr.bf16.mxu0 0
  %6226 = vmatpush1.bf16.xpose.msra.mxu0 0
  %6227 = vmatprep.mubr.bf16.mxu0 0
  %6228 = vmatmul.mubr.bf16.gmra.mrb[0].mxu0 %v6190
  %v6229 = vpop.f32.mrb[0].mxu0
  %v6230 = vadd.f32 0.0, %v6229
  %v6231 = vpop.f32.mrb[0].mxu0
  %v6232 = vpop.f32.mrb[0].mxu0
  %v6233 = vpop.f32.mrb[0].mxu0
  %6234 = vdwg.mxu0
  %v6235 = vmul.f32 %v5880, 0.35355338
  %v6236 = vmul.f32 %v5930, 0.35355338
  %v6237 = vmul.f32 %v5980, 0.35355338
  %v6238 = vmul.f32 %v6030, 0.35355338
  %v6239 = vmul.f32 %v6080, 0.35355338
  %v6240 = vmul.f32 %v6130, 0.35355338
  %v6241 = vmul.f32 %v6180, 0.35355338
  %v6242 = vmul.f32 %v6230, 0.35355338
  %v6243 = vadd.f32 %v6235, %v810
  %v6244 = vadd.f32 %v6236, %v814
  %v6245 = vadd.f32 %v6237, %v818
  %v6246 = vadd.f32 %v6238, %v822
  %v6247 = vadd.f32 %v6239, %v826
  %v6248 = vadd.f32 %v6240, %v830
  %v6249 = vadd.f32 %v6241, %v834
  %v6250 = vadd.f32 %v6242, %v838
  %v6251 = vsel %vm401, %v6243, -inf
  %6252 = vmax.xlane.f32.xlu0 %v6251
  %v6253 = vpop.xlane.xlu0 %6252
  %v6254 = vsel %vm401, %v6244, -inf
  %6255 = vmax.xlane.f32.xlu0 %v6254
  %v6256 = vpop.xlane.xlu0 %6255
  %v6257 = vsel %vm401, %v6245, -inf
  %6258 = vmax.xlane.f32.xlu0 %v6257
  %v6259 = vpop.xlane.xlu0 %6258
  %v6260 = vsel %vm401, %v6246, -inf
  %6261 = vmax.xlane.f32.xlu0 %v6260
  %v6262 = vpop.xlane.xlu0 %6261
  %v6263 = vsel %vm401, %v6247, -inf
  %6264 = vmax.xlane.f32.xlu0 %v6263
  %v6265 = vpop.xlane.xlu0 %6264
  %v6266 = vsel %vm401, %v6248, -inf
  %6267 = vmax.xlane.f32.xlu0 %v6266
  %v6268 = vpop.xlane.xlu0 %6267
  %v6269 = vsel %vm401, %v6249, -inf
  %6270 = vmax.xlane.f32.xlu0 %v6269
  %v6271 = vpop.xlane.xlu0 %6270
  %v6272 = vsel %vm401, %v6250, -inf
  %6273 = vmax.xlane.f32.xlu0 %v6272
  %v6274 = vpop.xlane.xlu0 %6273
  %v6275 = vsub.f32 %v6243, %v6253
  %v6276 = vsub.f32 %v6244, %v6256
  %v6277 = vsub.f32 %v6245, %v6259
  %v6278 = vsub.f32 %v6246, %v6262
  %v6279 = vsub.f32 %v6247, %v6265
  %v6280 = vsub.f32 %v6248, %v6268
  %v6281 = vsub.f32 %v6249, %v6271
  %v6282 = vsub.f32 %v6250, %v6274
  %v6283 = vmul.f32 %v6275, 1.442695
  %v6284 = vpow.pop %v6283
  %v6285 = vmul.f32 %v6276, 1.442695
  %v6286 = vpow.pop %v6285
  %v6287 = vmul.f32 %v6277, 1.442695
  %v6288 = vpow.pop %v6287
  %v6289 = vmul.f32 %v6278, 1.442695
  %v6290 = vpow.pop %v6289
  %v6291 = vmul.f32 %v6279, 1.442695
  %v6292 = vpow.pop %v6291
  %v6293 = vmul.f32 %v6280, 1.442695
  %v6294 = vpow.pop %v6293
  %v6295 = vmul.f32 %v6281, 1.442695
  %v6296 = vpow.pop %v6295
  %v6297 = vmul.f32 %v6282, 1.442695
  %v6298 = vpow.pop %v6297
  %v6299 = vsel %vm401, %v6284, 0.0
  %6300 = vadd.xlane.f32.xlu0 %v6299
  %v6301 = vpop.xlane.xlu0 %6300
  %v6302 = vsel %vm401, %v6286, 0.0
  %6303 = vadd.xlane.f32.xlu0 %v6302
  %v6304 = vpop.xlane.xlu0 %6303
  %v6305 = vsel %vm401, %v6288, 0.0
  %6306 = vadd.xlane.f32.xlu0 %v6305
  %v6307 = vpop.xlane.xlu0 %6306
  %v6308 = vsel %vm401, %v6290, 0.0
  %6309 = vadd.xlane.f32.xlu0 %v6308
  %v6310 = vpop.xlane.xlu0 %6309
  %v6311 = vsel %vm401, %v6292, 0.0
  %6312 = vadd.xlane.f32.xlu0 %v6311
  %v6313 = vpop.xlane.xlu0 %6312
  %v6314 = vsel %vm401, %v6294, 0.0
  %6315 = vadd.xlane.f32.xlu0 %v6314
  %v6316 = vpop.xlane.xlu0 %6315
  %v6317 = vsel %vm401, %v6296, 0.0
  %6318 = vadd.xlane.f32.xlu0 %v6317
  %v6319 = vpop.xlane.xlu0 %6318
  %v6320 = vsel %vm401, %v6298, 0.0
  %6321 = vadd.xlane.f32.xlu0 %v6320
  %v6322 = vpop.xlane.xlu0 %6321
  %v6323 = vrcp.pop %v6301
  %v6324 = vrcp.pop %v6304
  %v6325 = vrcp.pop %v6307
  %v6326 = vrcp.pop %v6310
  %v6327 = vrcp.pop %v6313
  %v6328 = vrcp.pop %v6316
  %v6329 = vrcp.pop %v6319
  %v6330 = vrcp.pop %v6322
  %v6331 = vmul.f32 %v6284, %v6323
  %v6332 = vmul.f32 %v6286, %v6324
  %v6333 = vmul.f32 %v6288, %v6325
  %v6334 = vmul.f32 %v6290, %v6326
  %v6335 = vmul.f32 %v6292, %v6327
  %v6336 = vmul.f32 %v6294, %v6328
  %v6337 = vmul.f32 %v6296, %v6329
  %v6338 = vmul.f32 %v6298, %v6330
  %v6339 = vpack.c.bf16 %v6331, %v6331
  %v6340 = vpack.c.bf16 %v6332, %v6332
  %v6341 = vpack.c.bf16 %v6333, %v6333
  %v6342 = vpack.c.bf16 %v6334, %v6334
  %v6343 = vpack.c.bf16 %v6335, %v6335
  %v6344 = vpack.c.bf16 %v6336, %v6336
  %v6345 = vpack.c.bf16 %v6337, %v6337
  %v6346 = vpack.c.bf16 %v6338, %v6338
  %6347 = vrot.lane.b32.xlu0 %v4939, 56
  %v6348 = vpop.permute.xlu0 %6347
  %v6350 = vsel %vm401, %v6339, 0
  %v6353 = vsel %vm956, %v6348, 0
  %6355 = vmatprep.subr.bf16.mxu0 0
  %6356 = vmatpush1.bf16.msra.mxu0 %v6353
  %6357 = vmatprep.subr.bf16.mxu0 0
  %6358 = vmatpush1.bf16.msra.mxu0 0
  %6359 = vmatprep.subr.bf16.mxu0 0
  %6360 = vmatpush1.bf16.msra.mxu0 0
  %6361 = vmatprep.subr.bf16.mxu0 0
  %6362 = vmatpush1.bf16.msra.mxu0 0
  %6363 = vmatprep.subr.bf16.mxu0 0
  %6364 = vmatpush1.bf16.msra.mxu0 0
  %6365 = vmatprep.subr.bf16.mxu0 0
  %6366 = vmatpush1.bf16.msra.mxu0 0
  %6367 = vmatprep.subr.bf16.mxu0 0
  %6368 = vmatpush1.bf16.msra.mxu0 0
  %6369 = vmatprep.subr.bf16.mxu0 0
  %6370 = vmatpush1.bf16.msra.mxu0 0
  %6371 = vmatprep.subr.bf16.mxu0 0
  %6372 = vmatpush1.bf16.msra.mxu0 0
  %6373 = vmatprep.subr.bf16.mxu0 0
  %6374 = vmatpush1.bf16.msra.mxu0 0
  %6375 = vmatprep.subr.bf16.mxu0 0
  %6376 = vmatpush1.bf16.msra.mxu0 0
  %6377 = vmatprep.subr.bf16.mxu0 0
  %6378 = vmatpush1.bf16.msra.mxu0 0
  %6379 = vmatprep.subr.bf16.mxu0 0
  %6380 = vmatpush1.bf16.msra.mxu0 0
  %6381 = vmatprep.subr.bf16.mxu0 0
  %6382 = vmatpush1.bf16.msra.mxu0 0
  %6383 = vmatprep.subr.bf16.mxu0 0
  %6384 = vmatpush1.bf16.msra.mxu0 0
  %6385 = vmatprep.subr.bf16.mxu0 0
  %6386 = vmatpush1.bf16.msra.mxu0 0
  %6387 = vmatprep.mubr.bf16.mxu0 0
  %6388 = vmatmul.mubr.bf16.gmra.mrb[0].mxu0 %v6350
  %v6389 = vpop.f32.mrb[0].mxu0
  %v6390 = vadd.f32 0.0, %v6389
  %v6391 = vpop.f32.mrb[0].mxu0
  %v6392 = vpop.f32.mrb[0].mxu0
  %v6393 = vpop.f32.mrb[0].mxu0
  %6394 = vdwg.mxu0
  %6395 = vrot.lane.b32.xlu0 %v4940, 56
  %v6396 = vpop.permute.xlu0 %6395
  %v6398 = vsel %vm401, %v6340, 0
  %v6401 = vsel %vm956, %v6396, 0
  %6403 = vmatprep.subr.bf16.mxu0 0
  %6404 = vmatpush1.bf16.msra.mxu0 %v6401
  %6405 = vmatprep.subr.bf16.mxu0 0
  %6406 = vmatpush1.bf16.msra.mxu0 0
  %6407 = vmatprep.subr.bf16.mxu0 0
  %6408 = vmatpush1.bf16.msra.mxu0 0
  %6409 = vmatprep.subr.bf16.mxu0 0
  %6410 = vmatpush1.bf16.msra.mxu0 0
  %6411 = vmatprep.subr.bf16.mxu0 0
  %6412 = vmatpush1.bf16.msra.mxu0 0
  %6413 = vmatprep.subr.bf16.mxu0 0
  %6414 = vmatpush1.bf16.msra.mxu0 0
  %6415 = vmatprep.subr.bf16.mxu0 0
  %6416 = vmatpush1.bf16.msra.mxu0 0
  %6417 = vmatprep.subr.bf16.mxu0 0
  %6418 = vmatpush1.bf16.msra.mxu0 0
  %6419 = vmatprep.subr.bf16.mxu0 0
  %6420 = vmatpush1.bf16.msra.mxu0 0
  %6421 = vmatprep.subr.bf16.mxu0 0
  %6422 = vmatpush1.bf16.msra.mxu0 0
  %6423 = vmatprep.subr.bf16.mxu0 0
  %6424 = vmatpush1.bf16.msra.mxu0 0
  %6425 = vmatprep.subr.bf16.mxu0 0
  %6426 = vmatpush1.bf16.msra.mxu0 0
  %6427 = vmatprep.subr.bf16.mxu0 0
  %6428 = vmatpush1.bf16.msra.mxu0 0
  %6429 = vmatprep.subr.bf16.mxu0 0
  %6430 = vmatpush1.bf16.msra.mxu0 0
  %6431 = vmatprep.subr.bf16.mxu0 0
  %6432 = vmatpush1.bf16.msra.mxu0 0
  %6433 = vmatprep.subr.bf16.mxu0 0
  %6434 = vmatpush1.bf16.msra.mxu0 0
  %6435 = vmatprep.mubr.bf16.mxu0 0
  %6436 = vmatmul.mubr.bf16.gmra.mrb[0].mxu0 %v6398
  %v6437 = vpop.f32.mrb[0].mxu0
  %v6438 = vadd.f32 0.0, %v6437
  %v6439 = vpop.f32.mrb[0].mxu0
  %v6440 = vpop.f32.mrb[0].mxu0
  %v6441 = vpop.f32.mrb[0].mxu0
  %6442 = vdwg.mxu0
  %6443 = vrot.lane.b32.xlu0 %v4941, 56
  %v6444 = vpop.permute.xlu0 %6443
  %v6446 = vsel %vm401, %v6341, 0
  %v6449 = vsel %vm956, %v6444, 0
  %6451 = vmatprep.subr.bf16.mxu0 0
  %6452 = vmatpush1.bf16.msra.mxu0 %v6449
  %6453 = vmatprep.subr.bf16.mxu0 0
  %6454 = vmatpush1.bf16.msra.mxu0 0
  %6455 = vmatprep.subr.bf16.mxu0 0
  %6456 = vmatpush1.bf16.msra.mxu0 0
  %6457 = vmatprep.subr.bf16.mxu0 0
  %6458 = vmatpush1.bf16.msra.mxu0 0
  %6459 = vmatprep.subr.bf16.mxu0 0
  %6460 = vmatpush1.bf16.msra.mxu0 0
  %6461 = vmatprep.subr.bf16.mxu0 0
  %6462 = vmatpush1.bf16.msra.mxu0 0
  %6463 = vmatprep.subr.bf16.mxu0 0
  %6464 = vmatpush1.bf16.msra.mxu0 0
  %6465 = vmatprep.subr.bf16.mxu0 0
  %6466 = vmatpush1.bf16.msra.mxu0 0
  %6467 = vmatprep.subr.bf16.mxu0 0
  %6468 = vmatpush1.bf16.msra.mxu0 0
  %6469 = vmatprep.subr.bf16.mxu0 0
  %6470 = vmatpush1.bf16.msra.mxu0 0
  %6471 = vmatprep.subr.bf16.mxu0 0
  %6472 = vmatpush1.bf16.msra.mxu0 0
  %6473 = vmatprep.subr.bf16.mxu0 0
  %6474 = vmatpush1.bf16.msra.mxu0 0
  %6475 = vmatprep.subr.bf16.mxu0 0
  %6476 = vmatpush1.bf16.msra.mxu0 0
  %6477 = vmatprep.subr.bf16.mxu0 0
  %6478 = vmatpush1.bf16.msra.mxu0 0
  %6479 = vmatprep.subr.bf16.mxu0 0
  %6480 = vmatpush1.bf16.msra.mxu0 0
  %6481 = vmatprep.subr.bf16.mxu0 0
  %6482 = vmatpush1.bf16.msra.mxu0 0
  %6483 = vmatprep.mubr.bf16.mxu0 0
  %6484 = vmatmul.mubr.bf16.gmra.mrb[0].mxu0 %v6446
  %v6485 = vpop.f32.mrb[0].mxu0
  %v6486 = vadd.f32 0.0, %v6485
  %v6487 = vpop.f32.mrb[0].mxu0
  %v6488 = vpop.f32.mrb[0].mxu0
  %v6489 = vpop.f32.mrb[0].mxu0
  %6490 = vdwg.mxu0
  %6491 = vrot.lane.b32.xlu0 %v4942, 56
  %v6492 = vpop.permute.xlu0 %6491
  %v6494 = vsel %vm401, %v6342, 0
  %v6497 = vsel %vm956, %v6492, 0
  %6499 = vmatprep.subr.bf16.mxu0 0
  %6500 = vmatpush1.bf16.msra.mxu0 %v6497
  %6501 = vmatprep.subr.bf16.mxu0 0
  %6502 = vmatpush1.bf16.msra.mxu0 0
  %6503 = vmatprep.subr.bf16.mxu0 0
  %6504 = vmatpush1.bf16.msra.mxu0 0
  %6505 = vmatprep.subr.bf16.mxu0 0
  %6506 = vmatpush1.bf16.msra.mxu0 0
  %6507 = vmatprep.subr.bf16.mxu0 0
  %6508 = vmatpush1.bf16.msra.mxu0 0
  %6509 = vmatprep.subr.bf16.mxu0 0
  %6510 = vmatpush1.bf16.msra.mxu0 0
  %6511 = vmatprep.subr.bf16.mxu0 0
  %6512 = vmatpush1.bf16.msra.mxu0 0
  %6513 = vmatprep.subr.bf16.mxu0 0
  %6514 = vmatpush1.bf16.msra.mxu0 0
  %6515 = vmatprep.subr.bf16.mxu0 0
  %6516 = vmatpush1.bf16.msra.mxu0 0
  %6517 = vmatprep.subr.bf16.mxu0 0
  %6518 = vmatpush1.bf16.msra.mxu0 0
  %6519 = vmatprep.subr.bf16.mxu0 0
  %6520 = vmatpush1.bf16.msra.mxu0 0
  %6521 = vmatprep.subr.bf16.mxu0 0
  %6522 = vmatpush1.bf16.msra.mxu0 0
  %6523 = vmatprep.subr.bf16.mxu0 0
  %6524 = vmatpush1.bf16.msra.mxu0 0
  %6525 = vmatprep.subr.bf16.mxu0 0
  %6526 = vmatpush1.bf16.msra.mxu0 0
  %6527 = vmatprep.subr.bf16.mxu0 0
  %6528 = vmatpush1.bf16.msra.mxu0 0
  %6529 = vmatprep.subr.bf16.mxu0 0
  %6530 = vmatpush1.bf16.msra.mxu0 0
  %6531 = vmatprep.mubr.bf16.mxu0 0
  %6532 = vmatmul.mubr.bf16.gmra.mrb[0].mxu0 %v6494
  %v6533 = vpop.f32.mrb[0].mxu0
  %v6534 = vadd.f32 0.0, %v6533
  %v6535 = vpop.f32.mrb[0].mxu0
  %v6536 = vpop.f32.mrb[0].mxu0
  %v6537 = vpop.f32.mrb[0].mxu0
  %6538 = vdwg.mxu0
  %6539 = vrot.lane.b32.xlu0 %v4943, 56
  %v6540 = vpop.permute.xlu0 %6539
  %v6542 = vsel %vm401, %v6343, 0
  %v6545 = vsel %vm956, %v6540, 0
  %6547 = vmatprep.subr.bf16.mxu0 0
  %6548 = vmatpush1.bf16.msra.mxu0 %v6545
  %6549 = vmatprep.subr.bf16.mxu0 0
  %6550 = vmatpush1.bf16.msra.mxu0 0
  %6551 = vmatprep.subr.bf16.mxu0 0
  %6552 = vmatpush1.bf16.msra.mxu0 0
  %6553 = vmatprep.subr.bf16.mxu0 0
  %6554 = vmatpush1.bf16.msra.mxu0 0
  %6555 = vmatprep.subr.bf16.mxu0 0
  %6556 = vmatpush1.bf16.msra.mxu0 0
  %6557 = vmatprep.subr.bf16.mxu0 0
  %6558 = vmatpush1.bf16.msra.mxu0 0
  %6559 = vmatprep.subr.bf16.mxu0 0
  %6560 = vmatpush1.bf16.msra.mxu0 0
  %6561 = vmatprep.subr.bf16.mxu0 0
  %6562 = vmatpush1.bf16.msra.mxu0 0
  %6563 = vmatprep.subr.bf16.mxu0 0
  %6564 = vmatpush1.bf16.msra.mxu0 0
  %6565 = vmatprep.subr.bf16.mxu0 0
  %6566 = vmatpush1.bf16.msra.mxu0 0
  %6567 = vmatprep.subr.bf16.mxu0 0
  %6568 = vmatpush1.bf16.msra.mxu0 0
  %6569 = vmatprep.subr.bf16.mxu0 0
  %6570 = vmatpush1.bf16.msra.mxu0 0
  %6571 = vmatprep.subr.bf16.mxu0 0
  %6572 = vmatpush1.bf16.msra.mxu0 0
  %6573 = vmatprep.subr.bf16.mxu0 0
  %6574 = vmatpush1.bf16.msra.mxu0 0
  %6575 = vmatprep.subr.bf16.mxu0 0
  %6576 = vmatpush1.bf16.msra.mxu0 0
  %6577 = vmatprep.subr.bf16.mxu0 0
  %6578 = vmatpush1.bf16.msra.mxu0 0
  %6579 = vmatprep.mubr.bf16.mxu0 0
  %6580 = vmatmul.mubr.bf16.gmra.mrb[0].mxu0 %v6542
  %v6581 = vpop.f32.mrb[0].mxu0
  %v6582 = vadd.f32 0.0, %v6581
  %v6583 = vpop.f32.mrb[0].mxu0
  %v6584 = vpop.f32.mrb[0].mxu0
  %v6585 = vpop.f32.mrb[0].mxu0
  %6586 = vdwg.mxu0
  %6587 = vrot.lane.b32.xlu0 %v4944, 56
  %v6588 = vpop.permute.xlu0 %6587
  %v6590 = vsel %vm401, %v6344, 0
  %v6593 = vsel %vm956, %v6588, 0
  %6595 = vmatprep.subr.bf16.mxu0 0
  %6596 = vmatpush1.bf16.msra.mxu0 %v6593
  %6597 = vmatprep.subr.bf16.mxu0 0
  %6598 = vmatpush1.bf16.msra.mxu0 0
  %6599 = vmatprep.subr.bf16.mxu0 0
  %6600 = vmatpush1.bf16.msra.mxu0 0
  %6601 = vmatprep.subr.bf16.mxu0 0
  %6602 = vmatpush1.bf16.msra.mxu0 0
  %6603 = vmatprep.subr.bf16.mxu0 0
  %6604 = vmatpush1.bf16.msra.mxu0 0
  %6605 = vmatprep.subr.bf16.mxu0 0
  %6606 = vmatpush1.bf16.msra.mxu0 0
  %6607 = vmatprep.subr.bf16.mxu0 0
  %6608 = vmatpush1.bf16.msra.mxu0 0
  %6609 = vmatprep.subr.bf16.mxu0 0
  %6610 = vmatpush1.bf16.msra.mxu0 0
  %6611 = vmatprep.subr.bf16.mxu0 0
  %6612 = vmatpush1.bf16.msra.mxu0 0
  %6613 = vmatprep.subr.bf16.mxu0 0
  %6614 = vmatpush1.bf16.msra.mxu0 0
  %6615 = vmatprep.subr.bf16.mxu0 0
  %6616 = vmatpush1.bf16.msra.mxu0 0
  %6617 = vmatprep.subr.bf16.mxu0 0
  %6618 = vmatpush1.bf16.msra.mxu0 0
  %6619 = vmatprep.subr.bf16.mxu0 0
  %6620 = vmatpush1.bf16.msra.mxu0 0
  %6621 = vmatprep.subr.bf16.mxu0 0
  %6622 = vmatpush1.bf16.msra.mxu0 0
  %6623 = vmatprep.subr.bf16.mxu0 0
  %6624 = vmatpush1.bf16.msra.mxu0 0
  %6625 = vmatprep.subr.bf16.mxu0 0
  %6626 = vmatpush1.bf16.msra.mxu0 0
  %6627 = vmatprep.mubr.bf16.mxu0 0
  %6628 = vmatmul.mubr.bf16.gmra.mrb[0].mxu0 %v6590
  %v6629 = vpop.f32.mrb[0].mxu0
  %v6630 = vadd.f32 0.0, %v6629
  %v6631 = vpop.f32.mrb[0].mxu0
  %v6632 = vpop.f32.mrb[0].mxu0
  %v6633 = vpop.f32.mrb[0].mxu0
  %6634 = vdwg.mxu0
  %6635 = vrot.lane.b32.xlu0 %v4945, 56
  %v6636 = vpop.permute.xlu0 %6635
  %v6638 = vsel %vm401, %v6345, 0
  %v6641 = vsel %vm956, %v6636, 0
  %6643 = vmatprep.subr.bf16.mxu0 0
  %6644 = vmatpush1.bf16.msra.mxu0 %v6641
  %6645 = vmatprep.subr.bf16.mxu0 0
  %6646 = vmatpush1.bf16.msra.mxu0 0
  %6647 = vmatprep.subr.bf16.mxu0 0
  %6648 = vmatpush1.bf16.msra.mxu0 0
  %6649 = vmatprep.subr.bf16.mxu0 0
  %6650 = vmatpush1.bf16.msra.mxu0 0
  %6651 = vmatprep.subr.bf16.mxu0 0
  %6652 = vmatpush1.bf16.msra.mxu0 0
  %6653 = vmatprep.subr.bf16.mxu0 0
  %6654 = vmatpush1.bf16.msra.mxu0 0
  %6655 = vmatprep.subr.bf16.mxu0 0
  %6656 = vmatpush1.bf16.msra.mxu0 0
  %6657 = vmatprep.subr.bf16.mxu0 0
  %6658 = vmatpush1.bf16.msra.mxu0 0
  %6659 = vmatprep.subr.bf16.mxu0 0
  %6660 = vmatpush1.bf16.msra.mxu0 0
  %6661 = vmatprep.subr.bf16.mxu0 0
  %6662 = vmatpush1.bf16.msra.mxu0 0
  %6663 = vmatprep.subr.bf16.mxu0 0
  %6664 = vmatpush1.bf16.msra.mxu0 0
  %6665 = vmatprep.subr.bf16.mxu0 0
  %6666 = vmatpush1.bf16.msra.mxu0 0
  %6667 = vmatprep.subr.bf16.mxu0 0
  %6668 = vmatpush1.bf16.msra.mxu0 0
  %6669 = vmatprep.subr.bf16.mxu0 0
  %6670 = vmatpush1.bf16.msra.mxu0 0
  %6671 = vmatprep.subr.bf16.mxu0 0
  %6672 = vmatpush1.bf16.msra.mxu0 0
  %6673 = vmatprep.subr.bf16.mxu0 0
  %6674 = vmatpush1.bf16.msra.mxu0 0
  %6675 = vmatprep.mubr.bf16.mxu0 0
  %6676 = vmatmul.mubr.bf16.gmra.mrb[0].mxu0 %v6638
  %v6677 = vpop.f32.mrb[0].mxu0
  %v6678 = vadd.f32 0.0, %v6677
  %v6679 = vpop.f32.mrb[0].mxu0
  %v6680 = vpop.f32.mrb[0].mxu0
  %v6681 = vpop.f32.mrb[0].mxu0
  %6682 = vdwg.mxu0
  %6683 = vrot.lane.b32.xlu0 %v4946, 56
  %v6684 = vpop.permute.xlu0 %6683
  %v6686 = vsel %vm401, %v6346, 0
  %v6689 = vsel %vm956, %v6684, 0
  %6691 = vmatprep.subr.bf16.mxu0 0
  %6692 = vmatpush1.bf16.msra.mxu0 %v6689
  %6693 = vmatprep.subr.bf16.mxu0 0
  %6694 = vmatpush1.bf16.msra.mxu0 0
  %6695 = vmatprep.subr.bf16.mxu0 0
  %6696 = vmatpush1.bf16.msra.mxu0 0
  %6697 = vmatprep.subr.bf16.mxu0 0
  %6698 = vmatpush1.bf16.msra.mxu0 0
  %6699 = vmatprep.subr.bf16.mxu0 0
  %6700 = vmatpush1.bf16.msra.mxu0 0
  %6701 = vmatprep.subr.bf16.mxu0 0
  %6702 = vmatpush1.bf16.msra.mxu0 0
  %6703 = vmatprep.subr.bf16.mxu0 0
  %6704 = vmatpush1.bf16.msra.mxu0 0
  %6705 = vmatprep.subr.bf16.mxu0 0
  %6706 = vmatpush1.bf16.msra.mxu0 0
  %6707 = vmatprep.subr.bf16.mxu0 0
  %6708 = vmatpush1.bf16.msra.mxu0 0
  %6709 = vmatprep.subr.bf16.mxu0 0
  %6710 = vmatpush1.bf16.msra.mxu0 0
  %6711 = vmatprep.subr.bf16.mxu0 0
  %6712 = vmatpush1.bf16.msra.mxu0 0
  %6713 = vmatprep.subr.bf16.mxu0 0
  %6714 = vmatpush1.bf16.msra.mxu0 0
  %6715 = vmatprep.subr.bf16.mxu0 0
  %6716 = vmatpush1.bf16.msra.mxu0 0
  %6717 = vmatprep.subr.bf16.mxu0 0
  %6718 = vmatpush1.bf16.msra.mxu0 0
  %6719 = vmatprep.subr.bf16.mxu0 0
  %6720 = vmatpush1.bf16.msra.mxu0 0
  %6721 = vmatprep.subr.bf16.mxu0 0
  %6722 = vmatpush1.bf16.msra.mxu0 0
  %6723 = vmatprep.mubr.bf16.mxu0 0
  %6724 = vmatmul.mubr.bf16.gmra.mrb[0].mxu0 %v6686
  %v6725 = vpop.f32.mrb[0].mxu0
  %v6726 = vadd.f32 0.0, %v6725
  %v6727 = vpop.f32.mrb[0].mxu0
  %v6728 = vpop.f32.mrb[0].mxu0
  %v6729 = vpop.f32.mrb[0].mxu0
  %6730 = vdwg.mxu0
  %6731 = vrot.lane.b32.xlu0 %v4939, 112
  %v6732 = vpop.permute.xlu0 %6731
  %6733 = vrot.lane.b32.xlu0 %v4939, 80
  %v6734 = vpop.permute.xlu0 %6733
  %v6736 = vsel %vm401, %v6732, 0
  %v6739 = vsel %vm401, %v6734, 0
  %6741 = vmatprep.subr.bf16.mxu0 0
  %6742 = vmatpush1.bf16.xpose.msra.mxu0 %v6739
  %6743 = vmatprep.subr.bf16.mxu0 0
  %6744 = vmatpush1.bf16.xpose.msra.mxu0 0
  %6745 = vmatprep.subr.bf16.mxu0 0
  %6746 = vmatpush1.bf16.xpose.msra.mxu0 0
  %6747 = vmatprep.subr.bf16.mxu0 0
  %6748 = vmatpush1.bf16.xpose.msra.mxu0 0
  %6749 = vmatprep.subr.bf16.mxu0 0
  %6750 = vmatpush1.bf16.xpose.msra.mxu0 0
  %6751 = vmatprep.subr.bf16.mxu0 0
  %6752 = vmatpush1.bf16.xpose.msra.mxu0 0
  %6753 = vmatprep.subr.bf16.mxu0 0
  %6754 = vmatpush1.bf16.xpose.msra.mxu0 0
  %6755 = vmatprep.subr.bf16.mxu0 0
  %6756 = vmatpush1.bf16.xpose.msra.mxu0 0
  %6757 = vmatprep.subr.bf16.mxu0 0
  %6758 = vmatpush1.bf16.xpose.msra.mxu0 0
  %6759 = vmatprep.subr.bf16.mxu0 0
  %6760 = vmatpush1.bf16.xpose.msra.mxu0 0
  %6761 = vmatprep.subr.bf16.mxu0 0
  %6762 = vmatpush1.bf16.xpose.msra.mxu0 0
  %6763 = vmatprep.subr.bf16.mxu0 0
  %6764 = vmatpush1.bf16.xpose.msra.mxu0 0
  %6765 = vmatprep.subr.bf16.mxu0 0
  %6766 = vmatpush1.bf16.xpose.msra.mxu0 0
  %6767 = vmatprep.subr.bf16.mxu0 0
  %6768 = vmatpush1.bf16.xpose.msra.mxu0 0
  %6769 = vmatprep.subr.bf16.mxu0 0
  %6770 = vmatpush1.bf16.xpose.msra.mxu0 0
  %6771 = vmatprep.subr.bf16.mxu0 0
  %6772 = vmatpush1.bf16.xpose.msra.mxu0 0
  %6773 = vmatprep.mubr.bf16.mxu0 0
  %6774 = vmatmul.mubr.bf16.gmra.mrb[0].mxu0 %v6736
  %v6775 = vpop.f32.mrb[0].mxu0
  %v6776 = vadd.f32 0.0, %v6775
  %v6777 = vpop.f32.mrb[0].mxu0
  %v6778 = vpop.f32.mrb[0].mxu0
  %v6779 = vpop.f32.mrb[0].mxu0
  %6780 = vdwg.mxu0
  %6781 = vrot.lane.b32.xlu0 %v4940, 112
  %v6782 = vpop.permute.xlu0 %6781
  %6783 = vrot.lane.b32.xlu0 %v4940, 80
  %v6784 = vpop.permute.xlu0 %6783
  %v6786 = vsel %vm401, %v6782, 0
  %v6789 = vsel %vm401, %v6784, 0
  %6791 = vmatprep.subr.bf16.mxu0 0
  %6792 = vmatpush1.bf16.xpose.msra.mxu0 %v6789
  %6793 = vmatprep.subr.bf16.mxu0 0
  %6794 = vmatpush1.bf16.xpose.msra.mxu0 0
  %6795 = vmatprep.subr.bf16.mxu0 0
  %6796 = vmatpush1.bf16.xpose.msra.mxu0 0
  %6797 = vmatprep.subr.bf16.mxu0 0
  %6798 = vmatpush1.bf16.xpose.msra.mxu0 0
  %6799 = vmatprep.subr.bf16.mxu0 0
  %6800 = vmatpush1.bf16.xpose.msra.mxu0 0
  %6801 = vmatprep.subr.bf16.mxu0 0
  %6802 = vmatpush1.bf16.xpose.msra.mxu0 0
  %6803 = vmatprep.subr.bf16.mxu0 0
  %6804 = vmatpush1.bf16.xpose.msra.mxu0 0
  %6805 = vmatprep.subr.bf16.mxu0 0
  %6806 = vmatpush1.bf16.xpose.msra.mxu0 0
  %6807 = vmatprep.subr.bf16.mxu0 0
  %6808 = vmatpush1.bf16.xpose.msra.mxu0 0
  %6809 = vmatprep.subr.bf16.mxu0 0
  %6810 = vmatpush1.bf16.xpose.msra.mxu0 0
  %6811 = vmatprep.subr.bf16.mxu0 0
  %6812 = vmatpush1.bf16.xpose.msra.mxu0 0
  %6813 = vmatprep.subr.bf16.mxu0 0
  %6814 = vmatpush1.bf16.xpose.msra.mxu0 0
  %6815 = vmatprep.subr.bf16.mxu0 0
  %6816 = vmatpush1.bf16.xpose.msra.mxu0 0
  %6817 = vmatprep.subr.bf16.mxu0 0
  %6818 = vmatpush1.bf16.xpose.msra.mxu0 0
  %6819 = vmatprep.subr.bf16.mxu0 0
  %6820 = vmatpush1.bf16.xpose.msra.mxu0 0
  %6821 = vmatprep.subr.bf16.mxu0 0
  %6822 = vmatpush1.bf16.xpose.msra.mxu0 0
  %6823 = vmatprep.mubr.bf16.mxu0 0
  %6824 = vmatmul.mubr.bf16.gmra.mrb[0].mxu0 %v6786
  %v6825 = vpop.f32.mrb[0].mxu0
  %v6826 = vadd.f32 0.0, %v6825
  %v6827 = vpop.f32.mrb[0].mxu0
  %v6828 = vpop.f32.mrb[0].mxu0
  %v6829 = vpop.f32.mrb[0].mxu0
  %6830 = vdwg.mxu0
  %6831 = vrot.lane.b32.xlu0 %v4941, 112
  %v6832 = vpop.permute.xlu0 %6831
  %6833 = vrot.lane.b32.xlu0 %v4941, 80
  %v6834 = vpop.permute.xlu0 %6833
  %v6836 = vsel %vm401, %v6832, 0
  %v6839 = vsel %vm401, %v6834, 0
  %6841 = vmatprep.subr.bf16.mxu0 0
  %6842 = vmatpush1.bf16.xpose.msra.mxu0 %v6839
  %6843 = vmatprep.subr.bf16.mxu0 0
  %6844 = vmatpush1.bf16.xpose.msra.mxu0 0
  %6845 = vmatprep.subr.bf16.mxu0 0
  %6846 = vmatpush1.bf16.xpose.msra.mxu0 0
  %6847 = vmatprep.subr.bf16.mxu0 0
  %6848 = vmatpush1.bf16.xpose.msra.mxu0 0
  %6849 = vmatprep.subr.bf16.mxu0 0
  %6850 = vmatpush1.bf16.xpose.msra.mxu0 0
  %6851 = vmatprep.subr.bf16.mxu0 0
  %6852 = vmatpush1.bf16.xpose.msra.mxu0 0
  %6853 = vmatprep.subr.bf16.mxu0 0
  %6854 = vmatpush1.bf16.xpose.msra.mxu0 0
  %6855 = vmatprep.subr.bf16.mxu0 0
  %6856 = vmatpush1.bf16.xpose.msra.mxu0 0
  %6857 = vmatprep.subr.bf16.mxu0 0
  %6858 = vmatpush1.bf16.xpose.msra.mxu0 0
  %6859 = vmatprep.subr.bf16.mxu0 0
  %6860 = vmatpush1.bf16.xpose.msra.mxu0 0
  %6861 = vmatprep.subr.bf16.mxu0 0
  %6862 = vmatpush1.bf16.xpose.msra.mxu0 0
  %6863 = vmatprep.subr.bf16.mxu0 0
  %6864 = vmatpush1.bf16.xpose.msra.mxu0 0
  %6865 = vmatprep.subr.bf16.mxu0 0
  %6866 = vmatpush1.bf16.xpose.msra.mxu0 0
  %6867 = vmatprep.subr.bf16.mxu0 0
  %6868 = vmatpush1.bf16.xpose.msra.mxu0 0
  %6869 = vmatprep.subr.bf16.mxu0 0
  %6870 = vmatpush1.bf16.xpose.msra.mxu0 0
  %6871 = vmatprep.subr.bf16.mxu0 0
  %6872 = vmatpush1.bf16.xpose.msra.mxu0 0
  %6873 = vmatprep.mubr.bf16.mxu0 0
  %6874 = vmatmul.mubr.bf16.gmra.mrb[0].mxu0 %v6836
  %v6875 = vpop.f32.mrb[0].mxu0
  %v6876 = vadd.f32 0.0, %v6875
  %v6877 = vpop.f32.mrb[0].mxu0
  %v6878 = vpop.f32.mrb[0].mxu0
  %v6879 = vpop.f32.mrb[0].mxu0
  %6880 = vdwg.mxu0
  %6881 = vrot.lane.b32.xlu0 %v4942, 112
  %v6882 = vpop.permute.xlu0 %6881
  %6883 = vrot.lane.b32.xlu0 %v4942, 80
  %v6884 = vpop.permute.xlu0 %6883
  %v6886 = vsel %vm401, %v6882, 0
  %v6889 = vsel %vm401, %v6884, 0
  %6891 = vmatprep.subr.bf16.mxu0 0
  %6892 = vmatpush1.bf16.xpose.msra.mxu0 %v6889
  %6893 = vmatprep.subr.bf16.mxu0 0
  %6894 = vmatpush1.bf16.xpose.msra.mxu0 0
  %6895 = vmatprep.subr.bf16.mxu0 0
  %6896 = vmatpush1.bf16.xpose.msra.mxu0 0
  %6897 = vmatprep.subr.bf16.mxu0 0
  %6898 = vmatpush1.bf16.xpose.msra.mxu0 0
  %6899 = vmatprep.subr.bf16.mxu0 0
  %6900 = vmatpush1.bf16.xpose.msra.mxu0 0
  %6901 = vmatprep.subr.bf16.mxu0 0
  %6902 = vmatpush1.bf16.xpose.msra.mxu0 0
  %6903 = vmatprep.subr.bf16.mxu0 0
  %6904 = vmatpush1.bf16.xpose.msra.mxu0 0
  %6905 = vmatprep.subr.bf16.mxu0 0
  %6906 = vmatpush1.bf16.xpose.msra.mxu0 0
  %6907 = vmatprep.subr.bf16.mxu0 0
  %6908 = vmatpush1.bf16.xpose.msra.mxu0 0
  %6909 = vmatprep.subr.bf16.mxu0 0
  %6910 = vmatpush1.bf16.xpose.msra.mxu0 0
  %6911 = vmatprep.subr.bf16.mxu0 0
  %6912 = vmatpush1.bf16.xpose.msra.mxu0 0
  %6913 = vmatprep.subr.bf16.mxu0 0
  %6914 = vmatpush1.bf16.xpose.msra.mxu0 0
  %6915 = vmatprep.subr.bf16.mxu0 0
  %6916 = vmatpush1.bf16.xpose.msra.mxu0 0
  %6917 = vmatprep.subr.bf16.mxu0 0
  %6918 = vmatpush1.bf16.xpose.msra.mxu0 0
  %6919 = vmatprep.subr.bf16.mxu0 0
  %6920 = vmatpush1.bf16.xpose.msra.mxu0 0
  %6921 = vmatprep.subr.bf16.mxu0 0
  %6922 = vmatpush1.bf16.xpose.msra.mxu0 0
  %6923 = vmatprep.mubr.bf16.mxu0 0
  %6924 = vmatmul.mubr.bf16.gmra.mrb[0].mxu0 %v6886
  %v6925 = vpop.f32.mrb[0].mxu0
  %v6926 = vadd.f32 0.0, %v6925
  %v6927 = vpop.f32.mrb[0].mxu0
  %v6928 = vpop.f32.mrb[0].mxu0
  %v6929 = vpop.f32.mrb[0].mxu0
  %6930 = vdwg.mxu0
  %6931 = vrot.lane.b32.xlu0 %v4943, 112
  %v6932 = vpop.permute.xlu0 %6931
  %6933 = vrot.lane.b32.xlu0 %v4943, 80
  %v6934 = vpop.permute.xlu0 %6933
  %v6936 = vsel %vm401, %v6932, 0
  %v6939 = vsel %vm401, %v6934, 0
  %6941 = vmatprep.subr.bf16.mxu0 0
  %6942 = vmatpush1.bf16.xpose.msra.mxu0 %v6939
  %6943 = vmatprep.subr.bf16.mxu0 0
  %6944 = vmatpush1.bf16.xpose.msra.mxu0 0
  %6945 = vmatprep.subr.bf16.mxu0 0
  %6946 = vmatpush1.bf16.xpose.msra.mxu0 0
  %6947 = vmatprep.subr.bf16.mxu0 0
  %6948 = vmatpush1.bf16.xpose.msra.mxu0 0
  %6949 = vmatprep.subr.bf16.mxu0 0
  %6950 = vmatpush1.bf16.xpose.msra.mxu0 0
  %6951 = vmatprep.subr.bf16.mxu0 0
  %6952 = vmatpush1.bf16.xpose.msra.mxu0 0
  %6953 = vmatprep.subr.bf16.mxu0 0
  %6954 = vmatpush1.bf16.xpose.msra.mxu0 0
  %6955 = vmatprep.subr.bf16.mxu0 0
  %6956 = vmatpush1.bf16.xpose.msra.mxu0 0
  %6957 = vmatprep.subr.bf16.mxu0 0
  %6958 = vmatpush1.bf16.xpose.msra.mxu0 0
  %6959 = vmatprep.subr.bf16.mxu0 0
  %6960 = vmatpush1.bf16.xpose.msra.mxu0 0
  %6961 = vmatprep.subr.bf16.mxu0 0
  %6962 = vmatpush1.bf16.xpose.msra.mxu0 0
  %6963 = vmatprep.subr.bf16.mxu0 0
  %6964 = vmatpush1.bf16.xpose.msra.mxu0 0
  %6965 = vmatprep.subr.bf16.mxu0 0
  %6966 = vmatpush1.bf16.xpose.msra.mxu0 0
  %6967 = vmatprep.subr.bf16.mxu0 0
  %6968 = vmatpush1.bf16.xpose.msra.mxu0 0
  %6969 = vmatprep.subr.bf16.mxu0 0
  %6970 = vmatpush1.bf16.xpose.msra.mxu0 0
  %6971 = vmatprep.subr.bf16.mxu0 0
  %6972 = vmatpush1.bf16.xpose.msra.mxu0 0
  %6973 = vmatprep.mubr.bf16.mxu0 0
  %6974 = vmatmul.mubr.bf16.gmra.mrb[0].mxu0 %v6936
  %v6975 = vpop.f32.mrb[0].mxu0
  %v6976 = vadd.f32 0.0, %v6975
  %v6977 = vpop.f32.mrb[0].mxu0
  %v6978 = vpop.f32.mrb[0].mxu0
  %v6979 = vpop.f32.mrb[0].mxu0
  %6980 = vdwg.mxu0
  %6981 = vrot.lane.b32.xlu0 %v4944, 112
  %v6982 = vpop.permute.xlu0 %6981
  %6983 = vrot.lane.b32.xlu0 %v4944, 80
  %v6984 = vpop.permute.xlu0 %6983
  %v6986 = vsel %vm401, %v6982, 0
  %v6989 = vsel %vm401, %v6984, 0
  %6991 = vmatprep.subr.bf16.mxu0 0
  %6992 = vmatpush1.bf16.xpose.msra.mxu0 %v6989
  %6993 = vmatprep.subr.bf16.mxu0 0
  %6994 = vmatpush1.bf16.xpose.msra.mxu0 0
  %6995 = vmatprep.subr.bf16.mxu0 0
  %6996 = vmatpush1.bf16.xpose.msra.mxu0 0
  %6997 = vmatprep.subr.bf16.mxu0 0
  %6998 = vmatpush1.bf16.xpose.msra.mxu0 0
  %6999 = vmatprep.subr.bf16.mxu0 0
  %7000 = vmatpush1.bf16.xpose.msra.mxu0 0
  %7001 = vmatprep.subr.bf16.mxu0 0
  %7002 = vmatpush1.bf16.xpose.msra.mxu0 0
  %7003 = vmatprep.subr.bf16.mxu0 0
  %7004 = vmatpush1.bf16.xpose.msra.mxu0 0
  %7005 = vmatprep.subr.bf16.mxu0 0
  %7006 = vmatpush1.bf16.xpose.msra.mxu0 0
  %7007 = vmatprep.subr.bf16.mxu0 0
  %7008 = vmatpush1.bf16.xpose.msra.mxu0 0
  %7009 = vmatprep.subr.bf16.mxu0 0
  %7010 = vmatpush1.bf16.xpose.msra.mxu0 0
  %7011 = vmatprep.subr.bf16.mxu0 0
  %7012 = vmatpush1.bf16.xpose.msra.mxu0 0
  %7013 = vmatprep.subr.bf16.mxu0 0
  %7014 = vmatpush1.bf16.xpose.msra.mxu0 0
  %7015 = vmatprep.subr.bf16.mxu0 0
  %7016 = vmatpush1.bf16.xpose.msra.mxu0 0
  %7017 = vmatprep.subr.bf16.mxu0 0
  %7018 = vmatpush1.bf16.xpose.msra.mxu0 0
  %7019 = vmatprep.subr.bf16.mxu0 0
  %7020 = vmatpush1.bf16.xpose.msra.mxu0 0
  %7021 = vmatprep.subr.bf16.mxu0 0
  %7022 = vmatpush1.bf16.xpose.msra.mxu0 0
  %7023 = vmatprep.mubr.bf16.mxu0 0
  %7024 = vmatmul.mubr.bf16.gmra.mrb[0].mxu0 %v6986
  %v7025 = vpop.f32.mrb[0].mxu0
  %v7026 = vadd.f32 0.0, %v7025
  %v7027 = vpop.f32.mrb[0].mxu0
  %v7028 = vpop.f32.mrb[0].mxu0
  %v7029 = vpop.f32.mrb[0].mxu0
  %7030 = vdwg.mxu0
  %7031 = vrot.lane.b32.xlu0 %v4945, 112
  %v7032 = vpop.permute.xlu0 %7031
  %7033 = vrot.lane.b32.xlu0 %v4945, 80
  %v7034 = vpop.permute.xlu0 %7033
  %v7036 = vsel %vm401, %v7032, 0
  %v7039 = vsel %vm401, %v7034, 0
  %7041 = vmatprep.subr.bf16.mxu0 0
  %7042 = vmatpush1.bf16.xpose.msra.mxu0 %v7039
  %7043 = vmatprep.subr.bf16.mxu0 0
  %7044 = vmatpush1.bf16.xpose.msra.mxu0 0
  %7045 = vmatprep.subr.bf16.mxu0 0
  %7046 = vmatpush1.bf16.xpose.msra.mxu0 0
  %7047 = vmatprep.subr.bf16.mxu0 0
  %7048 = vmatpush1.bf16.xpose.msra.mxu0 0
  %7049 = vmatprep.subr.bf16.mxu0 0
  %7050 = vmatpush1.bf16.xpose.msra.mxu0 0
  %7051 = vmatprep.subr.bf16.mxu0 0
  %7052 = vmatpush1.bf16.xpose.msra.mxu0 0
  %7053 = vmatprep.subr.bf16.mxu0 0
  %7054 = vmatpush1.bf16.xpose.msra.mxu0 0
  %7055 = vmatprep.subr.bf16.mxu0 0
  %7056 = vmatpush1.bf16.xpose.msra.mxu0 0
  %7057 = vmatprep.subr.bf16.mxu0 0
  %7058 = vmatpush1.bf16.xpose.msra.mxu0 0
  %7059 = vmatprep.subr.bf16.mxu0 0
  %7060 = vmatpush1.bf16.xpose.msra.mxu0 0
  %7061 = vmatprep.subr.bf16.mxu0 0
  %7062 = vmatpush1.bf16.xpose.msra.mxu0 0
  %7063 = vmatprep.subr.bf16.mxu0 0
  %7064 = vmatpush1.bf16.xpose.msra.mxu0 0
  %7065 = vmatprep.subr.bf16.mxu0 0
  %7066 = vmatpush1.bf16.xpose.msra.mxu0 0
  %7067 = vmatprep.subr.bf16.mxu0 0
  %7068 = vmatpush1.bf16.xpose.msra.mxu0 0
  %7069 = vmatprep.subr.bf16.mxu0 0
  %7070 = vmatpush1.bf16.xpose.msra.mxu0 0
  %7071 = vmatprep.subr.bf16.mxu0 0
  %7072 = vmatpush1.bf16.xpose.msra.mxu0 0
  %7073 = vmatprep.mubr.bf16.mxu0 0
  %7074 = vmatmul.mubr.bf16.gmra.mrb[0].mxu0 %v7036
  %v7075 = vpop.f32.mrb[0].mxu0
  %v7076 = vadd.f32 0.0, %v7075
  %v7077 = vpop.f32.mrb[0].mxu0
  %v7078 = vpop.f32.mrb[0].mxu0
  %v7079 = vpop.f32.mrb[0].mxu0
  %7080 = vdwg.mxu0
  %7081 = vrot.lane.b32.xlu0 %v4946, 112
  %v7082 = vpop.permute.xlu0 %7081
  %7083 = vrot.lane.b32.xlu0 %v4946, 80
  %v7084 = vpop.permute.xlu0 %7083
  %v7086 = vsel %vm401, %v7082, 0
  %v7089 = vsel %vm401, %v7084, 0
  %7091 = vmatprep.subr.bf16.mxu0 0
  %7092 = vmatpush1.bf16.xpose.msra.mxu0 %v7089
  %7093 = vmatprep.subr.bf16.mxu0 0
  %7094 = vmatpush1.bf16.xpose.msra.mxu0 0
  %7095 = vmatprep.subr.bf16.mxu0 0
  %7096 = vmatpush1.bf16.xpose.msra.mxu0 0
  %7097 = vmatprep.subr.bf16.mxu0 0
  %7098 = vmatpush1.bf16.xpose.msra.mxu0 0
  %7099 = vmatprep.subr.bf16.mxu0 0
  %7100 = vmatpush1.bf16.xpose.msra.mxu0 0
  %7101 = vmatprep.subr.bf16.mxu0 0
  %7102 = vmatpush1.bf16.xpose.msra.mxu0 0
  %7103 = vmatprep.subr.bf16.mxu0 0
  %7104 = vmatpush1.bf16.xpose.msra.mxu0 0
  %7105 = vmatprep.subr.bf16.mxu0 0
  %7106 = vmatpush1.bf16.xpose.msra.mxu0 0
  %7107 = vmatprep.subr.bf16.mxu0 0
  %7108 = vmatpush1.bf16.xpose.msra.mxu0 0
  %7109 = vmatprep.subr.bf16.mxu0 0
  %7110 = vmatpush1.bf16.xpose.msra.mxu0 0
  %7111 = vmatprep.subr.bf16.mxu0 0
  %7112 = vmatpush1.bf16.xpose.msra.mxu0 0
  %7113 = vmatprep.subr.bf16.mxu0 0
  %7114 = vmatpush1.bf16.xpose.msra.mxu0 0
  %7115 = vmatprep.subr.bf16.mxu0 0
  %7116 = vmatpush1.bf16.xpose.msra.mxu0 0
  %7117 = vmatprep.subr.bf16.mxu0 0
  %7118 = vmatpush1.bf16.xpose.msra.mxu0 0
  %7119 = vmatprep.subr.bf16.mxu0 0
  %7120 = vmatpush1.bf16.xpose.msra.mxu0 0
  %7121 = vmatprep.subr.bf16.mxu0 0
  %7122 = vmatpush1.bf16.xpose.msra.mxu0 0
  %7123 = vmatprep.mubr.bf16.mxu0 0
  %7124 = vmatmul.mubr.bf16.gmra.mrb[0].mxu0 %v7086
  %v7125 = vpop.f32.mrb[0].mxu0
  %v7126 = vadd.f32 0.0, %v7125
  %v7127 = vpop.f32.mrb[0].mxu0
  %v7128 = vpop.f32.mrb[0].mxu0
  %v7129 = vpop.f32.mrb[0].mxu0
  %7130 = vdwg.mxu0
  %v7131 = vmul.f32 %v6776, 0.35355338
  %v7132 = vmul.f32 %v6826, 0.35355338
  %v7133 = vmul.f32 %v6876, 0.35355338
  %v7134 = vmul.f32 %v6926, 0.35355338
  %v7135 = vmul.f32 %v6976, 0.35355338
  %v7136 = vmul.f32 %v7026, 0.35355338
  %v7137 = vmul.f32 %v7076, 0.35355338
  %v7138 = vmul.f32 %v7126, 0.35355338
  %v7139 = vadd.f32 %v7131, %v810
  %v7140 = vadd.f32 %v7132, %v814
  %v7141 = vadd.f32 %v7133, %v818
  %v7142 = vadd.f32 %v7134, %v822
  %v7143 = vadd.f32 %v7135, %v826
  %v7144 = vadd.f32 %v7136, %v830
  %v7145 = vadd.f32 %v7137, %v834
  %v7146 = vadd.f32 %v7138, %v838
  %v7147 = vsel %vm401, %v7139, -inf
  %7148 = vmax.xlane.f32.xlu0 %v7147
  %v7149 = vpop.xlane.xlu0 %7148
  %v7150 = vsel %vm401, %v7140, -inf
  %7151 = vmax.xlane.f32.xlu0 %v7150
  %v7152 = vpop.xlane.xlu0 %7151
  %v7153 = vsel %vm401, %v7141, -inf
  %7154 = vmax.xlane.f32.xlu0 %v7153
  %v7155 = vpop.xlane.xlu0 %7154
  %v7156 = vsel %vm401, %v7142, -inf
  %7157 = vmax.xlane.f32.xlu0 %v7156
  %v7158 = vpop.xlane.xlu0 %7157
  %v7159 = vsel %vm401, %v7143, -inf
  %7160 = vmax.xlane.f32.xlu0 %v7159
  %v7161 = vpop.xlane.xlu0 %7160
  %v7162 = vsel %vm401, %v7144, -inf
  %7163 = vmax.xlane.f32.xlu0 %v7162
  %v7164 = vpop.xlane.xlu0 %7163
  %v7165 = vsel %vm401, %v7145, -inf
  %7166 = vmax.xlane.f32.xlu0 %v7165
  %v7167 = vpop.xlane.xlu0 %7166
  %v7168 = vsel %vm401, %v7146, -inf
  %7169 = vmax.xlane.f32.xlu0 %v7168
  %v7170 = vpop.xlane.xlu0 %7169
  %v7171 = vsub.f32 %v7139, %v7149
  %v7172 = vsub.f32 %v7140, %v7152
  %v7173 = vsub.f32 %v7141, %v7155
  %v7174 = vsub.f32 %v7142, %v7158
  %v7175 = vsub.f32 %v7143, %v7161
  %v7176 = vsub.f32 %v7144, %v7164
  %v7177 = vsub.f32 %v7145, %v7167
  %v7178 = vsub.f32 %v7146, %v7170
  %v7179 = vmul.f32 %v7171, 1.442695
  %v7180 = vpow.pop %v7179
  %v7181 = vmul.f32 %v7172, 1.442695
  %v7182 = vpow.pop %v7181
  %v7183 = vmul.f32 %v7173, 1.442695
  %v7184 = vpow.pop %v7183
  %v7185 = vmul.f32 %v7174, 1.442695
  %v7186 = vpow.pop %v7185
  %v7187 = vmul.f32 %v7175, 1.442695
  %v7188 = vpow.pop %v7187
  %v7189 = vmul.f32 %v7176, 1.442695
  %v7190 = vpow.pop %v7189
  %v7191 = vmul.f32 %v7177, 1.442695
  %v7192 = vpow.pop %v7191
  %v7193 = vmul.f32 %v7178, 1.442695
  %v7194 = vpow.pop %v7193
  %v7195 = vsel %vm401, %v7180, 0.0
  %7196 = vadd.xlane.f32.xlu0 %v7195
  %v7197 = vpop.xlane.xlu0 %7196
  %v7198 = vsel %vm401, %v7182, 0.0
  %7199 = vadd.xlane.f32.xlu0 %v7198
  %v7200 = vpop.xlane.xlu0 %7199
  %v7201 = vsel %vm401, %v7184, 0.0
  %7202 = vadd.xlane.f32.xlu0 %v7201
  %v7203 = vpop.xlane.xlu0 %7202
  %v7204 = vsel %vm401, %v7186, 0.0
  %7205 = vadd.xlane.f32.xlu0 %v7204
  %v7206 = vpop.xlane.xlu0 %7205
  %v7207 = vsel %vm401, %v7188, 0.0
  %7208 = vadd.xlane.f32.xlu0 %v7207
  %v7209 = vpop.xlane.xlu0 %7208
  %v7210 = vsel %vm401, %v7190, 0.0
  %7211 = vadd.xlane.f32.xlu0 %v7210
  %v7212 = vpop.xlane.xlu0 %7211
  %v7213 = vsel %vm401, %v7192, 0.0
  %7214 = vadd.xlane.f32.xlu0 %v7213
  %v7215 = vpop.xlane.xlu0 %7214
  %v7216 = vsel %vm401, %v7194, 0.0
  %7217 = vadd.xlane.f32.xlu0 %v7216
  %v7218 = vpop.xlane.xlu0 %7217
  %v7219 = vrcp.pop %v7197
  %v7220 = vrcp.pop %v7200
  %v7221 = vrcp.pop %v7203
  %v7222 = vrcp.pop %v7206
  %v7223 = vrcp.pop %v7209
  %v7224 = vrcp.pop %v7212
  %v7225 = vrcp.pop %v7215
  %v7226 = vrcp.pop %v7218
  %v7227 = vmul.f32 %v7180, %v7219
  %v7228 = vmul.f32 %v7182, %v7220
  %v7229 = vmul.f32 %v7184, %v7221
  %v7230 = vmul.f32 %v7186, %v7222
  %v7231 = vmul.f32 %v7188, %v7223
  %v7232 = vmul.f32 %v7190, %v7224
  %v7233 = vmul.f32 %v7192, %v7225
  %v7234 = vmul.f32 %v7194, %v7226
  %v7235 = vpack.c.bf16 %v7227, %v7227
  %v7236 = vpack.c.bf16 %v7228, %v7228
  %v7237 = vpack.c.bf16 %v7229, %v7229
  %v7238 = vpack.c.bf16 %v7230, %v7230
  %v7239 = vpack.c.bf16 %v7231, %v7231
  %v7240 = vpack.c.bf16 %v7232, %v7232
  %v7241 = vpack.c.bf16 %v7233, %v7233
  %v7242 = vpack.c.bf16 %v7234, %v7234
  %7243 = vrot.lane.b32.xlu0 %v4939, 48
  %v7244 = vpop.permute.xlu0 %7243
  %v7246 = vsel %vm401, %v7235, 0
  %v7249 = vsel %vm956, %v7244, 0
  %7251 = vmatprep.subr.bf16.mxu0 0
  %7252 = vmatpush1.bf16.msra.mxu0 %v7249
  %7253 = vmatprep.subr.bf16.mxu0 0
  %7254 = vmatpush1.bf16.msra.mxu0 0
  %7255 = vmatprep.subr.bf16.mxu0 0
  %7256 = vmatpush1.bf16.msra.mxu0 0
  %7257 = vmatprep.subr.bf16.mxu0 0
  %7258 = vmatpush1.bf16.msra.mxu0 0
  %7259 = vmatprep.subr.bf16.mxu0 0
  %7260 = vmatpush1.bf16.msra.mxu0 0
  %7261 = vmatprep.subr.bf16.mxu0 0
  %7262 = vmatpush1.bf16.msra.mxu0 0
  %7263 = vmatprep.subr.bf16.mxu0 0
  %7264 = vmatpush1.bf16.msra.mxu0 0
  %7265 = vmatprep.subr.bf16.mxu0 0
  %7266 = vmatpush1.bf16.msra.mxu0 0
  %7267 = vmatprep.subr.bf16.mxu0 0
  %7268 = vmatpush1.bf16.msra.mxu0 0
  %7269 = vmatprep.subr.bf16.mxu0 0
  %7270 = vmatpush1.bf16.msra.mxu0 0
  %7271 = vmatprep.subr.bf16.mxu0 0
  %7272 = vmatpush1.bf16.msra.mxu0 0
  %7273 = vmatprep.subr.bf16.mxu0 0
  %7274 = vmatpush1.bf16.msra.mxu0 0
  %7275 = vmatprep.subr.bf16.mxu0 0
  %7276 = vmatpush1.bf16.msra.mxu0 0
  %7277 = vmatprep.subr.bf16.mxu0 0
  %7278 = vmatpush1.bf16.msra.mxu0 0
  %7279 = vmatprep.subr.bf16.mxu0 0
  %7280 = vmatpush1.bf16.msra.mxu0 0
  %7281 = vmatprep.subr.bf16.mxu0 0
  %7282 = vmatpush1.bf16.msra.mxu0 0
  %7283 = vmatprep.mubr.bf16.mxu0 0
  %7284 = vmatmul.mubr.bf16.gmra.mrb[0].mxu0 %v7246
  %v7285 = vpop.f32.mrb[0].mxu0
  %v7286 = vadd.f32 0.0, %v7285
  %v7287 = vpop.f32.mrb[0].mxu0
  %v7288 = vpop.f32.mrb[0].mxu0
  %v7289 = vpop.f32.mrb[0].mxu0
  %7290 = vdwg.mxu0
  %7291 = vrot.lane.b32.xlu0 %v4940, 48
  %v7292 = vpop.permute.xlu0 %7291
  %v7294 = vsel %vm401, %v7236, 0
  %v7297 = vsel %vm956, %v7292, 0
  %7299 = vmatprep.subr.bf16.mxu0 0
  %7300 = vmatpush1.bf16.msra.mxu0 %v7297
  %7301 = vmatprep.subr.bf16.mxu0 0
  %7302 = vmatpush1.bf16.msra.mxu0 0
  %7303 = vmatprep.subr.bf16.mxu0 0
  %7304 = vmatpush1.bf16.msra.mxu0 0
  %7305 = vmatprep.subr.bf16.mxu0 0
  %7306 = vmatpush1.bf16.msra.mxu0 0
  %7307 = vmatprep.subr.bf16.mxu0 0
  %7308 = vmatpush1.bf16.msra.mxu0 0
  %7309 = vmatprep.subr.bf16.mxu0 0
  %7310 = vmatpush1.bf16.msra.mxu0 0
  %7311 = vmatprep.subr.bf16.mxu0 0
  %7312 = vmatpush1.bf16.msra.mxu0 0
  %7313 = vmatprep.subr.bf16.mxu0 0
  %7314 = vmatpush1.bf16.msra.mxu0 0
  %7315 = vmatprep.subr.bf16.mxu0 0
  %7316 = vmatpush1.bf16.msra.mxu0 0
  %7317 = vmatprep.subr.bf16.mxu0 0
  %7318 = vmatpush1.bf16.msra.mxu0 0
  %7319 = vmatprep.subr.bf16.mxu0 0
  %7320 = vmatpush1.bf16.msra.mxu0 0
  %7321 = vmatprep.subr.bf16.mxu0 0
  %7322 = vmatpush1.bf16.msra.mxu0 0
  %7323 = vmatprep.subr.bf16.mxu0 0
  %7324 = vmatpush1.bf16.msra.mxu0 0
  %7325 = vmatprep.subr.bf16.mxu0 0
  %7326 = vmatpush1.bf16.msra.mxu0 0
  %7327 = vmatprep.subr.bf16.mxu0 0
  %7328 = vmatpush1.bf16.msra.mxu0 0
  %7329 = vmatprep.subr.bf16.mxu0 0
  %7330 = vmatpush1.bf16.msra.mxu0 0
  %7331 = vmatprep.mubr.bf16.mxu0 0
  %7332 = vmatmul.mubr.bf16.gmra.mrb[0].mxu0 %v7294
  %v7333 = vpop.f32.mrb[0].mxu0
  %v7334 = vadd.f32 0.0, %v7333
  %v7335 = vpop.f32.mrb[0].mxu0
  %v7336 = vpop.f32.mrb[0].mxu0
  %v7337 = vpop.f32.mrb[0].mxu0
  %7338 = vdwg.mxu0
  %7339 = vrot.lane.b32.xlu0 %v4941, 48
  %v7340 = vpop.permute.xlu0 %7339
  %v7342 = vsel %vm401, %v7237, 0
  %v7345 = vsel %vm956, %v7340, 0
  %7347 = vmatprep.subr.bf16.mxu0 0
  %7348 = vmatpush1.bf16.msra.mxu0 %v7345
  %7349 = vmatprep.subr.bf16.mxu0 0
  %7350 = vmatpush1.bf16.msra.mxu0 0
  %7351 = vmatprep.subr.bf16.mxu0 0
  %7352 = vmatpush1.bf16.msra.mxu0 0
  %7353 = vmatprep.subr.bf16.mxu0 0
  %7354 = vmatpush1.bf16.msra.mxu0 0
  %7355 = vmatprep.subr.bf16.mxu0 0
  %7356 = vmatpush1.bf16.msra.mxu0 0
  %7357 = vmatprep.subr.bf16.mxu0 0
  %7358 = vmatpush1.bf16.msra.mxu0 0
  %7359 = vmatprep.subr.bf16.mxu0 0
  %7360 = vmatpush1.bf16.msra.mxu0 0
  %7361 = vmatprep.subr.bf16.mxu0 0
  %7362 = vmatpush1.bf16.msra.mxu0 0
  %7363 = vmatprep.subr.bf16.mxu0 0
  %7364 = vmatpush1.bf16.msra.mxu0 0
  %7365 = vmatprep.subr.bf16.mxu0 0
  %7366 = vmatpush1.bf16.msra.mxu0 0
  %7367 = vmatprep.subr.bf16.mxu0 0
  %7368 = vmatpush1.bf16.msra.mxu0 0
  %7369 = vmatprep.subr.bf16.mxu0 0
  %7370 = vmatpush1.bf16.msra.mxu0 0
  %7371 = vmatprep.subr.bf16.mxu0 0
  %7372 = vmatpush1.bf16.msra.mxu0 0
  %7373 = vmatprep.subr.bf16.mxu0 0
  %7374 = vmatpush1.bf16.msra.mxu0 0
  %7375 = vmatprep.subr.bf16.mxu0 0
  %7376 = vmatpush1.bf16.msra.mxu0 0
  %7377 = vmatprep.subr.bf16.mxu0 0
  %7378 = vmatpush1.bf16.msra.mxu0 0
  %7379 = vmatprep.mubr.bf16.mxu0 0
  %7380 = vmatmul.mubr.bf16.gmra.mrb[0].mxu0 %v7342
  %v7381 = vpop.f32.mrb[0].mxu0
  %v7382 = vadd.f32 0.0, %v7381
  %v7383 = vpop.f32.mrb[0].mxu0
  %v7384 = vpop.f32.mrb[0].mxu0
  %v7385 = vpop.f32.mrb[0].mxu0
  %7386 = vdwg.mxu0
  %7387 = vrot.lane.b32.xlu0 %v4942, 48
  %v7388 = vpop.permute.xlu0 %7387
  %v7390 = vsel %vm401, %v7238, 0
  %v7393 = vsel %vm956, %v7388, 0
  %7395 = vmatprep.subr.bf16.mxu0 0
  %7396 = vmatpush1.bf16.msra.mxu0 %v7393
  %7397 = vmatprep.subr.bf16.mxu0 0
  %7398 = vmatpush1.bf16.msra.mxu0 0
  %7399 = vmatprep.subr.bf16.mxu0 0
  %7400 = vmatpush1.bf16.msra.mxu0 0
  %7401 = vmatprep.subr.bf16.mxu0 0
  %7402 = vmatpush1.bf16.msra.mxu0 0
  %7403 = vmatprep.subr.bf16.mxu0 0
  %7404 = vmatpush1.bf16.msra.mxu0 0
  %7405 = vmatprep.subr.bf16.mxu0 0
  %7406 = vmatpush1.bf16.msra.mxu0 0
  %7407 = vmatprep.subr.bf16.mxu0 0
  %7408 = vmatpush1.bf16.msra.mxu0 0
  %7409 = vmatprep.subr.bf16.mxu0 0
  %7410 = vmatpush1.bf16.msra.mxu0 0
  %7411 = vmatprep.subr.bf16.mxu0 0
  %7412 = vmatpush1.bf16.msra.mxu0 0
  %7413 = vmatprep.subr.bf16.mxu0 0
  %7414 = vmatpush1.bf16.msra.mxu0 0
  %7415 = vmatprep.subr.bf16.mxu0 0
  %7416 = vmatpush1.bf16.msra.mxu0 0
  %7417 = vmatprep.subr.bf16.mxu0 0
  %7418 = vmatpush1.bf16.msra.mxu0 0
  %7419 = vmatprep.subr.bf16.mxu0 0
  %7420 = vmatpush1.bf16.msra.mxu0 0
  %7421 = vmatprep.subr.bf16.mxu0 0
  %7422 = vmatpush1.bf16.msra.mxu0 0
  %7423 = vmatprep.subr.bf16.mxu0 0
  %7424 = vmatpush1.bf16.msra.mxu0 0
  %7425 = vmatprep.subr.bf16.mxu0 0
  %7426 = vmatpush1.bf16.msra.mxu0 0
  %7427 = vmatprep.mubr.bf16.mxu0 0
  %7428 = vmatmul.mubr.bf16.gmra.mrb[0].mxu0 %v7390
  %v7429 = vpop.f32.mrb[0].mxu0
  %v7430 = vadd.f32 0.0, %v7429
  %v7431 = vpop.f32.mrb[0].mxu0
  %v7432 = vpop.f32.mrb[0].mxu0
  %v7433 = vpop.f32.mrb[0].mxu0
  %7434 = vdwg.mxu0
  %7435 = vrot.lane.b32.xlu0 %v4943, 48
  %v7436 = vpop.permute.xlu0 %7435
  %v7438 = vsel %vm401, %v7239, 0
  %v7441 = vsel %vm956, %v7436, 0
  %7443 = vmatprep.subr.bf16.mxu0 0
  %7444 = vmatpush1.bf16.msra.mxu0 %v7441
  %7445 = vmatprep.subr.bf16.mxu0 0
  %7446 = vmatpush1.bf16.msra.mxu0 0
  %7447 = vmatprep.subr.bf16.mxu0 0
  %7448 = vmatpush1.bf16.msra.mxu0 0
  %7449 = vmatprep.subr.bf16.mxu0 0
  %7450 = vmatpush1.bf16.msra.mxu0 0
  %7451 = vmatprep.subr.bf16.mxu0 0
  %7452 = vmatpush1.bf16.msra.mxu0 0
  %7453 = vmatprep.subr.bf16.mxu0 0
  %7454 = vmatpush1.bf16.msra.mxu0 0
  %7455 = vmatprep.subr.bf16.mxu0 0
  %7456 = vmatpush1.bf16.msra.mxu0 0
  %7457 = vmatprep.subr.bf16.mxu0 0
  %7458 = vmatpush1.bf16.msra.mxu0 0
  %7459 = vmatprep.subr.bf16.mxu0 0
  %7460 = vmatpush1.bf16.msra.mxu0 0
  %7461 = vmatprep.subr.bf16.mxu0 0
  %7462 = vmatpush1.bf16.msra.mxu0 0
  %7463 = vmatprep.subr.bf16.mxu0 0
  %7464 = vmatpush1.bf16.msra.mxu0 0
  %7465 = vmatprep.subr.bf16.mxu0 0
  %7466 = vmatpush1.bf16.msra.mxu0 0
  %7467 = vmatprep.subr.bf16.mxu0 0
  %7468 = vmatpush1.bf16.msra.mxu0 0
  %7469 = vmatprep.subr.bf16.mxu0 0
  %7470 = vmatpush1.bf16.msra.mxu0 0
  %7471 = vmatprep.subr.bf16.mxu0 0
  %7472 = vmatpush1.bf16.msra.mxu0 0
  %7473 = vmatprep.subr.bf16.mxu0 0
  %7474 = vmatpush1.bf16.msra.mxu0 0
  %7475 = vmatprep.mubr.bf16.mxu0 0
  %7476 = vmatmul.mubr.bf16.gmra.mrb[0].mxu0 %v7438
  %v7477 = vpop.f32.mrb[0].mxu0
  %v7478 = vadd.f32 0.0, %v7477
  %v7479 = vpop.f32.mrb[0].mxu0
  %v7480 = vpop.f32.mrb[0].mxu0
  %v7481 = vpop.f32.mrb[0].mxu0
  %7482 = vdwg.mxu0
  %7483 = vrot.lane.b32.xlu0 %v4944, 48
  %v7484 = vpop.permute.xlu0 %7483
  %v7486 = vsel %vm401, %v7240, 0
  %v7489 = vsel %vm956, %v7484, 0
  %7491 = vmatprep.subr.bf16.mxu0 0
  %7492 = vmatpush1.bf16.msra.mxu0 %v7489
  %7493 = vmatprep.subr.bf16.mxu0 0
  %7494 = vmatpush1.bf16.msra.mxu0 0
  %7495 = vmatprep.subr.bf16.mxu0 0
  %7496 = vmatpush1.bf16.msra.mxu0 0
  %7497 = vmatprep.subr.bf16.mxu0 0
  %7498 = vmatpush1.bf16.msra.mxu0 0
  %7499 = vmatprep.subr.bf16.mxu0 0
  %7500 = vmatpush1.bf16.msra.mxu0 0
  %7501 = vmatprep.subr.bf16.mxu0 0
  %7502 = vmatpush1.bf16.msra.mxu0 0
  %7503 = vmatprep.subr.bf16.mxu0 0
  %7504 = vmatpush1.bf16.msra.mxu0 0
  %7505 = vmatprep.subr.bf16.mxu0 0
  %7506 = vmatpush1.bf16.msra.mxu0 0
  %7507 = vmatprep.subr.bf16.mxu0 0
  %7508 = vmatpush1.bf16.msra.mxu0 0
  %7509 = vmatprep.subr.bf16.mxu0 0
  %7510 = vmatpush1.bf16.msra.mxu0 0
  %7511 = vmatprep.subr.bf16.mxu0 0
  %7512 = vmatpush1.bf16.msra.mxu0 0
  %7513 = vmatprep.subr.bf16.mxu0 0
  %7514 = vmatpush1.bf16.msra.mxu0 0
  %7515 = vmatprep.subr.bf16.mxu0 0
  %7516 = vmatpush1.bf16.msra.mxu0 0
  %7517 = vmatprep.subr.bf16.mxu0 0
  %7518 = vmatpush1.bf16.msra.mxu0 0
  %7519 = vmatprep.subr.bf16.mxu0 0
  %7520 = vmatpush1.bf16.msra.mxu0 0
  %7521 = vmatprep.subr.bf16.mxu0 0
  %7522 = vmatpush1.bf16.msra.mxu0 0
  %7523 = vmatprep.mubr.bf16.mxu0 0
  %7524 = vmatmul.mubr.bf16.gmra.mrb[0].mxu0 %v7486
  %v7525 = vpop.f32.mrb[0].mxu0
  %v7526 = vadd.f32 0.0, %v7525
  %v7527 = vpop.f32.mrb[0].mxu0
  %v7528 = vpop.f32.mrb[0].mxu0
  %v7529 = vpop.f32.mrb[0].mxu0
  %7530 = vdwg.mxu0
  %7531 = vrot.lane.b32.xlu0 %v4945, 48
  %v7532 = vpop.permute.xlu0 %7531
  %v7534 = vsel %vm401, %v7241, 0
  %v7537 = vsel %vm956, %v7532, 0
  %7539 = vmatprep.subr.bf16.mxu0 0
  %7540 = vmatpush1.bf16.msra.mxu0 %v7537
  %7541 = vmatprep.subr.bf16.mxu0 0
  %7542 = vmatpush1.bf16.msra.mxu0 0
  %7543 = vmatprep.subr.bf16.mxu0 0
  %7544 = vmatpush1.bf16.msra.mxu0 0
  %7545 = vmatprep.subr.bf16.mxu0 0
  %7546 = vmatpush1.bf16.msra.mxu0 0
  %7547 = vmatprep.subr.bf16.mxu0 0
  %7548 = vmatpush1.bf16.msra.mxu0 0
  %7549 = vmatprep.subr.bf16.mxu0 0
  %7550 = vmatpush1.bf16.msra.mxu0 0
  %7551 = vmatprep.subr.bf16.mxu0 0
  %7552 = vmatpush1.bf16.msra.mxu0 0
  %7553 = vmatprep.subr.bf16.mxu0 0
  %7554 = vmatpush1.bf16.msra.mxu0 0
  %7555 = vmatprep.subr.bf16.mxu0 0
  %7556 = vmatpush1.bf16.msra.mxu0 0
  %7557 = vmatprep.subr.bf16.mxu0 0
  %7558 = vmatpush1.bf16.msra.mxu0 0
  %7559 = vmatprep.subr.bf16.mxu0 0
  %7560 = vmatpush1.bf16.msra.mxu0 0
  %7561 = vmatprep.subr.bf16.mxu0 0
  %7562 = vmatpush1.bf16.msra.mxu0 0
  %7563 = vmatprep.subr.bf16.mxu0 0
  %7564 = vmatpush1.bf16.msra.mxu0 0
  %7565 = vmatprep.subr.bf16.mxu0 0
  %7566 = vmatpush1.bf16.msra.mxu0 0
  %7567 = vmatprep.subr.bf16.mxu0 0
  %7568 = vmatpush1.bf16.msra.mxu0 0
  %7569 = vmatprep.subr.bf16.mxu0 0
  %7570 = vmatpush1.bf16.msra.mxu0 0
  %7571 = vmatprep.mubr.bf16.mxu0 0
  %7572 = vmatmul.mubr.bf16.gmra.mrb[0].mxu0 %v7534
  %v7573 = vpop.f32.mrb[0].mxu0
  %v7574 = vadd.f32 0.0, %v7573
  %v7575 = vpop.f32.mrb[0].mxu0
  %v7576 = vpop.f32.mrb[0].mxu0
  %v7577 = vpop.f32.mrb[0].mxu0
  %7578 = vdwg.mxu0
  %7579 = vrot.lane.b32.xlu0 %v4946, 48
  %v7580 = vpop.permute.xlu0 %7579
  %v7582 = vsel %vm401, %v7242, 0
  %v7585 = vsel %vm956, %v7580, 0
  %7587 = vmatprep.subr.bf16.mxu0 0
  %7588 = vmatpush1.bf16.msra.mxu0 %v7585
  %7589 = vmatprep.subr.bf16.mxu0 0
  %7590 = vmatpush1.bf16.msra.mxu0 0
  %7591 = vmatprep.subr.bf16.mxu0 0
  %7592 = vmatpush1.bf16.msra.mxu0 0
  %7593 = vmatprep.subr.bf16.mxu0 0
  %7594 = vmatpush1.bf16.msra.mxu0 0
  %7595 = vmatprep.subr.bf16.mxu0 0
  %7596 = vmatpush1.bf16.msra.mxu0 0
  %7597 = vmatprep.subr.bf16.mxu0 0
  %7598 = vmatpush1.bf16.msra.mxu0 0
  %7599 = vmatprep.subr.bf16.mxu0 0
  %7600 = vmatpush1.bf16.msra.mxu0 0
  %7601 = vmatprep.subr.bf16.mxu0 0
  %7602 = vmatpush1.bf16.msra.mxu0 0
  %7603 = vmatprep.subr.bf16.mxu0 0
  %7604 = vmatpush1.bf16.msra.mxu0 0
  %7605 = vmatprep.subr.bf16.mxu0 0
  %7606 = vmatpush1.bf16.msra.mxu0 0
  %7607 = vmatprep.subr.bf16.mxu0 0
  %7608 = vmatpush1.bf16.msra.mxu0 0
  %7609 = vmatprep.subr.bf16.mxu0 0
  %7610 = vmatpush1.bf16.msra.mxu0 0
  %7611 = vmatprep.subr.bf16.mxu0 0
  %7612 = vmatpush1.bf16.msra.mxu0 0
  %7613 = vmatprep.subr.bf16.mxu0 0
  %7614 = vmatpush1.bf16.msra.mxu0 0
  %7615 = vmatprep.subr.bf16.mxu0 0
  %7616 = vmatpush1.bf16.msra.mxu0 0
  %7617 = vmatprep.subr.bf16.mxu0 0
  %7618 = vmatpush1.bf16.msra.mxu0 0
  %7619 = vmatprep.mubr.bf16.mxu0 0
  %7620 = vmatmul.mubr.bf16.gmra.mrb[0].mxu0 %v7582
  %v7621 = vpop.f32.mrb[0].mxu0
  %v7622 = vadd.f32 0.0, %v7621
  %v7623 = vpop.f32.mrb[0].mxu0
  %v7624 = vpop.f32.mrb[0].mxu0
  %v7625 = vpop.f32.mrb[0].mxu0
  %7626 = vdwg.mxu0
  %7627 = vrot.lane.b32.xlu0 %v4939, 104
  %v7628 = vpop.permute.xlu0 %7627
  %7629 = vrot.lane.b32.xlu0 %v4939, 72
  %v7630 = vpop.permute.xlu0 %7629
  %v7632 = vsel %vm401, %v7628, 0
  %v7635 = vsel %vm401, %v7630, 0
  %7637 = vmatprep.subr.bf16.mxu0 0
  %7638 = vmatpush1.bf16.xpose.msra.mxu0 %v7635
  %7639 = vmatprep.subr.bf16.mxu0 0
  %7640 = vmatpush1.bf16.xpose.msra.mxu0 0
  %7641 = vmatprep.subr.bf16.mxu0 0
  %7642 = vmatpush1.bf16.xpose.msra.mxu0 0
  %7643 = vmatprep.subr.bf16.mxu0 0
  %7644 = vmatpush1.bf16.xpose.msra.mxu0 0
  %7645 = vmatprep.subr.bf16.mxu0 0
  %7646 = vmatpush1.bf16.xpose.msra.mxu0 0
  %7647 = vmatprep.subr.bf16.mxu0 0
  %7648 = vmatpush1.bf16.xpose.msra.mxu0 0
  %7649 = vmatprep.subr.bf16.mxu0 0
  %7650 = vmatpush1.bf16.xpose.msra.mxu0 0
  %7651 = vmatprep.subr.bf16.mxu0 0
  %7652 = vmatpush1.bf16.xpose.msra.mxu0 0
  %7653 = vmatprep.subr.bf16.mxu0 0
  %7654 = vmatpush1.bf16.xpose.msra.mxu0 0
  %7655 = vmatprep.subr.bf16.mxu0 0
  %7656 = vmatpush1.bf16.xpose.msra.mxu0 0
  %7657 = vmatprep.subr.bf16.mxu0 0
  %7658 = vmatpush1.bf16.xpose.msra.mxu0 0
  %7659 = vmatprep.subr.bf16.mxu0 0
  %7660 = vmatpush1.bf16.xpose.msra.mxu0 0
  %7661 = vmatprep.subr.bf16.mxu0 0
  %7662 = vmatpush1.bf16.xpose.msra.mxu0 0
  %7663 = vmatprep.subr.bf16.mxu0 0
  %7664 = vmatpush1.bf16.xpose.msra.mxu0 0
  %7665 = vmatprep.subr.bf16.mxu0 0
  %7666 = vmatpush1.bf16.xpose.msra.mxu0 0
  %7667 = vmatprep.subr.bf16.mxu0 0
  %7668 = vmatpush1.bf16.xpose.msra.mxu0 0
  %7669 = vmatprep.mubr.bf16.mxu0 0
  %7670 = vmatmul.mubr.bf16.gmra.mrb[0].mxu0 %v7632
  %v7671 = vpop.f32.mrb[0].mxu0
  %v7672 = vadd.f32 0.0, %v7671
  %v7673 = vpop.f32.mrb[0].mxu0
  %v7674 = vpop.f32.mrb[0].mxu0
  %v7675 = vpop.f32.mrb[0].mxu0
  %7676 = vdwg.mxu0
  %7677 = vrot.lane.b32.xlu0 %v4940, 104
  %v7678 = vpop.permute.xlu0 %7677
  %7679 = vrot.lane.b32.xlu0 %v4940, 72
  %v7680 = vpop.permute.xlu0 %7679
  %v7682 = vsel %vm401, %v7678, 0
  %v7685 = vsel %vm401, %v7680, 0
  %7687 = vmatprep.subr.bf16.mxu0 0
  %7688 = vmatpush1.bf16.xpose.msra.mxu0 %v7685
  %7689 = vmatprep.subr.bf16.mxu0 0
  %7690 = vmatpush1.bf16.xpose.msra.mxu0 0
  %7691 = vmatprep.subr.bf16.mxu0 0
  %7692 = vmatpush1.bf16.xpose.msra.mxu0 0
  %7693 = vmatprep.subr.bf16.mxu0 0
  %7694 = vmatpush1.bf16.xpose.msra.mxu0 0
  %7695 = vmatprep.subr.bf16.mxu0 0
  %7696 = vmatpush1.bf16.xpose.msra.mxu0 0
  %7697 = vmatprep.subr.bf16.mxu0 0
  %7698 = vmatpush1.bf16.xpose.msra.mxu0 0
  %7699 = vmatprep.subr.bf16.mxu0 0
  %7700 = vmatpush1.bf16.xpose.msra.mxu0 0
  %7701 = vmatprep.subr.bf16.mxu0 0
  %7702 = vmatpush1.bf16.xpose.msra.mxu0 0
  %7703 = vmatprep.subr.bf16.mxu0 0
  %7704 = vmatpush1.bf16.xpose.msra.mxu0 0
  %7705 = vmatprep.subr.bf16.mxu0 0
  %7706 = vmatpush1.bf16.xpose.msra.mxu0 0
  %7707 = vmatprep.subr.bf16.mxu0 0
  %7708 = vmatpush1.bf16.xpose.msra.mxu0 0
  %7709 = vmatprep.subr.bf16.mxu0 0
  %7710 = vmatpush1.bf16.xpose.msra.mxu0 0
  %7711 = vmatprep.subr.bf16.mxu0 0
  %7712 = vmatpush1.bf16.xpose.msra.mxu0 0
  %7713 = vmatprep.subr.bf16.mxu0 0
  %7714 = vmatpush1.bf16.xpose.msra.mxu0 0
  %7715 = vmatprep.subr.bf16.mxu0 0
  %7716 = vmatpush1.bf16.xpose.msra.mxu0 0
  %7717 = vmatprep.subr.bf16.mxu0 0
  %7718 = vmatpush1.bf16.xpose.msra.mxu0 0
  %7719 = vmatprep.mubr.bf16.mxu0 0
  %7720 = vmatmul.mubr.bf16.gmra.mrb[0].mxu0 %v7682
  %v7721 = vpop.f32.mrb[0].mxu0
  %v7722 = vadd.f32 0.0, %v7721
  %v7723 = vpop.f32.mrb[0].mxu0
  %v7724 = vpop.f32.mrb[0].mxu0
  %v7725 = vpop.f32.mrb[0].mxu0
  %7726 = vdwg.mxu0
  %7727 = vrot.lane.b32.xlu0 %v4941, 104
  %v7728 = vpop.permute.xlu0 %7727
  %7729 = vrot.lane.b32.xlu0 %v4941, 72
  %v7730 = vpop.permute.xlu0 %7729
  %v7732 = vsel %vm401, %v7728, 0
  %v7735 = vsel %vm401, %v7730, 0
  %7737 = vmatprep.subr.bf16.mxu0 0
  %7738 = vmatpush1.bf16.xpose.msra.mxu0 %v7735
  %7739 = vmatprep.subr.bf16.mxu0 0
  %7740 = vmatpush1.bf16.xpose.msra.mxu0 0
  %7741 = vmatprep.subr.bf16.mxu0 0
  %7742 = vmatpush1.bf16.xpose.msra.mxu0 0
  %7743 = vmatprep.subr.bf16.mxu0 0
  %7744 = vmatpush1.bf16.xpose.msra.mxu0 0
  %7745 = vmatprep.subr.bf16.mxu0 0
  %7746 = vmatpush1.bf16.xpose.msra.mxu0 0
  %7747 = vmatprep.subr.bf16.mxu0 0
  %7748 = vmatpush1.bf16.xpose.msra.mxu0 0
  %7749 = vmatprep.subr.bf16.mxu0 0
  %7750 = vmatpush1.bf16.xpose.msra.mxu0 0
  %7751 = vmatprep.subr.bf16.mxu0 0
  %7752 = vmatpush1.bf16.xpose.msra.mxu0 0
  %7753 = vmatprep.subr.bf16.mxu0 0
  %7754 = vmatpush1.bf16.xpose.msra.mxu0 0
  %7755 = vmatprep.subr.bf16.mxu0 0
  %7756 = vmatpush1.bf16.xpose.msra.mxu0 0
  %7757 = vmatprep.subr.bf16.mxu0 0
  %7758 = vmatpush1.bf16.xpose.msra.mxu0 0
  %7759 = vmatprep.subr.bf16.mxu0 0
  %7760 = vmatpush1.bf16.xpose.msra.mxu0 0
  %7761 = vmatprep.subr.bf16.mxu0 0
  %7762 = vmatpush1.bf16.xpose.msra.mxu0 0
  %7763 = vmatprep.subr.bf16.mxu0 0
  %7764 = vmatpush1.bf16.xpose.msra.mxu0 0
  %7765 = vmatprep.subr.bf16.mxu0 0
  %7766 = vmatpush1.bf16.xpose.msra.mxu0 0
  %7767 = vmatprep.subr.bf16.mxu0 0
  %7768 = vmatpush1.bf16.xpose.msra.mxu0 0
  %7769 = vmatprep.mubr.bf16.mxu0 0
  %7770 = vmatmul.mubr.bf16.gmra.mrb[0].mxu0 %v7732
  %v7771 = vpop.f32.mrb[0].mxu0
  %v7772 = vadd.f32 0.0, %v7771
  %v7773 = vpop.f32.mrb[0].mxu0
  %v7774 = vpop.f32.mrb[0].mxu0
  %v7775 = vpop.f32.mrb[0].mxu0
  %7776 = vdwg.mxu0
  %7777 = vrot.lane.b32.xlu0 %v4942, 104
  %v7778 = vpop.permute.xlu0 %7777
  %7779 = vrot.lane.b32.xlu0 %v4942, 72
  %v7780 = vpop.permute.xlu0 %7779
  %v7782 = vsel %vm401, %v7778, 0
  %v7785 = vsel %vm401, %v7780, 0
  %7787 = vmatprep.subr.bf16.mxu0 0
  %7788 = vmatpush1.bf16.xpose.msra.mxu0 %v7785
  %7789 = vmatprep.subr.bf16.mxu0 0
  %7790 = vmatpush1.bf16.xpose.msra.mxu0 0
  %7791 = vmatprep.subr.bf16.mxu0 0
  %7792 = vmatpush1.bf16.xpose.msra.mxu0 0
  %7793 = vmatprep.subr.bf16.mxu0 0
  %7794 = vmatpush1.bf16.xpose.msra.mxu0 0
  %7795 = vmatprep.subr.bf16.mxu0 0
  %7796 = vmatpush1.bf16.xpose.msra.mxu0 0
  %7797 = vmatprep.subr.bf16.mxu0 0
  %7798 = vmatpush1.bf16.xpose.msra.mxu0 0
  %7799 = vmatprep.subr.bf16.mxu0 0
  %7800 = vmatpush1.bf16.xpose.msra.mxu0 0
  %7801 = vmatprep.subr.bf16.mxu0 0
  %7802 = vmatpush1.bf16.xpose.msra.mxu0 0
  %7803 = vmatprep.subr.bf16.mxu0 0
  %7804 = vmatpush1.bf16.xpose.msra.mxu0 0
  %7805 = vmatprep.subr.bf16.mxu0 0
  %7806 = vmatpush1.bf16.xpose.msra.mxu0 0
  %7807 = vmatprep.subr.bf16.mxu0 0
  %7808 = vmatpush1.bf16.xpose.msra.mxu0 0
  %7809 = vmatprep.subr.bf16.mxu0 0
  %7810 = vmatpush1.bf16.xpose.msra.mxu0 0
  %7811 = vmatprep.subr.bf16.mxu0 0
  %7812 = vmatpush1.bf16.xpose.msra.mxu0 0
  %7813 = vmatprep.subr.bf16.mxu0 0
  %7814 = vmatpush1.bf16.xpose.msra.mxu0 0
  %7815 = vmatprep.subr.bf16.mxu0 0
  %7816 = vmatpush1.bf16.xpose.msra.mxu0 0
  %7817 = vmatprep.subr.bf16.mxu0 0
  %7818 = vmatpush1.bf16.xpose.msra.mxu0 0
  %7819 = vmatprep.mubr.bf16.mxu0 0
  %7820 = vmatmul.mubr.bf16.gmra.mrb[0].mxu0 %v7782
  %v7821 = vpop.f32.mrb[0].mxu0
  %v7822 = vadd.f32 0.0, %v7821
  %v7823 = vpop.f32.mrb[0].mxu0
  %v7824 = vpop.f32.mrb[0].mxu0
  %v7825 = vpop.f32.mrb[0].mxu0
  %7826 = vdwg.mxu0
  %7827 = vrot.lane.b32.xlu0 %v4943, 104
  %v7828 = vpop.permute.xlu0 %7827
  %7829 = vrot.lane.b32.xlu0 %v4943, 72
  %v7830 = vpop.permute.xlu0 %7829
  %v7832 = vsel %vm401, %v7828, 0
  %v7835 = vsel %vm401, %v7830, 0
  %7837 = vmatprep.subr.bf16.mxu0 0
  %7838 = vmatpush1.bf16.xpose.msra.mxu0 %v7835
  %7839 = vmatprep.subr.bf16.mxu0 0
  %7840 = vmatpush1.bf16.xpose.msra.mxu0 0
  %7841 = vmatprep.subr.bf16.mxu0 0
  %7842 = vmatpush1.bf16.xpose.msra.mxu0 0
  %7843 = vmatprep.subr.bf16.mxu0 0
  %7844 = vmatpush1.bf16.xpose.msra.mxu0 0
  %7845 = vmatprep.subr.bf16.mxu0 0
  %7846 = vmatpush1.bf16.xpose.msra.mxu0 0
  %7847 = vmatprep.subr.bf16.mxu0 0
  %7848 = vmatpush1.bf16.xpose.msra.mxu0 0
  %7849 = vmatprep.subr.bf16.mxu0 0
  %7850 = vmatpush1.bf16.xpose.msra.mxu0 0
  %7851 = vmatprep.subr.bf16.mxu0 0
  %7852 = vmatpush1.bf16.xpose.msra.mxu0 0
  %7853 = vmatprep.subr.bf16.mxu0 0
  %7854 = vmatpush1.bf16.xpose.msra.mxu0 0
  %7855 = vmatprep.subr.bf16.mxu0 0
  %7856 = vmatpush1.bf16.xpose.msra.mxu0 0
  %7857 = vmatprep.subr.bf16.mxu0 0
  %7858 = vmatpush1.bf16.xpose.msra.mxu0 0
  %7859 = vmatprep.subr.bf16.mxu0 0
  %7860 = vmatpush1.bf16.xpose.msra.mxu0 0
  %7861 = vmatprep.subr.bf16.mxu0 0
  %7862 = vmatpush1.bf16.xpose.msra.mxu0 0
  %7863 = vmatprep.subr.bf16.mxu0 0
  %7864 = vmatpush1.bf16.xpose.msra.mxu0 0
  %7865 = vmatprep.subr.bf16.mxu0 0
  %7866 = vmatpush1.bf16.xpose.msra.mxu0 0
  %7867 = vmatprep.subr.bf16.mxu0 0
  %7868 = vmatpush1.bf16.xpose.msra.mxu0 0
  %7869 = vmatprep.mubr.bf16.mxu0 0
  %7870 = vmatmul.mubr.bf16.gmra.mrb[0].mxu0 %v7832
  %v7871 = vpop.f32.mrb[0].mxu0
  %v7872 = vadd.f32 0.0, %v7871
  %v7873 = vpop.f32.mrb[0].mxu0
  %v7874 = vpop.f32.mrb[0].mxu0
  %v7875 = vpop.f32.mrb[0].mxu0
  %7876 = vdwg.mxu0
  %7877 = vrot.lane.b32.xlu0 %v4944, 104
  %v7878 = vpop.permute.xlu0 %7877
  %7879 = vrot.lane.b32.xlu0 %v4944, 72
  %v7880 = vpop.permute.xlu0 %7879
  %v7882 = vsel %vm401, %v7878, 0
  %v7885 = vsel %vm401, %v7880, 0
  %7887 = vmatprep.subr.bf16.mxu0 0
  %7888 = vmatpush1.bf16.xpose.msra.mxu0 %v7885
  %7889 = vmatprep.subr.bf16.mxu0 0
  %7890 = vmatpush1.bf16.xpose.msra.mxu0 0
  %7891 = vmatprep.subr.bf16.mxu0 0
  %7892 = vmatpush1.bf16.xpose.msra.mxu0 0
  %7893 = vmatprep.subr.bf16.mxu0 0
  %7894 = vmatpush1.bf16.xpose.msra.mxu0 0
  %7895 = vmatprep.subr.bf16.mxu0 0
  %7896 = vmatpush1.bf16.xpose.msra.mxu0 0
  %7897 = vmatprep.subr.bf16.mxu0 0
  %7898 = vmatpush1.bf16.xpose.msra.mxu0 0
  %7899 = vmatprep.subr.bf16.mxu0 0
  %7900 = vmatpush1.bf16.xpose.msra.mxu0 0
  %7901 = vmatprep.subr.bf16.mxu0 0
  %7902 = vmatpush1.bf16.xpose.msra.mxu0 0
  %7903 = vmatprep.subr.bf16.mxu0 0
  %7904 = vmatpush1.bf16.xpose.msra.mxu0 0
  %7905 = vmatprep.subr.bf16.mxu0 0
  %7906 = vmatpush1.bf16.xpose.msra.mxu0 0
  %7907 = vmatprep.subr.bf16.mxu0 0
  %7908 = vmatpush1.bf16.xpose.msra.mxu0 0
  %7909 = vmatprep.subr.bf16.mxu0 0
  %7910 = vmatpush1.bf16.xpose.msra.mxu0 0
  %7911 = vmatprep.subr.bf16.mxu0 0
  %7912 = vmatpush1.bf16.xpose.msra.mxu0 0
  %7913 = vmatprep.subr.bf16.mxu0 0
  %7914 = vmatpush1.bf16.xpose.msra.mxu0 0
  %7915 = vmatprep.subr.bf16.mxu0 0
  %7916 = vmatpush1.bf16.xpose.msra.mxu0 0
  %7917 = vmatprep.subr.bf16.mxu0 0
  %7918 = vmatpush1.bf16.xpose.msra.mxu0 0
  %7919 = vmatprep.mubr.bf16.mxu0 0
  %7920 = vmatmul.mubr.bf16.gmra.mrb[0].mxu0 %v7882
  %v7921 = vpop.f32.mrb[0].mxu0
  %v7922 = vadd.f32 0.0, %v7921
  %v7923 = vpop.f32.mrb[0].mxu0
  %v7924 = vpop.f32.mrb[0].mxu0
  %v7925 = vpop.f32.mrb[0].mxu0
  %7926 = vdwg.mxu0
  %7927 = vrot.lane.b32.xlu0 %v4945, 104
  %v7928 = vpop.permute.xlu0 %7927
  %7929 = vrot.lane.b32.xlu0 %v4945, 72
  %v7930 = vpop.permute.xlu0 %7929
  %v7932 = vsel %vm401, %v7928, 0
  %v7935 = vsel %vm401, %v7930, 0
  %7937 = vmatprep.subr.bf16.mxu0 0
  %7938 = vmatpush1.bf16.xpose.msra.mxu0 %v7935
  %7939 = vmatprep.subr.bf16.mxu0 0
  %7940 = vmatpush1.bf16.xpose.msra.mxu0 0
  %7941 = vmatprep.subr.bf16.mxu0 0
  %7942 = vmatpush1.bf16.xpose.msra.mxu0 0
  %7943 = vmatprep.subr.bf16.mxu0 0
  %7944 = vmatpush1.bf16.xpose.msra.mxu0 0
  %7945 = vmatprep.subr.bf16.mxu0 0
  %7946 = vmatpush1.bf16.xpose.msra.mxu0 0
  %7947 = vmatprep.subr.bf16.mxu0 0
  %7948 = vmatpush1.bf16.xpose.msra.mxu0 0
  %7949 = vmatprep.subr.bf16.mxu0 0
  %7950 = vmatpush1.bf16.xpose.msra.mxu0 0
  %7951 = vmatprep.subr.bf16.mxu0 0
  %7952 = vmatpush1.bf16.xpose.msra.mxu0 0
  %7953 = vmatprep.subr.bf16.mxu0 0
  %7954 = vmatpush1.bf16.xpose.msra.mxu0 0
  %7955 = vmatprep.subr.bf16.mxu0 0
  %7956 = vmatpush1.bf16.xpose.msra.mxu0 0
  %7957 = vmatprep.subr.bf16.mxu0 0
  %7958 = vmatpush1.bf16.xpose.msra.mxu0 0
  %7959 = vmatprep.subr.bf16.mxu0 0
  %7960 = vmatpush1.bf16.xpose.msra.mxu0 0
  %7961 = vmatprep.subr.bf16.mxu0 0
  %7962 = vmatpush1.bf16.xpose.msra.mxu0 0
  %7963 = vmatprep.subr.bf16.mxu0 0
  %7964 = vmatpush1.bf16.xpose.msra.mxu0 0
  %7965 = vmatprep.subr.bf16.mxu0 0
  %7966 = vmatpush1.bf16.xpose.msra.mxu0 0
  %7967 = vmatprep.subr.bf16.mxu0 0
  %7968 = vmatpush1.bf16.xpose.msra.mxu0 0
  %7969 = vmatprep.mubr.bf16.mxu0 0
  %7970 = vmatmul.mubr.bf16.gmra.mrb[0].mxu0 %v7932
  %v7971 = vpop.f32.mrb[0].mxu0
  %v7972 = vadd.f32 0.0, %v7971
  %v7973 = vpop.f32.mrb[0].mxu0
  %v7974 = vpop.f32.mrb[0].mxu0
  %v7975 = vpop.f32.mrb[0].mxu0
  %7976 = vdwg.mxu0
  %7977 = vrot.lane.b32.xlu0 %v4946, 104
  %v7978 = vpop.permute.xlu0 %7977
  %7979 = vrot.lane.b32.xlu0 %v4946, 72
  %v7980 = vpop.permute.xlu0 %7979
  %v7982 = vsel %vm401, %v7978, 0
  %v7985 = vsel %vm401, %v7980, 0
  %7987 = vmatprep.subr.bf16.mxu0 0
  %7988 = vmatpush1.bf16.xpose.msra.mxu0 %v7985
  %7989 = vmatprep.subr.bf16.mxu0 0
  %7990 = vmatpush1.bf16.xpose.msra.mxu0 0
  %7991 = vmatprep.subr.bf16.mxu0 0
  %7992 = vmatpush1.bf16.xpose.msra.mxu0 0
  %7993 = vmatprep.subr.bf16.mxu0 0
  %7994 = vmatpush1.bf16.xpose.msra.mxu0 0
  %7995 = vmatprep.subr.bf16.mxu0 0
  %7996 = vmatpush1.bf16.xpose.msra.mxu0 0
  %7997 = vmatprep.subr.bf16.mxu0 0
  %7998 = vmatpush1.bf16.xpose.msra.mxu0 0
  %7999 = vmatprep.subr.bf16.mxu0 0
  %8000 = vmatpush1.bf16.xpose.msra.mxu0 0
  %8001 = vmatprep.subr.bf16.mxu0 0
  %8002 = vmatpush1.bf16.xpose.msra.mxu0 0
  %8003 = vmatprep.subr.bf16.mxu0 0
  %8004 = vmatpush1.bf16.xpose.msra.mxu0 0
  %8005 = vmatprep.subr.bf16.mxu0 0
  %8006 = vmatpush1.bf16.xpose.msra.mxu0 0
  %8007 = vmatprep.subr.bf16.mxu0 0
  %8008 = vmatpush1.bf16.xpose.msra.mxu0 0
  %8009 = vmatprep.subr.bf16.mxu0 0
  %8010 = vmatpush1.bf16.xpose.msra.mxu0 0
  %8011 = vmatprep.subr.bf16.mxu0 0
  %8012 = vmatpush1.bf16.xpose.msra.mxu0 0
  %8013 = vmatprep.subr.bf16.mxu0 0
  %8014 = vmatpush1.bf16.xpose.msra.mxu0 0
  %8015 = vmatprep.subr.bf16.mxu0 0
  %8016 = vmatpush1.bf16.xpose.msra.mxu0 0
  %8017 = vmatprep.subr.bf16.mxu0 0
  %8018 = vmatpush1.bf16.xpose.msra.mxu0 0
  %8019 = vmatprep.mubr.bf16.mxu0 0
  %8020 = vmatmul.mubr.bf16.gmra.mrb[0].mxu0 %v7982
  %v8021 = vpop.f32.mrb[0].mxu0
  %v8022 = vadd.f32 0.0, %v8021
  %v8023 = vpop.f32.mrb[0].mxu0
  %v8024 = vpop.f32.mrb[0].mxu0
  %v8025 = vpop.f32.mrb[0].mxu0
  %8026 = vdwg.mxu0
  %v8027 = vmul.f32 %v7672, 0.35355338
  %v8028 = vmul.f32 %v7722, 0.35355338
  %v8029 = vmul.f32 %v7772, 0.35355338
  %v8030 = vmul.f32 %v7822, 0.35355338
  %v8031 = vmul.f32 %v7872, 0.35355338
  %v8032 = vmul.f32 %v7922, 0.35355338
  %v8033 = vmul.f32 %v7972, 0.35355338
  %v8034 = vmul.f32 %v8022, 0.35355338
  %v8035 = vadd.f32 %v8027, %v810
  %v8036 = vadd.f32 %v8028, %v814
  %v8037 = vadd.f32 %v8029, %v818
  %v8038 = vadd.f32 %v8030, %v822
  %v8039 = vadd.f32 %v8031, %v826
  %v8040 = vadd.f32 %v8032, %v830
  %v8041 = vadd.f32 %v8033, %v834
  %v8042 = vadd.f32 %v8034, %v838
  %v8043 = vsel %vm401, %v8035, -inf
  %8044 = vmax.xlane.f32.xlu0 %v8043
  %v8045 = vpop.xlane.xlu0 %8044
  %v8046 = vsel %vm401, %v8036, -inf
  %8047 = vmax.xlane.f32.xlu0 %v8046
  %v8048 = vpop.xlane.xlu0 %8047
  %v8049 = vsel %vm401, %v8037, -inf
  %8050 = vmax.xlane.f32.xlu0 %v8049
  %v8051 = vpop.xlane.xlu0 %8050
  %v8052 = vsel %vm401, %v8038, -inf
  %8053 = vmax.xlane.f32.xlu0 %v8052
  %v8054 = vpop.xlane.xlu0 %8053
  %v8055 = vsel %vm401, %v8039, -inf
  %8056 = vmax.xlane.f32.xlu0 %v8055
  %v8057 = vpop.xlane.xlu0 %8056
  %v8058 = vsel %vm401, %v8040, -inf
  %8059 = vmax.xlane.f32.xlu0 %v8058
  %v8060 = vpop.xlane.xlu0 %8059
  %v8061 = vsel %vm401, %v8041, -inf
  %8062 = vmax.xlane.f32.xlu0 %v8061
  %v8063 = vpop.xlane.xlu0 %8062
  %v8064 = vsel %vm401, %v8042, -inf
  %8065 = vmax.xlane.f32.xlu0 %v8064
  %v8066 = vpop.xlane.xlu0 %8065
  %v8067 = vsub.f32 %v8035, %v8045
  %v8068 = vsub.f32 %v8036, %v8048
  %v8069 = vsub.f32 %v8037, %v8051
  %v8070 = vsub.f32 %v8038, %v8054
  %v8071 = vsub.f32 %v8039, %v8057
  %v8072 = vsub.f32 %v8040, %v8060
  %v8073 = vsub.f32 %v8041, %v8063
  %v8074 = vsub.f32 %v8042, %v8066
  %v8075 = vmul.f32 %v8067, 1.442695
  %v8076 = vpow.pop %v8075
  %v8077 = vmul.f32 %v8068, 1.442695
  %v8078 = vpow.pop %v8077
  %v8079 = vmul.f32 %v8069, 1.442695
  %v8080 = vpow.pop %v8079
  %v8081 = vmul.f32 %v8070, 1.442695
  %v8082 = vpow.pop %v8081
  %v8083 = vmul.f32 %v8071, 1.442695
  %v8084 = vpow.pop %v8083
  %v8085 = vmul.f32 %v8072, 1.442695
  %v8086 = vpow.pop %v8085
  %v8087 = vmul.f32 %v8073, 1.442695
  %v8088 = vpow.pop %v8087
  %v8089 = vmul.f32 %v8074, 1.442695
  %v8090 = vpow.pop %v8089
  %v8091 = vsel %vm401, %v8076, 0.0
  %8092 = vadd.xlane.f32.xlu0 %v8091
  %v8093 = vpop.xlane.xlu0 %8092
  %v8094 = vsel %vm401, %v8078, 0.0
  %8095 = vadd.xlane.f32.xlu0 %v8094
  %v8096 = vpop.xlane.xlu0 %8095
  %v8097 = vsel %vm401, %v8080, 0.0
  %8098 = vadd.xlane.f32.xlu0 %v8097
  %v8099 = vpop.xlane.xlu0 %8098
  %v8100 = vsel %vm401, %v8082, 0.0
  %8101 = vadd.xlane.f32.xlu0 %v8100
  %v8102 = vpop.xlane.xlu0 %8101
  %v8103 = vsel %vm401, %v8084, 0.0
  %8104 = vadd.xlane.f32.xlu0 %v8103
  %v8105 = vpop.xlane.xlu0 %8104
  %v8106 = vsel %vm401, %v8086, 0.0
  %8107 = vadd.xlane.f32.xlu0 %v8106
  %v8108 = vpop.xlane.xlu0 %8107
  %v8109 = vsel %vm401, %v8088, 0.0
  %8110 = vadd.xlane.f32.xlu0 %v8109
  %v8111 = vpop.xlane.xlu0 %8110
  %v8112 = vsel %vm401, %v8090, 0.0
  %8113 = vadd.xlane.f32.xlu0 %v8112
  %v8114 = vpop.xlane.xlu0 %8113
  %v8115 = vrcp.pop %v8093
  %v8116 = vrcp.pop %v8096
  %v8117 = vrcp.pop %v8099
  %v8118 = vrcp.pop %v8102
  %v8119 = vrcp.pop %v8105
  %v8120 = vrcp.pop %v8108
  %v8121 = vrcp.pop %v8111
  %v8122 = vrcp.pop %v8114
  %v8123 = vmul.f32 %v8076, %v8115
  %v8124 = vmul.f32 %v8078, %v8116
  %v8125 = vmul.f32 %v8080, %v8117
  %v8126 = vmul.f32 %v8082, %v8118
  %v8127 = vmul.f32 %v8084, %v8119
  %v8128 = vmul.f32 %v8086, %v8120
  %v8129 = vmul.f32 %v8088, %v8121
  %v8130 = vmul.f32 %v8090, %v8122
  %v8131 = vpack.c.bf16 %v8123, %v8123
  %v8132 = vpack.c.bf16 %v8124, %v8124
  %v8133 = vpack.c.bf16 %v8125, %v8125
  %v8134 = vpack.c.bf16 %v8126, %v8126
  %v8135 = vpack.c.bf16 %v8127, %v8127
  %v8136 = vpack.c.bf16 %v8128, %v8128
  %v8137 = vpack.c.bf16 %v8129, %v8129
  %v8138 = vpack.c.bf16 %v8130, %v8130
  %8139 = vrot.lane.b32.xlu0 %v4939, 40
  %v8140 = vpop.permute.xlu0 %8139
  %v8142 = vsel %vm401, %v8131, 0
  %v8145 = vsel %vm956, %v8140, 0
  %8147 = vmatprep.subr.bf16.mxu0 0
  %8148 = vmatpush1.bf16.msra.mxu0 %v8145
  %8149 = vmatprep.subr.bf16.mxu0 0
  %8150 = vmatpush1.bf16.msra.mxu0 0
  %8151 = vmatprep.subr.bf16.mxu0 0
  %8152 = vmatpush1.bf16.msra.mxu0 0
  %8153 = vmatprep.subr.bf16.mxu0 0
  %8154 = vmatpush1.bf16.msra.mxu0 0
  %8155 = vmatprep.subr.bf16.mxu0 0
  %8156 = vmatpush1.bf16.msra.mxu0 0
  %8157 = vmatprep.subr.bf16.mxu0 0
  %8158 = vmatpush1.bf16.msra.mxu0 0
  %8159 = vmatprep.subr.bf16.mxu0 0
  %8160 = vmatpush1.bf16.msra.mxu0 0
  %8161 = vmatprep.subr.bf16.mxu0 0
  %8162 = vmatpush1.bf16.msra.mxu0 0
  %8163 = vmatprep.subr.bf16.mxu0 0
  %8164 = vmatpush1.bf16.msra.mxu0 0
  %8165 = vmatprep.subr.bf16.mxu0 0
  %8166 = vmatpush1.bf16.msra.mxu0 0
  %8167 = vmatprep.subr.bf16.mxu0 0
  %8168 = vmatpush1.bf16.msra.mxu0 0
  %8169 = vmatprep.subr.bf16.mxu0 0
  %8170 = vmatpush1.bf16.msra.mxu0 0
  %8171 = vmatprep.subr.bf16.mxu0 0
  %8172 = vmatpush1.bf16.msra.mxu0 0
  %8173 = vmatprep.subr.bf16.mxu0 0
  %8174 = vmatpush1.bf16.msra.mxu0 0
  %8175 = vmatprep.subr.bf16.mxu0 0
  %8176 = vmatpush1.bf16.msra.mxu0 0
  %8177 = vmatprep.subr.bf16.mxu0 0
  %8178 = vmatpush1.bf16.msra.mxu0 0
  %8179 = vmatprep.mubr.bf16.mxu0 0
  %8180 = vmatmul.mubr.bf16.gmra.mrb[0].mxu0 %v8142
  %v8181 = vpop.f32.mrb[0].mxu0
  %v8182 = vadd.f32 0.0, %v8181
  %v8183 = vpop.f32.mrb[0].mxu0
  %v8184 = vpop.f32.mrb[0].mxu0
  %v8185 = vpop.f32.mrb[0].mxu0
  %8186 = vdwg.mxu0
  %8187 = vrot.lane.b32.xlu0 %v4940, 40
  %v8188 = vpop.permute.xlu0 %8187
  %v8190 = vsel %vm401, %v8132, 0
  %v8193 = vsel %vm956, %v8188, 0
  %8195 = vmatprep.subr.bf16.mxu0 0
  %8196 = vmatpush1.bf16.msra.mxu0 %v8193
  %8197 = vmatprep.subr.bf16.mxu0 0
  %8198 = vmatpush1.bf16.msra.mxu0 0
  %8199 = vmatprep.subr.bf16.mxu0 0
  %8200 = vmatpush1.bf16.msra.mxu0 0
  %8201 = vmatprep.subr.bf16.mxu0 0
  %8202 = vmatpush1.bf16.msra.mxu0 0
  %8203 = vmatprep.subr.bf16.mxu0 0
  %8204 = vmatpush1.bf16.msra.mxu0 0
  %8205 = vmatprep.subr.bf16.mxu0 0
  %8206 = vmatpush1.bf16.msra.mxu0 0
  %8207 = vmatprep.subr.bf16.mxu0 0
  %8208 = vmatpush1.bf16.msra.mxu0 0
  %8209 = vmatprep.subr.bf16.mxu0 0
  %8210 = vmatpush1.bf16.msra.mxu0 0
  %8211 = vmatprep.subr.bf16.mxu0 0
  %8212 = vmatpush1.bf16.msra.mxu0 0
  %8213 = vmatprep.subr.bf16.mxu0 0
  %8214 = vmatpush1.bf16.msra.mxu0 0
  %8215 = vmatprep.subr.bf16.mxu0 0
  %8216 = vmatpush1.bf16.msra.mxu0 0
  %8217 = vmatprep.subr.bf16.mxu0 0
  %8218 = vmatpush1.bf16.msra.mxu0 0
  %8219 = vmatprep.subr.bf16.mxu0 0
  %8220 = vmatpush1.bf16.msra.mxu0 0
  %8221 = vmatprep.subr.bf16.mxu0 0
  %8222 = vmatpush1.bf16.msra.mxu0 0
  %8223 = vmatprep.subr.bf16.mxu0 0
  %8224 = vmatpush1.bf16.msra.mxu0 0
  %8225 = vmatprep.subr.bf16.mxu0 0
  %8226 = vmatpush1.bf16.msra.mxu0 0
  %8227 = vmatprep.mubr.bf16.mxu0 0
  %8228 = vmatmul.mubr.bf16.gmra.mrb[0].mxu0 %v8190
  %v8229 = vpop.f32.mrb[0].mxu0
  %v8230 = vadd.f32 0.0, %v8229
  %v8231 = vpop.f32.mrb[0].mxu0
  %v8232 = vpop.f32.mrb[0].mxu0
  %v8233 = vpop.f32.mrb[0].mxu0
  %8234 = vdwg.mxu0
  %8235 = vrot.lane.b32.xlu0 %v4941, 40
  %v8236 = vpop.permute.xlu0 %8235
  %v8238 = vsel %vm401, %v8133, 0
  %v8241 = vsel %vm956, %v8236, 0
  %8243 = vmatprep.subr.bf16.mxu0 0
  %8244 = vmatpush1.bf16.msra.mxu0 %v8241
  %8245 = vmatprep.subr.bf16.mxu0 0
  %8246 = vmatpush1.bf16.msra.mxu0 0
  %8247 = vmatprep.subr.bf16.mxu0 0
  %8248 = vmatpush1.bf16.msra.mxu0 0
  %8249 = vmatprep.subr.bf16.mxu0 0
  %8250 = vmatpush1.bf16.msra.mxu0 0
  %8251 = vmatprep.subr.bf16.mxu0 0
  %8252 = vmatpush1.bf16.msra.mxu0 0
  %8253 = vmatprep.subr.bf16.mxu0 0
  %8254 = vmatpush1.bf16.msra.mxu0 0
  %8255 = vmatprep.subr.bf16.mxu0 0
  %8256 = vmatpush1.bf16.msra.mxu0 0
  %8257 = vmatprep.subr.bf16.mxu0 0
  %8258 = vmatpush1.bf16.msra.mxu0 0
  %8259 = vmatprep.subr.bf16.mxu0 0
  %8260 = vmatpush1.bf16.msra.mxu0 0
  %8261 = vmatprep.subr.bf16.mxu0 0
  %8262 = vmatpush1.bf16.msra.mxu0 0
  %8263 = vmatprep.subr.bf16.mxu0 0
  %8264 = vmatpush1.bf16.msra.mxu0 0
  %8265 = vmatprep.subr.bf16.mxu0 0
  %8266 = vmatpush1.bf16.msra.mxu0 0
  %8267 = vmatprep.subr.bf16.mxu0 0
  %8268 = vmatpush1.bf16.msra.mxu0 0
  %8269 = vmatprep.subr.bf16.mxu0 0
  %8270 = vmatpush1.bf16.msra.mxu0 0
  %8271 = vmatprep.subr.bf16.mxu0 0
  %8272 = vmatpush1.bf16.msra.mxu0 0
  %8273 = vmatprep.subr.bf16.mxu0 0
  %8274 = vmatpush1.bf16.msra.mxu0 0
  %8275 = vmatprep.mubr.bf16.mxu0 0
  %8276 = vmatmul.mubr.bf16.gmra.mrb[0].mxu0 %v8238
  %v8277 = vpop.f32.mrb[0].mxu0
  %v8278 = vadd.f32 0.0, %v8277
  %v8279 = vpop.f32.mrb[0].mxu0
  %v8280 = vpop.f32.mrb[0].mxu0
  %v8281 = vpop.f32.mrb[0].mxu0
  %8282 = vdwg.mxu0
  %8283 = vrot.lane.b32.xlu0 %v4942, 40
  %v8284 = vpop.permute.xlu0 %8283
  %v8286 = vsel %vm401, %v8134, 0
  %v8289 = vsel %vm956, %v8284, 0
  %8291 = vmatprep.subr.bf16.mxu0 0
  %8292 = vmatpush1.bf16.msra.mxu0 %v8289
  %8293 = vmatprep.subr.bf16.mxu0 0
  %8294 = vmatpush1.bf16.msra.mxu0 0
  %8295 = vmatprep.subr.bf16.mxu0 0
  %8296 = vmatpush1.bf16.msra.mxu0 0
  %8297 = vmatprep.subr.bf16.mxu0 0
  %8298 = vmatpush1.bf16.msra.mxu0 0
  %8299 = vmatprep.subr.bf16.mxu0 0
  %8300 = vmatpush1.bf16.msra.mxu0 0
  %8301 = vmatprep.subr.bf16.mxu0 0
  %8302 = vmatpush1.bf16.msra.mxu0 0
  %8303 = vmatprep.subr.bf16.mxu0 0
  %8304 = vmatpush1.bf16.msra.mxu0 0
  %8305 = vmatprep.subr.bf16.mxu0 0
  %8306 = vmatpush1.bf16.msra.mxu0 0
  %8307 = vmatprep.subr.bf16.mxu0 0
  %8308 = vmatpush1.bf16.msra.mxu0 0
  %8309 = vmatprep.subr.bf16.mxu0 0
  %8310 = vmatpush1.bf16.msra.mxu0 0
  %8311 = vmatprep.subr.bf16.mxu0 0
  %8312 = vmatpush1.bf16.msra.mxu0 0
  %8313 = vmatprep.subr.bf16.mxu0 0
  %8314 = vmatpush1.bf16.msra.mxu0 0
  %8315 = vmatprep.subr.bf16.mxu0 0
  %8316 = vmatpush1.bf16.msra.mxu0 0
  %8317 = vmatprep.subr.bf16.mxu0 0
  %8318 = vmatpush1.bf16.msra.mxu0 0
  %8319 = vmatprep.subr.bf16.mxu0 0
  %8320 = vmatpush1.bf16.msra.mxu0 0
  %8321 = vmatprep.subr.bf16.mxu0 0
  %8322 = vmatpush1.bf16.msra.mxu0 0
  %8323 = vmatprep.mubr.bf16.mxu0 0
  %8324 = vmatmul.mubr.bf16.gmra.mrb[0].mxu0 %v8286
  %v8325 = vpop.f32.mrb[0].mxu0
  %v8326 = vadd.f32 0.0, %v8325
  %v8327 = vpop.f32.mrb[0].mxu0
  %v8328 = vpop.f32.mrb[0].mxu0
  %v8329 = vpop.f32.mrb[0].mxu0
  %8330 = vdwg.mxu0
  %8331 = vrot.lane.b32.xlu0 %v4943, 40
  %v8332 = vpop.permute.xlu0 %8331
  %v8334 = vsel %vm401, %v8135, 0
  %v8337 = vsel %vm956, %v8332, 0
  %8339 = vmatprep.subr.bf16.mxu0 0
  %8340 = vmatpush1.bf16.msra.mxu0 %v8337
  %8341 = vmatprep.subr.bf16.mxu0 0
  %8342 = vmatpush1.bf16.msra.mxu0 0
  %8343 = vmatprep.subr.bf16.mxu0 0
  %8344 = vmatpush1.bf16.msra.mxu0 0
  %8345 = vmatprep.subr.bf16.mxu0 0
  %8346 = vmatpush1.bf16.msra.mxu0 0
  %8347 = vmatprep.subr.bf16.mxu0 0
  %8348 = vmatpush1.bf16.msra.mxu0 0
  %8349 = vmatprep.subr.bf16.mxu0 0
  %8350 = vmatpush1.bf16.msra.mxu0 0
  %8351 = vmatprep.subr.bf16.mxu0 0
  %8352 = vmatpush1.bf16.msra.mxu0 0
  %8353 = vmatprep.subr.bf16.mxu0 0
  %8354 = vmatpush1.bf16.msra.mxu0 0
  %8355 = vmatprep.subr.bf16.mxu0 0
  %8356 = vmatpush1.bf16.msra.mxu0 0
  %8357 = vmatprep.subr.bf16.mxu0 0
  %8358 = vmatpush1.bf16.msra.mxu0 0
  %8359 = vmatprep.subr.bf16.mxu0 0
  %8360 = vmatpush1.bf16.msra.mxu0 0
  %8361 = vmatprep.subr.bf16.mxu0 0
  %8362 = vmatpush1.bf16.msra.mxu0 0
  %8363 = vmatprep.subr.bf16.mxu0 0
  %8364 = vmatpush1.bf16.msra.mxu0 0
  %8365 = vmatprep.subr.bf16.mxu0 0
  %8366 = vmatpush1.bf16.msra.mxu0 0
  %8367 = vmatprep.subr.bf16.mxu0 0
  %8368 = vmatpush1.bf16.msra.mxu0 0
  %8369 = vmatprep.subr.bf16.mxu0 0
  %8370 = vmatpush1.bf16.msra.mxu0 0
  %8371 = vmatprep.mubr.bf16.mxu0 0
  %8372 = vmatmul.mubr.bf16.gmra.mrb[0].mxu0 %v8334
  %v8373 = vpop.f32.mrb[0].mxu0
  %v8374 = vadd.f32 0.0, %v8373
  %v8375 = vpop.f32.mrb[0].mxu0
  %v8376 = vpop.f32.mrb[0].mxu0
  %v8377 = vpop.f32.mrb[0].mxu0
  %8378 = vdwg.mxu0
  %8379 = vrot.lane.b32.xlu0 %v4944, 40
  %v8380 = vpop.permute.xlu0 %8379
  %v8382 = vsel %vm401, %v8136, 0
  %v8385 = vsel %vm956, %v8380, 0
  %8387 = vmatprep.subr.bf16.mxu0 0
  %8388 = vmatpush1.bf16.msra.mxu0 %v8385
  %8389 = vmatprep.subr.bf16.mxu0 0
  %8390 = vmatpush1.bf16.msra.mxu0 0
  %8391 = vmatprep.subr.bf16.mxu0 0
  %8392 = vmatpush1.bf16.msra.mxu0 0
  %8393 = vmatprep.subr.bf16.mxu0 0
  %8394 = vmatpush1.bf16.msra.mxu0 0
  %8395 = vmatprep.subr.bf16.mxu0 0
  %8396 = vmatpush1.bf16.msra.mxu0 0
  %8397 = vmatprep.subr.bf16.mxu0 0
  %8398 = vmatpush1.bf16.msra.mxu0 0
  %8399 = vmatprep.subr.bf16.mxu0 0
  %8400 = vmatpush1.bf16.msra.mxu0 0
  %8401 = vmatprep.subr.bf16.mxu0 0
  %8402 = vmatpush1.bf16.msra.mxu0 0
  %8403 = vmatprep.subr.bf16.mxu0 0
  %8404 = vmatpush1.bf16.msra.mxu0 0
  %8405 = vmatprep.subr.bf16.mxu0 0
  %8406 = vmatpush1.bf16.msra.mxu0 0
  %8407 = vmatprep.subr.bf16.mxu0 0
  %8408 = vmatpush1.bf16.msra.mxu0 0
  %8409 = vmatprep.subr.bf16.mxu0 0
  %8410 = vmatpush1.bf16.msra.mxu0 0
  %8411 = vmatprep.subr.bf16.mxu0 0
  %8412 = vmatpush1.bf16.msra.mxu0 0
  %8413 = vmatprep.subr.bf16.mxu0 0
  %8414 = vmatpush1.bf16.msra.mxu0 0
  %8415 = vmatprep.subr.bf16.mxu0 0
  %8416 = vmatpush1.bf16.msra.mxu0 0
  %8417 = vmatprep.subr.bf16.mxu0 0
  %8418 = vmatpush1.bf16.msra.mxu0 0
  %8419 = vmatprep.mubr.bf16.mxu0 0
  %8420 = vmatmul.mubr.bf16.gmra.mrb[0].mxu0 %v8382
  %v8421 = vpop.f32.mrb[0].mxu0
  %v8422 = vadd.f32 0.0, %v8421
  %v8423 = vpop.f32.mrb[0].mxu0
  %v8424 = vpop.f32.mrb[0].mxu0
  %v8425 = vpop.f32.mrb[0].mxu0
  %8426 = vdwg.mxu0
  %8427 = vrot.lane.b32.xlu0 %v4945, 40
  %v8428 = vpop.permute.xlu0 %8427
  %v8430 = vsel %vm401, %v8137, 0
  %v8433 = vsel %vm956, %v8428, 0
  %8435 = vmatprep.subr.bf16.mxu0 0
  %8436 = vmatpush1.bf16.msra.mxu0 %v8433
  %8437 = vmatprep.subr.bf16.mxu0 0
  %8438 = vmatpush1.bf16.msra.mxu0 0
  %8439 = vmatprep.subr.bf16.mxu0 0
  %8440 = vmatpush1.bf16.msra.mxu0 0
  %8441 = vmatprep.subr.bf16.mxu0 0
  %8442 = vmatpush1.bf16.msra.mxu0 0
  %8443 = vmatprep.subr.bf16.mxu0 0
  %8444 = vmatpush1.bf16.msra.mxu0 0
  %8445 = vmatprep.subr.bf16.mxu0 0
  %8446 = vmatpush1.bf16.msra.mxu0 0
  %8447 = vmatprep.subr.bf16.mxu0 0
  %8448 = vmatpush1.bf16.msra.mxu0 0
  %8449 = vmatprep.subr.bf16.mxu0 0
  %8450 = vmatpush1.bf16.msra.mxu0 0
  %8451 = vmatprep.subr.bf16.mxu0 0
  %8452 = vmatpush1.bf16.msra.mxu0 0
  %8453 = vmatprep.subr.bf16.mxu0 0
  %8454 = vmatpush1.bf16.msra.mxu0 0
  %8455 = vmatprep.subr.bf16.mxu0 0
  %8456 = vmatpush1.bf16.msra.mxu0 0
  %8457 = vmatprep.subr.bf16.mxu0 0
  %8458 = vmatpush1.bf16.msra.mxu0 0
  %8459 = vmatprep.subr.bf16.mxu0 0
  %8460 = vmatpush1.bf16.msra.mxu0 0
  %8461 = vmatprep.subr.bf16.mxu0 0
  %8462 = vmatpush1.bf16.msra.mxu0 0
  %8463 = vmatprep.subr.bf16.mxu0 0
  %8464 = vmatpush1.bf16.msra.mxu0 0
  %8465 = vmatprep.subr.bf16.mxu0 0
  %8466 = vmatpush1.bf16.msra.mxu0 0
  %8467 = vmatprep.mubr.bf16.mxu0 0
  %8468 = vmatmul.mubr.bf16.gmra.mrb[0].mxu0 %v8430
  %v8469 = vpop.f32.mrb[0].mxu0
  %v8470 = vadd.f32 0.0, %v8469
  %v8471 = vpop.f32.mrb[0].mxu0
  %v8472 = vpop.f32.mrb[0].mxu0
  %v8473 = vpop.f32.mrb[0].mxu0
  %8474 = vdwg.mxu0
  %8475 = vrot.lane.b32.xlu0 %v4946, 40
  %v8476 = vpop.permute.xlu0 %8475
  %v8478 = vsel %vm401, %v8138, 0
  %v8481 = vsel %vm956, %v8476, 0
  %8483 = vmatprep.subr.bf16.mxu0 0
  %8484 = vmatpush1.bf16.msra.mxu0 %v8481
  %8485 = vmatprep.subr.bf16.mxu0 0
  %8486 = vmatpush1.bf16.msra.mxu0 0
  %8487 = vmatprep.subr.bf16.mxu0 0
  %8488 = vmatpush1.bf16.msra.mxu0 0
  %8489 = vmatprep.subr.bf16.mxu0 0
  %8490 = vmatpush1.bf16.msra.mxu0 0
  %8491 = vmatprep.subr.bf16.mxu0 0
  %8492 = vmatpush1.bf16.msra.mxu0 0
  %8493 = vmatprep.subr.bf16.mxu0 0
  %8494 = vmatpush1.bf16.msra.mxu0 0
  %8495 = vmatprep.subr.bf16.mxu0 0
  %8496 = vmatpush1.bf16.msra.mxu0 0
  %8497 = vmatprep.subr.bf16.mxu0 0
  %8498 = vmatpush1.bf16.msra.mxu0 0
  %8499 = vmatprep.subr.bf16.mxu0 0
  %8500 = vmatpush1.bf16.msra.mxu0 0
  %8501 = vmatprep.subr.bf16.mxu0 0
  %8502 = vmatpush1.bf16.msra.mxu0 0
  %8503 = vmatprep.subr.bf16.mxu0 0
  %8504 = vmatpush1.bf16.msra.mxu0 0
  %8505 = vmatprep.subr.bf16.mxu0 0
  %8506 = vmatpush1.bf16.msra.mxu0 0
  %8507 = vmatprep.subr.bf16.mxu0 0
  %8508 = vmatpush1.bf16.msra.mxu0 0
  %8509 = vmatprep.subr.bf16.mxu0 0
  %8510 = vmatpush1.bf16.msra.mxu0 0
  %8511 = vmatprep.subr.bf16.mxu0 0
  %8512 = vmatpush1.bf16.msra.mxu0 0
  %8513 = vmatprep.subr.bf16.mxu0 0
  %8514 = vmatpush1.bf16.msra.mxu0 0
  %8515 = vmatprep.mubr.bf16.mxu0 0
  %8516 = vmatmul.mubr.bf16.gmra.mrb[0].mxu0 %v8478
  %v8517 = vpop.f32.mrb[0].mxu0
  %v8518 = vadd.f32 0.0, %v8517
  %v8519 = vpop.f32.mrb[0].mxu0
  %v8520 = vpop.f32.mrb[0].mxu0
  %v8521 = vpop.f32.mrb[0].mxu0
  %8522 = vdwg.mxu0
  %8531 = vrot.lane.b32.xlu0 %v6390, 8
  %v8532 = vpop.permute.xlu0 %8531
  %8533 = vrot.lane.b32.xlu0 %v6438, 8
  %v8534 = vpop.permute.xlu0 %8533
  %8535 = vrot.lane.b32.xlu0 %v6486, 8
  %v8536 = vpop.permute.xlu0 %8535
  %8537 = vrot.lane.b32.xlu0 %v6534, 8
  %v8538 = vpop.permute.xlu0 %8537
  %8539 = vrot.lane.b32.xlu0 %v6582, 8
  %v8540 = vpop.permute.xlu0 %8539
  %8541 = vrot.lane.b32.xlu0 %v6630, 8
  %v8542 = vpop.permute.xlu0 %8541
  %8543 = vrot.lane.b32.xlu0 %v6678, 8
  %v8544 = vpop.permute.xlu0 %8543
  %8545 = vrot.lane.b32.xlu0 %v6726, 8
  %v8546 = vpop.permute.xlu0 %8545
  %8563 = vrot.lane.b32.xlu0 %v7286, 16
  %v8564 = vpop.permute.xlu0 %8563
  %8565 = vrot.lane.b32.xlu0 %v7334, 16
  %v8566 = vpop.permute.xlu0 %8565
  %8567 = vrot.lane.b32.xlu0 %v7382, 16
  %v8568 = vpop.permute.xlu0 %8567
  %8569 = vrot.lane.b32.xlu0 %v7430, 16
  %v8570 = vpop.permute.xlu0 %8569
  %8571 = vrot.lane.b32.xlu0 %v7478, 16
  %v8572 = vpop.permute.xlu0 %8571
  %8573 = vrot.lane.b32.xlu0 %v7526, 16
  %v8574 = vpop.permute.xlu0 %8573
  %8575 = vrot.lane.b32.xlu0 %v7574, 16
  %v8576 = vpop.permute.xlu0 %8575
  %8577 = vrot.lane.b32.xlu0 %v7622, 16
  %v8578 = vpop.permute.xlu0 %8577
  %8595 = vrot.lane.b32.xlu0 %v8182, 24
  %v8596 = vpop.permute.xlu0 %8595
  %8597 = vrot.lane.b32.xlu0 %v8230, 24
  %v8598 = vpop.permute.xlu0 %8597
  %8599 = vrot.lane.b32.xlu0 %v8278, 24
  %v8600 = vpop.permute.xlu0 %8599
  %8601 = vrot.lane.b32.xlu0 %v8326, 24
  %v8602 = vpop.permute.xlu0 %8601
  %8603 = vrot.lane.b32.xlu0 %v8374, 24
  %v8604 = vpop.permute.xlu0 %8603
  %8605 = vrot.lane.b32.xlu0 %v8422, 24
  %v8606 = vpop.permute.xlu0 %8605
  %8607 = vrot.lane.b32.xlu0 %v8470, 24
  %v8608 = vpop.permute.xlu0 %8607
  %8609 = vrot.lane.b32.xlu0 %v8518, 24
  %v8610 = vpop.permute.xlu0 %8609
  %v8619 = vsel %vm401, %v5494, %v8532
  %v8620 = vsel %vm401, %v5542, %v8534
  %v8621 = vsel %vm401, %v5590, %v8536
  %v8622 = vsel %vm401, %v5638, %v8538
  %v8623 = vsel %vm401, %v5686, %v8540
  %v8624 = vsel %vm401, %v5734, %v8542
  %v8625 = vsel %vm401, %v5782, %v8544
  %v8626 = vsel %vm401, %v5830, %v8546
  %v8627 = vsel %vm4128, %v8619, %v8564
  %v8628 = vsel %vm4128, %v8620, %v8566
  %v8629 = vsel %vm4128, %v8621, %v8568
  %v8630 = vsel %vm4128, %v8622, %v8570
  %v8631 = vsel %vm4128, %v8623, %v8572
  %v8632 = vsel %vm4128, %v8624, %v8574
  %v8633 = vsel %vm4128, %v8625, %v8576
  %v8634 = vsel %vm4128, %v8626, %v8578
  %v8635 = vsel %vm4137, %v8627, %v8596
  %v8636 = vsel %vm4137, %v8628, %v8598
  %v8637 = vsel %vm4137, %v8629, %v8600
  %v8638 = vsel %vm4137, %v8630, %v8602
  %v8639 = vsel %vm4137, %v8631, %v8604
  %v8640 = vsel %vm4137, %v8632, %v8606
  %v8641 = vsel %vm4137, %v8633, %v8608
  %v8642 = vsel %vm4137, %v8634, %v8610
  %v8643 = vpack.c.bf16 %v8636, %v8635
  %v8644 = vpack.c.bf16 %v8638, %v8637
  %v8645 = vpack.c.bf16 %v8640, %v8639
  %v8646 = vpack.c.bf16 %v8642, %v8641
  %s8647 = scalar_lea.vmem %s15, 16
  %v8648 = vld [vmem:[%s8647] sm:$0xf]
  %v8649 = vld [vmem:[%s8647 + $0x4] sm:$0xf]
  %v8650 = vld [vmem:[%s8647 + $0x8] sm:$0xf]
  %v8651 = vld [vmem:[%s8647 + $0xc] sm:$0xf]
  %s8652 = scalar_lea.vmem %s17, 1
  %v8653 = vld [vmem:[%s8652] sm:$0x1]
  %v8655 = vlaneseq
  %v8656 = vshrl.u32 %v8655, 7
  %v8657 = vsub.s32 0, %v8656
  %v8658 = vrot.slane %v8653, %v8657
  %v8664 = vunpack.c.l.b16 %v8648
  %v8665 = vunpack.c.l.b16 %v8649
  %v8666 = vunpack.c.l.b16 %v8650
  %v8667 = vunpack.c.l.b16 %v8651
  %v8668 = vpack.c.b16 %v8665, %v8664
  %v8669 = vpack.c.b16 %v8667, %v8666
  %v8673 = vsel %vm152, %v8643, 0
  %v8676 = vsel %vm152, %v8644, 0
  %v8679 = vsel %vm152, %v8645, 0
  %v8682 = vsel %vm152, %v8646, 0
  %8684 = vmatprep.subr.bf16.mxu0 0
  %8685 = vmatpush1.bf16.msra.mxu0 %v8668
  %8686 = vmatprep.subr.bf16.mxu0 0
  %8687 = vmatpush1.bf16.msra.mxu0 %v8669
  %8688 = vmatprep.subr.bf16.mxu0 0
  %8689 = vmatpush1.bf16.msra.mxu0 0
  %8690 = vmatprep.subr.bf16.mxu0 0
  %8691 = vmatpush1.bf16.msra.mxu0 0
  %8692 = vmatprep.subr.bf16.mxu0 0
  %8693 = vmatpush1.bf16.msra.mxu0 0
  %8694 = vmatprep.subr.bf16.mxu0 0
  %8695 = vmatpush1.bf16.msra.mxu0 0
  %8696 = vmatprep.subr.bf16.mxu0 0
  %8697 = vmatpush1.bf16.msra.mxu0 0
  %8698 = vmatprep.subr.bf16.mxu0 0
  %8699 = vmatpush1.bf16.msra.mxu0 0
  %8700 = vmatprep.subr.bf16.mxu0 0
  %8701 = vmatpush1.bf16.msra.mxu0 0
  %8702 = vmatprep.subr.bf16.mxu0 0
  %8703 = vmatpush1.bf16.msra.mxu0 0
  %8704 = vmatprep.subr.bf16.mxu0 0
  %8705 = vmatpush1.bf16.msra.mxu0 0
  %8706 = vmatprep.subr.bf16.mxu0 0
  %8707 = vmatpush1.bf16.msra.mxu0 0
  %8708 = vmatprep.subr.bf16.mxu0 0
  %8709 = vmatpush1.bf16.msra.mxu0 0
  %8710 = vmatprep.subr.bf16.mxu0 0
  %8711 = vmatpush1.bf16.msra.mxu0 0
  %8712 = vmatprep.subr.bf16.mxu0 0
  %8713 = vmatpush1.bf16.msra.mxu0 0
  %8714 = vmatprep.subr.bf16.mxu0 0
  %8715 = vmatpush1.bf16.msra.mxu0 0
  %8716 = vmatprep.mubr.bf16.mxu0 0
  %8717 = vmatmul.mubr.bf16.gmra.mrb[0].mxu0 %v8673
  %v8718 = vpop.f32.mrb[0].mxu0
  %v8719 = vadd.f32 %v8658, %v8718
  %v8720 = vpop.f32.mrb[0].mxu0
  %v8721 = vpop.f32.mrb[0].mxu0
  %v8722 = vadd.f32 %v8658, %v8721
  %v8723 = vpop.f32.mrb[0].mxu0
  %8724 = vmatprep.mubr.bf16.mxu0 0
  %8725 = vmatmul.mubr.bf16.gmra.mrb[0].mxu0 %v8676
  %v8726 = vpop.f32.mrb[0].mxu0
  %v8727 = vadd.f32 %v8658, %v8726
  %v8728 = vpop.f32.mrb[0].mxu0
  %v8729 = vpop.f32.mrb[0].mxu0
  %v8730 = vadd.f32 %v8658, %v8729
  %v8731 = vpop.f32.mrb[0].mxu0
  %8732 = vmatprep.mubr.bf16.mxu0 0
  %8733 = vmatmul.mubr.bf16.gmra.mrb[0].mxu0 %v8679
  %v8734 = vpop.f32.mrb[0].mxu0
  %v8735 = vadd.f32 %v8658, %v8734
  %v8736 = vpop.f32.mrb[0].mxu0
  %v8737 = vpop.f32.mrb[0].mxu0
  %v8738 = vadd.f32 %v8658, %v8737
  %v8739 = vpop.f32.mrb[0].mxu0
  %8740 = vmatprep.mubr.bf16.mxu0 0
  %8741 = vmatmul.mubr.bf16.gmra.mrb[0].mxu0 %v8682
  %v8742 = vpop.f32.mrb[0].mxu0
  %v8743 = vadd.f32 %v8658, %v8742
  %v8744 = vpop.f32.mrb[0].mxu0
  %v8745 = vpop.f32.mrb[0].mxu0
  %v8746 = vadd.f32 %v8658, %v8745
  %v8747 = vpop.f32.mrb[0].mxu0
  %8748 = vdwg.mxu0
  %v8749 = vadd.f32 %v8719, %v4689
  %v8750 = vadd.f32 %v8722, %v4690
  %v8751 = vadd.f32 %v8727, %v4691
  %v8752 = vadd.f32 %v8730, %v4692
  %v8753 = vadd.f32 %v8735, %v4693
  %v8754 = vadd.f32 %v8738, %v4694
  %v8755 = vadd.f32 %v8743, %v4695
  %v8756 = vadd.f32 %v8746, %v4696
  %s8757 = scalar_lea.vmem %s19, 1
  %v8758 = vld [vmem:[%s8757] sm:$0x1]
  %s8759 = scalar_lea.vmem %s21, 1
  %v8760 = vld [vmem:[%s8759] sm:$0x1]
  %v8761 = vsel %vm152, %v8749, 0.0
  %8762 = vadd.xlane.f32.xlu0 %v8761
  %v8763 = vpop.xlane.xlu0 %8762
  %v8764 = vsel %vm152, %v8750, 0.0
  %8765 = vadd.xlane.f32.xlu0 %v8764
  %v8766 = vpop.xlane.xlu0 %8765
  %v8767 = vsel %vm152, %v8751, 0.0
  %8768 = vadd.xlane.f32.xlu0 %v8767
  %v8769 = vpop.xlane.xlu0 %8768
  %v8770 = vsel %vm152, %v8752, 0.0
  %8771 = vadd.xlane.f32.xlu0 %v8770
  %v8772 = vpop.xlane.xlu0 %8771
  %v8773 = vsel %vm152, %v8753, 0.0
  %8774 = vadd.xlane.f32.xlu0 %v8773
  %v8775 = vpop.xlane.xlu0 %8774
  %v8776 = vsel %vm152, %v8754, 0.0
  %8777 = vadd.xlane.f32.xlu0 %v8776
  %v8778 = vpop.xlane.xlu0 %8777
  %v8779 = vsel %vm152, %v8755, 0.0
  %8780 = vadd.xlane.f32.xlu0 %v8779
  %v8781 = vpop.xlane.xlu0 %8780
  %v8782 = vsel %vm152, %v8756, 0.0
  %8783 = vadd.xlane.f32.xlu0 %v8782
  %v8784 = vpop.xlane.xlu0 %8783
  %v8785 = vmul.f32 %v8763, %v177
  %v8786 = vmul.f32 %v8766, %v177
  %v8787 = vmul.f32 %v8769, %v177
  %v8788 = vmul.f32 %v8772, %v177
  %v8789 = vmul.f32 %v8775, %v177
  %v8790 = vmul.f32 %v8778, %v177
  %v8791 = vmul.f32 %v8781, %v177
  %v8792 = vmul.f32 %v8784, %v177
  %v8793 = vsub.f32 %v8749, %v8785
  %v8794 = vsub.f32 %v8750, %v8786
  %v8795 = vsub.f32 %v8751, %v8787
  %v8796 = vsub.f32 %v8752, %v8788
  %v8797 = vsub.f32 %v8753, %v8789
  %v8798 = vsub.f32 %v8754, %v8790
  %v8799 = vsub.f32 %v8755, %v8791
  %v8800 = vsub.f32 %v8756, %v8792
  %v8801 = vmul.f32 %v8793, %v8793
  %v8802 = vmul.f32 %v8794, %v8794
  %v8803 = vmul.f32 %v8795, %v8795
  %v8804 = vmul.f32 %v8796, %v8796
  %v8805 = vmul.f32 %v8797, %v8797
  %v8806 = vmul.f32 %v8798, %v8798
  %v8807 = vmul.f32 %v8799, %v8799
  %v8808 = vmul.f32 %v8800, %v8800
  %v8809 = vsel %vm152, %v8801, 0.0
  %8810 = vadd.xlane.f32.xlu0 %v8809
  %v8811 = vpop.xlane.xlu0 %8810
  %v8812 = vsel %vm152, %v8802, 0.0
  %8813 = vadd.xlane.f32.xlu0 %v8812
  %v8814 = vpop.xlane.xlu0 %8813
  %v8815 = vsel %vm152, %v8803, 0.0
  %8816 = vadd.xlane.f32.xlu0 %v8815
  %v8817 = vpop.xlane.xlu0 %8816
  %v8818 = vsel %vm152, %v8804, 0.0
  %8819 = vadd.xlane.f32.xlu0 %v8818
  %v8820 = vpop.xlane.xlu0 %8819
  %v8821 = vsel %vm152, %v8805, 0.0
  %8822 = vadd.xlane.f32.xlu0 %v8821
  %v8823 = vpop.xlane.xlu0 %8822
  %v8824 = vsel %vm152, %v8806, 0.0
  %8825 = vadd.xlane.f32.xlu0 %v8824
  %v8826 = vpop.xlane.xlu0 %8825
  %v8827 = vsel %vm152, %v8807, 0.0
  %8828 = vadd.xlane.f32.xlu0 %v8827
  %v8829 = vpop.xlane.xlu0 %8828
  %v8830 = vsel %vm152, %v8808, 0.0
  %8831 = vadd.xlane.f32.xlu0 %v8830
  %v8832 = vpop.xlane.xlu0 %8831
  %v8833 = vmul.f32 %v8811, %v177
  %v8834 = vmul.f32 %v8814, %v177
  %v8835 = vmul.f32 %v8817, %v177
  %v8836 = vmul.f32 %v8820, %v177
  %v8837 = vmul.f32 %v8823, %v177
  %v8838 = vmul.f32 %v8826, %v177
  %v8839 = vmul.f32 %v8829, %v177
  %v8840 = vmul.f32 %v8832, %v177
  %v8841 = vadd.f32 %v8833, 1e-06
  %v8842 = vadd.f32 %v8834, 1e-06
  %v8843 = vadd.f32 %v8835, 1e-06
  %v8844 = vadd.f32 %v8836, 1e-06
  %v8845 = vadd.f32 %v8837, 1e-06
  %v8846 = vadd.f32 %v8838, 1e-06
  %v8847 = vadd.f32 %v8839, 1e-06
  %v8848 = vadd.f32 %v8840, 1e-06
  %v8849 = vrsqrt.pop %v8841
  %v8850 = vrsqrt.pop %v8842
  %v8851 = vrsqrt.pop %v8843
  %v8852 = vrsqrt.pop %v8844
  %v8853 = vrsqrt.pop %v8845
  %v8854 = vrsqrt.pop %v8846
  %v8855 = vrsqrt.pop %v8847
  %v8856 = vrsqrt.pop %v8848
  %v8857 = vmul.f32 %v8793, %v8849
  %v8858 = vmul.f32 %v8794, %v8850
  %v8859 = vmul.f32 %v8795, %v8851
  %v8860 = vmul.f32 %v8796, %v8852
  %v8861 = vmul.f32 %v8797, %v8853
  %v8862 = vmul.f32 %v8798, %v8854
  %v8863 = vmul.f32 %v8799, %v8855
  %v8864 = vmul.f32 %v8800, %v8856
  %v8866 = vlaneseq
  %v8867 = vshrl.u32 %v8866, 7
  %v8868 = vsub.s32 0, %v8867
  %v8869 = vrot.slane %v8758, %v8868
  %v8871 = vmul.f32 %v8857, %v8869
  %v8872 = vmul.f32 %v8858, %v8869
  %v8873 = vmul.f32 %v8859, %v8869
  %v8874 = vmul.f32 %v8860, %v8869
  %v8875 = vmul.f32 %v8861, %v8869
  %v8876 = vmul.f32 %v8862, %v8869
  %v8877 = vmul.f32 %v8863, %v8869
  %v8878 = vmul.f32 %v8864, %v8869
  %v8880 = vlaneseq
  %v8881 = vshrl.u32 %v8880, 7
  %v8882 = vsub.s32 0, %v8881
  %v8883 = vrot.slane %v8760, %v8882
  %v8885 = vadd.f32 %v8871, %v8883
  %v8886 = vadd.f32 %v8872, %v8883
  %v8887 = vadd.f32 %v8873, %v8883
  %v8888 = vadd.f32 %v8874, %v8883
  %v8889 = vadd.f32 %v8875, %v8883
  %v8890 = vadd.f32 %v8876, %v8883
  %v8891 = vadd.f32 %v8877, %v8883
  %v8892 = vadd.f32 %v8878, %v8883
  %v8893 = vpack.c.bf16 %v8886, %v8885
  %v8894 = vpack.c.bf16 %v8888, %v8887
  %v8895 = vpack.c.bf16 %v8890, %v8889
  %v8896 = vpack.c.bf16 %v8892, %v8891
  %s8897 = scalar_lea.vmem %s23, 16
  %v8898 = vld [vmem:[%s8897] sm:$0xf]
  %v8899 = vld [vmem:[%s8897 + $0x4] sm:$0xf]
  %v8900 = vld [vmem:[%s8897 + $0x8] sm:$0xf]
  %v8901 = vld [vmem:[%s8897 + $0xc] sm:$0xf]
  %s8902 = scalar_lea.vmem %s25, 1
  %v8903 = vld [vmem:[%s8902] sm:$0x1]
  %v8905 = vlaneseq
  %v8906 = vshrl.u32 %v8905, 7
  %v8907 = vsub.s32 0, %v8906
  %v8908 = vrot.slane %v8903, %v8907
  %v8914 = vunpack.c.l.b16 %v8898
  %v8915 = vunpack.c.l.b16 %v8899
  %v8916 = vunpack.c.l.b16 %v8900
  %v8917 = vunpack.c.l.b16 %v8901
  %v8918 = vpack.c.b16 %v8915, %v8914
  %v8919 = vpack.c.b16 %v8917, %v8916
  %v8923 = vsel %vm152, %v8893, 0
  %v8926 = vsel %vm152, %v8894, 0
  %v8929 = vsel %vm152, %v8895, 0
  %v8932 = vsel %vm152, %v8896, 0
  %8934 = vmatprep.subr.bf16.mxu0 0
  %8935 = vmatpush1.bf16.msra.mxu0 %v8918
  %8936 = vmatprep.subr.bf16.mxu0 0
  %8937 = vmatpush1.bf16.msra.mxu0 %v8919
  %8938 = vmatprep.subr.bf16.mxu0 0
  %8939 = vmatpush1.bf16.msra.mxu0 0
  %8940 = vmatprep.subr.bf16.mxu0 0
  %8941 = vmatpush1.bf16.msra.mxu0 0
  %8942 = vmatprep.subr.bf16.mxu0 0
  %8943 = vmatpush1.bf16.msra.mxu0 0
  %8944 = vmatprep.subr.bf16.mxu0 0
  %8945 = vmatpush1.bf16.msra.mxu0 0
  %8946 = vmatprep.subr.bf16.mxu0 0
  %8947 = vmatpush1.bf16.msra.mxu0 0
  %8948 = vmatprep.subr.bf16.mxu0 0
  %8949 = vmatpush1.bf16.msra.mxu0 0
  %8950 = vmatprep.subr.bf16.mxu0 0
  %8951 = vmatpush1.bf16.msra.mxu0 0
  %8952 = vmatprep.subr.bf16.mxu0 0
  %8953 = vmatpush1.bf16.msra.mxu0 0
  %8954 = vmatprep.subr.bf16.mxu0 0
  %8955 = vmatpush1.bf16.msra.mxu0 0
  %8956 = vmatprep.subr.bf16.mxu0 0
  %8957 = vmatpush1.bf16.msra.mxu0 0
  %8958 = vmatprep.subr.bf16.mxu0 0
  %8959 = vmatpush1.bf16.msra.mxu0 0
  %8960 = vmatprep.subr.bf16.mxu0 0
  %8961 = vmatpush1.bf16.msra.mxu0 0
  %8962 = vmatprep.subr.bf16.mxu0 0
  %8963 = vmatpush1.bf16.msra.mxu0 0
  %8964 = vmatprep.subr.bf16.mxu0 0
  %8965 = vmatpush1.bf16.msra.mxu0 0
  %8966 = vmatprep.mubr.bf16.mxu0 0
  %8967 = vmatmul.mubr.bf16.gmra.mrb[0].mxu0 %v8923
  %v8968 = vpop.f32.mrb[0].mxu0
  %v8969 = vadd.f32 %v8908, %v8968
  %v8970 = vpop.f32.mrb[0].mxu0
  %v8971 = vpop.f32.mrb[0].mxu0
  %v8972 = vadd.f32 %v8908, %v8971
  %v8973 = vpop.f32.mrb[0].mxu0
  %8974 = vmatprep.mubr.bf16.mxu0 0
  %8975 = vmatmul.mubr.bf16.gmra.mrb[0].mxu0 %v8926
  %v8976 = vpop.f32.mrb[0].mxu0
  %v8977 = vadd.f32 %v8908, %v8976
  %v8978 = vpop.f32.mrb[0].mxu0
  %v8979 = vpop.f32.mrb[0].mxu0
  %v8980 = vadd.f32 %v8908, %v8979
  %v8981 = vpop.f32.mrb[0].mxu0
  %8982 = vmatprep.mubr.bf16.mxu0 0
  %8983 = vmatmul.mubr.bf16.gmra.mrb[0].mxu0 %v8929
  %v8984 = vpop.f32.mrb[0].mxu0
  %v8985 = vadd.f32 %v8908, %v8984
  %v8986 = vpop.f32.mrb[0].mxu0
  %v8987 = vpop.f32.mrb[0].mxu0
  %v8988 = vadd.f32 %v8908, %v8987
  %v8989 = vpop.f32.mrb[0].mxu0
  %8990 = vmatprep.mubr.bf16.mxu0 0
  %8991 = vmatmul.mubr.bf16.gmra.mrb[0].mxu0 %v8932
  %v8992 = vpop.f32.mrb[0].mxu0
  %v8993 = vadd.f32 %v8908, %v8992
  %v8994 = vpop.f32.mrb[0].mxu0
  %v8995 = vpop.f32.mrb[0].mxu0
  %v8996 = vadd.f32 %v8908, %v8995
  %v8997 = vpop.f32.mrb[0].mxu0
  %8998 = vdwg.mxu0
  %v8999 = vmul.f32 %v8969, 0.5
  %v9000 = vmul.f32 %v8972, 0.5
  %v9001 = vmul.f32 %v8977, 0.5
  %v9002 = vmul.f32 %v8980, 0.5
  %v9003 = vmul.f32 %v8985, 0.5
  %v9004 = vmul.f32 %v8988, 0.5
  %v9005 = vmul.f32 %v8993, 0.5
  %v9006 = vmul.f32 %v8996, 0.5
  %v9007 = vmul.f32 %v8969, 0.044715
  %v9008 = vmul.f32 %v8972, 0.044715
  %v9009 = vmul.f32 %v8977, 0.044715
  %v9010 = vmul.f32 %v8980, 0.044715
  %v9011 = vmul.f32 %v8985, 0.044715
  %v9012 = vmul.f32 %v8988, 0.044715
  %v9013 = vmul.f32 %v8993, 0.044715
  %v9014 = vmul.f32 %v8996, 0.044715
  %v9015 = vmul.f32 %v9007, %v8969
  %v9016 = vmul.f32 %v9008, %v8972
  %v9017 = vmul.f32 %v9009, %v8977
  %v9018 = vmul.f32 %v9010, %v8980
  %v9019 = vmul.f32 %v9011, %v8985
  %v9020 = vmul.f32 %v9012, %v8988
  %v9021 = vmul.f32 %v9013, %v8993
  %v9022 = vmul.f32 %v9014, %v8996
  %v9023 = vmul.f32 %v9015, %v8969
  %v9024 = vmul.f32 %v9016, %v8972
  %v9025 = vmul.f32 %v9017, %v8977
  %v9026 = vmul.f32 %v9018, %v8980
  %v9027 = vmul.f32 %v9019, %v8985
  %v9028 = vmul.f32 %v9020, %v8988
  %v9029 = vmul.f32 %v9021, %v8993
  %v9030 = vmul.f32 %v9022, %v8996
  %v9031 = vadd.f32 %v8969, %v9023
  %v9032 = vadd.f32 %v8972, %v9024
  %v9033 = vadd.f32 %v8977, %v9025
  %v9034 = vadd.f32 %v8980, %v9026
  %v9035 = vadd.f32 %v8985, %v9027
  %v9036 = vadd.f32 %v8988, %v9028
  %v9037 = vadd.f32 %v8993, %v9029
  %v9038 = vadd.f32 %v8996, %v9030
  %v9039 = vmul.f32 %v9031, 0.7978846
  %v9040 = vmul.f32 %v9032, 0.7978846
  %v9041 = vmul.f32 %v9033, 0.7978846
  %v9042 = vmul.f32 %v9034, 0.7978846
  %v9043 = vmul.f32 %v9035, 0.7978846
  %v9044 = vmul.f32 %v9036, 0.7978846
  %v9045 = vmul.f32 %v9037, 0.7978846
  %v9046 = vmul.f32 %v9038, 0.7978846
  %v9047 = vtanh.pop %v9039
  %v9048 = vtanh.pop %v9040
  %v9049 = vtanh.pop %v9041
  %v9050 = vtanh.pop %v9042
  %v9051 = vtanh.pop %v9043
  %v9052 = vtanh.pop %v9044
  %v9053 = vtanh.pop %v9045
  %v9054 = vtanh.pop %v9046
  %v9055 = vadd.f32 %v9047, 1.0
  %v9056 = vadd.f32 %v9048, 1.0
  %v9057 = vadd.f32 %v9049, 1.0
  %v9058 = vadd.f32 %v9050, 1.0
  %v9059 = vadd.f32 %v9051, 1.0
  %v9060 = vadd.f32 %v9052, 1.0
  %v9061 = vadd.f32 %v9053, 1.0
  %v9062 = vadd.f32 %v9054, 1.0
  %v9063 = vmul.f32 %v8999, %v9055
  %v9064 = vmul.f32 %v9000, %v9056
  %v9065 = vmul.f32 %v9001, %v9057
  %v9066 = vmul.f32 %v9002, %v9058
  %v9067 = vmul.f32 %v9003, %v9059
  %v9068 = vmul.f32 %v9004, %v9060
  %v9069 = vmul.f32 %v9005, %v9061
  %v9070 = vmul.f32 %v9006, %v9062
  %v9071 = vpack.c.bf16 %v9064, %v9063
  %v9072 = vpack.c.bf16 %v9066, %v9065
  %v9073 = vpack.c.bf16 %v9068, %v9067
  %v9074 = vpack.c.bf16 %v9070, %v9069
  %s9075 = scalar_lea.vmem %s27, 32
  %v9076 = vld [vmem:[%s9075] sm:$0xf]
  %v9077 = vld [vmem:[%s9075 + $0x4] sm:$0xf]
  %v9078 = vld [vmem:[%s9075 + $0x8] sm:$0xf]
  %v9079 = vld [vmem:[%s9075 + $0xc] sm:$0xf]
  %v9080 = vld [vmem:[%s9075 + $0x10] sm:$0xf]
  %v9081 = vld [vmem:[%s9075 + $0x14] sm:$0xf]
  %v9082 = vld [vmem:[%s9075 + $0x18] sm:$0xf]
  %v9083 = vld [vmem:[%s9075 + $0x1c] sm:$0xf]
  %s9084 = scalar_lea.vmem %s29, 1
  %v9085 = vld [vmem:[%s9084] sm:$0x1]
  %v9087 = vlaneseq
  %v9088 = vshrl.u32 %v9087, 7
  %v9089 = vsub.s32 0, %v9088
  %v9090 = vrot.slane %v9085, %v9089
  %v9100 = vunpack.c.l.b16 %v9076
  %v9101 = vunpack.c.l.b16 %v9077
  %v9102 = vunpack.c.l.b16 %v9078
  %v9103 = vunpack.c.l.b16 %v9079
  %v9104 = vunpack.c.l.b16 %v9080
  %v9105 = vunpack.c.l.b16 %v9081
  %v9106 = vunpack.c.l.b16 %v9082
  %v9107 = vunpack.c.l.b16 %v9083
  %v9108 = vpack.c.b16 %v9101, %v9100
  %v9109 = vpack.c.b16 %v9103, %v9102
  %v9110 = vpack.c.b16 %v9105, %v9104
  %v9111 = vpack.c.b16 %v9107, %v9106
  %v9117 = vsel %vm4611, %v9071, 0
  %v9120 = vsel %vm4611, %v9072, 0
  %v9123 = vsel %vm4611, %v9073, 0
  %v9126 = vsel %vm4611, %v9074, 0
  %9128 = vmatprep.subr.bf16.mxu0 0
  %9129 = vmatpush1.bf16.msra.mxu0 %v9108
  %9130 = vmatprep.subr.bf16.mxu0 0
  %9131 = vmatpush1.bf16.msra.mxu0 %v9109
  %9132 = vmatprep.subr.bf16.mxu0 0
  %9133 = vmatpush1.bf16.msra.mxu0 %v9110
  %9134 = vmatprep.subr.bf16.mxu0 0
  %9135 = vmatpush1.bf16.msra.mxu0 %v9111
  %9136 = vmatprep.subr.bf16.mxu0 0
  %9137 = vmatpush1.bf16.msra.mxu0 0
  %9138 = vmatprep.subr.bf16.mxu0 0
  %9139 = vmatpush1.bf16.msra.mxu0 0
  %9140 = vmatprep.subr.bf16.mxu0 0
  %9141 = vmatpush1.bf16.msra.mxu0 0
  %9142 = vmatprep.subr.bf16.mxu0 0
  %9143 = vmatpush1.bf16.msra.mxu0 0
  %9144 = vmatprep.subr.bf16.mxu0 0
  %9145 = vmatpush1.bf16.msra.mxu0 0
  %9146 = vmatprep.subr.bf16.mxu0 0
  %9147 = vmatpush1.bf16.msra.mxu0 0
  %9148 = vmatprep.subr.bf16.mxu0 0
  %9149 = vmatpush1.bf16.msra.mxu0 0
  %9150 = vmatprep.subr.bf16.mxu0 0
  %9151 = vmatpush1.bf16.msra.mxu0 0
  %9152 = vmatprep.subr.bf16.mxu0 0
  %9153 = vmatpush1.bf16.msra.mxu0 0
  %9154 = vmatprep.subr.bf16.mxu0 0
  %9155 = vmatpush1.bf16.msra.mxu0 0
  %9156 = vmatprep.subr.bf16.mxu0 0
  %9157 = vmatpush1.bf16.msra.mxu0 0
  %9158 = vmatprep.subr.bf16.mxu0 0
  %9159 = vmatpush1.bf16.msra.mxu0 0
  %9160 = vmatprep.mubr.bf16.mxu0 0
  %9161 = vmatmul.mubr.bf16.gmra.mrb[0].mxu0 %v9117
  %v9162 = vpop.f32.mrb[0].mxu0
  %v9163 = vadd.f32 %v9090, %v9162
  %v9164 = vpop.f32.mrb[0].mxu0
  %v9165 = vpop.f32.mrb[0].mxu0
  %v9166 = vadd.f32 %v9090, %v9165
  %v9167 = vpop.f32.mrb[0].mxu0
  %9168 = vmatprep.mubr.bf16.mxu0 0
  %9169 = vmatmul.mubr.bf16.gmra.mrb[0].mxu0 %v9120
  %v9170 = vpop.f32.mrb[0].mxu0
  %v9171 = vadd.f32 %v9090, %v9170
  %v9172 = vpop.f32.mrb[0].mxu0
  %v9173 = vpop.f32.mrb[0].mxu0
  %v9174 = vadd.f32 %v9090, %v9173
  %v9175 = vpop.f32.mrb[0].mxu0
  %9176 = vmatprep.mubr.bf16.mxu0 0
  %9177 = vmatmul.mubr.bf16.gmra.mrb[0].mxu0 %v9123
  %v9178 = vpop.f32.mrb[0].mxu0
  %v9179 = vadd.f32 %v9090, %v9178
  %v9180 = vpop.f32.mrb[0].mxu0
  %v9181 = vpop.f32.mrb[0].mxu0
  %v9182 = vadd.f32 %v9090, %v9181
  %v9183 = vpop.f32.mrb[0].mxu0
  %9184 = vmatprep.mubr.bf16.mxu0 0
  %9185 = vmatmul.mubr.bf16.gmra.mrb[0].mxu0 %v9126
  %v9186 = vpop.f32.mrb[0].mxu0
  %v9187 = vadd.f32 %v9090, %v9186
  %v9188 = vpop.f32.mrb[0].mxu0
  %v9189 = vpop.f32.mrb[0].mxu0
  %v9190 = vadd.f32 %v9090, %v9189
  %v9191 = vpop.f32.mrb[0].mxu0
  %9192 = vdwg.mxu0
  %v9193 = vadd.f32 %v9163, %v8749
  %v9194 = vadd.f32 %v9166, %v8750
  %v9195 = vadd.f32 %v9171, %v8751
  %v9196 = vadd.f32 %v9174, %v8752
  %v9197 = vadd.f32 %v9179, %v8753
  %v9198 = vadd.f32 %v9182, %v8754
  %v9199 = vadd.f32 %v9187, %v8755
  %v9200 = vadd.f32 %v9190, %v8756
  %v9201 = vld [vmem:[%s31] sm:$0x1]
  %v9202 = vld [vmem:[%s33] sm:$0x1]
  %v9203 = vsel %vm152, %v9193, 0.0
  %9204 = vadd.xlane.f32.xlu0 %v9203
  %v9205 = vpop.xlane.xlu0 %9204
  %v9206 = vsel %vm152, %v9194, 0.0
  %9207 = vadd.xlane.f32.xlu0 %v9206
  %v9208 = vpop.xlane.xlu0 %9207
  %v9209 = vsel %vm152, %v9195, 0.0
  %9210 = vadd.xlane.f32.xlu0 %v9209
  %v9211 = vpop.xlane.xlu0 %9210
  %v9212 = vsel %vm152, %v9196, 0.0
  %9213 = vadd.xlane.f32.xlu0 %v9212
  %v9214 = vpop.xlane.xlu0 %9213
  %v9215 = vsel %vm152, %v9197, 0.0
  %9216 = vadd.xlane.f32.xlu0 %v9215
  %v9217 = vpop.xlane.xlu0 %9216
  %v9218 = vsel %vm152, %v9198, 0.0
  %9219 = vadd.xlane.f32.xlu0 %v9218
  %v9220 = vpop.xlane.xlu0 %9219
  %v9221 = vsel %vm152, %v9199, 0.0
  %9222 = vadd.xlane.f32.xlu0 %v9221
  %v9223 = vpop.xlane.xlu0 %9222
  %v9224 = vsel %vm152, %v9200, 0.0
  %9225 = vadd.xlane.f32.xlu0 %v9224
  %v9226 = vpop.xlane.xlu0 %9225
  %v9227 = vmul.f32 %v9205, %v177
  %v9228 = vmul.f32 %v9208, %v177
  %v9229 = vmul.f32 %v9211, %v177
  %v9230 = vmul.f32 %v9214, %v177
  %v9231 = vmul.f32 %v9217, %v177
  %v9232 = vmul.f32 %v9220, %v177
  %v9233 = vmul.f32 %v9223, %v177
  %v9234 = vmul.f32 %v9226, %v177
  %v9235 = vsub.f32 %v9193, %v9227
  %v9236 = vsub.f32 %v9194, %v9228
  %v9237 = vsub.f32 %v9195, %v9229
  %v9238 = vsub.f32 %v9196, %v9230
  %v9239 = vsub.f32 %v9197, %v9231
  %v9240 = vsub.f32 %v9198, %v9232
  %v9241 = vsub.f32 %v9199, %v9233
  %v9242 = vsub.f32 %v9200, %v9234
  %v9243 = vmul.f32 %v9235, %v9235
  %v9244 = vmul.f32 %v9236, %v9236
  %v9245 = vmul.f32 %v9237, %v9237
  %v9246 = vmul.f32 %v9238, %v9238
  %v9247 = vmul.f32 %v9239, %v9239
  %v9248 = vmul.f32 %v9240, %v9240
  %v9249 = vmul.f32 %v9241, %v9241
  %v9250 = vmul.f32 %v9242, %v9242
  %v9251 = vsel %vm152, %v9243, 0.0
  %9252 = vadd.xlane.f32.xlu0 %v9251
  %v9253 = vpop.xlane.xlu0 %9252
  %v9254 = vsel %vm152, %v9244, 0.0
  %9255 = vadd.xlane.f32.xlu0 %v9254
  %v9256 = vpop.xlane.xlu0 %9255
  %v9257 = vsel %vm152, %v9245, 0.0
  %9258 = vadd.xlane.f32.xlu0 %v9257
  %v9259 = vpop.xlane.xlu0 %9258
  %v9260 = vsel %vm152, %v9246, 0.0
  %9261 = vadd.xlane.f32.xlu0 %v9260
  %v9262 = vpop.xlane.xlu0 %9261
  %v9263 = vsel %vm152, %v9247, 0.0
  %9264 = vadd.xlane.f32.xlu0 %v9263
  %v9265 = vpop.xlane.xlu0 %9264
  %v9266 = vsel %vm152, %v9248, 0.0
  %9267 = vadd.xlane.f32.xlu0 %v9266
  %v9268 = vpop.xlane.xlu0 %9267
  %v9269 = vsel %vm152, %v9249, 0.0
  %9270 = vadd.xlane.f32.xlu0 %v9269
  %v9271 = vpop.xlane.xlu0 %9270
  %v9272 = vsel %vm152, %v9250, 0.0
  %9273 = vadd.xlane.f32.xlu0 %v9272
  %v9274 = vpop.xlane.xlu0 %9273
  %v9275 = vmul.f32 %v9253, %v177
  %v9276 = vmul.f32 %v9256, %v177
  %v9277 = vmul.f32 %v9259, %v177
  %v9278 = vmul.f32 %v9262, %v177
  %v9279 = vmul.f32 %v9265, %v177
  %v9280 = vmul.f32 %v9268, %v177
  %v9281 = vmul.f32 %v9271, %v177
  %v9282 = vmul.f32 %v9274, %v177
  %v9283 = vadd.f32 %v9275, 1e-06
  %v9284 = vadd.f32 %v9276, 1e-06
  %v9285 = vadd.f32 %v9277, 1e-06
  %v9286 = vadd.f32 %v9278, 1e-06
  %v9287 = vadd.f32 %v9279, 1e-06
  %v9288 = vadd.f32 %v9280, 1e-06
  %v9289 = vadd.f32 %v9281, 1e-06
  %v9290 = vadd.f32 %v9282, 1e-06
  %v9291 = vrsqrt.pop %v9283
  %v9292 = vrsqrt.pop %v9284
  %v9293 = vrsqrt.pop %v9285
  %v9294 = vrsqrt.pop %v9286
  %v9295 = vrsqrt.pop %v9287
  %v9296 = vrsqrt.pop %v9288
  %v9297 = vrsqrt.pop %v9289
  %v9298 = vrsqrt.pop %v9290
  %v9299 = vmul.f32 %v9235, %v9291
  %v9300 = vmul.f32 %v9236, %v9292
  %v9301 = vmul.f32 %v9237, %v9293
  %v9302 = vmul.f32 %v9238, %v9294
  %v9303 = vmul.f32 %v9239, %v9295
  %v9304 = vmul.f32 %v9240, %v9296
  %v9305 = vmul.f32 %v9241, %v9297
  %v9306 = vmul.f32 %v9242, %v9298
  %v9308 = vlaneseq
  %v9309 = vshrl.u32 %v9308, 7
  %v9310 = vsub.s32 0, %v9309
  %v9311 = vrot.slane %v9201, %v9310
  %v9313 = vmul.f32 %v9299, %v9311
  %v9314 = vmul.f32 %v9300, %v9311
  %v9315 = vmul.f32 %v9301, %v9311
  %v9316 = vmul.f32 %v9302, %v9311
  %v9317 = vmul.f32 %v9303, %v9311
  %v9318 = vmul.f32 %v9304, %v9311
  %v9319 = vmul.f32 %v9305, %v9311
  %v9320 = vmul.f32 %v9306, %v9311
  %v9322 = vlaneseq
  %v9323 = vshrl.u32 %v9322, 7
  %v9324 = vsub.s32 0, %v9323
  %v9325 = vrot.slane %v9202, %v9324
  %v9327 = vadd.f32 %v9313, %v9325
  %v9328 = vadd.f32 %v9314, %v9325
  %v9329 = vadd.f32 %v9315, %v9325
  %v9330 = vadd.f32 %v9316, %v9325
  %v9331 = vadd.f32 %v9317, %v9325
  %v9332 = vadd.f32 %v9318, %v9325
  %v9333 = vadd.f32 %v9319, %v9325
  %v9334 = vadd.f32 %v9320, %v9325
  %v9335 = vpack.c.bf16 %v9328, %v9327
  %v9336 = vpack.c.bf16 %v9330, %v9329
  %v9337 = vpack.c.bf16 %v9332, %v9331
  %v9338 = vpack.c.bf16 %v9334, %v9333
  %v9339 = vld [vmem:[%s35] sm:$0xf]
  %v9340 = vld [vmem:[%s35 + $0x4] sm:$0xf]
  %v9341 = vld [vmem:[%s35 + $0x8] sm:$0xf]
  %v9342 = vld [vmem:[%s35 + $0xc] sm:$0xf]
  %v9343 = vld [vmem:[%s37] sm:$0x1]
  %v9345 = vlaneseq
  %v9346 = vshrl.u32 %v9345, 7
  %v9347 = vsub.s32 0, %v9346
  %v9348 = vrot.slane %v9343, %v9347
  %v9354 = vunpack.c.l.b16 %v9339
  %v9355 = vunpack.c.l.b16 %v9340
  %v9356 = vunpack.c.l.b16 %v9341
  %v9357 = vunpack.c.l.b16 %v9342
  %v9358 = vpack.c.b16 %v9355, %v9354
  %v9359 = vpack.c.b16 %v9357, %v9356
  %v9363 = vsel %vm152, %v9335, 0
  %v9366 = vsel %vm152, %v9336, 0
  %v9369 = vsel %vm152, %v9337, 0
  %v9372 = vsel %vm152, %v9338, 0
  %9374 = vmatprep.subr.bf16.mxu0 0
  %9375 = vmatpush1.bf16.msra.mxu0 %v9358
  %9376 = vmatprep.subr.bf16.mxu0 0
  %9377 = vmatpush1.bf16.msra.mxu0 %v9359
  %9378 = vmatprep.subr.bf16.mxu0 0
  %9379 = vmatpush1.bf16.msra.mxu0 0
  %9380 = vmatprep.subr.bf16.mxu0 0
  %9381 = vmatpush1.bf16.msra.mxu0 0
  %9382 = vmatprep.subr.bf16.mxu0 0
  %9383 = vmatpush1.bf16.msra.mxu0 0
  %9384 = vmatprep.subr.bf16.mxu0 0
  %9385 = vmatpush1.bf16.msra.mxu0 0
  %9386 = vmatprep.subr.bf16.mxu0 0
  %9387 = vmatpush1.bf16.msra.mxu0 0
  %9388 = vmatprep.subr.bf16.mxu0 0
  %9389 = vmatpush1.bf16.msra.mxu0 0
  %9390 = vmatprep.subr.bf16.mxu0 0
  %9391 = vmatpush1.bf16.msra.mxu0 0
  %9392 = vmatprep.subr.bf16.mxu0 0
  %9393 = vmatpush1.bf16.msra.mxu0 0
  %9394 = vmatprep.subr.bf16.mxu0 0
  %9395 = vmatpush1.bf16.msra.mxu0 0
  %9396 = vmatprep.subr.bf16.mxu0 0
  %9397 = vmatpush1.bf16.msra.mxu0 0
  %9398 = vmatprep.subr.bf16.mxu0 0
  %9399 = vmatpush1.bf16.msra.mxu0 0
  %9400 = vmatprep.subr.bf16.mxu0 0
  %9401 = vmatpush1.bf16.msra.mxu0 0
  %9402 = vmatprep.subr.bf16.mxu0 0
  %9403 = vmatpush1.bf16.msra.mxu0 0
  %9404 = vmatprep.subr.bf16.mxu0 0
  %9405 = vmatpush1.bf16.msra.mxu0 0
  %9406 = vmatprep.mubr.bf16.mxu0 0
  %9407 = vmatmul.mubr.bf16.gmra.mrb[0].mxu0 %v9363
  %v9408 = vpop.f32.mrb[0].mxu0
  %v9409 = vadd.f32 %v9348, %v9408
  %v9410 = vpop.f32.mrb[0].mxu0
  %v9411 = vpop.f32.mrb[0].mxu0
  %v9412 = vadd.f32 %v9348, %v9411
  %v9413 = vpop.f32.mrb[0].mxu0
  %9414 = vmatprep.mubr.bf16.mxu0 0
  %9415 = vmatmul.mubr.bf16.gmra.mrb[0].mxu0 %v9366
  %v9416 = vpop.f32.mrb[0].mxu0
  %v9417 = vadd.f32 %v9348, %v9416
  %v9418 = vpop.f32.mrb[0].mxu0
  %v9419 = vpop.f32.mrb[0].mxu0
  %v9420 = vadd.f32 %v9348, %v9419
  %v9421 = vpop.f32.mrb[0].mxu0
  %9422 = vmatprep.mubr.bf16.mxu0 0
  %9423 = vmatmul.mubr.bf16.gmra.mrb[0].mxu0 %v9369
  %v9424 = vpop.f32.mrb[0].mxu0
  %v9425 = vadd.f32 %v9348, %v9424
  %v9426 = vpop.f32.mrb[0].mxu0
  %v9427 = vpop.f32.mrb[0].mxu0
  %v9428 = vadd.f32 %v9348, %v9427
  %v9429 = vpop.f32.mrb[0].mxu0
  %9430 = vmatprep.mubr.bf16.mxu0 0
  %9431 = vmatmul.mubr.bf16.gmra.mrb[0].mxu0 %v9372
  %v9432 = vpop.f32.mrb[0].mxu0
  %v9433 = vadd.f32 %v9348, %v9432
  %v9434 = vpop.f32.mrb[0].mxu0
  %v9435 = vpop.f32.mrb[0].mxu0
  %v9436 = vadd.f32 %v9348, %v9435
  %v9437 = vpop.f32.mrb[0].mxu0
  %9438 = vdwg.mxu0
  %v9439 = vld [vmem:[%s39] sm:$0xf]
  %v9440 = vld [vmem:[%s39 + $0x4] sm:$0xf]
  %v9441 = vld [vmem:[%s39 + $0x8] sm:$0xf]
  %v9442 = vld [vmem:[%s39 + $0xc] sm:$0xf]
  %v9443 = vld [vmem:[%s41] sm:$0x1]
  %v9445 = vlaneseq
  %v9446 = vshrl.u32 %v9445, 7
  %v9447 = vsub.s32 0, %v9446
  %v9448 = vrot.slane %v9443, %v9447
  %v9454 = vunpack.c.l.b16 %v9439
  %v9455 = vunpack.c.l.b16 %v9440
  %v9456 = vunpack.c.l.b16 %v9441
  %v9457 = vunpack.c.l.b16 %v9442
  %v9458 = vpack.c.b16 %v9455, %v9454
  %v9459 = vpack.c.b16 %v9457, %v9456
  %9462 = vmatprep.subr.bf16.mxu0 0
  %9463 = vmatpush1.bf16.msra.mxu0 %v9458
  %9464 = vmatprep.subr.bf16.mxu0 0
  %9465 = vmatpush1.bf16.msra.mxu0 %v9459
  %9466 = vmatprep.subr.bf16.mxu0 0
  %9467 = vmatpush1.bf16.msra.mxu0 0
  %9468 = vmatprep.subr.bf16.mxu0 0
  %9469 = vmatpush1.bf16.msra.mxu0 0
  %9470 = vmatprep.subr.bf16.mxu0 0
  %9471 = vmatpush1.bf16.msra.mxu0 0
  %9472 = vmatprep.subr.bf16.mxu0 0
  %9473 = vmatpush1.bf16.msra.mxu0 0
  %9474 = vmatprep.subr.bf16.mxu0 0
  %9475 = vmatpush1.bf16.msra.mxu0 0
  %9476 = vmatprep.subr.bf16.mxu0 0
  %9477 = vmatpush1.bf16.msra.mxu0 0
  %9478 = vmatprep.subr.bf16.mxu0 0
  %9479 = vmatpush1.bf16.msra.mxu0 0
  %9480 = vmatprep.subr.bf16.mxu0 0
  %9481 = vmatpush1.bf16.msra.mxu0 0
  %9482 = vmatprep.subr.bf16.mxu0 0
  %9483 = vmatpush1.bf16.msra.mxu0 0
  %9484 = vmatprep.subr.bf16.mxu0 0
  %9485 = vmatpush1.bf16.msra.mxu0 0
  %9486 = vmatprep.subr.bf16.mxu0 0
  %9487 = vmatpush1.bf16.msra.mxu0 0
  %9488 = vmatprep.subr.bf16.mxu0 0
  %9489 = vmatpush1.bf16.msra.mxu0 0
  %9490 = vmatprep.subr.bf16.mxu0 0
  %9491 = vmatpush1.bf16.msra.mxu0 0
  %9492 = vmatprep.subr.bf16.mxu0 0
  %9493 = vmatpush1.bf16.msra.mxu0 0
  %9494 = vmatprep.mubr.bf16.mxu0 0
  %9495 = vmatmul.mubr.bf16.gmra.mrb[0].mxu0 %v9363
  %v9496 = vpop.f32.mrb[0].mxu0
  %v9497 = vadd.f32 %v9448, %v9496
  %v9498 = vpop.f32.mrb[0].mxu0
  %v9499 = vpop.f32.mrb[0].mxu0
  %v9500 = vadd.f32 %v9448, %v9499
  %v9501 = vpop.f32.mrb[0].mxu0
  %9502 = vmatprep.mubr.bf16.mxu0 0
  %9503 = vmatmul.mubr.bf16.gmra.mrb[0].mxu0 %v9366
  %v9504 = vpop.f32.mrb[0].mxu0
  %v9505 = vadd.f32 %v9448, %v9504
  %v9506 = vpop.f32.mrb[0].mxu0
  %v9507 = vpop.f32.mrb[0].mxu0
  %v9508 = vadd.f32 %v9448, %v9507
  %v9509 = vpop.f32.mrb[0].mxu0
  %9510 = vmatprep.mubr.bf16.mxu0 0
  %9511 = vmatmul.mubr.bf16.gmra.mrb[0].mxu0 %v9369
  %v9512 = vpop.f32.mrb[0].mxu0
  %v9513 = vadd.f32 %v9448, %v9512
  %v9514 = vpop.f32.mrb[0].mxu0
  %v9515 = vpop.f32.mrb[0].mxu0
  %v9516 = vadd.f32 %v9448, %v9515
  %v9517 = vpop.f32.mrb[0].mxu0
  %9518 = vmatprep.mubr.bf16.mxu0 0
  %9519 = vmatmul.mubr.bf16.gmra.mrb[0].mxu0 %v9372
  %v9520 = vpop.f32.mrb[0].mxu0
  %v9521 = vadd.f32 %v9448, %v9520
  %v9522 = vpop.f32.mrb[0].mxu0
  %v9523 = vpop.f32.mrb[0].mxu0
  %v9524 = vadd.f32 %v9448, %v9523
  %v9525 = vpop.f32.mrb[0].mxu0
  %9526 = vdwg.mxu0
  %v9527 = vsub.f32 %v142, 1.0
  %v9528 = vsub.f32 %v143, 1.0
  %v9529 = vsub.f32 %v144, 1.0
  %v9530 = vsub.f32 %v145, 1.0
  %v9531 = vsub.f32 %v146, 1.0
  %v9532 = vsub.f32 %v147, 1.0
  %v9533 = vsub.f32 %v148, 1.0
  %v9534 = vsub.f32 %v149, 1.0
  %v9535 = vmul.f32 %v9527, 1e+09
  %v9536 = vmul.f32 %v9528, 1e+09
  %v9537 = vmul.f32 %v9529, 1e+09
  %v9538 = vmul.f32 %v9530, 1e+09
  %v9539 = vmul.f32 %v9531, 1e+09
  %v9540 = vmul.f32 %v9532, 1e+09
  %v9541 = vmul.f32 %v9533, 1e+09
  %v9542 = vmul.f32 %v9534, 1e+09
  %9544 = vset.pattern.permute.xlu0 0
  %9545 = vperm.xlu0 %9544, %v9535
  %v9546 = vpop.permute.xlu0 %9545
  %9549 = vset.pattern.permute.xlu0 0
  %9550 = vperm.xlu0 %9549, %v9536
  %v9551 = vpop.permute.xlu0 %9550
  %9554 = vset.pattern.permute.xlu0 0
  %9555 = vperm.xlu0 %9554, %v9537
  %v9556 = vpop.permute.xlu0 %9555
  %9559 = vset.pattern.permute.xlu0 0
  %9560 = vperm.xlu0 %9559, %v9538
  %v9561 = vpop.permute.xlu0 %9560
  %9564 = vset.pattern.permute.xlu0 0
  %9565 = vperm.xlu0 %9564, %v9539
  %v9566 = vpop.permute.xlu0 %9565
  %9569 = vset.pattern.permute.xlu0 0
  %9570 = vperm.xlu0 %9569, %v9540
  %v9571 = vpop.permute.xlu0 %9570
  %9574 = vset.pattern.permute.xlu0 0
  %9575 = vperm.xlu0 %9574, %v9541
  %v9576 = vpop.permute.xlu0 %9575
  %9579 = vset.pattern.permute.xlu0 0
  %9580 = vperm.xlu0 %9579, %v9542
  %v9581 = vpop.permute.xlu0 %9580
  %v9583 = vadd.f32 %v9409, %v9546
  %v9584 = vadd.f32 %v9412, %v9551
  %v9585 = vadd.f32 %v9417, %v9556
  %v9586 = vadd.f32 %v9420, %v9561
  %v9587 = vadd.f32 %v9425, %v9566
  %v9588 = vadd.f32 %v9428, %v9571
  %v9589 = vadd.f32 %v9433, %v9576
  %v9590 = vadd.f32 %v9436, %v9581
  %vm9591 = vcmask 31744
  %v9592 = vsel %vm9591, %v9583, -inf
  %v9593 = vrot.slane %v9592, 4
  %v9594 = vmax.f32 %v9592, %v9593
  %v9595 = vrot.slane %v9594, 2
  %v9596 = vmax.f32 %v9594, %v9595
  %v9597 = vrot.slane %v9596, 1
  %v9598 = vmax.f32 %v9596, %v9597
  %v9599 = vsel %vm9591, %v9584, -inf
  %v9600 = vrot.slane %v9599, 4
  %v9601 = vmax.f32 %v9599, %v9600
  %v9602 = vrot.slane %v9601, 2
  %v9603 = vmax.f32 %v9601, %v9602
  %v9604 = vrot.slane %v9603, 1
  %v9605 = vmax.f32 %v9603, %v9604
  %v9606 = vsel %vm9591, %v9585, -inf
  %v9607 = vrot.slane %v9606, 4
  %v9608 = vmax.f32 %v9606, %v9607
  %v9609 = vrot.slane %v9608, 2
  %v9610 = vmax.f32 %v9608, %v9609
  %v9611 = vrot.slane %v9610, 1
  %v9612 = vmax.f32 %v9610, %v9611
  %v9613 = vsel %vm9591, %v9586, -inf
  %v9614 = vrot.slane %v9613, 4
  %v9615 = vmax.f32 %v9613, %v9614
  %v9616 = vrot.slane %v9615, 2
  %v9617 = vmax.f32 %v9615, %v9616
  %v9618 = vrot.slane %v9617, 1
  %v9619 = vmax.f32 %v9617, %v9618
  %v9620 = vsel %vm9591, %v9587, -inf
  %v9621 = vrot.slane %v9620, 4
  %v9622 = vmax.f32 %v9620, %v9621
  %v9623 = vrot.slane %v9622, 2
  %v9624 = vmax.f32 %v9622, %v9623
  %v9625 = vrot.slane %v9624, 1
  %v9626 = vmax.f32 %v9624, %v9625
  %v9627 = vsel %vm9591, %v9588, -inf
  %v9628 = vrot.slane %v9627, 4
  %v9629 = vmax.f32 %v9627, %v9628
  %v9630 = vrot.slane %v9629, 2
  %v9631 = vmax.f32 %v9629, %v9630
  %v9632 = vrot.slane %v9631, 1
  %v9633 = vmax.f32 %v9631, %v9632
  %v9634 = vsel %vm9591, %v9589, -inf
  %v9635 = vrot.slane %v9634, 4
  %v9636 = vmax.f32 %v9634, %v9635
  %v9637 = vrot.slane %v9636, 2
  %v9638 = vmax.f32 %v9636, %v9637
  %v9639 = vrot.slane %v9638, 1
  %v9640 = vmax.f32 %v9638, %v9639
  %v9641 = vsel %vm9591, %v9590, -inf
  %v9642 = vrot.slane %v9641, 4
  %v9643 = vmax.f32 %v9641, %v9642
  %v9644 = vrot.slane %v9643, 2
  %v9645 = vmax.f32 %v9643, %v9644
  %v9646 = vrot.slane %v9645, 1
  %v9647 = vmax.f32 %v9645, %v9646
  %v9648 = vsub.f32 %v9583, %v9598
  %v9649 = vsub.f32 %v9584, %v9605
  %v9650 = vsub.f32 %v9585, %v9612
  %v9651 = vsub.f32 %v9586, %v9619
  %v9652 = vsub.f32 %v9587, %v9626
  %v9653 = vsub.f32 %v9588, %v9633
  %v9654 = vsub.f32 %v9589, %v9640
  %v9655 = vsub.f32 %v9590, %v9647
  %v9656 = vmul.f32 %v9648, 1.442695
  %v9657 = vpow.pop %v9656
  %v9658 = vmul.f32 %v9649, 1.442695
  %v9659 = vpow.pop %v9658
  %v9660 = vmul.f32 %v9650, 1.442695
  %v9661 = vpow.pop %v9660
  %v9662 = vmul.f32 %v9651, 1.442695
  %v9663 = vpow.pop %v9662
  %v9664 = vmul.f32 %v9652, 1.442695
  %v9665 = vpow.pop %v9664
  %v9666 = vmul.f32 %v9653, 1.442695
  %v9667 = vpow.pop %v9666
  %v9668 = vmul.f32 %v9654, 1.442695
  %v9669 = vpow.pop %v9668
  %v9670 = vmul.f32 %v9655, 1.442695
  %v9671 = vpow.pop %v9670
  %v9672 = vsel %vm9591, %v9657, 0.0
  %v9673 = vrot.slane %v9672, 4
  %v9674 = vadd.f32 %v9672, %v9673
  %v9675 = vrot.slane %v9674, 2
  %v9676 = vadd.f32 %v9674, %v9675
  %v9677 = vrot.slane %v9676, 1
  %v9678 = vadd.f32 %v9676, %v9677
  %v9679 = vsel %vm9591, %v9659, 0.0
  %v9680 = vrot.slane %v9679, 4
  %v9681 = vadd.f32 %v9679, %v9680
  %v9682 = vrot.slane %v9681, 2
  %v9683 = vadd.f32 %v9681, %v9682
  %v9684 = vrot.slane %v9683, 1
  %v9685 = vadd.f32 %v9683, %v9684
  %v9686 = vsel %vm9591, %v9661, 0.0
  %v9687 = vrot.slane %v9686, 4
  %v9688 = vadd.f32 %v9686, %v9687
  %v9689 = vrot.slane %v9688, 2
  %v9690 = vadd.f32 %v9688, %v9689
  %v9691 = vrot.slane %v9690, 1
  %v9692 = vadd.f32 %v9690, %v9691
  %v9693 = vsel %vm9591, %v9663, 0.0
  %v9694 = vrot.slane %v9693, 4
  %v9695 = vadd.f32 %v9693, %v9694
  %v9696 = vrot.slane %v9695, 2
  %v9697 = vadd.f32 %v9695, %v9696
  %v9698 = vrot.slane %v9697, 1
  %v9699 = vadd.f32 %v9697, %v9698
  %v9700 = vsel %vm9591, %v9665, 0.0
  %v9701 = vrot.slane %v9700, 4
  %v9702 = vadd.f32 %v9700, %v9701
  %v9703 = vrot.slane %v9702, 2
  %v9704 = vadd.f32 %v9702, %v9703
  %v9705 = vrot.slane %v9704, 1
  %v9706 = vadd.f32 %v9704, %v9705
  %v9707 = vsel %vm9591, %v9667, 0.0
  %v9708 = vrot.slane %v9707, 4
  %v9709 = vadd.f32 %v9707, %v9708
  %v9710 = vrot.slane %v9709, 2
  %v9711 = vadd.f32 %v9709, %v9710
  %v9712 = vrot.slane %v9711, 1
  %v9713 = vadd.f32 %v9711, %v9712
  %v9714 = vsel %vm9591, %v9669, 0.0
  %v9715 = vrot.slane %v9714, 4
  %v9716 = vadd.f32 %v9714, %v9715
  %v9717 = vrot.slane %v9716, 2
  %v9718 = vadd.f32 %v9716, %v9717
  %v9719 = vrot.slane %v9718, 1
  %v9720 = vadd.f32 %v9718, %v9719
  %v9721 = vsel %vm9591, %v9671, 0.0
  %v9722 = vrot.slane %v9721, 4
  %v9723 = vadd.f32 %v9721, %v9722
  %v9724 = vrot.slane %v9723, 2
  %v9725 = vadd.f32 %v9723, %v9724
  %v9726 = vrot.slane %v9725, 1
  %v9727 = vadd.f32 %v9725, %v9726
  %v9728 = vrcp.pop %v9678
  %v9729 = vrcp.pop %v9685
  %v9730 = vrcp.pop %v9692
  %v9731 = vrcp.pop %v9699
  %v9732 = vrcp.pop %v9706
  %v9733 = vrcp.pop %v9713
  %v9734 = vrcp.pop %v9720
  %v9735 = vrcp.pop %v9727
  %v9736 = vmul.f32 %v9657, %v9728
  %v9737 = vmul.f32 %v9659, %v9729
  %v9738 = vmul.f32 %v9661, %v9730
  %v9739 = vmul.f32 %v9663, %v9731
  %v9740 = vmul.f32 %v9665, %v9732
  %v9741 = vmul.f32 %v9667, %v9733
  %v9742 = vmul.f32 %v9669, %v9734
  %v9743 = vmul.f32 %v9671, %v9735
  %9745 = vset.pattern.permute.xlu0 0
  %9746 = vperm.xlu0 %9745, %v9736
  %v9747 = vpop.permute.xlu0 %9746
  %9750 = vset.pattern.permute.xlu0 0
  %9751 = vperm.xlu0 %9750, %v9737
  %v9752 = vpop.permute.xlu0 %9751
  %9755 = vset.pattern.permute.xlu0 0
  %9756 = vperm.xlu0 %9755, %v9738
  %v9757 = vpop.permute.xlu0 %9756
  %9760 = vset.pattern.permute.xlu0 0
  %9761 = vperm.xlu0 %9760, %v9739
  %v9762 = vpop.permute.xlu0 %9761
  %9765 = vset.pattern.permute.xlu0 0
  %9766 = vperm.xlu0 %9765, %v9740
  %v9767 = vpop.permute.xlu0 %9766
  %9770 = vset.pattern.permute.xlu0 0
  %9771 = vperm.xlu0 %9770, %v9741
  %v9772 = vpop.permute.xlu0 %9771
  %9775 = vset.pattern.permute.xlu0 0
  %9776 = vperm.xlu0 %9775, %v9742
  %v9777 = vpop.permute.xlu0 %9776
  %9780 = vset.pattern.permute.xlu0 0
  %9781 = vperm.xlu0 %9780, %v9743
  %v9782 = vpop.permute.xlu0 %9781
  %v9784 = vmul.f32 %v9747, %v9497
  %v9785 = vmul.f32 %v9752, %v9500
  %v9786 = vmul.f32 %v9757, %v9505
  %v9787 = vmul.f32 %v9762, %v9508
  %v9788 = vmul.f32 %v9767, %v9513
  %v9789 = vmul.f32 %v9772, %v9516
  %v9790 = vmul.f32 %v9777, %v9521
  %v9791 = vmul.f32 %v9782, %v9524
  %v9792 = vsel %vm401, %v9784, 0.0
  %v9793 = vrot.slane %v9792, 4
  %v9794 = vadd.f32 %v9792, %v9793
  %v9795 = vrot.slane %v9794, 2
  %v9796 = vadd.f32 %v9794, %v9795
  %v9797 = vrot.slane %v9796, 1
  %v9798 = vadd.f32 %v9796, %v9797
  %v9799 = vsel %vm401, %v9785, 0.0
  %v9800 = vrot.slane %v9799, 4
  %v9801 = vadd.f32 %v9799, %v9800
  %v9802 = vrot.slane %v9801, 2
  %v9803 = vadd.f32 %v9801, %v9802
  %v9804 = vrot.slane %v9803, 1
  %v9805 = vadd.f32 %v9803, %v9804
  %v9806 = vsel %vm401, %v9786, 0.0
  %v9807 = vrot.slane %v9806, 4
  %v9808 = vadd.f32 %v9806, %v9807
  %v9809 = vrot.slane %v9808, 2
  %v9810 = vadd.f32 %v9808, %v9809
  %v9811 = vrot.slane %v9810, 1
  %v9812 = vadd.f32 %v9810, %v9811
  %v9813 = vsel %vm401, %v9787, 0.0
  %v9814 = vrot.slane %v9813, 4
  %v9815 = vadd.f32 %v9813, %v9814
  %v9816 = vrot.slane %v9815, 2
  %v9817 = vadd.f32 %v9815, %v9816
  %v9818 = vrot.slane %v9817, 1
  %v9819 = vadd.f32 %v9817, %v9818
  %v9820 = vsel %vm401, %v9788, 0.0
  %v9821 = vrot.slane %v9820, 4
  %v9822 = vadd.f32 %v9820, %v9821
  %v9823 = vrot.slane %v9822, 2
  %v9824 = vadd.f32 %v9822, %v9823
  %v9825 = vrot.slane %v9824, 1
  %v9826 = vadd.f32 %v9824, %v9825
  %v9827 = vsel %vm401, %v9789, 0.0
  %v9828 = vrot.slane %v9827, 4
  %v9829 = vadd.f32 %v9827, %v9828
  %v9830 = vrot.slane %v9829, 2
  %v9831 = vadd.f32 %v9829, %v9830
  %v9832 = vrot.slane %v9831, 1
  %v9833 = vadd.f32 %v9831, %v9832
  %v9834 = vsel %vm401, %v9790, 0.0
  %v9835 = vrot.slane %v9834, 4
  %v9836 = vadd.f32 %v9834, %v9835
  %v9837 = vrot.slane %v9836, 2
  %v9838 = vadd.f32 %v9836, %v9837
  %v9839 = vrot.slane %v9838, 1
  %v9840 = vadd.f32 %v9838, %v9839
  %v9841 = vsel %vm401, %v9791, 0.0
  %v9842 = vrot.slane %v9841, 4
  %v9843 = vadd.f32 %v9841, %v9842
  %v9844 = vrot.slane %v9843, 2
  %v9845 = vadd.f32 %v9843, %v9844
  %v9846 = vrot.slane %v9845, 1
  %v9847 = vadd.f32 %v9845, %v9846
  %v9848 = vld [vmem:[%s43] sm:$0x1]
  %v9849 = vld [vmem:[%s45] sm:$0x1]
  %v9850 = vsel %vm401, %v9798, 0.0
  %9851 = vadd.xlane.f32.xlu0 %v9850
  %v9852 = vpop.xlane.xlu0 %9851
  %v9853 = vsel %vm401, %v9805, 0.0
  %9854 = vadd.xlane.f32.xlu0 %v9853
  %v9855 = vpop.xlane.xlu0 %9854
  %v9856 = vsel %vm401, %v9812, 0.0
  %9857 = vadd.xlane.f32.xlu0 %v9856
  %v9858 = vpop.xlane.xlu0 %9857
  %v9859 = vsel %vm401, %v9819, 0.0
  %9860 = vadd.xlane.f32.xlu0 %v9859
  %v9861 = vpop.xlane.xlu0 %9860
  %v9862 = vsel %vm401, %v9826, 0.0
  %9863 = vadd.xlane.f32.xlu0 %v9862
  %v9864 = vpop.xlane.xlu0 %9863
  %v9865 = vsel %vm401, %v9833, 0.0
  %9866 = vadd.xlane.f32.xlu0 %v9865
  %v9867 = vpop.xlane.xlu0 %9866
  %v9868 = vsel %vm401, %v9840, 0.0
  %9869 = vadd.xlane.f32.xlu0 %v9868
  %v9870 = vpop.xlane.xlu0 %9869
  %v9871 = vsel %vm401, %v9847, 0.0
  %9872 = vadd.xlane.f32.xlu0 %v9871
  %v9873 = vpop.xlane.xlu0 %9872
  %v9874 = vrcp.pop 8.0
  %v9875 = vmul.f32 %v9852, %v9874
  %v9876 = vmul.f32 %v9855, %v9874
  %v9877 = vmul.f32 %v9858, %v9874
  %v9878 = vmul.f32 %v9861, %v9874
  %v9879 = vmul.f32 %v9864, %v9874
  %v9880 = vmul.f32 %v9867, %v9874
  %v9881 = vmul.f32 %v9870, %v9874
  %v9882 = vmul.f32 %v9873, %v9874
  %v9883 = vsub.f32 %v9798, %v9875
  %v9884 = vsub.f32 %v9805, %v9876
  %v9885 = vsub.f32 %v9812, %v9877
  %v9886 = vsub.f32 %v9819, %v9878
  %v9887 = vsub.f32 %v9826, %v9879
  %v9888 = vsub.f32 %v9833, %v9880
  %v9889 = vsub.f32 %v9840, %v9881
  %v9890 = vsub.f32 %v9847, %v9882
  %v9891 = vmul.f32 %v9883, %v9883
  %v9892 = vmul.f32 %v9884, %v9884
  %v9893 = vmul.f32 %v9885, %v9885
  %v9894 = vmul.f32 %v9886, %v9886
  %v9895 = vmul.f32 %v9887, %v9887
  %v9896 = vmul.f32 %v9888, %v9888
  %v9897 = vmul.f32 %v9889, %v9889
  %v9898 = vmul.f32 %v9890, %v9890
  %v9899 = vsel %vm401, %v9891, 0.0
  %9900 = vadd.xlane.f32.xlu0 %v9899
  %v9901 = vpop.xlane.xlu0 %9900
  %v9902 = vsel %vm401, %v9892, 0.0
  %9903 = vadd.xlane.f32.xlu0 %v9902
  %v9904 = vpop.xlane.xlu0 %9903
  %v9905 = vsel %vm401, %v9893, 0.0
  %9906 = vadd.xlane.f32.xlu0 %v9905
  %v9907 = vpop.xlane.xlu0 %9906
  %v9908 = vsel %vm401, %v9894, 0.0
  %9909 = vadd.xlane.f32.xlu0 %v9908
  %v9910 = vpop.xlane.xlu0 %9909
  %v9911 = vsel %vm401, %v9895, 0.0
  %9912 = vadd.xlane.f32.xlu0 %v9911
  %v9913 = vpop.xlane.xlu0 %9912
  %v9914 = vsel %vm401, %v9896, 0.0
  %9915 = vadd.xlane.f32.xlu0 %v9914
  %v9916 = vpop.xlane.xlu0 %9915
  %v9917 = vsel %vm401, %v9897, 0.0
  %9918 = vadd.xlane.f32.xlu0 %v9917
  %v9919 = vpop.xlane.xlu0 %9918
  %v9920 = vsel %vm401, %v9898, 0.0
  %9921 = vadd.xlane.f32.xlu0 %v9920
  %v9922 = vpop.xlane.xlu0 %9921
  %v9923 = vmul.f32 %v9901, %v9874
  %v9924 = vmul.f32 %v9904, %v9874
  %v9925 = vmul.f32 %v9907, %v9874
  %v9926 = vmul.f32 %v9910, %v9874
  %v9927 = vmul.f32 %v9913, %v9874
  %v9928 = vmul.f32 %v9916, %v9874
  %v9929 = vmul.f32 %v9919, %v9874
  %v9930 = vmul.f32 %v9922, %v9874
  %v9931 = vadd.f32 %v9923, 1e-06
  %v9932 = vadd.f32 %v9924, 1e-06
  %v9933 = vadd.f32 %v9925, 1e-06
  %v9934 = vadd.f32 %v9926, 1e-06
  %v9935 = vadd.f32 %v9927, 1e-06
  %v9936 = vadd.f32 %v9928, 1e-06
  %v9937 = vadd.f32 %v9929, 1e-06
  %v9938 = vadd.f32 %v9930, 1e-06
  %v9939 = vrsqrt.pop %v9931
  %v9940 = vrsqrt.pop %v9932
  %v9941 = vrsqrt.pop %v9933
  %v9942 = vrsqrt.pop %v9934
  %v9943 = vrsqrt.pop %v9935
  %v9944 = vrsqrt.pop %v9936
  %v9945 = vrsqrt.pop %v9937
  %v9946 = vrsqrt.pop %v9938
  %v9947 = vmul.f32 %v9883, %v9939
  %v9948 = vmul.f32 %v9884, %v9940
  %v9949 = vmul.f32 %v9885, %v9941
  %v9950 = vmul.f32 %v9886, %v9942
  %v9951 = vmul.f32 %v9887, %v9943
  %v9952 = vmul.f32 %v9888, %v9944
  %v9953 = vmul.f32 %v9889, %v9945
  %v9954 = vmul.f32 %v9890, %v9946
  %v9955 = vmul.f32 %v9947, %v9848
  %v9956 = vmul.f32 %v9948, %v9848
  %v9957 = vmul.f32 %v9949, %v9848
  %v9958 = vmul.f32 %v9950, %v9848
  %v9959 = vmul.f32 %v9951, %v9848
  %v9960 = vmul.f32 %v9952, %v9848
  %v9961 = vmul.f32 %v9953, %v9848
  %v9962 = vmul.f32 %v9954, %v9848
  %v9963 = vadd.f32 %v9955, %v9849
  %v9964 = vadd.f32 %v9956, %v9849
  %v9965 = vadd.f32 %v9957, %v9849
  %v9966 = vadd.f32 %v9958, %v9849
  %v9967 = vadd.f32 %v9959, %v9849
  %v9968 = vadd.f32 %v9960, %v9849
  %v9969 = vadd.f32 %v9961, %v9849
  %v9970 = vadd.f32 %v9962, %v9849
  %9971 = vset.pattern.permute.xlu0 1
  %9972 = vperm.xlu0 %9971, %v9736
  %v9973 = vpop.permute.xlu0 %9972
  %9975 = vset.pattern.permute.xlu0 1
  %9976 = vperm.xlu0 %9975, %v9737
  %v9977 = vpop.permute.xlu0 %9976
  %9979 = vset.pattern.permute.xlu0 1
  %9980 = vperm.xlu0 %9979, %v9738
  %v9981 = vpop.permute.xlu0 %9980
  %9983 = vset.pattern.permute.xlu0 1
  %9984 = vperm.xlu0 %9983, %v9739
  %v9985 = vpop.permute.xlu0 %9984
  %9987 = vset.pattern.permute.xlu0 1
  %9988 = vperm.xlu0 %9987, %v9740
  %v9989 = vpop.permute.xlu0 %9988
  %9991 = vset.pattern.permute.xlu0 1
  %9992 = vperm.xlu0 %9991, %v9741
  %v9993 = vpop.permute.xlu0 %9992
  %9995 = vset.pattern.permute.xlu0 1
  %9996 = vperm.xlu0 %9995, %v9742
  %v9997 = vpop.permute.xlu0 %9996
  %9999 = vset.pattern.permute.xlu0 1
  %10000 = vperm.xlu0 %9999, %v9743
  %v10001 = vpop.permute.xlu0 %10000
  %v10003 = vmul.f32 %v9973, %v9497
  %v10004 = vmul.f32 %v9977, %v9500
  %v10005 = vmul.f32 %v9981, %v9505
  %v10006 = vmul.f32 %v9985, %v9508
  %v10007 = vmul.f32 %v9989, %v9513
  %v10008 = vmul.f32 %v9993, %v9516
  %v10009 = vmul.f32 %v9997, %v9521
  %v10010 = vmul.f32 %v10001, %v9524
  %vm10011 = vcmask 130112
  %v10012 = vsel %vm10011, %v10003, 0.0
  %v10013 = vrot.slane %v10012, 4
  %v10014 = vadd.f32 %v10012, %v10013
  %v10015 = vrot.slane %v10014, 2
  %v10016 = vadd.f32 %v10014, %v10015
  %v10017 = vrot.slane %v10016, 1
  %v10018 = vadd.f32 %v10016, %v10017
  %v10019 = vsel %vm10011, %v10004, 0.0
  %v10020 = vrot.slane %v10019, 4
  %v10021 = vadd.f32 %v10019, %v10020
  %v10022 = vrot.slane %v10021, 2
  %v10023 = vadd.f32 %v10021, %v10022
  %v10024 = vrot.slane %v10023, 1
  %v10025 = vadd.f32 %v10023, %v10024
  %v10026 = vsel %vm10011, %v10005, 0.0
  %v10027 = vrot.slane %v10026, 4
  %v10028 = vadd.f32 %v10026, %v10027
  %v10029 = vrot.slane %v10028, 2
  %v10030 = vadd.f32 %v10028, %v10029
  %v10031 = vrot.slane %v10030, 1
  %v10032 = vadd.f32 %v10030, %v10031
  %v10033 = vsel %vm10011, %v10006, 0.0
  %v10034 = vrot.slane %v10033, 4
  %v10035 = vadd.f32 %v10033, %v10034
  %v10036 = vrot.slane %v10035, 2
  %v10037 = vadd.f32 %v10035, %v10036
  %v10038 = vrot.slane %v10037, 1
  %v10039 = vadd.f32 %v10037, %v10038
  %v10040 = vsel %vm10011, %v10007, 0.0
  %v10041 = vrot.slane %v10040, 4
  %v10042 = vadd.f32 %v10040, %v10041
  %v10043 = vrot.slane %v10042, 2
  %v10044 = vadd.f32 %v10042, %v10043
  %v10045 = vrot.slane %v10044, 1
  %v10046 = vadd.f32 %v10044, %v10045
  %v10047 = vsel %vm10011, %v10008, 0.0
  %v10048 = vrot.slane %v10047, 4
  %v10049 = vadd.f32 %v10047, %v10048
  %v10050 = vrot.slane %v10049, 2
  %v10051 = vadd.f32 %v10049, %v10050
  %v10052 = vrot.slane %v10051, 1
  %v10053 = vadd.f32 %v10051, %v10052
  %v10054 = vsel %vm10011, %v10009, 0.0
  %v10055 = vrot.slane %v10054, 4
  %v10056 = vadd.f32 %v10054, %v10055
  %v10057 = vrot.slane %v10056, 2
  %v10058 = vadd.f32 %v10056, %v10057
  %v10059 = vrot.slane %v10058, 1
  %v10060 = vadd.f32 %v10058, %v10059
  %v10061 = vsel %vm10011, %v10010, 0.0
  %v10062 = vrot.slane %v10061, 4
  %v10063 = vadd.f32 %v10061, %v10062
  %v10064 = vrot.slane %v10063, 2
  %v10065 = vadd.f32 %v10063, %v10064
  %v10066 = vrot.slane %v10065, 1
  %v10067 = vadd.f32 %v10065, %v10066
  %10076 = vrot.lane.b32.xlu0 %v10018, 120
  %v10077 = vpop.permute.xlu0 %10076
  %10078 = vrot.lane.b32.xlu0 %v10025, 120
  %v10079 = vpop.permute.xlu0 %10078
  %10080 = vrot.lane.b32.xlu0 %v10032, 120
  %v10081 = vpop.permute.xlu0 %10080
  %10082 = vrot.lane.b32.xlu0 %v10039, 120
  %v10083 = vpop.permute.xlu0 %10082
  %10084 = vrot.lane.b32.xlu0 %v10046, 120
  %v10085 = vpop.permute.xlu0 %10084
  %10086 = vrot.lane.b32.xlu0 %v10053, 120
  %v10087 = vpop.permute.xlu0 %10086
  %10088 = vrot.lane.b32.xlu0 %v10060, 120
  %v10089 = vpop.permute.xlu0 %10088
  %10090 = vrot.lane.b32.xlu0 %v10067, 120
  %v10091 = vpop.permute.xlu0 %10090
  %v10100 = vsel %vm401, %v10077, 0.0
  %10101 = vadd.xlane.f32.xlu0 %v10100
  %v10102 = vpop.xlane.xlu0 %10101
  %v10103 = vsel %vm401, %v10079, 0.0
  %10104 = vadd.xlane.f32.xlu0 %v10103
  %v10105 = vpop.xlane.xlu0 %10104
  %v10106 = vsel %vm401, %v10081, 0.0
  %10107 = vadd.xlane.f32.xlu0 %v10106
  %v10108 = vpop.xlane.xlu0 %10107
  %v10109 = vsel %vm401, %v10083, 0.0
  %10110 = vadd.xlane.f32.xlu0 %v10109
  %v10111 = vpop.xlane.xlu0 %10110
  %v10112 = vsel %vm401, %v10085, 0.0
  %10113 = vadd.xlane.f32.xlu0 %v10112
  %v10114 = vpop.xlane.xlu0 %10113
  %v10115 = vsel %vm401, %v10087, 0.0
  %10116 = vadd.xlane.f32.xlu0 %v10115
  %v10117 = vpop.xlane.xlu0 %10116
  %v10118 = vsel %vm401, %v10089, 0.0
  %10119 = vadd.xlane.f32.xlu0 %v10118
  %v10120 = vpop.xlane.xlu0 %10119
  %v10121 = vsel %vm401, %v10091, 0.0
  %10122 = vadd.xlane.f32.xlu0 %v10121
  %v10123 = vpop.xlane.xlu0 %10122
  %v10124 = vmul.f32 %v10102, %v9874
  %v10125 = vmul.f32 %v10105, %v9874
  %v10126 = vmul.f32 %v10108, %v9874
  %v10127 = vmul.f32 %v10111, %v9874
  %v10128 = vmul.f32 %v10114, %v9874
  %v10129 = vmul.f32 %v10117, %v9874
  %v10130 = vmul.f32 %v10120, %v9874
  %v10131 = vmul.f32 %v10123, %v9874
  %v10132 = vsub.f32 %v10018, %v10124
  %v10133 = vsub.f32 %v10025, %v10125
  %v10134 = vsub.f32 %v10032, %v10126
  %v10135 = vsub.f32 %v10039, %v10127
  %v10136 = vsub.f32 %v10046, %v10128
  %v10137 = vsub.f32 %v10053, %v10129
  %v10138 = vsub.f32 %v10060, %v10130
  %v10139 = vsub.f32 %v10067, %v10131
  %v10140 = vmul.f32 %v10132, %v10132
  %v10141 = vmul.f32 %v10133, %v10133
  %v10142 = vmul.f32 %v10134, %v10134
  %v10143 = vmul.f32 %v10135, %v10135
  %v10144 = vmul.f32 %v10136, %v10136
  %v10145 = vmul.f32 %v10137, %v10137
  %v10146 = vmul.f32 %v10138, %v10138
  %v10147 = vmul.f32 %v10139, %v10139
  %10156 = vrot.lane.b32.xlu0 %v10140, 120
  %v10157 = vpop.permute.xlu0 %10156
  %10158 = vrot.lane.b32.xlu0 %v10141, 120
  %v10159 = vpop.permute.xlu0 %10158
  %10160 = vrot.lane.b32.xlu0 %v10142, 120
  %v10161 = vpop.permute.xlu0 %10160
  %10162 = vrot.lane.b32.xlu0 %v10143, 120
  %v10163 = vpop.permute.xlu0 %10162
  %10164 = vrot.lane.b32.xlu0 %v10144, 120
  %v10165 = vpop.permute.xlu0 %10164
  %10166 = vrot.lane.b32.xlu0 %v10145, 120
  %v10167 = vpop.permute.xlu0 %10166
  %10168 = vrot.lane.b32.xlu0 %v10146, 120
  %v10169 = vpop.permute.xlu0 %10168
  %10170 = vrot.lane.b32.xlu0 %v10147, 120
  %v10171 = vpop.permute.xlu0 %10170
  %v10180 = vsel %vm401, %v10157, 0.0
  %10181 = vadd.xlane.f32.xlu0 %v10180
  %v10182 = vpop.xlane.xlu0 %10181
  %v10183 = vsel %vm401, %v10159, 0.0
  %10184 = vadd.xlane.f32.xlu0 %v10183
  %v10185 = vpop.xlane.xlu0 %10184
  %v10186 = vsel %vm401, %v10161, 0.0
  %10187 = vadd.xlane.f32.xlu0 %v10186
  %v10188 = vpop.xlane.xlu0 %10187
  %v10189 = vsel %vm401, %v10163, 0.0
  %10190 = vadd.xlane.f32.xlu0 %v10189
  %v10191 = vpop.xlane.xlu0 %10190
  %v10192 = vsel %vm401, %v10165, 0.0
  %10193 = vadd.xlane.f32.xlu0 %v10192
  %v10194 = vpop.xlane.xlu0 %10193
  %v10195 = vsel %vm401, %v10167, 0.0
  %10196 = vadd.xlane.f32.xlu0 %v10195
  %v10197 = vpop.xlane.xlu0 %10196
  %v10198 = vsel %vm401, %v10169, 0.0
  %10199 = vadd.xlane.f32.xlu0 %v10198
  %v10200 = vpop.xlane.xlu0 %10199
  %v10201 = vsel %vm401, %v10171, 0.0
  %10202 = vadd.xlane.f32.xlu0 %v10201
  %v10203 = vpop.xlane.xlu0 %10202
  %v10204 = vmul.f32 %v10182, %v9874
  %v10205 = vmul.f32 %v10185, %v9874
  %v10206 = vmul.f32 %v10188, %v9874
  %v10207 = vmul.f32 %v10191, %v9874
  %v10208 = vmul.f32 %v10194, %v9874
  %v10209 = vmul.f32 %v10197, %v9874
  %v10210 = vmul.f32 %v10200, %v9874
  %v10211 = vmul.f32 %v10203, %v9874
  %v10212 = vadd.f32 %v10204, 1e-06
  %v10213 = vadd.f32 %v10205, 1e-06
  %v10214 = vadd.f32 %v10206, 1e-06
  %v10215 = vadd.f32 %v10207, 1e-06
  %v10216 = vadd.f32 %v10208, 1e-06
  %v10217 = vadd.f32 %v10209, 1e-06
  %v10218 = vadd.f32 %v10210, 1e-06
  %v10219 = vadd.f32 %v10211, 1e-06
  %v10220 = vrsqrt.pop %v10212
  %v10221 = vrsqrt.pop %v10213
  %v10222 = vrsqrt.pop %v10214
  %v10223 = vrsqrt.pop %v10215
  %v10224 = vrsqrt.pop %v10216
  %v10225 = vrsqrt.pop %v10217
  %v10226 = vrsqrt.pop %v10218
  %v10227 = vrsqrt.pop %v10219
  %v10228 = vmul.f32 %v10132, %v10220
  %v10229 = vmul.f32 %v10133, %v10221
  %v10230 = vmul.f32 %v10134, %v10222
  %v10231 = vmul.f32 %v10135, %v10223
  %v10232 = vmul.f32 %v10136, %v10224
  %v10233 = vmul.f32 %v10137, %v10225
  %v10234 = vmul.f32 %v10138, %v10226
  %v10235 = vmul.f32 %v10139, %v10227
  %v10237 = vlaneseq
  %v10238 = vshrl.u32 %v10237, 7
  %v10239 = vsub.s32 0, %v10238
  %v10240 = vrot.slane %v9848, %v10239
  %10241 = vrot.lane.b32.xlu0 %v10240, 8
  %v10242 = vpop.permute.xlu0 %10241
  %v10244 = vmul.f32 %v10228, %v10242
  %v10245 = vmul.f32 %v10229, %v10242
  %v10246 = vmul.f32 %v10230, %v10242
  %v10247 = vmul.f32 %v10231, %v10242
  %v10248 = vmul.f32 %v10232, %v10242
  %v10249 = vmul.f32 %v10233, %v10242
  %v10250 = vmul.f32 %v10234, %v10242
  %v10251 = vmul.f32 %v10235, %v10242
  %v10253 = vlaneseq
  %v10254 = vshrl.u32 %v10253, 7
  %v10255 = vsub.s32 0, %v10254
  %v10256 = vrot.slane %v9849, %v10255
  %10257 = vrot.lane.b32.xlu0 %v10256, 8
  %v10258 = vpop.permute.xlu0 %10257
  %v10260 = vadd.f32 %v10244, %v10258
  %v10261 = vadd.f32 %v10245, %v10258
  %v10262 = vadd.f32 %v10246, %v10258
  %v10263 = vadd.f32 %v10247, %v10258
  %v10264 = vadd.f32 %v10248, %v10258
  %v10265 = vadd.f32 %v10249, %v10258
  %v10266 = vadd.f32 %v10250, %v10258
  %v10267 = vadd.f32 %v10251, %v10258
  %10268 = vset.pattern.permute.xlu0 2
  %10269 = vperm.xlu0 %10268, %v9736
  %v10270 = vpop.permute.xlu0 %10269
  %10272 = vset.pattern.permute.xlu0 2
  %10273 = vperm.xlu0 %10272, %v9737
  %v10274 = vpop.permute.xlu0 %10273
  %10276 = vset.pattern.permute.xlu0 2
  %10277 = vperm.xlu0 %10276, %v9738
  %v10278 = vpop.permute.xlu0 %10277
  %10280 = vset.pattern.permute.xlu0 2
  %10281 = vperm.xlu0 %10280, %v9739
  %v10282 = vpop.permute.xlu0 %10281
  %10284 = vset.pattern.permute.xlu0 2
  %10285 = vperm.xlu0 %10284, %v9740
  %v10286 = vpop.permute.xlu0 %10285
  %10288 = vset.pattern.permute.xlu0 2
  %10289 = vperm.xlu0 %10288, %v9741
  %v10290 = vpop.permute.xlu0 %10289
  %10292 = vset.pattern.permute.xlu0 2
  %10293 = vperm.xlu0 %10292, %v9742
  %v10294 = vpop.permute.xlu0 %10293
  %10296 = vset.pattern.permute.xlu0 2
  %10297 = vperm.xlu0 %10296, %v9743
  %v10298 = vpop.permute.xlu0 %10297
  %v10300 = vmul.f32 %v10270, %v9497
  %v10301 = vmul.f32 %v10274, %v9500
  %v10302 = vmul.f32 %v10278, %v9505
  %v10303 = vmul.f32 %v10282, %v9508
  %v10304 = vmul.f32 %v10286, %v9513
  %v10305 = vmul.f32 %v10290, %v9516
  %v10306 = vmul.f32 %v10294, %v9521
  %v10307 = vmul.f32 %v10298, %v9524
  %vm10308 = vcmask 195712
  %v10309 = vsel %vm10308, %v10300, 0.0
  %v10310 = vrot.slane %v10309, 4
  %v10311 = vadd.f32 %v10309, %v10310
  %v10312 = vrot.slane %v10311, 2
  %v10313 = vadd.f32 %v10311, %v10312
  %v10314 = vrot.slane %v10313, 1
  %v10315 = vadd.f32 %v10313, %v10314
  %v10316 = vsel %vm10308, %v10301, 0.0
  %v10317 = vrot.slane %v10316, 4
  %v10318 = vadd.f32 %v10316, %v10317
  %v10319 = vrot.slane %v10318, 2
  %v10320 = vadd.f32 %v10318, %v10319
  %v10321 = vrot.slane %v10320, 1
  %v10322 = vadd.f32 %v10320, %v10321
  %v10323 = vsel %vm10308, %v10302, 0.0
  %v10324 = vrot.slane %v10323, 4
  %v10325 = vadd.f32 %v10323, %v10324
  %v10326 = vrot.slane %v10325, 2
  %v10327 = vadd.f32 %v10325, %v10326
  %v10328 = vrot.slane %v10327, 1
  %v10329 = vadd.f32 %v10327, %v10328
  %v10330 = vsel %vm10308, %v10303, 0.0
  %v10331 = vrot.slane %v10330, 4
  %v10332 = vadd.f32 %v10330, %v10331
  %v10333 = vrot.slane %v10332, 2
  %v10334 = vadd.f32 %v10332, %v10333
  %v10335 = vrot.slane %v10334, 1
  %v10336 = vadd.f32 %v10334, %v10335
  %v10337 = vsel %vm10308, %v10304, 0.0
  %v10338 = vrot.slane %v10337, 4
  %v10339 = vadd.f32 %v10337, %v10338
  %v10340 = vrot.slane %v10339, 2
  %v10341 = vadd.f32 %v10339, %v10340
  %v10342 = vrot.slane %v10341, 1
  %v10343 = vadd.f32 %v10341, %v10342
  %v10344 = vsel %vm10308, %v10305, 0.0
  %v10345 = vrot.slane %v10344, 4
  %v10346 = vadd.f32 %v10344, %v10345
  %v10347 = vrot.slane %v10346, 2
  %v10348 = vadd.f32 %v10346, %v10347
  %v10349 = vrot.slane %v10348, 1
  %v10350 = vadd.f32 %v10348, %v10349
  %v10351 = vsel %vm10308, %v10306, 0.0
  %v10352 = vrot.slane %v10351, 4
  %v10353 = vadd.f32 %v10351, %v10352
  %v10354 = vrot.slane %v10353, 2
  %v10355 = vadd.f32 %v10353, %v10354
  %v10356 = vrot.slane %v10355, 1
  %v10357 = vadd.f32 %v10355, %v10356
  %v10358 = vsel %vm10308, %v10307, 0.0
  %v10359 = vrot.slane %v10358, 4
  %v10360 = vadd.f32 %v10358, %v10359
  %v10361 = vrot.slane %v10360, 2
  %v10362 = vadd.f32 %v10360, %v10361
  %v10363 = vrot.slane %v10362, 1
  %v10364 = vadd.f32 %v10362, %v10363
  %10373 = vrot.lane.b32.xlu0 %v10315, 112
  %v10374 = vpop.permute.xlu0 %10373
  %10375 = vrot.lane.b32.xlu0 %v10322, 112
  %v10376 = vpop.permute.xlu0 %10375
  %10377 = vrot.lane.b32.xlu0 %v10329, 112
  %v10378 = vpop.permute.xlu0 %10377
  %10379 = vrot.lane.b32.xlu0 %v10336, 112
  %v10380 = vpop.permute.xlu0 %10379
  %10381 = vrot.lane.b32.xlu0 %v10343, 112
  %v10382 = vpop.permute.xlu0 %10381
  %10383 = vrot.lane.b32.xlu0 %v10350, 112
  %v10384 = vpop.permute.xlu0 %10383
  %10385 = vrot.lane.b32.xlu0 %v10357, 112
  %v10386 = vpop.permute.xlu0 %10385
  %10387 = vrot.lane.b32.xlu0 %v10364, 112
  %v10388 = vpop.permute.xlu0 %10387
  %v10397 = vsel %vm401, %v10374, 0.0
  %10398 = vadd.xlane.f32.xlu0 %v10397
  %v10399 = vpop.xlane.xlu0 %10398
  %v10400 = vsel %vm401, %v10376, 0.0
  %10401 = vadd.xlane.f32.xlu0 %v10400
  %v10402 = vpop.xlane.xlu0 %10401
  %v10403 = vsel %vm401, %v10378, 0.0
  %10404 = vadd.xlane.f32.xlu0 %v10403
  %v10405 = vpop.xlane.xlu0 %10404
  %v10406 = vsel %vm401, %v10380, 0.0
  %10407 = vadd.xlane.f32.xlu0 %v10406
  %v10408 = vpop.xlane.xlu0 %10407
  %v10409 = vsel %vm401, %v10382, 0.0
  %10410 = vadd.xlane.f32.xlu0 %v10409
  %v10411 = vpop.xlane.xlu0 %10410
  %v10412 = vsel %vm401, %v10384, 0.0
  %10413 = vadd.xlane.f32.xlu0 %v10412
  %v10414 = vpop.xlane.xlu0 %10413
  %v10415 = vsel %vm401, %v10386, 0.0
  %10416 = vadd.xlane.f32.xlu0 %v10415
  %v10417 = vpop.xlane.xlu0 %10416
  %v10418 = vsel %vm401, %v10388, 0.0
  %10419 = vadd.xlane.f32.xlu0 %v10418
  %v10420 = vpop.xlane.xlu0 %10419
  %v10421 = vmul.f32 %v10399, %v9874
  %v10422 = vmul.f32 %v10402, %v9874
  %v10423 = vmul.f32 %v10405, %v9874
  %v10424 = vmul.f32 %v10408, %v9874
  %v10425 = vmul.f32 %v10411, %v9874
  %v10426 = vmul.f32 %v10414, %v9874
  %v10427 = vmul.f32 %v10417, %v9874
  %v10428 = vmul.f32 %v10420, %v9874
  %v10429 = vsub.f32 %v10315, %v10421
  %v10430 = vsub.f32 %v10322, %v10422
  %v10431 = vsub.f32 %v10329, %v10423
  %v10432 = vsub.f32 %v10336, %v10424
  %v10433 = vsub.f32 %v10343, %v10425
  %v10434 = vsub.f32 %v10350, %v10426
  %v10435 = vsub.f32 %v10357, %v10427
  %v10436 = vsub.f32 %v10364, %v10428
  %v10437 = vmul.f32 %v10429, %v10429
  %v10438 = vmul.f32 %v10430, %v10430
  %v10439 = vmul.f32 %v10431, %v10431
  %v10440 = vmul.f32 %v10432, %v10432
  %v10441 = vmul.f32 %v10433, %v10433
  %v10442 = vmul.f32 %v10434, %v10434
  %v10443 = vmul.f32 %v10435, %v10435
  %v10444 = vmul.f32 %v10436, %v10436
  %10453 = vrot.lane.b32.xlu0 %v10437, 112
  %v10454 = vpop.permute.xlu0 %10453
  %10455 = vrot.lane.b32.xlu0 %v10438, 112
  %v10456 = vpop.permute.xlu0 %10455
  %10457 = vrot.lane.b32.xlu0 %v10439, 112
  %v10458 = vpop.permute.xlu0 %10457
  %10459 = vrot.lane.b32.xlu0 %v10440, 112
  %v10460 = vpop.permute.xlu0 %10459
  %10461 = vrot.lane.b32.xlu0 %v10441, 112
  %v10462 = vpop.permute.xlu0 %10461
  %10463 = vrot.lane.b32.xlu0 %v10442, 112
  %v10464 = vpop.permute.xlu0 %10463
  %10465 = vrot.lane.b32.xlu0 %v10443, 112
  %v10466 = vpop.permute.xlu0 %10465
  %10467 = vrot.lane.b32.xlu0 %v10444, 112
  %v10468 = vpop.permute.xlu0 %10467
  %v10477 = vsel %vm401, %v10454, 0.0
  %10478 = vadd.xlane.f32.xlu0 %v10477
  %v10479 = vpop.xlane.xlu0 %10478
  %v10480 = vsel %vm401, %v10456, 0.0
  %10481 = vadd.xlane.f32.xlu0 %v10480
  %v10482 = vpop.xlane.xlu0 %10481
  %v10483 = vsel %vm401, %v10458, 0.0
  %10484 = vadd.xlane.f32.xlu0 %v10483
  %v10485 = vpop.xlane.xlu0 %10484
  %v10486 = vsel %vm401, %v10460, 0.0
  %10487 = vadd.xlane.f32.xlu0 %v10486
  %v10488 = vpop.xlane.xlu0 %10487
  %v10489 = vsel %vm401, %v10462, 0.0
  %10490 = vadd.xlane.f32.xlu0 %v10489
  %v10491 = vpop.xlane.xlu0 %10490
  %v10492 = vsel %vm401, %v10464, 0.0
  %10493 = vadd.xlane.f32.xlu0 %v10492
  %v10494 = vpop.xlane.xlu0 %10493
  %v10495 = vsel %vm401, %v10466, 0.0
  %10496 = vadd.xlane.f32.xlu0 %v10495
  %v10497 = vpop.xlane.xlu0 %10496
  %v10498 = vsel %vm401, %v10468, 0.0
  %10499 = vadd.xlane.f32.xlu0 %v10498
  %v10500 = vpop.xlane.xlu0 %10499
  %v10501 = vmul.f32 %v10479, %v9874
  %v10502 = vmul.f32 %v10482, %v9874
  %v10503 = vmul.f32 %v10485, %v9874
  %v10504 = vmul.f32 %v10488, %v9874
  %v10505 = vmul.f32 %v10491, %v9874
  %v10506 = vmul.f32 %v10494, %v9874
  %v10507 = vmul.f32 %v10497, %v9874
  %v10508 = vmul.f32 %v10500, %v9874
  %v10509 = vadd.f32 %v10501, 1e-06
  %v10510 = vadd.f32 %v10502, 1e-06
  %v10511 = vadd.f32 %v10503, 1e-06
  %v10512 = vadd.f32 %v10504, 1e-06
  %v10513 = vadd.f32 %v10505, 1e-06
  %v10514 = vadd.f32 %v10506, 1e-06
  %v10515 = vadd.f32 %v10507, 1e-06
  %v10516 = vadd.f32 %v10508, 1e-06
  %v10517 = vrsqrt.pop %v10509
  %v10518 = vrsqrt.pop %v10510
  %v10519 = vrsqrt.pop %v10511
  %v10520 = vrsqrt.pop %v10512
  %v10521 = vrsqrt.pop %v10513
  %v10522 = vrsqrt.pop %v10514
  %v10523 = vrsqrt.pop %v10515
  %v10524 = vrsqrt.pop %v10516
  %v10525 = vmul.f32 %v10429, %v10517
  %v10526 = vmul.f32 %v10430, %v10518
  %v10527 = vmul.f32 %v10431, %v10519
  %v10528 = vmul.f32 %v10432, %v10520
  %v10529 = vmul.f32 %v10433, %v10521
  %v10530 = vmul.f32 %v10434, %v10522
  %v10531 = vmul.f32 %v10435, %v10523
  %v10532 = vmul.f32 %v10436, %v10524
  %10533 = vrot.lane.b32.xlu0 %v10240, 16
  %v10534 = vpop.permute.xlu0 %10533
  %v10536 = vmul.f32 %v10525, %v10534
  %v10537 = vmul.f32 %v10526, %v10534
  %v10538 = vmul.f32 %v10527, %v10534
  %v10539 = vmul.f32 %v10528, %v10534
  %v10540 = vmul.f32 %v10529, %v10534
  %v10541 = vmul.f32 %v10530, %v10534
  %v10542 = vmul.f32 %v10531, %v10534
  %v10543 = vmul.f32 %v10532, %v10534
  %10544 = vrot.lane.b32.xlu0 %v10256, 16
  %v10545 = vpop.permute.xlu0 %10544
  %v10547 = vadd.f32 %v10536, %v10545
  %v10548 = vadd.f32 %v10537, %v10545
  %v10549 = vadd.f32 %v10538, %v10545
  %v10550 = vadd.f32 %v10539, %v10545
  %v10551 = vadd.f32 %v10540, %v10545
  %v10552 = vadd.f32 %v10541, %v10545
  %v10553 = vadd.f32 %v10542, %v10545
  %v10554 = vadd.f32 %v10543, %v10545
  %10555 = vset.pattern.permute.xlu0 3
  %10556 = vperm.xlu0 %10555, %v9736
  %v10557 = vpop.permute.xlu0 %10556
  %10559 = vset.pattern.permute.xlu0 3
  %10560 = vperm.xlu0 %10559, %v9737
  %v10561 = vpop.permute.xlu0 %10560
  %10563 = vset.pattern.permute.xlu0 3
  %10564 = vperm.xlu0 %10563, %v9738
  %v10565 = vpop.permute.xlu0 %10564
  %10567 = vset.pattern.permute.xlu0 3
  %10568 = vperm.xlu0 %10567, %v9739
  %v10569 = vpop.permute.xlu0 %10568
  %10571 = vset.pattern.permute.xlu0 3
  %10572 = vperm.xlu0 %10571, %v9740
  %v10573 = vpop.permute.xlu0 %10572
  %10575 = vset.pattern.permute.xlu0 3
  %10576 = vperm.xlu0 %10575, %v9741
  %v10577 = vpop.permute.xlu0 %10576
  %10579 = vset.pattern.permute.xlu0 3
  %10580 = vperm.xlu0 %10579, %v9742
  %v10581 = vpop.permute.xlu0 %10580
  %10583 = vset.pattern.permute.xlu0 3
  %10584 = vperm.xlu0 %10583, %v9743
  %v10585 = vpop.permute.xlu0 %10584
  %v10587 = vmul.f32 %v10557, %v9497
  %v10588 = vmul.f32 %v10561, %v9500
  %v10589 = vmul.f32 %v10565, %v9505
  %v10590 = vmul.f32 %v10569, %v9508
  %v10591 = vmul.f32 %v10573, %v9513
  %v10592 = vmul.f32 %v10577, %v9516
  %v10593 = vmul.f32 %v10581, %v9521
  %v10594 = vmul.f32 %v10585, %v9524
  %vm10595 = vcmask 261312
  %v10596 = vsel %vm10595, %v10587, 0.0
  %v10597 = vrot.slane %v10596, 4
  %v10598 = vadd.f32 %v10596, %v10597
  %v10599 = vrot.slane %v10598, 2
  %v10600 = vadd.f32 %v10598, %v10599
  %v10601 = vrot.slane %v10600, 1
  %v10602 = vadd.f32 %v10600, %v10601
  %v10603 = vsel %vm10595, %v10588, 0.0
  %v10604 = vrot.slane %v10603, 4
  %v10605 = vadd.f32 %v10603, %v10604
  %v10606 = vrot.slane %v10605, 2
  %v10607 = vadd.f32 %v10605, %v10606
  %v10608 = vrot.slane %v10607, 1
  %v10609 = vadd.f32 %v10607, %v10608
  %v10610 = vsel %vm10595, %v10589, 0.0
  %v10611 = vrot.slane %v10610, 4
  %v10612 = vadd.f32 %v10610, %v10611
  %v10613 = vrot.slane %v10612, 2
  %v10614 = vadd.f32 %v10612, %v10613
  %v10615 = vrot.slane %v10614, 1
  %v10616 = vadd.f32 %v10614, %v10615
  %v10617 = vsel %vm10595, %v10590, 0.0
  %v10618 = vrot.slane %v10617, 4
  %v10619 = vadd.f32 %v10617, %v10618
  %v10620 = vrot.slane %v10619, 2
  %v10621 = vadd.f32 %v10619, %v10620
  %v10622 = vrot.slane %v10621, 1
  %v10623 = vadd.f32 %v10621, %v10622
  %v10624 = vsel %vm10595, %v10591, 0.0
  %v10625 = vrot.slane %v10624, 4
  %v10626 = vadd.f32 %v10624, %v10625
  %v10627 = vrot.slane %v10626, 2
  %v10628 = vadd.f32 %v10626, %v10627
  %v10629 = vrot.slane %v10628, 1
  %v10630 = vadd.f32 %v10628, %v10629
  %v10631 = vsel %vm10595, %v10592, 0.0
  %v10632 = vrot.slane %v10631, 4
  %v10633 = vadd.f32 %v10631, %v10632
  %v10634 = vrot.slane %v10633, 2
  %v10635 = vadd.f32 %v10633, %v10634
  %v10636 = vrot.slane %v10635, 1
  %v10637 = vadd.f32 %v10635, %v10636
  %v10638 = vsel %vm10595, %v10593, 0.0
  %v10639 = vrot.slane %v10638, 4
  %v10640 = vadd.f32 %v10638, %v10639
  %v10641 = vrot.slane %v10640, 2
  %v10642 = vadd.f32 %v10640, %v10641
  %v10643 = vrot.slane %v10642, 1
  %v10644 = vadd.f32 %v10642, %v10643
  %v10645 = vsel %vm10595, %v10594, 0.0
  %v10646 = vrot.slane %v10645, 4
  %v10647 = vadd.f32 %v10645, %v10646
  %v10648 = vrot.slane %v10647, 2
  %v10649 = vadd.f32 %v10647, %v10648
  %v10650 = vrot.slane %v10649, 1
  %v10651 = vadd.f32 %v10649, %v10650
  %10660 = vrot.lane.b32.xlu0 %v10602, 104
  %v10661 = vpop.permute.xlu0 %10660
  %10662 = vrot.lane.b32.xlu0 %v10609, 104
  %v10663 = vpop.permute.xlu0 %10662
  %10664 = vrot.lane.b32.xlu0 %v10616, 104
  %v10665 = vpop.permute.xlu0 %10664
  %10666 = vrot.lane.b32.xlu0 %v10623, 104
  %v10667 = vpop.permute.xlu0 %10666
  %10668 = vrot.lane.b32.xlu0 %v10630, 104
  %v10669 = vpop.permute.xlu0 %10668
  %10670 = vrot.lane.b32.xlu0 %v10637, 104
  %v10671 = vpop.permute.xlu0 %10670
  %10672 = vrot.lane.b32.xlu0 %v10644, 104
  %v10673 = vpop.permute.xlu0 %10672
  %10674 = vrot.lane.b32.xlu0 %v10651, 104
  %v10675 = vpop.permute.xlu0 %10674
  %v10684 = vsel %vm401, %v10661, 0.0
  %10685 = vadd.xlane.f32.xlu0 %v10684
  %v10686 = vpop.xlane.xlu0 %10685
  %v10687 = vsel %vm401, %v10663, 0.0
  %10688 = vadd.xlane.f32.xlu0 %v10687
  %v10689 = vpop.xlane.xlu0 %10688
  %v10690 = vsel %vm401, %v10665, 0.0
  %10691 = vadd.xlane.f32.xlu0 %v10690
  %v10692 = vpop.xlane.xlu0 %10691
  %v10693 = vsel %vm401, %v10667, 0.0
  %10694 = vadd.xlane.f32.xlu0 %v10693
  %v10695 = vpop.xlane.xlu0 %10694
  %v10696 = vsel %vm401, %v10669, 0.0
  %10697 = vadd.xlane.f32.xlu0 %v10696
  %v10698 = vpop.xlane.xlu0 %10697
  %v10699 = vsel %vm401, %v10671, 0.0
  %10700 = vadd.xlane.f32.xlu0 %v10699
  %v10701 = vpop.xlane.xlu0 %10700
  %v10702 = vsel %vm401, %v10673, 0.0
  %10703 = vadd.xlane.f32.xlu0 %v10702
  %v10704 = vpop.xlane.xlu0 %10703
  %v10705 = vsel %vm401, %v10675, 0.0
  %10706 = vadd.xlane.f32.xlu0 %v10705
  %v10707 = vpop.xlane.xlu0 %10706
  %v10708 = vmul.f32 %v10686, %v9874
  %v10709 = vmul.f32 %v10689, %v9874
  %v10710 = vmul.f32 %v10692, %v9874
  %v10711 = vmul.f32 %v10695, %v9874
  %v10712 = vmul.f32 %v10698, %v9874
  %v10713 = vmul.f32 %v10701, %v9874
  %v10714 = vmul.f32 %v10704, %v9874
  %v10715 = vmul.f32 %v10707, %v9874
  %v10716 = vsub.f32 %v10602, %v10708
  %v10717 = vsub.f32 %v10609, %v10709
  %v10718 = vsub.f32 %v10616, %v10710
  %v10719 = vsub.f32 %v10623, %v10711
  %v10720 = vsub.f32 %v10630, %v10712
  %v10721 = vsub.f32 %v10637, %v10713
  %v10722 = vsub.f32 %v10644, %v10714
  %v10723 = vsub.f32 %v10651, %v10715
  %v10724 = vmul.f32 %v10716, %v10716
  %v10725 = vmul.f32 %v10717, %v10717
  %v10726 = vmul.f32 %v10718, %v10718
  %v10727 = vmul.f32 %v10719, %v10719
  %v10728 = vmul.f32 %v10720, %v10720
  %v10729 = vmul.f32 %v10721, %v10721
  %v10730 = vmul.f32 %v10722, %v10722
  %v10731 = vmul.f32 %v10723, %v10723
  %10740 = vrot.lane.b32.xlu0 %v10724, 104
  %v10741 = vpop.permute.xlu0 %10740
  %10742 = vrot.lane.b32.xlu0 %v10725, 104
  %v10743 = vpop.permute.xlu0 %10742
  %10744 = vrot.lane.b32.xlu0 %v10726, 104
  %v10745 = vpop.permute.xlu0 %10744
  %10746 = vrot.lane.b32.xlu0 %v10727, 104
  %v10747 = vpop.permute.xlu0 %10746
  %10748 = vrot.lane.b32.xlu0 %v10728, 104
  %v10749 = vpop.permute.xlu0 %10748
  %10750 = vrot.lane.b32.xlu0 %v10729, 104
  %v10751 = vpop.permute.xlu0 %10750
  %10752 = vrot.lane.b32.xlu0 %v10730, 104
  %v10753 = vpop.permute.xlu0 %10752
  %10754 = vrot.lane.b32.xlu0 %v10731, 104
  %v10755 = vpop.permute.xlu0 %10754
  %v10764 = vsel %vm401, %v10741, 0.0
  %10765 = vadd.xlane.f32.xlu0 %v10764
  %v10766 = vpop.xlane.xlu0 %10765
  %v10767 = vsel %vm401, %v10743, 0.0
  %10768 = vadd.xlane.f32.xlu0 %v10767
  %v10769 = vpop.xlane.xlu0 %10768
  %v10770 = vsel %vm401, %v10745, 0.0
  %10771 = vadd.xlane.f32.xlu0 %v10770
  %v10772 = vpop.xlane.xlu0 %10771
  %v10773 = vsel %vm401, %v10747, 0.0
  %10774 = vadd.xlane.f32.xlu0 %v10773
  %v10775 = vpop.xlane.xlu0 %10774
  %v10776 = vsel %vm401, %v10749, 0.0
  %10777 = vadd.xlane.f32.xlu0 %v10776
  %v10778 = vpop.xlane.xlu0 %10777
  %v10779 = vsel %vm401, %v10751, 0.0
  %10780 = vadd.xlane.f32.xlu0 %v10779
  %v10781 = vpop.xlane.xlu0 %10780
  %v10782 = vsel %vm401, %v10753, 0.0
  %10783 = vadd.xlane.f32.xlu0 %v10782
  %v10784 = vpop.xlane.xlu0 %10783
  %v10785 = vsel %vm401, %v10755, 0.0
  %10786 = vadd.xlane.f32.xlu0 %v10785
  %v10787 = vpop.xlane.xlu0 %10786
  %v10788 = vmul.f32 %v10766, %v9874
  %v10789 = vmul.f32 %v10769, %v9874
  %v10790 = vmul.f32 %v10772, %v9874
  %v10791 = vmul.f32 %v10775, %v9874
  %v10792 = vmul.f32 %v10778, %v9874
  %v10793 = vmul.f32 %v10781, %v9874
  %v10794 = vmul.f32 %v10784, %v9874
  %v10795 = vmul.f32 %v10787, %v9874
  %v10796 = vadd.f32 %v10788, 1e-06
  %v10797 = vadd.f32 %v10789, 1e-06
  %v10798 = vadd.f32 %v10790, 1e-06
  %v10799 = vadd.f32 %v10791, 1e-06
  %v10800 = vadd.f32 %v10792, 1e-06
  %v10801 = vadd.f32 %v10793, 1e-06
  %v10802 = vadd.f32 %v10794, 1e-06
  %v10803 = vadd.f32 %v10795, 1e-06
  %v10804 = vrsqrt.pop %v10796
  %v10805 = vrsqrt.pop %v10797
  %v10806 = vrsqrt.pop %v10798
  %v10807 = vrsqrt.pop %v10799
  %v10808 = vrsqrt.pop %v10800
  %v10809 = vrsqrt.pop %v10801
  %v10810 = vrsqrt.pop %v10802
  %v10811 = vrsqrt.pop %v10803
  %v10812 = vmul.f32 %v10716, %v10804
  %v10813 = vmul.f32 %v10717, %v10805
  %v10814 = vmul.f32 %v10718, %v10806
  %v10815 = vmul.f32 %v10719, %v10807
  %v10816 = vmul.f32 %v10720, %v10808
  %v10817 = vmul.f32 %v10721, %v10809
  %v10818 = vmul.f32 %v10722, %v10810
  %v10819 = vmul.f32 %v10723, %v10811
  %10820 = vrot.lane.b32.xlu0 %v10240, 24
  %v10821 = vpop.permute.xlu0 %10820
  %v10823 = vmul.f32 %v10812, %v10821
  %v10824 = vmul.f32 %v10813, %v10821
  %v10825 = vmul.f32 %v10814, %v10821
  %v10826 = vmul.f32 %v10815, %v10821
  %v10827 = vmul.f32 %v10816, %v10821
  %v10828 = vmul.f32 %v10817, %v10821
  %v10829 = vmul.f32 %v10818, %v10821
  %v10830 = vmul.f32 %v10819, %v10821
  %10831 = vrot.lane.b32.xlu0 %v10256, 24
  %v10832 = vpop.permute.xlu0 %10831
  %v10834 = vadd.f32 %v10823, %v10832
  %v10835 = vadd.f32 %v10824, %v10832
  %v10836 = vadd.f32 %v10825, %v10832
  %v10837 = vadd.f32 %v10826, %v10832
  %v10838 = vadd.f32 %v10827, %v10832
  %v10839 = vadd.f32 %v10828, %v10832
  %v10840 = vadd.f32 %v10829, %v10832
  %v10841 = vadd.f32 %v10830, %v10832
  %v10842 = vsel %vm401, %v9963, %v10260
  %v10843 = vsel %vm401, %v9964, %v10261
  %v10844 = vsel %vm401, %v9965, %v10262
  %v10845 = vsel %vm401, %v9966, %v10263
  %v10846 = vsel %vm401, %v9967, %v10264
  %v10847 = vsel %vm401, %v9968, %v10265
  %v10848 = vsel %vm401, %v9969, %v10266
  %v10849 = vsel %vm401, %v9970, %v10267
  %v10850 = vsel %vm4128, %v10842, %v10547
  %v10851 = vsel %vm4128, %v10843, %v10548
  %v10852 = vsel %vm4128, %v10844, %v10549
  %v10853 = vsel %vm4128, %v10845, %v10550
  %v10854 = vsel %vm4128, %v10846, %v10551
  %v10855 = vsel %vm4128, %v10847, %v10552
  %v10856 = vsel %vm4128, %v10848, %v10553
  %v10857 = vsel %vm4128, %v10849, %v10554
  %v10858 = vsel %vm4137, %v10850, %v10834
  %v10859 = vsel %vm4137, %v10851, %v10835
  %v10860 = vsel %vm4137, %v10852, %v10836
  %v10861 = vsel %vm4137, %v10853, %v10837
  %v10862 = vsel %vm4137, %v10854, %v10838
  %v10863 = vsel %vm4137, %v10855, %v10839
  %v10864 = vsel %vm4137, %v10856, %v10840
  %v10865 = vsel %vm4137, %v10857, %v10841
  %vm10866 = vcmask 253952
  %10867 = vst.msk [vmem:[%s59] sm:$0x1] %vm10866, %v10858
  %10868 = vst.msk [vmem:[%s59 + $0x1] sm:$0x1] %vm10866, %v10859
  %10869 = vst.msk [vmem:[%s59 + $0x2] sm:$0x1] %vm10866, %v10860
  %10870 = vst.msk [vmem:[%s59 + $0x3] sm:$0x1] %vm10866, %v10861
  %10871 = vst.msk [vmem:[%s59 + $0x4] sm:$0x1] %vm10866, %v10862
  %10872 = vst.msk [vmem:[%s59 + $0x5] sm:$0x1] %vm10866, %v10863
  %10873 = vst.msk [vmem:[%s59 + $0x6] sm:$0x1] %vm10866, %v10864
  %10874 = vst.msk [vmem:[%s59 + $0x7] sm:$0x1] %vm10866, %v10865
  %v10875 = vlaneseq
  %v10876 = vshrl.u32 %v10875, 7
  %v10877 = vsub.s32 0, %v10876
  %v10878 = vrot.slane %v10858, %v10877
  %v10879 = vlaneseq
  %v10880 = vshrl.u32 %v10879, 7
  %v10881 = vsub.s32 0, %v10880
  %v10882 = vrot.slane %v10859, %v10881
  %v10883 = vlaneseq
  %v10884 = vshrl.u32 %v10883, 7
  %v10885 = vsub.s32 0, %v10884
  %v10886 = vrot.slane %v10860, %v10885
  %v10887 = vlaneseq
  %v10888 = vshrl.u32 %v10887, 7
  %v10889 = vsub.s32 0, %v10888
  %v10890 = vrot.slane %v10861, %v10889
  %v10891 = vlaneseq
  %v10892 = vshrl.u32 %v10891, 7
  %v10893 = vsub.s32 0, %v10892
  %v10894 = vrot.slane %v10862, %v10893
  %v10895 = vlaneseq
  %v10896 = vshrl.u32 %v10895, 7
  %v10897 = vsub.s32 0, %v10896
  %v10898 = vrot.slane %v10863, %v10897
  %v10899 = vlaneseq
  %v10900 = vshrl.u32 %v10899, 7
  %v10901 = vsub.s32 0, %v10900
  %v10902 = vrot.slane %v10864, %v10901
  %v10903 = vlaneseq
  %v10904 = vshrl.u32 %v10903, 7
  %v10905 = vsub.s32 0, %v10904
  %v10906 = vrot.slane %v10865, %v10905
  %v10907 = vadd.f32 %v9327, %v10878
  %v10908 = vadd.f32 %v9328, %v10882
  %v10909 = vadd.f32 %v9329, %v10886
  %v10910 = vadd.f32 %v9330, %v10890
  %v10911 = vadd.f32 %v9331, %v10894
  %v10912 = vadd.f32 %v9332, %v10898
  %v10913 = vadd.f32 %v9333, %v10902
  %v10914 = vadd.f32 %v9334, %v10906
  %v10915 = vld [vmem:[%s47] sm:$0x1]
  %v10916 = vld [vmem:[%s49] sm:$0x1]
  %v10917 = vsel %vm152, %v10907, 0.0
  %10918 = vadd.xlane.f32.xlu0 %v10917
  %v10919 = vpop.xlane.xlu0 %10918
  %v10920 = vsel %vm152, %v10908, 0.0
  %10921 = vadd.xlane.f32.xlu0 %v10920
  %v10922 = vpop.xlane.xlu0 %10921
  %v10923 = vsel %vm152, %v10909, 0.0
  %10924 = vadd.xlane.f32.xlu0 %v10923
  %v10925 = vpop.xlane.xlu0 %10924
  %v10926 = vsel %vm152, %v10910, 0.0
  %10927 = vadd.xlane.f32.xlu0 %v10926
  %v10928 = vpop.xlane.xlu0 %10927
  %v10929 = vsel %vm152, %v10911, 0.0
  %10930 = vadd.xlane.f32.xlu0 %v10929
  %v10931 = vpop.xlane.xlu0 %10930
  %v10932 = vsel %vm152, %v10912, 0.0
  %10933 = vadd.xlane.f32.xlu0 %v10932
  %v10934 = vpop.xlane.xlu0 %10933
  %v10935 = vsel %vm152, %v10913, 0.0
  %10936 = vadd.xlane.f32.xlu0 %v10935
  %v10937 = vpop.xlane.xlu0 %10936
  %v10938 = vsel %vm152, %v10914, 0.0
  %10939 = vadd.xlane.f32.xlu0 %v10938
  %v10940 = vpop.xlane.xlu0 %10939
  %v10941 = vmul.f32 %v10919, %v177
  %v10942 = vmul.f32 %v10922, %v177
  %v10943 = vmul.f32 %v10925, %v177
  %v10944 = vmul.f32 %v10928, %v177
  %v10945 = vmul.f32 %v10931, %v177
  %v10946 = vmul.f32 %v10934, %v177
  %v10947 = vmul.f32 %v10937, %v177
  %v10948 = vmul.f32 %v10940, %v177
  %v10949 = vsub.f32 %v10907, %v10941
  %v10950 = vsub.f32 %v10908, %v10942
  %v10951 = vsub.f32 %v10909, %v10943
  %v10952 = vsub.f32 %v10910, %v10944
  %v10953 = vsub.f32 %v10911, %v10945
  %v10954 = vsub.f32 %v10912, %v10946
  %v10955 = vsub.f32 %v10913, %v10947
  %v10956 = vsub.f32 %v10914, %v10948
  %v10957 = vmul.f32 %v10949, %v10949
  %v10958 = vmul.f32 %v10950, %v10950
  %v10959 = vmul.f32 %v10951, %v10951
  %v10960 = vmul.f32 %v10952, %v10952
  %v10961 = vmul.f32 %v10953, %v10953
  %v10962 = vmul.f32 %v10954, %v10954
  %v10963 = vmul.f32 %v10955, %v10955
  %v10964 = vmul.f32 %v10956, %v10956
  %v10965 = vsel %vm152, %v10957, 0.0
  %10966 = vadd.xlane.f32.xlu0 %v10965
  %v10967 = vpop.xlane.xlu0 %10966
  %v10968 = vsel %vm152, %v10958, 0.0
  %10969 = vadd.xlane.f32.xlu0 %v10968
  %v10970 = vpop.xlane.xlu0 %10969
  %v10971 = vsel %vm152, %v10959, 0.0
  %10972 = vadd.xlane.f32.xlu0 %v10971
  %v10973 = vpop.xlane.xlu0 %10972
  %v10974 = vsel %vm152, %v10960, 0.0
  %10975 = vadd.xlane.f32.xlu0 %v10974
  %v10976 = vpop.xlane.xlu0 %10975
  %v10977 = vsel %vm152, %v10961, 0.0
  %10978 = vadd.xlane.f32.xlu0 %v10977
  %v10979 = vpop.xlane.xlu0 %10978
  %v10980 = vsel %vm152, %v10962, 0.0
  %10981 = vadd.xlane.f32.xlu0 %v10980
  %v10982 = vpop.xlane.xlu0 %10981
  %v10983 = vsel %vm152, %v10963, 0.0
  %10984 = vadd.xlane.f32.xlu0 %v10983
  %v10985 = vpop.xlane.xlu0 %10984
  %v10986 = vsel %vm152, %v10964, 0.0
  %10987 = vadd.xlane.f32.xlu0 %v10986
  %v10988 = vpop.xlane.xlu0 %10987
  %v10989 = vmul.f32 %v10967, %v177
  %v10990 = vmul.f32 %v10970, %v177
  %v10991 = vmul.f32 %v10973, %v177
  %v10992 = vmul.f32 %v10976, %v177
  %v10993 = vmul.f32 %v10979, %v177
  %v10994 = vmul.f32 %v10982, %v177
  %v10995 = vmul.f32 %v10985, %v177
  %v10996 = vmul.f32 %v10988, %v177
  %v10997 = vadd.f32 %v10989, 1e-06
  %v10998 = vadd.f32 %v10990, 1e-06
  %v10999 = vadd.f32 %v10991, 1e-06
  %v11000 = vadd.f32 %v10992, 1e-06
  %v11001 = vadd.f32 %v10993, 1e-06
  %v11002 = vadd.f32 %v10994, 1e-06
  %v11003 = vadd.f32 %v10995, 1e-06
  %v11004 = vadd.f32 %v10996, 1e-06
  %v11005 = vrsqrt.pop %v10997
  %v11006 = vrsqrt.pop %v10998
  %v11007 = vrsqrt.pop %v10999
  %v11008 = vrsqrt.pop %v11000
  %v11009 = vrsqrt.pop %v11001
  %v11010 = vrsqrt.pop %v11002
  %v11011 = vrsqrt.pop %v11003
  %v11012 = vrsqrt.pop %v11004
  %v11013 = vmul.f32 %v10949, %v11005
  %v11014 = vmul.f32 %v10950, %v11006
  %v11015 = vmul.f32 %v10951, %v11007
  %v11016 = vmul.f32 %v10952, %v11008
  %v11017 = vmul.f32 %v10953, %v11009
  %v11018 = vmul.f32 %v10954, %v11010
  %v11019 = vmul.f32 %v10955, %v11011
  %v11020 = vmul.f32 %v10956, %v11012
  %v11022 = vlaneseq
  %v11023 = vshrl.u32 %v11022, 7
  %v11024 = vsub.s32 0, %v11023
  %v11025 = vrot.slane %v10915, %v11024
  %v11027 = vmul.f32 %v11013, %v11025
  %v11028 = vmul.f32 %v11014, %v11025
  %v11029 = vmul.f32 %v11015, %v11025
  %v11030 = vmul.f32 %v11016, %v11025
  %v11031 = vmul.f32 %v11017, %v11025
  %v11032 = vmul.f32 %v11018, %v11025
  %v11033 = vmul.f32 %v11019, %v11025
  %v11034 = vmul.f32 %v11020, %v11025
  %v11036 = vlaneseq
  %v11037 = vshrl.u32 %v11036, 7
  %v11038 = vsub.s32 0, %v11037
  %v11039 = vrot.slane %v10916, %v11038
  %v11041 = vadd.f32 %v11027, %v11039
  %v11042 = vadd.f32 %v11028, %v11039
  %v11043 = vadd.f32 %v11029, %v11039
  %v11044 = vadd.f32 %v11030, %v11039
  %v11045 = vadd.f32 %v11031, %v11039
  %v11046 = vadd.f32 %v11032, %v11039
  %v11047 = vadd.f32 %v11033, %v11039
  %v11048 = vadd.f32 %v11034, %v11039
  %v11049 = vpack.c.bf16 %v11042, %v11041
  %v11050 = vpack.c.bf16 %v11044, %v11043
  %v11051 = vpack.c.bf16 %v11046, %v11045
  %v11052 = vpack.c.bf16 %v11048, %v11047
  %v11053 = vld [vmem:[%s51] sm:$0xf]
  %v11054 = vld [vmem:[%s51 + $0x4] sm:$0xf]
  %v11055 = vld [vmem:[%s51 + $0x8] sm:$0xf]
  %v11056 = vld [vmem:[%s51 + $0xc] sm:$0xf]
  %v11057 = vld [vmem:[%s53] sm:$0x1]
  %v11059 = vlaneseq
  %v11060 = vshrl.u32 %v11059, 7
  %v11061 = vsub.s32 0, %v11060
  %v11062 = vrot.slane %v11057, %v11061
  %v11068 = vunpack.c.l.b16 %v11053
  %v11069 = vunpack.c.l.b16 %v11054
  %v11070 = vunpack.c.l.b16 %v11055
  %v11071 = vunpack.c.l.b16 %v11056
  %v11072 = vpack.c.b16 %v11069, %v11068
  %v11073 = vpack.c.b16 %v11071, %v11070
  %v11077 = vsel %vm152, %v11049, 0
  %v11080 = vsel %vm152, %v11050, 0
  %v11083 = vsel %vm152, %v11051, 0
  %v11086 = vsel %vm152, %v11052, 0
  %11088 = vmatprep.subr.bf16.mxu0 0
  %11089 = vmatpush1.bf16.msra.mxu0 %v11072
  %11090 = vmatprep.subr.bf16.mxu0 0
  %11091 = vmatpush1.bf16.msra.mxu0 %v11073
  %11092 = vmatprep.subr.bf16.mxu0 0
  %11093 = vmatpush1.bf16.msra.mxu0 0
  %11094 = vmatprep.subr.bf16.mxu0 0
  %11095 = vmatpush1.bf16.msra.mxu0 0
  %11096 = vmatprep.subr.bf16.mxu0 0
  %11097 = vmatpush1.bf16.msra.mxu0 0
  %11098 = vmatprep.subr.bf16.mxu0 0
  %11099 = vmatpush1.bf16.msra.mxu0 0
  %11100 = vmatprep.subr.bf16.mxu0 0
  %11101 = vmatpush1.bf16.msra.mxu0 0
  %11102 = vmatprep.subr.bf16.mxu0 0
  %11103 = vmatpush1.bf16.msra.mxu0 0
  %11104 = vmatprep.subr.bf16.mxu0 0
  %11105 = vmatpush1.bf16.msra.mxu0 0
  %11106 = vmatprep.subr.bf16.mxu0 0
  %11107 = vmatpush1.bf16.msra.mxu0 0
  %11108 = vmatprep.subr.bf16.mxu0 0
  %11109 = vmatpush1.bf16.msra.mxu0 0
  %11110 = vmatprep.subr.bf16.mxu0 0
  %11111 = vmatpush1.bf16.msra.mxu0 0
  %11112 = vmatprep.subr.bf16.mxu0 0
  %11113 = vmatpush1.bf16.msra.mxu0 0
  %11114 = vmatprep.subr.bf16.mxu0 0
  %11115 = vmatpush1.bf16.msra.mxu0 0
  %11116 = vmatprep.subr.bf16.mxu0 0
  %11117 = vmatpush1.bf16.msra.mxu0 0
  %11118 = vmatprep.subr.bf16.mxu0 0
  %11119 = vmatpush1.bf16.msra.mxu0 0
  %11120 = vmatprep.mubr.bf16.mxu0 0
  %11121 = vmatmul.mubr.bf16.gmra.mrb[0].mxu0 %v11077
  %v11122 = vpop.f32.mrb[0].mxu0
  %v11123 = vadd.f32 %v11062, %v11122
  %v11124 = vpop.f32.mrb[0].mxu0
  %v11125 = vpop.f32.mrb[0].mxu0
  %v11126 = vadd.f32 %v11062, %v11125
  %v11127 = vpop.f32.mrb[0].mxu0
  %11128 = vmatprep.mubr.bf16.mxu0 0
  %11129 = vmatmul.mubr.bf16.gmra.mrb[0].mxu0 %v11080
  %v11130 = vpop.f32.mrb[0].mxu0
  %v11131 = vadd.f32 %v11062, %v11130
  %v11132 = vpop.f32.mrb[0].mxu0
  %v11133 = vpop.f32.mrb[0].mxu0
  %v11134 = vadd.f32 %v11062, %v11133
  %v11135 = vpop.f32.mrb[0].mxu0
  %11136 = vmatprep.mubr.bf16.mxu0 0
  %11137 = vmatmul.mubr.bf16.gmra.mrb[0].mxu0 %v11083
  %v11138 = vpop.f32.mrb[0].mxu0
  %v11139 = vadd.f32 %v11062, %v11138
  %v11140 = vpop.f32.mrb[0].mxu0
  %v11141 = vpop.f32.mrb[0].mxu0
  %v11142 = vadd.f32 %v11062, %v11141
  %v11143 = vpop.f32.mrb[0].mxu0
  %11144 = vmatprep.mubr.bf16.mxu0 0
  %11145 = vmatmul.mubr.bf16.gmra.mrb[0].mxu0 %v11086
  %v11146 = vpop.f32.mrb[0].mxu0
  %v11147 = vadd.f32 %v11062, %v11146
  %v11148 = vpop.f32.mrb[0].mxu0
  %v11149 = vpop.f32.mrb[0].mxu0
  %v11150 = vadd.f32 %v11062, %v11149
  %v11151 = vpop.f32.mrb[0].mxu0
  %11152 = vdwg.mxu0
  %v11153 = vmul.f32 %v11123, 0.5
  %v11154 = vmul.f32 %v11126, 0.5
  %v11155 = vmul.f32 %v11131, 0.5
  %v11156 = vmul.f32 %v11134, 0.5
  %v11157 = vmul.f32 %v11139, 0.5
  %v11158 = vmul.f32 %v11142, 0.5
  %v11159 = vmul.f32 %v11147, 0.5
  %v11160 = vmul.f32 %v11150, 0.5
  %v11161 = vmul.f32 %v11123, 0.044715
  %v11162 = vmul.f32 %v11126, 0.044715
  %v11163 = vmul.f32 %v11131, 0.044715
  %v11164 = vmul.f32 %v11134, 0.044715
  %v11165 = vmul.f32 %v11139, 0.044715
  %v11166 = vmul.f32 %v11142, 0.044715
  %v11167 = vmul.f32 %v11147, 0.044715
  %v11168 = vmul.f32 %v11150, 0.044715
  %v11169 = vmul.f32 %v11161, %v11123
  %v11170 = vmul.f32 %v11162, %v11126
  %v11171 = vmul.f32 %v11163, %v11131
  %v11172 = vmul.f32 %v11164, %v11134
  %v11173 = vmul.f32 %v11165, %v11139
  %v11174 = vmul.f32 %v11166, %v11142
  %v11175 = vmul.f32 %v11167, %v11147
  %v11176 = vmul.f32 %v11168, %v11150
  %v11177 = vmul.f32 %v11169, %v11123
  %v11178 = vmul.f32 %v11170, %v11126
  %v11179 = vmul.f32 %v11171, %v11131
  %v11180 = vmul.f32 %v11172, %v11134
  %v11181 = vmul.f32 %v11173, %v11139
  %v11182 = vmul.f32 %v11174, %v11142
  %v11183 = vmul.f32 %v11175, %v11147
  %v11184 = vmul.f32 %v11176, %v11150
  %v11185 = vadd.f32 %v11123, %v11177
  %v11186 = vadd.f32 %v11126, %v11178
  %v11187 = vadd.f32 %v11131, %v11179
  %v11188 = vadd.f32 %v11134, %v11180
  %v11189 = vadd.f32 %v11139, %v11181
  %v11190 = vadd.f32 %v11142, %v11182
  %v11191 = vadd.f32 %v11147, %v11183
  %v11192 = vadd.f32 %v11150, %v11184
  %v11193 = vmul.f32 %v11185, 0.7978846
  %v11194 = vmul.f32 %v11186, 0.7978846
  %v11195 = vmul.f32 %v11187, 0.7978846
  %v11196 = vmul.f32 %v11188, 0.7978846
  %v11197 = vmul.f32 %v11189, 0.7978846
  %v11198 = vmul.f32 %v11190, 0.7978846
  %v11199 = vmul.f32 %v11191, 0.7978846
  %v11200 = vmul.f32 %v11192, 0.7978846
  %v11201 = vtanh.pop %v11193
  %v11202 = vtanh.pop %v11194
  %v11203 = vtanh.pop %v11195
  %v11204 = vtanh.pop %v11196
  %v11205 = vtanh.pop %v11197
  %v11206 = vtanh.pop %v11198
  %v11207 = vtanh.pop %v11199
  %v11208 = vtanh.pop %v11200
  %v11209 = vadd.f32 %v11201, 1.0
  %v11210 = vadd.f32 %v11202, 1.0
  %v11211 = vadd.f32 %v11203, 1.0
  %v11212 = vadd.f32 %v11204, 1.0
  %v11213 = vadd.f32 %v11205, 1.0
  %v11214 = vadd.f32 %v11206, 1.0
  %v11215 = vadd.f32 %v11207, 1.0
  %v11216 = vadd.f32 %v11208, 1.0
  %v11217 = vmul.f32 %v11153, %v11209
  %v11218 = vmul.f32 %v11154, %v11210
  %v11219 = vmul.f32 %v11155, %v11211
  %v11220 = vmul.f32 %v11156, %v11212
  %v11221 = vmul.f32 %v11157, %v11213
  %v11222 = vmul.f32 %v11158, %v11214
  %v11223 = vmul.f32 %v11159, %v11215
  %v11224 = vmul.f32 %v11160, %v11216
  %v11225 = vpack.c.bf16 %v11218, %v11217
  %v11226 = vpack.c.bf16 %v11220, %v11219
  %v11227 = vpack.c.bf16 %v11222, %v11221
  %v11228 = vpack.c.bf16 %v11224, %v11223
  %v11229 = vld [vmem:[%s55] sm:$0xf]
  %v11230 = vld [vmem:[%s55 + $0x4] sm:$0xf]
  %v11231 = vld [vmem:[%s55 + $0x8] sm:$0xf]
  %v11232 = vld [vmem:[%s55 + $0xc] sm:$0xf]
  %v11233 = vld [vmem:[%s55 + $0x10] sm:$0xf]
  %v11234 = vld [vmem:[%s55 + $0x14] sm:$0xf]
  %v11235 = vld [vmem:[%s55 + $0x18] sm:$0xf]
  %v11236 = vld [vmem:[%s55 + $0x1c] sm:$0xf]
  %v11237 = vld [vmem:[%s57] sm:$0x1]
  %v11239 = vlaneseq
  %v11240 = vshrl.u32 %v11239, 7
  %v11241 = vsub.s32 0, %v11240
  %v11242 = vrot.slane %v11237, %v11241
  %v11252 = vunpack.c.l.b16 %v11229
  %v11253 = vunpack.c.l.b16 %v11230
  %v11254 = vunpack.c.l.b16 %v11231
  %v11255 = vunpack.c.l.b16 %v11232
  %v11256 = vunpack.c.l.b16 %v11233
  %v11257 = vunpack.c.l.b16 %v11234
  %v11258 = vunpack.c.l.b16 %v11235
  %v11259 = vunpack.c.l.b16 %v11236
  %v11260 = vpack.c.b16 %v11253, %v11252
  %v11261 = vpack.c.b16 %v11255, %v11254
  %v11262 = vpack.c.b16 %v11257, %v11256
  %v11263 = vpack.c.b16 %v11259, %v11258
  %v11269 = vsel %vm4611, %v11225, 0
  %v11272 = vsel %vm4611, %v11226, 0
  %v11275 = vsel %vm4611, %v11227, 0
  %v11278 = vsel %vm4611, %v11228, 0
  %11280 = vmatprep.subr.bf16.mxu0 0
  %11281 = vmatpush1.bf16.msra.mxu0 %v11260
  %11282 = vmatprep.subr.bf16.mxu0 0
  %11283 = vmatpush1.bf16.msra.mxu0 %v11261
  %11284 = vmatprep.subr.bf16.mxu0 0
  %11285 = vmatpush1.bf16.msra.mxu0 %v11262
  %11286 = vmatprep.subr.bf16.mxu0 0
  %11287 = vmatpush1.bf16.msra.mxu0 %v11263
  %11288 = vmatprep.subr.bf16.mxu0 0
  %11289 = vmatpush1.bf16.msra.mxu0 0
  %11290 = vmatprep.subr.bf16.mxu0 0
  %11291 = vmatpush1.bf16.msra.mxu0 0
  %11292 = vmatprep.subr.bf16.mxu0 0
  %11293 = vmatpush1.bf16.msra.mxu0 0
  %11294 = vmatprep.subr.bf16.mxu0 0
  %11295 = vmatpush1.bf16.msra.mxu0 0
  %11296 = vmatprep.subr.bf16.mxu0 0
  %11297 = vmatpush1.bf16.msra.mxu0 0
  %11298 = vmatprep.subr.bf16.mxu0 0
  %11299 = vmatpush1.bf16.msra.mxu0 0
  %11300 = vmatprep.subr.bf16.mxu0 0
  %11301 = vmatpush1.bf16.msra.mxu0 0
  %11302 = vmatprep.subr.bf16.mxu0 0
  %11303 = vmatpush1.bf16.msra.mxu0 0
  %11304 = vmatprep.subr.bf16.mxu0 0
  %11305 = vmatpush1.bf16.msra.mxu0 0
  %11306 = vmatprep.subr.bf16.mxu0 0
  %11307 = vmatpush1.bf16.msra.mxu0 0
  %11308 = vmatprep.subr.bf16.mxu0 0
  %11309 = vmatpush1.bf16.msra.mxu0 0
  %11310 = vmatprep.subr.bf16.mxu0 0
  %11311 = vmatpush1.bf16.msra.mxu0 0
  %11312 = vmatprep.mubr.bf16.mxu0 0
  %11313 = vmatmul.mubr.bf16.gmra.mrb[0].mxu0 %v11269
  %v11314 = vpop.f32.mrb[0].mxu0
  %v11315 = vadd.f32 %v11242, %v11314
  %v11316 = vpop.f32.mrb[0].mxu0
  %v11317 = vpop.f32.mrb[0].mxu0
  %v11318 = vadd.f32 %v11242, %v11317
  %v11319 = vpop.f32.mrb[0].mxu0
  %11320 = vmatprep.mubr.bf16.mxu0 0
  %11321 = vmatmul.mubr.bf16.gmra.mrb[0].mxu0 %v11272
  %v11322 = vpop.f32.mrb[0].mxu0
  %v11323 = vadd.f32 %v11242, %v11322
  %v11324 = vpop.f32.mrb[0].mxu0
  %v11325 = vpop.f32.mrb[0].mxu0
  %v11326 = vadd.f32 %v11242, %v11325
  %v11327 = vpop.f32.mrb[0].mxu0
  %11328 = vmatprep.mubr.bf16.mxu0 0
  %11329 = vmatmul.mubr.bf16.gmra.mrb[0].mxu0 %v11275
  %v11330 = vpop.f32.mrb[0].mxu0
  %v11331 = vadd.f32 %v11242, %v11330
  %v11332 = vpop.f32.mrb[0].mxu0
  %v11333 = vpop.f32.mrb[0].mxu0
  %v11334 = vadd.f32 %v11242, %v11333
  %v11335 = vpop.f32.mrb[0].mxu0
  %11336 = vmatprep.mubr.bf16.mxu0 0
  %11337 = vmatmul.mubr.bf16.gmra.mrb[0].mxu0 %v11278
  %v11338 = vpop.f32.mrb[0].mxu0
  %v11339 = vadd.f32 %v11242, %v11338
  %v11340 = vpop.f32.mrb[0].mxu0
  %v11341 = vpop.f32.mrb[0].mxu0
  %v11342 = vadd.f32 %v11242, %v11341
  %v11343 = vpop.f32.mrb[0].mxu0
  %11344 = vdwg.mxu0
  %v11345 = vadd.f32 %v11315, %v10907
  %v11346 = vadd.f32 %v11318, %v10908
  %v11347 = vadd.f32 %v11323, %v10909
  %v11348 = vadd.f32 %v11326, %v10910
  %v11349 = vadd.f32 %v11331, %v10911
  %v11350 = vadd.f32 %v11334, %v10912
  %v11351 = vadd.f32 %v11339, %v10913
  %v11352 = vadd.f32 %v11342, %v10914
  %11354 = vset.pattern.permute.xlu0 0
  %11355 = vperm.xlu0 %11354, %v142
  %v11356 = vpop.permute.xlu0 %11355
  %11359 = vset.pattern.permute.xlu0 0
  %11360 = vperm.xlu0 %11359, %v143
  %v11361 = vpop.permute.xlu0 %11360
  %11364 = vset.pattern.permute.xlu0 0
  %11365 = vperm.xlu0 %11364, %v144
  %v11366 = vpop.permute.xlu0 %11365
  %11369 = vset.pattern.permute.xlu0 0
  %11370 = vperm.xlu0 %11369, %v145
  %v11371 = vpop.permute.xlu0 %11370
  %11374 = vset.pattern.permute.xlu0 0
  %11375 = vperm.xlu0 %11374, %v146
  %v11376 = vpop.permute.xlu0 %11375
  %11379 = vset.pattern.permute.xlu0 0
  %11380 = vperm.xlu0 %11379, %v147
  %v11381 = vpop.permute.xlu0 %11380
  %11384 = vset.pattern.permute.xlu0 0
  %11385 = vperm.xlu0 %11384, %v148
  %v11386 = vpop.permute.xlu0 %11385
  %11389 = vset.pattern.permute.xlu0 0
  %11390 = vperm.xlu0 %11389, %v149
  %v11391 = vpop.permute.xlu0 %11390
  %v11393 = vmul.f32 %v11345, %v11356
  %v11394 = vmul.f32 %v11346, %v11361
  %v11395 = vmul.f32 %v11347, %v11366
  %v11396 = vmul.f32 %v11348, %v11371
  %v11397 = vmul.f32 %v11349, %v11376
  %v11398 = vmul.f32 %v11350, %v11381
  %v11399 = vmul.f32 %v11351, %v11386
  %v11400 = vmul.f32 %v11352, %v11391
  %11401 = vst.msk [vmem:[%s61] sm:$0xff] %vm152, %v11393
  %11402 = vst.msk [vmem:[%s61 + $0x8] sm:$0xff] %vm152, %v11394
  %11403 = vst.msk [vmem:[%s61 + $0x10] sm:$0xff] %vm152, %v11395
  %11404 = vst.msk [vmem:[%s61 + $0x18] sm:$0xff] %vm152, %v11396
  %11405 = vst.msk [vmem:[%s61 + $0x20] sm:$0xff] %vm152, %v11397
  %11406 = vst.msk [vmem:[%s61 + $0x28] sm:$0xff] %vm152, %v11398
  %11407 = vst.msk [vmem:[%s61 + $0x30] sm:$0xff] %vm152, %v11399
  %11408 = vst.msk [vmem:[%s61 + $0x38] sm:$0xff] %vm152, %v11400
  // Predicated region
  $region118: #{new_transformer_encoder_forward.1} parent=0 // pred_check
    _
  $region119: #{new_transformer_encoder_forward.1} parent=0 // pred_check_branch
    %11410 = sbr.rel (0) target = $region121
  $region120: #{new_transformer_encoder_forward.1} parent=0 // pred_region
    _
  $region121: #{new_transformer_encoder_forward.1} parent=0 // pred_fallthru
    _
  // Predicated region
  $region122: #{new_transformer_encoder_forward.1} parent=0 // pred_check
    _
  $region123: #{new_transformer_encoder_forward.1} parent=0 // pred_check_branch
    %11412 = sbr.rel (0) target = $region125
  $region124: #{new_transformer_encoder_forward.1} parent=0 // pred_region
    _
  $region125: #{new_transformer_encoder_forward.1} parent=0 // pred_fallthru
    _
  // Predicated region
  $region126: #{new_transformer_encoder_forward.1} parent=0 // pred_check
    _
  $region127: #{new_transformer_encoder_forward.1} parent=0 // pred_check_branch
    %11414 = sbr.rel (0) target = $region129
  $region128: #{new_transformer_encoder_forward.1} parent=0 // pred_region
    _
  $region129: #{new_transformer_encoder_forward.1} parent=0 // pred_fallthru
    _
  // Predicated region
  $region130: #{new_transformer_encoder_forward.1} parent=0 // pred_check
    _
  $region131: #{new_transformer_encoder_forward.1} parent=0 // pred_check_branch
    %11416 = sbr.rel (0) target = $region133
  $region132: #{new_transformer_encoder_forward.1} parent=0 // pred_region
    _
  $region133: #{new_transformer_encoder_forward.1} parent=0 // pred_fallthru
    _

</llo_original>
